<compile_context>
chip_gen: v5e
topology: v5e:2x2
jax: 0.10.0
libtpu: 0.0.40
codegen_flags: <defaults>
</compile_context>

<pallas_src>
import functools

import jax
import jax.numpy as jnp
import numpy as np
from jax.experimental import pallas as pl
from jax.experimental.pallas import tpu as pltpu


def _phase_slice(phases, modulus, start, length):
    """Gather samples of a per-row signal stored in polyphase form.

    `phases[t][:, a]` holds signal[modulus * a + t].  The returned array's
    column v equals signal[start + modulus * v] (zero where that index falls
    outside the stored signal).  `start` may be negative.  Only static Python
    arithmetic, contiguous lane slices and concatenation with zeros are used.
    """
    t = start % modulus
    base = (start - t) // modulus
    ph = phases[t]
    rows, n = ph.shape
    lo, hi = base, base + length
    lo_c, hi_c = max(lo, 0), min(hi, n)
    parts = []
    if lo_c > lo:
        parts.append(jnp.zeros((rows, lo_c - lo), ph.dtype))
    if hi_c > lo_c:
        parts.append(ph[:, lo_c:hi_c])
    if hi > hi_c:
        parts.append(jnp.zeros((rows, hi - hi_c), ph.dtype))
    return parts[0] if len(parts) == 1 else jnp.concatenate(parts, axis=1)


def _temporal_embedding_kernel(x12_ref, w1_ref, b1_ref, w2_ref, g_ref, bt_ref,
                               w3_ref, b3_ref, o_ref, *,
                               B, H, C, W1, Wy, Wp, W3, eps):
    f32 = jnp.float32
    BH = B * H

    x12v = x12_ref[...]                        # (12, B*H, T12)
    x12 = [x12v[r] for r in range(12)]         # 12 x (B*H, T12)
    w1 = w1_ref[...]                           # (C, 30)
    K1 = w1.shape[1]
    b1 = b1_ref[...]                           # (C, 1)
    w2 = w2_ref[...]                           # (C, H*C)
    gamma = g_ref[...]                         # (C, 1)
    beta = bt_ref[...]                         # (C, 1)
    w3 = w3_ref[...]                           # (C, K3*C)   (pool 1/20 folded in)
    K3 = w3.shape[1] // C
    b3 = b3_ref[...]                           # (C, 1)

    # Phase widths: conv1 output (length W1) and conv2 output (length Wy) are
    # kept split by (index mod 4); the pool output (length Wp) by parity.
    n1 = [(W1 - t + 3) // 4 for t in range(4)]
    m2 = [(Wy - t + 3) // 4 for t in range(4)]
    off2 = [0, m2[0], m2[0] + m2[1], m2[0] + m2[1] + m2[2]]
    LE = (Wp + 1) // 2
    LO = Wp // 2

    # ---- conv1: Conv2d(1, C, (1,30), stride=(1,3), pad=(0,10)) ---------------
    # Cin == 1 -> per-electrode temporal FIR: VPU shifted multiply-accumulate
    # over the 12-phase input (stride 3 x the downstream 4-phase split).
    x1_ph = []                                 # x1_ph[t]: (B*H, C, n1[t])
    for t in range(4):
        acc = jnp.zeros((BH, C, n1[t]), f32)
        for k in range(K1):
            tap = _phase_slice(x12, 12, 3 * t + k, n1[t])        # (B*H, n1[t])
            acc = acc + tap[:, None, :] * w1[None, :, k:k + 1]
        x1_ph.append(acc + b1[None, :, :])

    # ---- conv2: Conv2d(C, C, (H,1), pad=(0,5), bias=False) -------------------
    # Pure (electrode, channel) mixing.  All (batch, phase) blocks are
    # concatenated along the lane axis so a SINGLE lane-dense 2-D MXU matmul
    # handles the whole stage.  Flattened input row order is h*C + c, matching
    # the columns of w2_ref.
    blocks = []                                # B*4 blocks of (H*C, m2[t])
    for b in range(B):
        x1_b = [jnp.concatenate([x1_ph[t][b * H + h] for h in range(H)], axis=0)
                for t in range(4)]             # 4 x (H*C, n1[t])
        for t in range(4):
            blocks.append(_phase_slice(x1_b, 4, t - 5, m2[t]))
    xcat = jnp.concatenate(blocks, axis=1)                        # (H*C, B*Wy)
    y = jnp.dot(w2, xcat, preferred_element_type=f32)             # (C,   B*Wy)

    # ---- BatchNorm2d(C) (training-mode stats, biased var) + ReLU -------------
    # Single reduction over the concatenated block, folded into one per-channel
    # scale/shift.
    cnt = float(B * Wy)
    mu = jnp.sum(y, axis=1, keepdims=True) / cnt
    var = jnp.sum(jnp.square(y - mu), axis=1, keepdims=True) / cnt
    scale = gamma * jax.lax.rsqrt(var + eps)
    shift = beta - mu * scale
    yn = jnp.maximum(y * scale + shift, 0.0)                      # (C, B*Wy)

    # F.dropout(p=0.0) -> identity.
    # TODO(synk): stochastic dropout mask (PyTorch RNG) is not reproduced.

    # ---- AvgPool2d((1,20), stride=(1,2)) + conv3 im2col -----------------------
    # Pool is a plain 20-term VPU sum (the 1/20 is folded into w3 host-side);
    # conv3 columns for all batches are concatenated along lanes -> ONE matmul.
    cols = []                                  # B blocks of (K3*C, W3)
    for b in range(B):
        yr_b = [yn[:, b * Wy + off2[t]: b * Wy + off2[t] + m2[t]]
                for t in range(4)]             # 4 x (C, m2[t])
        pe = sum(_phase_slice(yr_b, 4, k, LE) for k in range(20))
        po = sum(_phase_slice(yr_b, 4, 2 + k, LO) for k in range(20))
        p_ph = [pe, po]                        # pool[2a] / pool[2a+1] (x 20)
        cols.append(jnp.concatenate(
            [_phase_slice(p_ph, 2, j - 4, W3) for j in range(K3)], axis=0))
    cols_all = jnp.concatenate(cols, axis=1)                      # (K3*C, B*W3)
    z = jnp.dot(w3, cols_all, preferred_element_type=f32) + b3    # (C,    B*W3)
    for b in range(B):
        o_ref[b] = z[:, b * W3:(b + 1) * W3]


def temporal_embedding(x, params, dropout_p=0.0, eps=1e-5):
    """Pallas forward of Temporal_Embedding.  x: (B, E, W) float -> (B, C, W3)."""
    del dropout_p  # TODO(synk): F.dropout with p>0 not reproduced (identity).
    B, H, W = x.shape
    C = params["w1"].shape[0]
    assert params["w2"].shape[2] == H, "conv2 kernel height must equal in_channels"

    W1 = (W + 2 * 10 - 30) // 3 + 1           # conv1: k=30, s=3, p=10
    Wy = W1 + 2 * 5                           # conv2: k=(H,1), p=(0,5)
    Wp = (Wy - 20) // 2 + 1                   # avgpool: k=20, s=2
    W3 = (Wp + 2 * 4 - 10) // 2 + 1           # conv3: k=10, s=2, p=4
    BH = B * H
    T12 = -(-(W + 20) // 12)                  # ceil((W + 20) / 12)

    # Host-side layout plumbing: apply the conv1 zero padding (+ alignment) and
    # de-interleave the time axis into 12 = 3*2*2 polyphase components so that
    # every strided access inside the kernel becomes a contiguous lane slice.
    x2 = x.reshape(BH, W).astype(jnp.float32)
    xpad = jnp.pad(x2, ((0, 0), (10, 10 + 12 * T12 - (W + 20))))
    x12 = jnp.transpose(xpad.reshape(BH, T12, 12), (2, 0, 1))     # (12, BH, T12)

    # Weight layout plumbing.
    w1m = params["w1"][:, 0, 0, :].astype(jnp.float32)            # (C, 30)
    b1 = params["b1"].reshape(C, 1).astype(jnp.float32)
    w2f = jnp.transpose(params["w2"][:, :, :, 0], (0, 2, 1)).reshape(
        C, H * C).astype(jnp.float32)                             # [co, h*C+ci]
    g = params["gamma"].reshape(C, 1).astype(jnp.float32)
    bt = params["beta"].reshape(C, 1).astype(jnp.float32)
    K3 = params["w3"].shape[2]
    # Fold the avg-pool's 1/20 into the conv3 weights (the pool output only
    # feeds conv3, which is linear in it); the kernel then just sums 20 taps.
    w3c = jnp.transpose(params["w3"] / 20.0, (0, 2, 1)).reshape(
        C, K3 * C).astype(jnp.float32)                            # [co, j*C+ci]
    b3 = params["b3"].reshape(C, 1).astype(jnp.float32)

    kernel = functools.partial(
        _temporal_embedding_kernel,
        B=B, H=H, C=C, W1=W1, Wy=Wy, Wp=Wp, W3=W3, eps=eps)

    vmem = lambda: pl.BlockSpec(memory_space=pltpu.MemorySpace.VMEM)
    args = (x12, w1m, b1, w2f, g, bt, w3c, b3)
    return pl.pallas_call(
        kernel,
        out_shape=jax.ShapeDtypeStruct((B, C, W3), jnp.float32),
        in_specs=[vmem() for _ in args],
        out_specs=vmem(),
    )(*args)


# ---------------------------------------------------------------------------
# Parameter init (PyTorch-like scales) and a pure-JAX reference for validation
# ---------------------------------------------------------------------------
def init_params(key, in_channels=4, out_channels=16):
    C, H = out_channels, in_channels
    ks = jax.random.split(key, 7)

    def u(k, shape, fan_in):
        b = 1.0 / float(np.sqrt(fan_in))
        return jax.random.uniform(k, shape, jnp.float32, -b, b)

    w1 = u(ks[0], (C, 1, 1, 30), 30)          # conv1 weight
    b1 = u(ks[1], (C,), 30)                   # conv1 bias
    w2 = u(ks[2], (C, C, H, 1), C * H)        # conv2 weight (no bias)
    w3 = u(ks[3], (C, C, 10), C * 10)         # conv3 weight
    b3 = u(ks[4], (C,), C * 10)               # conv3 bias
    gamma = 1.0 + 0.1 * jax.random.normal(ks[5], (C,), jnp.float32)
    beta = 0.1 * jax.random.normal(ks[6], (C,), jnp.float32)
    return dict(w1=w1, b1=b1, w2=w2, gamma=gamma, beta=beta, w3=w3, b3=b3)


def _ref_forward(x, params, eps=1e-5):
    HI = jax.lax.Precision.HIGHEST
    dn = ("NCHW", "OIHW", "NCHW")
    h = x[:, None, :, :].astype(jnp.float32)                      # (B, 1, E, W)
    h = jax.lax.conv_general_dilated(h, params["w1"], (1, 3), [(0, 0), (10, 10)],
                                     dimension_numbers=dn, precision=HI)
    h = h + params["b1"][None, :, None, None]
    h = jax.lax.conv_general_dilated(h, params["w2"], (1, 1), [(0, 0), (5, 5)],
                                     dimension_numbers=dn, precision=HI)
    mu = jnp.mean(h, axis=(0, 2, 3), keepdims=True)
    var = jnp.mean(jnp.square(h - mu), axis=(0, 2, 3), keepdims=True)
    h = (h - mu) / jnp.sqrt(var + eps)
    h = h * params["gamma"][None, :, None, None] + params["beta"][None, :, None, None]
    h = jnp.maximum(h, 0.0)
    h = jax.lax.reduce_window(h, 0.0, jax.lax.add,
                              (1, 1, 1, 20), (1, 1, 1, 2), "VALID") / 20.0
    h = h[:, :, 0, :]                                             # squeeze(2)
    h = jax.lax.conv_general_dilated(h[:, :, None, :],
                                     params["w3"][:, :, None, :], (1, 2),
                                     [(0, 0), (4, 4)],
                                     dimension_numbers=dn, precision=HI)[:, :, 0, :]
    return h + params["b3"][None, :, None]


if __name__ == "__main__":
    key = jax.random.PRNGKey(0)
    kx, kp = jax.random.split(key)

    B, in_channels, W = 2, 4, 250              # (batch, eeg electrodes, time)
    out_channels = 16
    x = jax.random.normal(kx, (B, in_channels, W), dtype=jnp.float32)
    params = init_params(kp, in_channels, out_channels)

    out = jax.block_until_ready(temporal_embedding(x, params, dropout_p=0.0))
    ref = jax.block_until_ready(_ref_forward(x, params))
    assert out.shape == ref.shape, (out.shape, ref.shape)

    # The kernel's conv2/conv3 matmuls use the TPU's default matmul precision
    # (single-pass bf16 MXU), while the reference runs at HIGHEST precision;
    # observed differences are O(1e-3), so a 1e-2 tolerance leaves ample margin
    # while still catching real bugs.
    np.testing.assert_allclose(np.asarray(out), np.asarray(ref),
                               rtol=1e-2, atol=1e-2)
    print("KERNEL_OK")
</pallas_src>

<mosaic_0001>
module attributes {stable_mosaic.version = 11 : i64} {
  func.func @_temporal_embedding_kernel(%arg0: memref<12x8x23xf32, #tpu.memory_space<vmem>>, %arg1: memref<16x30xf32, #tpu.memory_space<vmem>>, %arg2: memref<16x1xf32, #tpu.memory_space<vmem>>, %arg3: memref<16x64xf32, #tpu.memory_space<vmem>>, %arg4: memref<16x1xf32, #tpu.memory_space<vmem>>, %arg5: memref<16x1xf32, #tpu.memory_space<vmem>>, %arg6: memref<16x160xf32, #tpu.memory_space<vmem>>, %arg7: memref<16x1xf32, #tpu.memory_space<vmem>>, %arg8: memref<2x16x18xf32, #tpu.memory_space<vmem>>) attributes {dimension_semantics = [], scalar_prefetch = 0 : i64, scratch_operands = 0 : i64, tpu.core_type = #tpu.core_type<tc>} {
    %c0 = arith.constant 0 : index
    %c0_0 = arith.constant 0 : index
    %c0_1 = arith.constant 0 : index
    %0 = vector.load %arg0[%c0, %c0_0, %c0_1] : memref<12x8x23xf32, #tpu.memory_space<vmem>>, vector<12x8x23xf32>
    %1 = vector.extract_strided_slice %0 {offsets = [0, 0, 0], sizes = [1, 8, 23], strides = [1, 1, 1]} : vector<12x8x23xf32> to vector<1x8x23xf32>
    %2 = vector.shape_cast %1 : vector<1x8x23xf32> to vector<8x23xf32>
    %3 = vector.extract_strided_slice %0 {offsets = [1, 0, 0], sizes = [1, 8, 23], strides = [1, 1, 1]} : vector<12x8x23xf32> to vector<1x8x23xf32>
    %4 = vector.shape_cast %3 : vector<1x8x23xf32> to vector<8x23xf32>
    %5 = vector.extract_strided_slice %0 {offsets = [2, 0, 0], sizes = [1, 8, 23], strides = [1, 1, 1]} : vector<12x8x23xf32> to vector<1x8x23xf32>
    %6 = vector.shape_cast %5 : vector<1x8x23xf32> to vector<8x23xf32>
    %7 = vector.extract_strided_slice %0 {offsets = [3, 0, 0], sizes = [1, 8, 23], strides = [1, 1, 1]} : vector<12x8x23xf32> to vector<1x8x23xf32>
    %8 = vector.shape_cast %7 : vector<1x8x23xf32> to vector<8x23xf32>
    %9 = vector.extract_strided_slice %0 {offsets = [4, 0, 0], sizes = [1, 8, 23], strides = [1, 1, 1]} : vector<12x8x23xf32> to vector<1x8x23xf32>
    %10 = vector.shape_cast %9 : vector<1x8x23xf32> to vector<8x23xf32>
    %11 = vector.extract_strided_slice %0 {offsets = [5, 0, 0], sizes = [1, 8, 23], strides = [1, 1, 1]} : vector<12x8x23xf32> to vector<1x8x23xf32>
    %12 = vector.shape_cast %11 : vector<1x8x23xf32> to vector<8x23xf32>
    %13 = vector.extract_strided_slice %0 {offsets = [6, 0, 0], sizes = [1, 8, 23], strides = [1, 1, 1]} : vector<12x8x23xf32> to vector<1x8x23xf32>
    %14 = vector.shape_cast %13 : vector<1x8x23xf32> to vector<8x23xf32>
    %15 = vector.extract_strided_slice %0 {offsets = [7, 0, 0], sizes = [1, 8, 23], strides = [1, 1, 1]} : vector<12x8x23xf32> to vector<1x8x23xf32>
    %16 = vector.shape_cast %15 : vector<1x8x23xf32> to vector<8x23xf32>
    %17 = vector.extract_strided_slice %0 {offsets = [8, 0, 0], sizes = [1, 8, 23], strides = [1, 1, 1]} : vector<12x8x23xf32> to vector<1x8x23xf32>
    %18 = vector.shape_cast %17 : vector<1x8x23xf32> to vector<8x23xf32>
    %19 = vector.extract_strided_slice %0 {offsets = [9, 0, 0], sizes = [1, 8, 23], strides = [1, 1, 1]} : vector<12x8x23xf32> to vector<1x8x23xf32>
    %20 = vector.shape_cast %19 : vector<1x8x23xf32> to vector<8x23xf32>
    %21 = vector.extract_strided_slice %0 {offsets = [10, 0, 0], sizes = [1, 8, 23], strides = [1, 1, 1]} : vector<12x8x23xf32> to vector<1x8x23xf32>
    %22 = vector.shape_cast %21 : vector<1x8x23xf32> to vector<8x23xf32>
    %23 = vector.extract_strided_slice %0 {offsets = [11, 0, 0], sizes = [1, 8, 23], strides = [1, 1, 1]} : vector<12x8x23xf32> to vector<1x8x23xf32>
    %24 = vector.shape_cast %23 : vector<1x8x23xf32> to vector<8x23xf32>
    %c0_2 = arith.constant 0 : index
    %c0_3 = arith.constant 0 : index
    %25 = vector.load %arg1[%c0_2, %c0_3] : memref<16x30xf32, #tpu.memory_space<vmem>>, vector<16x30xf32>
    %c0_4 = arith.constant 0 : index
    %c0_5 = arith.constant 0 : index
    %26 = vector.load %arg2[%c0_4, %c0_5] : memref<16x1xf32, #tpu.memory_space<vmem>>, vector<16x1xf32>
    %c0_6 = arith.constant 0 : index
    %c0_7 = arith.constant 0 : index
    %27 = vector.load %arg3[%c0_6, %c0_7] : memref<16x64xf32, #tpu.memory_space<vmem>>, vector<16x64xf32>
    %c0_8 = arith.constant 0 : index
    %c0_9 = arith.constant 0 : index
    %28 = vector.load %arg4[%c0_8, %c0_9] : memref<16x1xf32, #tpu.memory_space<vmem>>, vector<16x1xf32>
    %c0_10 = arith.constant 0 : index
    %c0_11 = arith.constant 0 : index
    %29 = vector.load %arg5[%c0_10, %c0_11] : memref<16x1xf32, #tpu.memory_space<vmem>>, vector<16x1xf32>
    %c0_12 = arith.constant 0 : index
    %c0_13 = arith.constant 0 : index
    %30 = vector.load %arg6[%c0_12, %c0_13] : memref<16x160xf32, #tpu.memory_space<vmem>>, vector<16x160xf32>
    %c0_14 = arith.constant 0 : index
    %c0_15 = arith.constant 0 : index
    %31 = vector.load %arg7[%c0_14, %c0_15] : memref<16x1xf32, #tpu.memory_space<vmem>>, vector<16x1xf32>
    %cst = arith.constant 0.000000e+00 : f32
    %32 = vector.broadcast %cst : f32 to vector<8x16x21xf32>
    %33 = vector.extract_strided_slice %2 {offsets = [0, 0], sizes = [8, 21], strides = [1, 1]} : vector<8x23xf32> to vector<8x21xf32>
    %34 = vector.shape_cast %33 : vector<8x21xf32> to vector<8x1x21xf32>
    %35 = vector.extract_strided_slice %25 {offsets = [0, 0], sizes = [16, 1], strides = [1, 1]} : vector<16x30xf32> to vector<16x1xf32>
    %36 = vector.shape_cast %35 : vector<16x1xf32> to vector<1x16x1xf32>
    %37 = vector.broadcast %34 : vector<8x1x21xf32> to vector<8x16x21xf32>
    %38 = vector.broadcast %36 : vector<1x16x1xf32> to vector<8x16x21xf32>
    %39 = arith.mulf %37, %38 : vector<8x16x21xf32>
    %40 = arith.addf %32, %39 : vector<8x16x21xf32>
    %41 = vector.extract_strided_slice %4 {offsets = [0, 0], sizes = [8, 21], strides = [1, 1]} : vector<8x23xf32> to vector<8x21xf32>
    %42 = vector.shape_cast %41 : vector<8x21xf32> to vector<8x1x21xf32>
    %43 = vector.extract_strided_slice %25 {offsets = [0, 1], sizes = [16, 1], strides = [1, 1]} : vector<16x30xf32> to vector<16x1xf32>
    %44 = vector.shape_cast %43 : vector<16x1xf32> to vector<1x16x1xf32>
    %45 = vector.broadcast %42 : vector<8x1x21xf32> to vector<8x16x21xf32>
    %46 = vector.broadcast %44 : vector<1x16x1xf32> to vector<8x16x21xf32>
    %47 = arith.mulf %45, %46 : vector<8x16x21xf32>
    %48 = arith.addf %40, %47 : vector<8x16x21xf32>
    %49 = vector.extract_strided_slice %6 {offsets = [0, 0], sizes = [8, 21], strides = [1, 1]} : vector<8x23xf32> to vector<8x21xf32>
    %50 = vector.shape_cast %49 : vector<8x21xf32> to vector<8x1x21xf32>
    %51 = vector.extract_strided_slice %25 {offsets = [0, 2], sizes = [16, 1], strides = [1, 1]} : vector<16x30xf32> to vector<16x1xf32>
    %52 = vector.shape_cast %51 : vector<16x1xf32> to vector<1x16x1xf32>
    %53 = vector.broadcast %50 : vector<8x1x21xf32> to vector<8x16x21xf32>
    %54 = vector.broadcast %52 : vector<1x16x1xf32> to vector<8x16x21xf32>
    %55 = arith.mulf %53, %54 : vector<8x16x21xf32>
    %56 = arith.addf %48, %55 : vector<8x16x21xf32>
    %57 = vector.extract_strided_slice %8 {offsets = [0, 0], sizes = [8, 21], strides = [1, 1]} : vector<8x23xf32> to vector<8x21xf32>
    %58 = vector.shape_cast %57 : vector<8x21xf32> to vector<8x1x21xf32>
    %59 = vector.extract_strided_slice %25 {offsets = [0, 3], sizes = [16, 1], strides = [1, 1]} : vector<16x30xf32> to vector<16x1xf32>
    %60 = vector.shape_cast %59 : vector<16x1xf32> to vector<1x16x1xf32>
    %61 = vector.broadcast %58 : vector<8x1x21xf32> to vector<8x16x21xf32>
    %62 = vector.broadcast %60 : vector<1x16x1xf32> to vector<8x16x21xf32>
    %63 = arith.mulf %61, %62 : vector<8x16x21xf32>
    %64 = arith.addf %56, %63 : vector<8x16x21xf32>
    %65 = vector.extract_strided_slice %10 {offsets = [0, 0], sizes = [8, 21], strides = [1, 1]} : vector<8x23xf32> to vector<8x21xf32>
    %66 = vector.shape_cast %65 : vector<8x21xf32> to vector<8x1x21xf32>
    %67 = vector.extract_strided_slice %25 {offsets = [0, 4], sizes = [16, 1], strides = [1, 1]} : vector<16x30xf32> to vector<16x1xf32>
    %68 = vector.shape_cast %67 : vector<16x1xf32> to vector<1x16x1xf32>
    %69 = vector.broadcast %66 : vector<8x1x21xf32> to vector<8x16x21xf32>
    %70 = vector.broadcast %68 : vector<1x16x1xf32> to vector<8x16x21xf32>
    %71 = arith.mulf %69, %70 : vector<8x16x21xf32>
    %72 = arith.addf %64, %71 : vector<8x16x21xf32>
    %73 = vector.extract_strided_slice %12 {offsets = [0, 0], sizes = [8, 21], strides = [1, 1]} : vector<8x23xf32> to vector<8x21xf32>
    %74 = vector.shape_cast %73 : vector<8x21xf32> to vector<8x1x21xf32>
    %75 = vector.extract_strided_slice %25 {offsets = [0, 5], sizes = [16, 1], strides = [1, 1]} : vector<16x30xf32> to vector<16x1xf32>
    %76 = vector.shape_cast %75 : vector<16x1xf32> to vector<1x16x1xf32>
    %77 = vector.broadcast %74 : vector<8x1x21xf32> to vector<8x16x21xf32>
    %78 = vector.broadcast %76 : vector<1x16x1xf32> to vector<8x16x21xf32>
    %79 = arith.mulf %77, %78 : vector<8x16x21xf32>
    %80 = arith.addf %72, %79 : vector<8x16x21xf32>
    %81 = vector.extract_strided_slice %14 {offsets = [0, 0], sizes = [8, 21], strides = [1, 1]} : vector<8x23xf32> to vector<8x21xf32>
    %82 = vector.shape_cast %81 : vector<8x21xf32> to vector<8x1x21xf32>
    %83 = vector.extract_strided_slice %25 {offsets = [0, 6], sizes = [16, 1], strides = [1, 1]} : vector<16x30xf32> to vector<16x1xf32>
    %84 = vector.shape_cast %83 : vector<16x1xf32> to vector<1x16x1xf32>
    %85 = vector.broadcast %82 : vector<8x1x21xf32> to vector<8x16x21xf32>
    %86 = vector.broadcast %84 : vector<1x16x1xf32> to vector<8x16x21xf32>
    %87 = arith.mulf %85, %86 : vector<8x16x21xf32>
    %88 = arith.addf %80, %87 : vector<8x16x21xf32>
    %89 = vector.extract_strided_slice %16 {offsets = [0, 0], sizes = [8, 21], strides = [1, 1]} : vector<8x23xf32> to vector<8x21xf32>
    %90 = vector.shape_cast %89 : vector<8x21xf32> to vector<8x1x21xf32>
    %91 = vector.extract_strided_slice %25 {offsets = [0, 7], sizes = [16, 1], strides = [1, 1]} : vector<16x30xf32> to vector<16x1xf32>
    %92 = vector.shape_cast %91 : vector<16x1xf32> to vector<1x16x1xf32>
    %93 = vector.broadcast %90 : vector<8x1x21xf32> to vector<8x16x21xf32>
    %94 = vector.broadcast %92 : vector<1x16x1xf32> to vector<8x16x21xf32>
    %95 = arith.mulf %93, %94 : vector<8x16x21xf32>
    %96 = arith.addf %88, %95 : vector<8x16x21xf32>
    %97 = vector.extract_strided_slice %18 {offsets = [0, 0], sizes = [8, 21], strides = [1, 1]} : vector<8x23xf32> to vector<8x21xf32>
    %98 = vector.shape_cast %97 : vector<8x21xf32> to vector<8x1x21xf32>
    %99 = vector.extract_strided_slice %25 {offsets = [0, 8], sizes = [16, 1], strides = [1, 1]} : vector<16x30xf32> to vector<16x1xf32>
    %100 = vector.shape_cast %99 : vector<16x1xf32> to vector<1x16x1xf32>
    %101 = vector.broadcast %98 : vector<8x1x21xf32> to vector<8x16x21xf32>
    %102 = vector.broadcast %100 : vector<1x16x1xf32> to vector<8x16x21xf32>
    %103 = arith.mulf %101, %102 : vector<8x16x21xf32>
    %104 = arith.addf %96, %103 : vector<8x16x21xf32>
    %105 = vector.extract_strided_slice %20 {offsets = [0, 0], sizes = [8, 21], strides = [1, 1]} : vector<8x23xf32> to vector<8x21xf32>
    %106 = vector.shape_cast %105 : vector<8x21xf32> to vector<8x1x21xf32>
    %107 = vector.extract_strided_slice %25 {offsets = [0, 9], sizes = [16, 1], strides = [1, 1]} : vector<16x30xf32> to vector<16x1xf32>
    %108 = vector.shape_cast %107 : vector<16x1xf32> to vector<1x16x1xf32>
    %109 = vector.broadcast %106 : vector<8x1x21xf32> to vector<8x16x21xf32>
    %110 = vector.broadcast %108 : vector<1x16x1xf32> to vector<8x16x21xf32>
    %111 = arith.mulf %109, %110 : vector<8x16x21xf32>
    %112 = arith.addf %104, %111 : vector<8x16x21xf32>
    %113 = vector.extract_strided_slice %22 {offsets = [0, 0], sizes = [8, 21], strides = [1, 1]} : vector<8x23xf32> to vector<8x21xf32>
    %114 = vector.shape_cast %113 : vector<8x21xf32> to vector<8x1x21xf32>
    %115 = vector.extract_strided_slice %25 {offsets = [0, 10], sizes = [16, 1], strides = [1, 1]} : vector<16x30xf32> to vector<16x1xf32>
    %116 = vector.shape_cast %115 : vector<16x1xf32> to vector<1x16x1xf32>
    %117 = vector.broadcast %114 : vector<8x1x21xf32> to vector<8x16x21xf32>
    %118 = vector.broadcast %116 : vector<1x16x1xf32> to vector<8x16x21xf32>
    %119 = arith.mulf %117, %118 : vector<8x16x21xf32>
    %120 = arith.addf %112, %119 : vector<8x16x21xf32>
    %121 = vector.extract_strided_slice %24 {offsets = [0, 0], sizes = [8, 21], strides = [1, 1]} : vector<8x23xf32> to vector<8x21xf32>
    %122 = vector.shape_cast %121 : vector<8x21xf32> to vector<8x1x21xf32>
    %123 = vector.extract_strided_slice %25 {offsets = [0, 11], sizes = [16, 1], strides = [1, 1]} : vector<16x30xf32> to vector<16x1xf32>
    %124 = vector.shape_cast %123 : vector<16x1xf32> to vector<1x16x1xf32>
    %125 = vector.broadcast %122 : vector<8x1x21xf32> to vector<8x16x21xf32>
    %126 = vector.broadcast %124 : vector<1x16x1xf32> to vector<8x16x21xf32>
    %127 = arith.mulf %125, %126 : vector<8x16x21xf32>
    %128 = arith.addf %120, %127 : vector<8x16x21xf32>
    %129 = vector.extract_strided_slice %2 {offsets = [0, 1], sizes = [8, 21], strides = [1, 1]} : vector<8x23xf32> to vector<8x21xf32>
    %130 = vector.shape_cast %129 : vector<8x21xf32> to vector<8x1x21xf32>
    %131 = vector.extract_strided_slice %25 {offsets = [0, 12], sizes = [16, 1], strides = [1, 1]} : vector<16x30xf32> to vector<16x1xf32>
    %132 = vector.shape_cast %131 : vector<16x1xf32> to vector<1x16x1xf32>
    %133 = vector.broadcast %130 : vector<8x1x21xf32> to vector<8x16x21xf32>
    %134 = vector.broadcast %132 : vector<1x16x1xf32> to vector<8x16x21xf32>
    %135 = arith.mulf %133, %134 : vector<8x16x21xf32>
    %136 = arith.addf %128, %135 : vector<8x16x21xf32>
    %137 = vector.extract_strided_slice %4 {offsets = [0, 1], sizes = [8, 21], strides = [1, 1]} : vector<8x23xf32> to vector<8x21xf32>
    %138 = vector.shape_cast %137 : vector<8x21xf32> to vector<8x1x21xf32>
    %139 = vector.extract_strided_slice %25 {offsets = [0, 13], sizes = [16, 1], strides = [1, 1]} : vector<16x30xf32> to vector<16x1xf32>
    %140 = vector.shape_cast %139 : vector<16x1xf32> to vector<1x16x1xf32>
    %141 = vector.broadcast %138 : vector<8x1x21xf32> to vector<8x16x21xf32>
    %142 = vector.broadcast %140 : vector<1x16x1xf32> to vector<8x16x21xf32>
    %143 = arith.mulf %141, %142 : vector<8x16x21xf32>
    %144 = arith.addf %136, %143 : vector<8x16x21xf32>
    %145 = vector.extract_strided_slice %6 {offsets = [0, 1], sizes = [8, 21], strides = [1, 1]} : vector<8x23xf32> to vector<8x21xf32>
    %146 = vector.shape_cast %145 : vector<8x21xf32> to vector<8x1x21xf32>
    %147 = vector.extract_strided_slice %25 {offsets = [0, 14], sizes = [16, 1], strides = [1, 1]} : vector<16x30xf32> to vector<16x1xf32>
    %148 = vector.shape_cast %147 : vector<16x1xf32> to vector<1x16x1xf32>
    %149 = vector.broadcast %146 : vector<8x1x21xf32> to vector<8x16x21xf32>
    %150 = vector.broadcast %148 : vector<1x16x1xf32> to vector<8x16x21xf32>
    %151 = arith.mulf %149, %150 : vector<8x16x21xf32>
    %152 = arith.addf %144, %151 : vector<8x16x21xf32>
    %153 = vector.extract_strided_slice %8 {offsets = [0, 1], sizes = [8, 21], strides = [1, 1]} : vector<8x23xf32> to vector<8x21xf32>
    %154 = vector.shape_cast %153 : vector<8x21xf32> to vector<8x1x21xf32>
    %155 = vector.extract_strided_slice %25 {offsets = [0, 15], sizes = [16, 1], strides = [1, 1]} : vector<16x30xf32> to vector<16x1xf32>
    %156 = vector.shape_cast %155 : vector<16x1xf32> to vector<1x16x1xf32>
    %157 = vector.broadcast %154 : vector<8x1x21xf32> to vector<8x16x21xf32>
    %158 = vector.broadcast %156 : vector<1x16x1xf32> to vector<8x16x21xf32>
    %159 = arith.mulf %157, %158 : vector<8x16x21xf32>
    %160 = arith.addf %152, %159 : vector<8x16x21xf32>
    %161 = vector.extract_strided_slice %10 {offsets = [0, 1], sizes = [8, 21], strides = [1, 1]} : vector<8x23xf32> to vector<8x21xf32>
    %162 = vector.shape_cast %161 : vector<8x21xf32> to vector<8x1x21xf32>
    %163 = vector.extract_strided_slice %25 {offsets = [0, 16], sizes = [16, 1], strides = [1, 1]} : vector<16x30xf32> to vector<16x1xf32>
    %164 = vector.shape_cast %163 : vector<16x1xf32> to vector<1x16x1xf32>
    %165 = vector.broadcast %162 : vector<8x1x21xf32> to vector<8x16x21xf32>
    %166 = vector.broadcast %164 : vector<1x16x1xf32> to vector<8x16x21xf32>
    %167 = arith.mulf %165, %166 : vector<8x16x21xf32>
    %168 = arith.addf %160, %167 : vector<8x16x21xf32>
    %169 = vector.extract_strided_slice %12 {offsets = [0, 1], sizes = [8, 21], strides = [1, 1]} : vector<8x23xf32> to vector<8x21xf32>
    %170 = vector.shape_cast %169 : vector<8x21xf32> to vector<8x1x21xf32>
    %171 = vector.extract_strided_slice %25 {offsets = [0, 17], sizes = [16, 1], strides = [1, 1]} : vector<16x30xf32> to vector<16x1xf32>
    %172 = vector.shape_cast %171 : vector<16x1xf32> to vector<1x16x1xf32>
    %173 = vector.broadcast %170 : vector<8x1x21xf32> to vector<8x16x21xf32>
    %174 = vector.broadcast %172 : vector<1x16x1xf32> to vector<8x16x21xf32>
    %175 = arith.mulf %173, %174 : vector<8x16x21xf32>
    %176 = arith.addf %168, %175 : vector<8x16x21xf32>
    %177 = vector.extract_strided_slice %14 {offsets = [0, 1], sizes = [8, 21], strides = [1, 1]} : vector<8x23xf32> to vector<8x21xf32>
    %178 = vector.shape_cast %177 : vector<8x21xf32> to vector<8x1x21xf32>
    %179 = vector.extract_strided_slice %25 {offsets = [0, 18], sizes = [16, 1], strides = [1, 1]} : vector<16x30xf32> to vector<16x1xf32>
    %180 = vector.shape_cast %179 : vector<16x1xf32> to vector<1x16x1xf32>
    %181 = vector.broadcast %178 : vector<8x1x21xf32> to vector<8x16x21xf32>
    %182 = vector.broadcast %180 : vector<1x16x1xf32> to vector<8x16x21xf32>
    %183 = arith.mulf %181, %182 : vector<8x16x21xf32>
    %184 = arith.addf %176, %183 : vector<8x16x21xf32>
    %185 = vector.extract_strided_slice %16 {offsets = [0, 1], sizes = [8, 21], strides = [1, 1]} : vector<8x23xf32> to vector<8x21xf32>
    %186 = vector.shape_cast %185 : vector<8x21xf32> to vector<8x1x21xf32>
    %187 = vector.extract_strided_slice %25 {offsets = [0, 19], sizes = [16, 1], strides = [1, 1]} : vector<16x30xf32> to vector<16x1xf32>
    %188 = vector.shape_cast %187 : vector<16x1xf32> to vector<1x16x1xf32>
    %189 = vector.broadcast %186 : vector<8x1x21xf32> to vector<8x16x21xf32>
    %190 = vector.broadcast %188 : vector<1x16x1xf32> to vector<8x16x21xf32>
    %191 = arith.mulf %189, %190 : vector<8x16x21xf32>
    %192 = arith.addf %184, %191 : vector<8x16x21xf32>
    %193 = vector.extract_strided_slice %18 {offsets = [0, 1], sizes = [8, 21], strides = [1, 1]} : vector<8x23xf32> to vector<8x21xf32>
    %194 = vector.shape_cast %193 : vector<8x21xf32> to vector<8x1x21xf32>
    %195 = vector.extract_strided_slice %25 {offsets = [0, 20], sizes = [16, 1], strides = [1, 1]} : vector<16x30xf32> to vector<16x1xf32>
    %196 = vector.shape_cast %195 : vector<16x1xf32> to vector<1x16x1xf32>
    %197 = vector.broadcast %194 : vector<8x1x21xf32> to vector<8x16x21xf32>
    %198 = vector.broadcast %196 : vector<1x16x1xf32> to vector<8x16x21xf32>
    %199 = arith.mulf %197, %198 : vector<8x16x21xf32>
    %200 = arith.addf %192, %199 : vector<8x16x21xf32>
    %201 = vector.extract_strided_slice %20 {offsets = [0, 1], sizes = [8, 21], strides = [1, 1]} : vector<8x23xf32> to vector<8x21xf32>
    %202 = vector.shape_cast %201 : vector<8x21xf32> to vector<8x1x21xf32>
    %203 = vector.extract_strided_slice %25 {offsets = [0, 21], sizes = [16, 1], strides = [1, 1]} : vector<16x30xf32> to vector<16x1xf32>
    %204 = vector.shape_cast %203 : vector<16x1xf32> to vector<1x16x1xf32>
    %205 = vector.broadcast %202 : vector<8x1x21xf32> to vector<8x16x21xf32>
    %206 = vector.broadcast %204 : vector<1x16x1xf32> to vector<8x16x21xf32>
    %207 = arith.mulf %205, %206 : vector<8x16x21xf32>
    %208 = arith.addf %200, %207 : vector<8x16x21xf32>
    %209 = vector.extract_strided_slice %22 {offsets = [0, 1], sizes = [8, 21], strides = [1, 1]} : vector<8x23xf32> to vector<8x21xf32>
    %210 = vector.shape_cast %209 : vector<8x21xf32> to vector<8x1x21xf32>
    %211 = vector.extract_strided_slice %25 {offsets = [0, 22], sizes = [16, 1], strides = [1, 1]} : vector<16x30xf32> to vector<16x1xf32>
    %212 = vector.shape_cast %211 : vector<16x1xf32> to vector<1x16x1xf32>
    %213 = vector.broadcast %210 : vector<8x1x21xf32> to vector<8x16x21xf32>
    %214 = vector.broadcast %212 : vector<1x16x1xf32> to vector<8x16x21xf32>
    %215 = arith.mulf %213, %214 : vector<8x16x21xf32>
    %216 = arith.addf %208, %215 : vector<8x16x21xf32>
    %217 = vector.extract_strided_slice %24 {offsets = [0, 1], sizes = [8, 21], strides = [1, 1]} : vector<8x23xf32> to vector<8x21xf32>
    %218 = vector.shape_cast %217 : vector<8x21xf32> to vector<8x1x21xf32>
    %219 = vector.extract_strided_slice %25 {offsets = [0, 23], sizes = [16, 1], strides = [1, 1]} : vector<16x30xf32> to vector<16x1xf32>
    %220 = vector.shape_cast %219 : vector<16x1xf32> to vector<1x16x1xf32>
    %221 = vector.broadcast %218 : vector<8x1x21xf32> to vector<8x16x21xf32>
    %222 = vector.broadcast %220 : vector<1x16x1xf32> to vector<8x16x21xf32>
    %223 = arith.mulf %221, %222 : vector<8x16x21xf32>
    %224 = arith.addf %216, %223 : vector<8x16x21xf32>
    %225 = vector.extract_strided_slice %2 {offsets = [0, 2], sizes = [8, 21], strides = [1, 1]} : vector<8x23xf32> to vector<8x21xf32>
    %226 = vector.shape_cast %225 : vector<8x21xf32> to vector<8x1x21xf32>
    %227 = vector.extract_strided_slice %25 {offsets = [0, 24], sizes = [16, 1], strides = [1, 1]} : vector<16x30xf32> to vector<16x1xf32>
    %228 = vector.shape_cast %227 : vector<16x1xf32> to vector<1x16x1xf32>
    %229 = vector.broadcast %226 : vector<8x1x21xf32> to vector<8x16x21xf32>
    %230 = vector.broadcast %228 : vector<1x16x1xf32> to vector<8x16x21xf32>
    %231 = arith.mulf %229, %230 : vector<8x16x21xf32>
    %232 = arith.addf %224, %231 : vector<8x16x21xf32>
    %233 = vector.extract_strided_slice %4 {offsets = [0, 2], sizes = [8, 21], strides = [1, 1]} : vector<8x23xf32> to vector<8x21xf32>
    %234 = vector.shape_cast %233 : vector<8x21xf32> to vector<8x1x21xf32>
    %235 = vector.extract_strided_slice %25 {offsets = [0, 25], sizes = [16, 1], strides = [1, 1]} : vector<16x30xf32> to vector<16x1xf32>
    %236 = vector.shape_cast %235 : vector<16x1xf32> to vector<1x16x1xf32>
    %237 = vector.broadcast %234 : vector<8x1x21xf32> to vector<8x16x21xf32>
    %238 = vector.broadcast %236 : vector<1x16x1xf32> to vector<8x16x21xf32>
    %239 = arith.mulf %237, %238 : vector<8x16x21xf32>
    %240 = arith.addf %232, %239 : vector<8x16x21xf32>
    %241 = vector.extract_strided_slice %6 {offsets = [0, 2], sizes = [8, 21], strides = [1, 1]} : vector<8x23xf32> to vector<8x21xf32>
    %242 = vector.shape_cast %241 : vector<8x21xf32> to vector<8x1x21xf32>
    %243 = vector.extract_strided_slice %25 {offsets = [0, 26], sizes = [16, 1], strides = [1, 1]} : vector<16x30xf32> to vector<16x1xf32>
    %244 = vector.shape_cast %243 : vector<16x1xf32> to vector<1x16x1xf32>
    %245 = vector.broadcast %242 : vector<8x1x21xf32> to vector<8x16x21xf32>
    %246 = vector.broadcast %244 : vector<1x16x1xf32> to vector<8x16x21xf32>
    %247 = arith.mulf %245, %246 : vector<8x16x21xf32>
    %248 = arith.addf %240, %247 : vector<8x16x21xf32>
    %249 = vector.extract_strided_slice %8 {offsets = [0, 2], sizes = [8, 21], strides = [1, 1]} : vector<8x23xf32> to vector<8x21xf32>
    %250 = vector.shape_cast %249 : vector<8x21xf32> to vector<8x1x21xf32>
    %251 = vector.extract_strided_slice %25 {offsets = [0, 27], sizes = [16, 1], strides = [1, 1]} : vector<16x30xf32> to vector<16x1xf32>
    %252 = vector.shape_cast %251 : vector<16x1xf32> to vector<1x16x1xf32>
    %253 = vector.broadcast %250 : vector<8x1x21xf32> to vector<8x16x21xf32>
    %254 = vector.broadcast %252 : vector<1x16x1xf32> to vector<8x16x21xf32>
    %255 = arith.mulf %253, %254 : vector<8x16x21xf32>
    %256 = arith.addf %248, %255 : vector<8x16x21xf32>
    %257 = vector.extract_strided_slice %10 {offsets = [0, 2], sizes = [8, 21], strides = [1, 1]} : vector<8x23xf32> to vector<8x21xf32>
    %258 = vector.shape_cast %257 : vector<8x21xf32> to vector<8x1x21xf32>
    %259 = vector.extract_strided_slice %25 {offsets = [0, 28], sizes = [16, 1], strides = [1, 1]} : vector<16x30xf32> to vector<16x1xf32>
    %260 = vector.shape_cast %259 : vector<16x1xf32> to vector<1x16x1xf32>
    %261 = vector.broadcast %258 : vector<8x1x21xf32> to vector<8x16x21xf32>
    %262 = vector.broadcast %260 : vector<1x16x1xf32> to vector<8x16x21xf32>
    %263 = arith.mulf %261, %262 : vector<8x16x21xf32>
    %264 = arith.addf %256, %263 : vector<8x16x21xf32>
    %265 = vector.extract_strided_slice %12 {offsets = [0, 2], sizes = [8, 21], strides = [1, 1]} : vector<8x23xf32> to vector<8x21xf32>
    %266 = vector.shape_cast %265 : vector<8x21xf32> to vector<8x1x21xf32>
    %267 = vector.extract_strided_slice %25 {offsets = [0, 29], sizes = [16, 1], strides = [1, 1]} : vector<16x30xf32> to vector<16x1xf32>
    %268 = vector.shape_cast %267 : vector<16x1xf32> to vector<1x16x1xf32>
    %269 = vector.broadcast %266 : vector<8x1x21xf32> to vector<8x16x21xf32>
    %270 = vector.broadcast %268 : vector<1x16x1xf32> to vector<8x16x21xf32>
    %271 = arith.mulf %269, %270 : vector<8x16x21xf32>
    %272 = arith.addf %264, %271 : vector<8x16x21xf32>
    %273 = vector.shape_cast %26 : vector<16x1xf32> to vector<1x16x1xf32>
    %274 = vector.broadcast %273 : vector<1x16x1xf32> to vector<8x16x21xf32>
    %275 = arith.addf %272, %274 : vector<8x16x21xf32>
    %cst_16 = arith.constant 0.000000e+00 : f32
    %276 = vector.broadcast %cst_16 : f32 to vector<8x16x20xf32>
    %277 = vector.extract_strided_slice %8 {offsets = [0, 0], sizes = [8, 20], strides = [1, 1]} : vector<8x23xf32> to vector<8x20xf32>
    %278 = vector.shape_cast %277 : vector<8x20xf32> to vector<8x1x20xf32>
    %279 = vector.extract_strided_slice %25 {offsets = [0, 0], sizes = [16, 1], strides = [1, 1]} : vector<16x30xf32> to vector<16x1xf32>
    %280 = vector.shape_cast %279 : vector<16x1xf32> to vector<1x16x1xf32>
    %281 = vector.broadcast %278 : vector<8x1x20xf32> to vector<8x16x20xf32>
    %282 = vector.broadcast %280 : vector<1x16x1xf32> to vector<8x16x20xf32>
    %283 = arith.mulf %281, %282 : vector<8x16x20xf32>
    %284 = arith.addf %276, %283 : vector<8x16x20xf32>
    %285 = vector.extract_strided_slice %10 {offsets = [0, 0], sizes = [8, 20], strides = [1, 1]} : vector<8x23xf32> to vector<8x20xf32>
    %286 = vector.shape_cast %285 : vector<8x20xf32> to vector<8x1x20xf32>
    %287 = vector.extract_strided_slice %25 {offsets = [0, 1], sizes = [16, 1], strides = [1, 1]} : vector<16x30xf32> to vector<16x1xf32>
    %288 = vector.shape_cast %287 : vector<16x1xf32> to vector<1x16x1xf32>
    %289 = vector.broadcast %286 : vector<8x1x20xf32> to vector<8x16x20xf32>
    %290 = vector.broadcast %288 : vector<1x16x1xf32> to vector<8x16x20xf32>
    %291 = arith.mulf %289, %290 : vector<8x16x20xf32>
    %292 = arith.addf %284, %291 : vector<8x16x20xf32>
    %293 = vector.extract_strided_slice %12 {offsets = [0, 0], sizes = [8, 20], strides = [1, 1]} : vector<8x23xf32> to vector<8x20xf32>
    %294 = vector.shape_cast %293 : vector<8x20xf32> to vector<8x1x20xf32>
    %295 = vector.extract_strided_slice %25 {offsets = [0, 2], sizes = [16, 1], strides = [1, 1]} : vector<16x30xf32> to vector<16x1xf32>
    %296 = vector.shape_cast %295 : vector<16x1xf32> to vector<1x16x1xf32>
    %297 = vector.broadcast %294 : vector<8x1x20xf32> to vector<8x16x20xf32>
    %298 = vector.broadcast %296 : vector<1x16x1xf32> to vector<8x16x20xf32>
    %299 = arith.mulf %297, %298 : vector<8x16x20xf32>
    %300 = arith.addf %292, %299 : vector<8x16x20xf32>
    %301 = vector.extract_strided_slice %14 {offsets = [0, 0], sizes = [8, 20], strides = [1, 1]} : vector<8x23xf32> to vector<8x20xf32>
    %302 = vector.shape_cast %301 : vector<8x20xf32> to vector<8x1x20xf32>
    %303 = vector.extract_strided_slice %25 {offsets = [0, 3], sizes = [16, 1], strides = [1, 1]} : vector<16x30xf32> to vector<16x1xf32>
    %304 = vector.shape_cast %303 : vector<16x1xf32> to vector<1x16x1xf32>
    %305 = vector.broadcast %302 : vector<8x1x20xf32> to vector<8x16x20xf32>
    %306 = vector.broadcast %304 : vector<1x16x1xf32> to vector<8x16x20xf32>
    %307 = arith.mulf %305, %306 : vector<8x16x20xf32>
    %308 = arith.addf %300, %307 : vector<8x16x20xf32>
    %309 = vector.extract_strided_slice %16 {offsets = [0, 0], sizes = [8, 20], strides = [1, 1]} : vector<8x23xf32> to vector<8x20xf32>
    %310 = vector.shape_cast %309 : vector<8x20xf32> to vector<8x1x20xf32>
    %311 = vector.extract_strided_slice %25 {offsets = [0, 4], sizes = [16, 1], strides = [1, 1]} : vector<16x30xf32> to vector<16x1xf32>
    %312 = vector.shape_cast %311 : vector<16x1xf32> to vector<1x16x1xf32>
    %313 = vector.broadcast %310 : vector<8x1x20xf32> to vector<8x16x20xf32>
    %314 = vector.broadcast %312 : vector<1x16x1xf32> to vector<8x16x20xf32>
    %315 = arith.mulf %313, %314 : vector<8x16x20xf32>
    %316 = arith.addf %308, %315 : vector<8x16x20xf32>
    %317 = vector.extract_strided_slice %18 {offsets = [0, 0], sizes = [8, 20], strides = [1, 1]} : vector<8x23xf32> to vector<8x20xf32>
    %318 = vector.shape_cast %317 : vector<8x20xf32> to vector<8x1x20xf32>
    %319 = vector.extract_strided_slice %25 {offsets = [0, 5], sizes = [16, 1], strides = [1, 1]} : vector<16x30xf32> to vector<16x1xf32>
    %320 = vector.shape_cast %319 : vector<16x1xf32> to vector<1x16x1xf32>
    %321 = vector.broadcast %318 : vector<8x1x20xf32> to vector<8x16x20xf32>
    %322 = vector.broadcast %320 : vector<1x16x1xf32> to vector<8x16x20xf32>
    %323 = arith.mulf %321, %322 : vector<8x16x20xf32>
    %324 = arith.addf %316, %323 : vector<8x16x20xf32>
    %325 = vector.extract_strided_slice %20 {offsets = [0, 0], sizes = [8, 20], strides = [1, 1]} : vector<8x23xf32> to vector<8x20xf32>
    %326 = vector.shape_cast %325 : vector<8x20xf32> to vector<8x1x20xf32>
    %327 = vector.extract_strided_slice %25 {offsets = [0, 6], sizes = [16, 1], strides = [1, 1]} : vector<16x30xf32> to vector<16x1xf32>
    %328 = vector.shape_cast %327 : vector<16x1xf32> to vector<1x16x1xf32>
    %329 = vector.broadcast %326 : vector<8x1x20xf32> to vector<8x16x20xf32>
    %330 = vector.broadcast %328 : vector<1x16x1xf32> to vector<8x16x20xf32>
    %331 = arith.mulf %329, %330 : vector<8x16x20xf32>
    %332 = arith.addf %324, %331 : vector<8x16x20xf32>
    %333 = vector.extract_strided_slice %22 {offsets = [0, 0], sizes = [8, 20], strides = [1, 1]} : vector<8x23xf32> to vector<8x20xf32>
    %334 = vector.shape_cast %333 : vector<8x20xf32> to vector<8x1x20xf32>
    %335 = vector.extract_strided_slice %25 {offsets = [0, 7], sizes = [16, 1], strides = [1, 1]} : vector<16x30xf32> to vector<16x1xf32>
    %336 = vector.shape_cast %335 : vector<16x1xf32> to vector<1x16x1xf32>
    %337 = vector.broadcast %334 : vector<8x1x20xf32> to vector<8x16x20xf32>
    %338 = vector.broadcast %336 : vector<1x16x1xf32> to vector<8x16x20xf32>
    %339 = arith.mulf %337, %338 : vector<8x16x20xf32>
    %340 = arith.addf %332, %339 : vector<8x16x20xf32>
    %341 = vector.extract_strided_slice %24 {offsets = [0, 0], sizes = [8, 20], strides = [1, 1]} : vector<8x23xf32> to vector<8x20xf32>
    %342 = vector.shape_cast %341 : vector<8x20xf32> to vector<8x1x20xf32>
    %343 = vector.extract_strided_slice %25 {offsets = [0, 8], sizes = [16, 1], strides = [1, 1]} : vector<16x30xf32> to vector<16x1xf32>
    %344 = vector.shape_cast %343 : vector<16x1xf32> to vector<1x16x1xf32>
    %345 = vector.broadcast %342 : vector<8x1x20xf32> to vector<8x16x20xf32>
    %346 = vector.broadcast %344 : vector<1x16x1xf32> to vector<8x16x20xf32>
    %347 = arith.mulf %345, %346 : vector<8x16x20xf32>
    %348 = arith.addf %340, %347 : vector<8x16x20xf32>
    %349 = vector.extract_strided_slice %2 {offsets = [0, 1], sizes = [8, 20], strides = [1, 1]} : vector<8x23xf32> to vector<8x20xf32>
    %350 = vector.shape_cast %349 : vector<8x20xf32> to vector<8x1x20xf32>
    %351 = vector.extract_strided_slice %25 {offsets = [0, 9], sizes = [16, 1], strides = [1, 1]} : vector<16x30xf32> to vector<16x1xf32>
    %352 = vector.shape_cast %351 : vector<16x1xf32> to vector<1x16x1xf32>
    %353 = vector.broadcast %350 : vector<8x1x20xf32> to vector<8x16x20xf32>
    %354 = vector.broadcast %352 : vector<1x16x1xf32> to vector<8x16x20xf32>
    %355 = arith.mulf %353, %354 : vector<8x16x20xf32>
    %356 = arith.addf %348, %355 : vector<8x16x20xf32>
    %357 = vector.extract_strided_slice %4 {offsets = [0, 1], sizes = [8, 20], strides = [1, 1]} : vector<8x23xf32> to vector<8x20xf32>
    %358 = vector.shape_cast %357 : vector<8x20xf32> to vector<8x1x20xf32>
    %359 = vector.extract_strided_slice %25 {offsets = [0, 10], sizes = [16, 1], strides = [1, 1]} : vector<16x30xf32> to vector<16x1xf32>
    %360 = vector.shape_cast %359 : vector<16x1xf32> to vector<1x16x1xf32>
    %361 = vector.broadcast %358 : vector<8x1x20xf32> to vector<8x16x20xf32>
    %362 = vector.broadcast %360 : vector<1x16x1xf32> to vector<8x16x20xf32>
    %363 = arith.mulf %361, %362 : vector<8x16x20xf32>
    %364 = arith.addf %356, %363 : vector<8x16x20xf32>
    %365 = vector.extract_strided_slice %6 {offsets = [0, 1], sizes = [8, 20], strides = [1, 1]} : vector<8x23xf32> to vector<8x20xf32>
    %366 = vector.shape_cast %365 : vector<8x20xf32> to vector<8x1x20xf32>
    %367 = vector.extract_strided_slice %25 {offsets = [0, 11], sizes = [16, 1], strides = [1, 1]} : vector<16x30xf32> to vector<16x1xf32>
    %368 = vector.shape_cast %367 : vector<16x1xf32> to vector<1x16x1xf32>
    %369 = vector.broadcast %366 : vector<8x1x20xf32> to vector<8x16x20xf32>
    %370 = vector.broadcast %368 : vector<1x16x1xf32> to vector<8x16x20xf32>
    %371 = arith.mulf %369, %370 : vector<8x16x20xf32>
    %372 = arith.addf %364, %371 : vector<8x16x20xf32>
    %373 = vector.extract_strided_slice %8 {offsets = [0, 1], sizes = [8, 20], strides = [1, 1]} : vector<8x23xf32> to vector<8x20xf32>
    %374 = vector.shape_cast %373 : vector<8x20xf32> to vector<8x1x20xf32>
    %375 = vector.extract_strided_slice %25 {offsets = [0, 12], sizes = [16, 1], strides = [1, 1]} : vector<16x30xf32> to vector<16x1xf32>
    %376 = vector.shape_cast %375 : vector<16x1xf32> to vector<1x16x1xf32>
    %377 = vector.broadcast %374 : vector<8x1x20xf32> to vector<8x16x20xf32>
    %378 = vector.broadcast %376 : vector<1x16x1xf32> to vector<8x16x20xf32>
    %379 = arith.mulf %377, %378 : vector<8x16x20xf32>
    %380 = arith.addf %372, %379 : vector<8x16x20xf32>
    %381 = vector.extract_strided_slice %10 {offsets = [0, 1], sizes = [8, 20], strides = [1, 1]} : vector<8x23xf32> to vector<8x20xf32>
    %382 = vector.shape_cast %381 : vector<8x20xf32> to vector<8x1x20xf32>
    %383 = vector.extract_strided_slice %25 {offsets = [0, 13], sizes = [16, 1], strides = [1, 1]} : vector<16x30xf32> to vector<16x1xf32>
    %384 = vector.shape_cast %383 : vector<16x1xf32> to vector<1x16x1xf32>
    %385 = vector.broadcast %382 : vector<8x1x20xf32> to vector<8x16x20xf32>
    %386 = vector.broadcast %384 : vector<1x16x1xf32> to vector<8x16x20xf32>
    %387 = arith.mulf %385, %386 : vector<8x16x20xf32>
    %388 = arith.addf %380, %387 : vector<8x16x20xf32>
    %389 = vector.extract_strided_slice %12 {offsets = [0, 1], sizes = [8, 20], strides = [1, 1]} : vector<8x23xf32> to vector<8x20xf32>
    %390 = vector.shape_cast %389 : vector<8x20xf32> to vector<8x1x20xf32>
    %391 = vector.extract_strided_slice %25 {offsets = [0, 14], sizes = [16, 1], strides = [1, 1]} : vector<16x30xf32> to vector<16x1xf32>
    %392 = vector.shape_cast %391 : vector<16x1xf32> to vector<1x16x1xf32>
    %393 = vector.broadcast %390 : vector<8x1x20xf32> to vector<8x16x20xf32>
    %394 = vector.broadcast %392 : vector<1x16x1xf32> to vector<8x16x20xf32>
    %395 = arith.mulf %393, %394 : vector<8x16x20xf32>
    %396 = arith.addf %388, %395 : vector<8x16x20xf32>
    %397 = vector.extract_strided_slice %14 {offsets = [0, 1], sizes = [8, 20], strides = [1, 1]} : vector<8x23xf32> to vector<8x20xf32>
    %398 = vector.shape_cast %397 : vector<8x20xf32> to vector<8x1x20xf32>
    %399 = vector.extract_strided_slice %25 {offsets = [0, 15], sizes = [16, 1], strides = [1, 1]} : vector<16x30xf32> to vector<16x1xf32>
    %400 = vector.shape_cast %399 : vector<16x1xf32> to vector<1x16x1xf32>
    %401 = vector.broadcast %398 : vector<8x1x20xf32> to vector<8x16x20xf32>
    %402 = vector.broadcast %400 : vector<1x16x1xf32> to vector<8x16x20xf32>
    %403 = arith.mulf %401, %402 : vector<8x16x20xf32>
    %404 = arith.addf %396, %403 : vector<8x16x20xf32>
    %405 = vector.extract_strided_slice %16 {offsets = [0, 1], sizes = [8, 20], strides = [1, 1]} : vector<8x23xf32> to vector<8x20xf32>
    %406 = vector.shape_cast %405 : vector<8x20xf32> to vector<8x1x20xf32>
    %407 = vector.extract_strided_slice %25 {offsets = [0, 16], sizes = [16, 1], strides = [1, 1]} : vector<16x30xf32> to vector<16x1xf32>
    %408 = vector.shape_cast %407 : vector<16x1xf32> to vector<1x16x1xf32>
    %409 = vector.broadcast %406 : vector<8x1x20xf32> to vector<8x16x20xf32>
    %410 = vector.broadcast %408 : vector<1x16x1xf32> to vector<8x16x20xf32>
    %411 = arith.mulf %409, %410 : vector<8x16x20xf32>
    %412 = arith.addf %404, %411 : vector<8x16x20xf32>
    %413 = vector.extract_strided_slice %18 {offsets = [0, 1], sizes = [8, 20], strides = [1, 1]} : vector<8x23xf32> to vector<8x20xf32>
    %414 = vector.shape_cast %413 : vector<8x20xf32> to vector<8x1x20xf32>
    %415 = vector.extract_strided_slice %25 {offsets = [0, 17], sizes = [16, 1], strides = [1, 1]} : vector<16x30xf32> to vector<16x1xf32>
    %416 = vector.shape_cast %415 : vector<16x1xf32> to vector<1x16x1xf32>
    %417 = vector.broadcast %414 : vector<8x1x20xf32> to vector<8x16x20xf32>
    %418 = vector.broadcast %416 : vector<1x16x1xf32> to vector<8x16x20xf32>
    %419 = arith.mulf %417, %418 : vector<8x16x20xf32>
    %420 = arith.addf %412, %419 : vector<8x16x20xf32>
    %421 = vector.extract_strided_slice %20 {offsets = [0, 1], sizes = [8, 20], strides = [1, 1]} : vector<8x23xf32> to vector<8x20xf32>
    %422 = vector.shape_cast %421 : vector<8x20xf32> to vector<8x1x20xf32>
    %423 = vector.extract_strided_slice %25 {offsets = [0, 18], sizes = [16, 1], strides = [1, 1]} : vector<16x30xf32> to vector<16x1xf32>
    %424 = vector.shape_cast %423 : vector<16x1xf32> to vector<1x16x1xf32>
    %425 = vector.broadcast %422 : vector<8x1x20xf32> to vector<8x16x20xf32>
    %426 = vector.broadcast %424 : vector<1x16x1xf32> to vector<8x16x20xf32>
    %427 = arith.mulf %425, %426 : vector<8x16x20xf32>
    %428 = arith.addf %420, %427 : vector<8x16x20xf32>
    %429 = vector.extract_strided_slice %22 {offsets = [0, 1], sizes = [8, 20], strides = [1, 1]} : vector<8x23xf32> to vector<8x20xf32>
    %430 = vector.shape_cast %429 : vector<8x20xf32> to vector<8x1x20xf32>
    %431 = vector.extract_strided_slice %25 {offsets = [0, 19], sizes = [16, 1], strides = [1, 1]} : vector<16x30xf32> to vector<16x1xf32>
    %432 = vector.shape_cast %431 : vector<16x1xf32> to vector<1x16x1xf32>
    %433 = vector.broadcast %430 : vector<8x1x20xf32> to vector<8x16x20xf32>
    %434 = vector.broadcast %432 : vector<1x16x1xf32> to vector<8x16x20xf32>
    %435 = arith.mulf %433, %434 : vector<8x16x20xf32>
    %436 = arith.addf %428, %435 : vector<8x16x20xf32>
    %437 = vector.extract_strided_slice %24 {offsets = [0, 1], sizes = [8, 20], strides = [1, 1]} : vector<8x23xf32> to vector<8x20xf32>
    %438 = vector.shape_cast %437 : vector<8x20xf32> to vector<8x1x20xf32>
    %439 = vector.extract_strided_slice %25 {offsets = [0, 20], sizes = [16, 1], strides = [1, 1]} : vector<16x30xf32> to vector<16x1xf32>
    %440 = vector.shape_cast %439 : vector<16x1xf32> to vector<1x16x1xf32>
    %441 = vector.broadcast %438 : vector<8x1x20xf32> to vector<8x16x20xf32>
    %442 = vector.broadcast %440 : vector<1x16x1xf32> to vector<8x16x20xf32>
    %443 = arith.mulf %441, %442 : vector<8x16x20xf32>
    %444 = arith.addf %436, %443 : vector<8x16x20xf32>
    %445 = vector.extract_strided_slice %2 {offsets = [0, 2], sizes = [8, 20], strides = [1, 1]} : vector<8x23xf32> to vector<8x20xf32>
    %446 = vector.shape_cast %445 : vector<8x20xf32> to vector<8x1x20xf32>
    %447 = vector.extract_strided_slice %25 {offsets = [0, 21], sizes = [16, 1], strides = [1, 1]} : vector<16x30xf32> to vector<16x1xf32>
    %448 = vector.shape_cast %447 : vector<16x1xf32> to vector<1x16x1xf32>
    %449 = vector.broadcast %446 : vector<8x1x20xf32> to vector<8x16x20xf32>
    %450 = vector.broadcast %448 : vector<1x16x1xf32> to vector<8x16x20xf32>
    %451 = arith.mulf %449, %450 : vector<8x16x20xf32>
    %452 = arith.addf %444, %451 : vector<8x16x20xf32>
    %453 = vector.extract_strided_slice %4 {offsets = [0, 2], sizes = [8, 20], strides = [1, 1]} : vector<8x23xf32> to vector<8x20xf32>
    %454 = vector.shape_cast %453 : vector<8x20xf32> to vector<8x1x20xf32>
    %455 = vector.extract_strided_slice %25 {offsets = [0, 22], sizes = [16, 1], strides = [1, 1]} : vector<16x30xf32> to vector<16x1xf32>
    %456 = vector.shape_cast %455 : vector<16x1xf32> to vector<1x16x1xf32>
    %457 = vector.broadcast %454 : vector<8x1x20xf32> to vector<8x16x20xf32>
    %458 = vector.broadcast %456 : vector<1x16x1xf32> to vector<8x16x20xf32>
    %459 = arith.mulf %457, %458 : vector<8x16x20xf32>
    %460 = arith.addf %452, %459 : vector<8x16x20xf32>
    %461 = vector.extract_strided_slice %6 {offsets = [0, 2], sizes = [8, 20], strides = [1, 1]} : vector<8x23xf32> to vector<8x20xf32>
    %462 = vector.shape_cast %461 : vector<8x20xf32> to vector<8x1x20xf32>
    %463 = vector.extract_strided_slice %25 {offsets = [0, 23], sizes = [16, 1], strides = [1, 1]} : vector<16x30xf32> to vector<16x1xf32>
    %464 = vector.shape_cast %463 : vector<16x1xf32> to vector<1x16x1xf32>
    %465 = vector.broadcast %462 : vector<8x1x20xf32> to vector<8x16x20xf32>
    %466 = vector.broadcast %464 : vector<1x16x1xf32> to vector<8x16x20xf32>
    %467 = arith.mulf %465, %466 : vector<8x16x20xf32>
    %468 = arith.addf %460, %467 : vector<8x16x20xf32>
    %469 = vector.extract_strided_slice %8 {offsets = [0, 2], sizes = [8, 20], strides = [1, 1]} : vector<8x23xf32> to vector<8x20xf32>
    %470 = vector.shape_cast %469 : vector<8x20xf32> to vector<8x1x20xf32>
    %471 = vector.extract_strided_slice %25 {offsets = [0, 24], sizes = [16, 1], strides = [1, 1]} : vector<16x30xf32> to vector<16x1xf32>
    %472 = vector.shape_cast %471 : vector<16x1xf32> to vector<1x16x1xf32>
    %473 = vector.broadcast %470 : vector<8x1x20xf32> to vector<8x16x20xf32>
    %474 = vector.broadcast %472 : vector<1x16x1xf32> to vector<8x16x20xf32>
    %475 = arith.mulf %473, %474 : vector<8x16x20xf32>
    %476 = arith.addf %468, %475 : vector<8x16x20xf32>
    %477 = vector.extract_strided_slice %10 {offsets = [0, 2], sizes = [8, 20], strides = [1, 1]} : vector<8x23xf32> to vector<8x20xf32>
    %478 = vector.shape_cast %477 : vector<8x20xf32> to vector<8x1x20xf32>
    %479 = vector.extract_strided_slice %25 {offsets = [0, 25], sizes = [16, 1], strides = [1, 1]} : vector<16x30xf32> to vector<16x1xf32>
    %480 = vector.shape_cast %479 : vector<16x1xf32> to vector<1x16x1xf32>
    %481 = vector.broadcast %478 : vector<8x1x20xf32> to vector<8x16x20xf32>
    %482 = vector.broadcast %480 : vector<1x16x1xf32> to vector<8x16x20xf32>
    %483 = arith.mulf %481, %482 : vector<8x16x20xf32>
    %484 = arith.addf %476, %483 : vector<8x16x20xf32>
    %485 = vector.extract_strided_slice %12 {offsets = [0, 2], sizes = [8, 20], strides = [1, 1]} : vector<8x23xf32> to vector<8x20xf32>
    %486 = vector.shape_cast %485 : vector<8x20xf32> to vector<8x1x20xf32>
    %487 = vector.extract_strided_slice %25 {offsets = [0, 26], sizes = [16, 1], strides = [1, 1]} : vector<16x30xf32> to vector<16x1xf32>
    %488 = vector.shape_cast %487 : vector<16x1xf32> to vector<1x16x1xf32>
    %489 = vector.broadcast %486 : vector<8x1x20xf32> to vector<8x16x20xf32>
    %490 = vector.broadcast %488 : vector<1x16x1xf32> to vector<8x16x20xf32>
    %491 = arith.mulf %489, %490 : vector<8x16x20xf32>
    %492 = arith.addf %484, %491 : vector<8x16x20xf32>
    %493 = vector.extract_strided_slice %14 {offsets = [0, 2], sizes = [8, 20], strides = [1, 1]} : vector<8x23xf32> to vector<8x20xf32>
    %494 = vector.shape_cast %493 : vector<8x20xf32> to vector<8x1x20xf32>
    %495 = vector.extract_strided_slice %25 {offsets = [0, 27], sizes = [16, 1], strides = [1, 1]} : vector<16x30xf32> to vector<16x1xf32>
    %496 = vector.shape_cast %495 : vector<16x1xf32> to vector<1x16x1xf32>
    %497 = vector.broadcast %494 : vector<8x1x20xf32> to vector<8x16x20xf32>
    %498 = vector.broadcast %496 : vector<1x16x1xf32> to vector<8x16x20xf32>
    %499 = arith.mulf %497, %498 : vector<8x16x20xf32>
    %500 = arith.addf %492, %499 : vector<8x16x20xf32>
    %501 = vector.extract_strided_slice %16 {offsets = [0, 2], sizes = [8, 20], strides = [1, 1]} : vector<8x23xf32> to vector<8x20xf32>
    %502 = vector.shape_cast %501 : vector<8x20xf32> to vector<8x1x20xf32>
    %503 = vector.extract_strided_slice %25 {offsets = [0, 28], sizes = [16, 1], strides = [1, 1]} : vector<16x30xf32> to vector<16x1xf32>
    %504 = vector.shape_cast %503 : vector<16x1xf32> to vector<1x16x1xf32>
    %505 = vector.broadcast %502 : vector<8x1x20xf32> to vector<8x16x20xf32>
    %506 = vector.broadcast %504 : vector<1x16x1xf32> to vector<8x16x20xf32>
    %507 = arith.mulf %505, %506 : vector<8x16x20xf32>
    %508 = arith.addf %500, %507 : vector<8x16x20xf32>
    %509 = vector.extract_strided_slice %18 {offsets = [0, 2], sizes = [8, 20], strides = [1, 1]} : vector<8x23xf32> to vector<8x20xf32>
    %510 = vector.shape_cast %509 : vector<8x20xf32> to vector<8x1x20xf32>
    %511 = vector.extract_strided_slice %25 {offsets = [0, 29], sizes = [16, 1], strides = [1, 1]} : vector<16x30xf32> to vector<16x1xf32>
    %512 = vector.shape_cast %511 : vector<16x1xf32> to vector<1x16x1xf32>
    %513 = vector.broadcast %510 : vector<8x1x20xf32> to vector<8x16x20xf32>
    %514 = vector.broadcast %512 : vector<1x16x1xf32> to vector<8x16x20xf32>
    %515 = arith.mulf %513, %514 : vector<8x16x20xf32>
    %516 = arith.addf %508, %515 : vector<8x16x20xf32>
    %517 = vector.shape_cast %26 : vector<16x1xf32> to vector<1x16x1xf32>
    %518 = vector.broadcast %517 : vector<1x16x1xf32> to vector<8x16x20xf32>
    %519 = arith.addf %516, %518 : vector<8x16x20xf32>
    %cst_17 = arith.constant 0.000000e+00 : f32
    %520 = vector.broadcast %cst_17 : f32 to vector<8x16x20xf32>
    %521 = vector.extract_strided_slice %14 {offsets = [0, 0], sizes = [8, 20], strides = [1, 1]} : vector<8x23xf32> to vector<8x20xf32>
    %522 = vector.shape_cast %521 : vector<8x20xf32> to vector<8x1x20xf32>
    %523 = vector.extract_strided_slice %25 {offsets = [0, 0], sizes = [16, 1], strides = [1, 1]} : vector<16x30xf32> to vector<16x1xf32>
    %524 = vector.shape_cast %523 : vector<16x1xf32> to vector<1x16x1xf32>
    %525 = vector.broadcast %522 : vector<8x1x20xf32> to vector<8x16x20xf32>
    %526 = vector.broadcast %524 : vector<1x16x1xf32> to vector<8x16x20xf32>
    %527 = arith.mulf %525, %526 : vector<8x16x20xf32>
    %528 = arith.addf %520, %527 : vector<8x16x20xf32>
    %529 = vector.extract_strided_slice %16 {offsets = [0, 0], sizes = [8, 20], strides = [1, 1]} : vector<8x23xf32> to vector<8x20xf32>
    %530 = vector.shape_cast %529 : vector<8x20xf32> to vector<8x1x20xf32>
    %531 = vector.extract_strided_slice %25 {offsets = [0, 1], sizes = [16, 1], strides = [1, 1]} : vector<16x30xf32> to vector<16x1xf32>
    %532 = vector.shape_cast %531 : vector<16x1xf32> to vector<1x16x1xf32>
    %533 = vector.broadcast %530 : vector<8x1x20xf32> to vector<8x16x20xf32>
    %534 = vector.broadcast %532 : vector<1x16x1xf32> to vector<8x16x20xf32>
    %535 = arith.mulf %533, %534 : vector<8x16x20xf32>
    %536 = arith.addf %528, %535 : vector<8x16x20xf32>
    %537 = vector.extract_strided_slice %18 {offsets = [0, 0], sizes = [8, 20], strides = [1, 1]} : vector<8x23xf32> to vector<8x20xf32>
    %538 = vector.shape_cast %537 : vector<8x20xf32> to vector<8x1x20xf32>
    %539 = vector.extract_strided_slice %25 {offsets = [0, 2], sizes = [16, 1], strides = [1, 1]} : vector<16x30xf32> to vector<16x1xf32>
    %540 = vector.shape_cast %539 : vector<16x1xf32> to vector<1x16x1xf32>
    %541 = vector.broadcast %538 : vector<8x1x20xf32> to vector<8x16x20xf32>
    %542 = vector.broadcast %540 : vector<1x16x1xf32> to vector<8x16x20xf32>
    %543 = arith.mulf %541, %542 : vector<8x16x20xf32>
    %544 = arith.addf %536, %543 : vector<8x16x20xf32>
    %545 = vector.extract_strided_slice %20 {offsets = [0, 0], sizes = [8, 20], strides = [1, 1]} : vector<8x23xf32> to vector<8x20xf32>
    %546 = vector.shape_cast %545 : vector<8x20xf32> to vector<8x1x20xf32>
    %547 = vector.extract_strided_slice %25 {offsets = [0, 3], sizes = [16, 1], strides = [1, 1]} : vector<16x30xf32> to vector<16x1xf32>
    %548 = vector.shape_cast %547 : vector<16x1xf32> to vector<1x16x1xf32>
    %549 = vector.broadcast %546 : vector<8x1x20xf32> to vector<8x16x20xf32>
    %550 = vector.broadcast %548 : vector<1x16x1xf32> to vector<8x16x20xf32>
    %551 = arith.mulf %549, %550 : vector<8x16x20xf32>
    %552 = arith.addf %544, %551 : vector<8x16x20xf32>
    %553 = vector.extract_strided_slice %22 {offsets = [0, 0], sizes = [8, 20], strides = [1, 1]} : vector<8x23xf32> to vector<8x20xf32>
    %554 = vector.shape_cast %553 : vector<8x20xf32> to vector<8x1x20xf32>
    %555 = vector.extract_strided_slice %25 {offsets = [0, 4], sizes = [16, 1], strides = [1, 1]} : vector<16x30xf32> to vector<16x1xf32>
    %556 = vector.shape_cast %555 : vector<16x1xf32> to vector<1x16x1xf32>
    %557 = vector.broadcast %554 : vector<8x1x20xf32> to vector<8x16x20xf32>
    %558 = vector.broadcast %556 : vector<1x16x1xf32> to vector<8x16x20xf32>
    %559 = arith.mulf %557, %558 : vector<8x16x20xf32>
    %560 = arith.addf %552, %559 : vector<8x16x20xf32>
    %561 = vector.extract_strided_slice %24 {offsets = [0, 0], sizes = [8, 20], strides = [1, 1]} : vector<8x23xf32> to vector<8x20xf32>
    %562 = vector.shape_cast %561 : vector<8x20xf32> to vector<8x1x20xf32>
    %563 = vector.extract_strided_slice %25 {offsets = [0, 5], sizes = [16, 1], strides = [1, 1]} : vector<16x30xf32> to vector<16x1xf32>
    %564 = vector.shape_cast %563 : vector<16x1xf32> to vector<1x16x1xf32>
    %565 = vector.broadcast %562 : vector<8x1x20xf32> to vector<8x16x20xf32>
    %566 = vector.broadcast %564 : vector<1x16x1xf32> to vector<8x16x20xf32>
    %567 = arith.mulf %565, %566 : vector<8x16x20xf32>
    %568 = arith.addf %560, %567 : vector<8x16x20xf32>
    %569 = vector.extract_strided_slice %2 {offsets = [0, 1], sizes = [8, 20], strides = [1, 1]} : vector<8x23xf32> to vector<8x20xf32>
    %570 = vector.shape_cast %569 : vector<8x20xf32> to vector<8x1x20xf32>
    %571 = vector.extract_strided_slice %25 {offsets = [0, 6], sizes = [16, 1], strides = [1, 1]} : vector<16x30xf32> to vector<16x1xf32>
    %572 = vector.shape_cast %571 : vector<16x1xf32> to vector<1x16x1xf32>
    %573 = vector.broadcast %570 : vector<8x1x20xf32> to vector<8x16x20xf32>
    %574 = vector.broadcast %572 : vector<1x16x1xf32> to vector<8x16x20xf32>
    %575 = arith.mulf %573, %574 : vector<8x16x20xf32>
    %576 = arith.addf %568, %575 : vector<8x16x20xf32>
    %577 = vector.extract_strided_slice %4 {offsets = [0, 1], sizes = [8, 20], strides = [1, 1]} : vector<8x23xf32> to vector<8x20xf32>
    %578 = vector.shape_cast %577 : vector<8x20xf32> to vector<8x1x20xf32>
    %579 = vector.extract_strided_slice %25 {offsets = [0, 7], sizes = [16, 1], strides = [1, 1]} : vector<16x30xf32> to vector<16x1xf32>
    %580 = vector.shape_cast %579 : vector<16x1xf32> to vector<1x16x1xf32>
    %581 = vector.broadcast %578 : vector<8x1x20xf32> to vector<8x16x20xf32>
    %582 = vector.broadcast %580 : vector<1x16x1xf32> to vector<8x16x20xf32>
    %583 = arith.mulf %581, %582 : vector<8x16x20xf32>
    %584 = arith.addf %576, %583 : vector<8x16x20xf32>
    %585 = vector.extract_strided_slice %6 {offsets = [0, 1], sizes = [8, 20], strides = [1, 1]} : vector<8x23xf32> to vector<8x20xf32>
    %586 = vector.shape_cast %585 : vector<8x20xf32> to vector<8x1x20xf32>
    %587 = vector.extract_strided_slice %25 {offsets = [0, 8], sizes = [16, 1], strides = [1, 1]} : vector<16x30xf32> to vector<16x1xf32>
    %588 = vector.shape_cast %587 : vector<16x1xf32> to vector<1x16x1xf32>
    %589 = vector.broadcast %586 : vector<8x1x20xf32> to vector<8x16x20xf32>
    %590 = vector.broadcast %588 : vector<1x16x1xf32> to vector<8x16x20xf32>
    %591 = arith.mulf %589, %590 : vector<8x16x20xf32>
    %592 = arith.addf %584, %591 : vector<8x16x20xf32>
    %593 = vector.extract_strided_slice %8 {offsets = [0, 1], sizes = [8, 20], strides = [1, 1]} : vector<8x23xf32> to vector<8x20xf32>
    %594 = vector.shape_cast %593 : vector<8x20xf32> to vector<8x1x20xf32>
    %595 = vector.extract_strided_slice %25 {offsets = [0, 9], sizes = [16, 1], strides = [1, 1]} : vector<16x30xf32> to vector<16x1xf32>
    %596 = vector.shape_cast %595 : vector<16x1xf32> to vector<1x16x1xf32>
    %597 = vector.broadcast %594 : vector<8x1x20xf32> to vector<8x16x20xf32>
    %598 = vector.broadcast %596 : vector<1x16x1xf32> to vector<8x16x20xf32>
    %599 = arith.mulf %597, %598 : vector<8x16x20xf32>
    %600 = arith.addf %592, %599 : vector<8x16x20xf32>
    %601 = vector.extract_strided_slice %10 {offsets = [0, 1], sizes = [8, 20], strides = [1, 1]} : vector<8x23xf32> to vector<8x20xf32>
    %602 = vector.shape_cast %601 : vector<8x20xf32> to vector<8x1x20xf32>
    %603 = vector.extract_strided_slice %25 {offsets = [0, 10], sizes = [16, 1], strides = [1, 1]} : vector<16x30xf32> to vector<16x1xf32>
    %604 = vector.shape_cast %603 : vector<16x1xf32> to vector<1x16x1xf32>
    %605 = vector.broadcast %602 : vector<8x1x20xf32> to vector<8x16x20xf32>
    %606 = vector.broadcast %604 : vector<1x16x1xf32> to vector<8x16x20xf32>
    %607 = arith.mulf %605, %606 : vector<8x16x20xf32>
    %608 = arith.addf %600, %607 : vector<8x16x20xf32>
    %609 = vector.extract_strided_slice %12 {offsets = [0, 1], sizes = [8, 20], strides = [1, 1]} : vector<8x23xf32> to vector<8x20xf32>
    %610 = vector.shape_cast %609 : vector<8x20xf32> to vector<8x1x20xf32>
    %611 = vector.extract_strided_slice %25 {offsets = [0, 11], sizes = [16, 1], strides = [1, 1]} : vector<16x30xf32> to vector<16x1xf32>
    %612 = vector.shape_cast %611 : vector<16x1xf32> to vector<1x16x1xf32>
    %613 = vector.broadcast %610 : vector<8x1x20xf32> to vector<8x16x20xf32>
    %614 = vector.broadcast %612 : vector<1x16x1xf32> to vector<8x16x20xf32>
    %615 = arith.mulf %613, %614 : vector<8x16x20xf32>
    %616 = arith.addf %608, %615 : vector<8x16x20xf32>
    %617 = vector.extract_strided_slice %14 {offsets = [0, 1], sizes = [8, 20], strides = [1, 1]} : vector<8x23xf32> to vector<8x20xf32>
    %618 = vector.shape_cast %617 : vector<8x20xf32> to vector<8x1x20xf32>
    %619 = vector.extract_strided_slice %25 {offsets = [0, 12], sizes = [16, 1], strides = [1, 1]} : vector<16x30xf32> to vector<16x1xf32>
    %620 = vector.shape_cast %619 : vector<16x1xf32> to vector<1x16x1xf32>
    %621 = vector.broadcast %618 : vector<8x1x20xf32> to vector<8x16x20xf32>
    %622 = vector.broadcast %620 : vector<1x16x1xf32> to vector<8x16x20xf32>
    %623 = arith.mulf %621, %622 : vector<8x16x20xf32>
    %624 = arith.addf %616, %623 : vector<8x16x20xf32>
    %625 = vector.extract_strided_slice %16 {offsets = [0, 1], sizes = [8, 20], strides = [1, 1]} : vector<8x23xf32> to vector<8x20xf32>
    %626 = vector.shape_cast %625 : vector<8x20xf32> to vector<8x1x20xf32>
    %627 = vector.extract_strided_slice %25 {offsets = [0, 13], sizes = [16, 1], strides = [1, 1]} : vector<16x30xf32> to vector<16x1xf32>
    %628 = vector.shape_cast %627 : vector<16x1xf32> to vector<1x16x1xf32>
    %629 = vector.broadcast %626 : vector<8x1x20xf32> to vector<8x16x20xf32>
    %630 = vector.broadcast %628 : vector<1x16x1xf32> to vector<8x16x20xf32>
    %631 = arith.mulf %629, %630 : vector<8x16x20xf32>
    %632 = arith.addf %624, %631 : vector<8x16x20xf32>
    %633 = vector.extract_strided_slice %18 {offsets = [0, 1], sizes = [8, 20], strides = [1, 1]} : vector<8x23xf32> to vector<8x20xf32>
    %634 = vector.shape_cast %633 : vector<8x20xf32> to vector<8x1x20xf32>
    %635 = vector.extract_strided_slice %25 {offsets = [0, 14], sizes = [16, 1], strides = [1, 1]} : vector<16x30xf32> to vector<16x1xf32>
    %636 = vector.shape_cast %635 : vector<16x1xf32> to vector<1x16x1xf32>
    %637 = vector.broadcast %634 : vector<8x1x20xf32> to vector<8x16x20xf32>
    %638 = vector.broadcast %636 : vector<1x16x1xf32> to vector<8x16x20xf32>
    %639 = arith.mulf %637, %638 : vector<8x16x20xf32>
    %640 = arith.addf %632, %639 : vector<8x16x20xf32>
    %641 = vector.extract_strided_slice %20 {offsets = [0, 1], sizes = [8, 20], strides = [1, 1]} : vector<8x23xf32> to vector<8x20xf32>
    %642 = vector.shape_cast %641 : vector<8x20xf32> to vector<8x1x20xf32>
    %643 = vector.extract_strided_slice %25 {offsets = [0, 15], sizes = [16, 1], strides = [1, 1]} : vector<16x30xf32> to vector<16x1xf32>
    %644 = vector.shape_cast %643 : vector<16x1xf32> to vector<1x16x1xf32>
    %645 = vector.broadcast %642 : vector<8x1x20xf32> to vector<8x16x20xf32>
    %646 = vector.broadcast %644 : vector<1x16x1xf32> to vector<8x16x20xf32>
    %647 = arith.mulf %645, %646 : vector<8x16x20xf32>
    %648 = arith.addf %640, %647 : vector<8x16x20xf32>
    %649 = vector.extract_strided_slice %22 {offsets = [0, 1], sizes = [8, 20], strides = [1, 1]} : vector<8x23xf32> to vector<8x20xf32>
    %650 = vector.shape_cast %649 : vector<8x20xf32> to vector<8x1x20xf32>
    %651 = vector.extract_strided_slice %25 {offsets = [0, 16], sizes = [16, 1], strides = [1, 1]} : vector<16x30xf32> to vector<16x1xf32>
    %652 = vector.shape_cast %651 : vector<16x1xf32> to vector<1x16x1xf32>
    %653 = vector.broadcast %650 : vector<8x1x20xf32> to vector<8x16x20xf32>
    %654 = vector.broadcast %652 : vector<1x16x1xf32> to vector<8x16x20xf32>
    %655 = arith.mulf %653, %654 : vector<8x16x20xf32>
    %656 = arith.addf %648, %655 : vector<8x16x20xf32>
    %657 = vector.extract_strided_slice %24 {offsets = [0, 1], sizes = [8, 20], strides = [1, 1]} : vector<8x23xf32> to vector<8x20xf32>
    %658 = vector.shape_cast %657 : vector<8x20xf32> to vector<8x1x20xf32>
    %659 = vector.extract_strided_slice %25 {offsets = [0, 17], sizes = [16, 1], strides = [1, 1]} : vector<16x30xf32> to vector<16x1xf32>
    %660 = vector.shape_cast %659 : vector<16x1xf32> to vector<1x16x1xf32>
    %661 = vector.broadcast %658 : vector<8x1x20xf32> to vector<8x16x20xf32>
    %662 = vector.broadcast %660 : vector<1x16x1xf32> to vector<8x16x20xf32>
    %663 = arith.mulf %661, %662 : vector<8x16x20xf32>
    %664 = arith.addf %656, %663 : vector<8x16x20xf32>
    %665 = vector.extract_strided_slice %2 {offsets = [0, 2], sizes = [8, 20], strides = [1, 1]} : vector<8x23xf32> to vector<8x20xf32>
    %666 = vector.shape_cast %665 : vector<8x20xf32> to vector<8x1x20xf32>
    %667 = vector.extract_strided_slice %25 {offsets = [0, 18], sizes = [16, 1], strides = [1, 1]} : vector<16x30xf32> to vector<16x1xf32>
    %668 = vector.shape_cast %667 : vector<16x1xf32> to vector<1x16x1xf32>
    %669 = vector.broadcast %666 : vector<8x1x20xf32> to vector<8x16x20xf32>
    %670 = vector.broadcast %668 : vector<1x16x1xf32> to vector<8x16x20xf32>
    %671 = arith.mulf %669, %670 : vector<8x16x20xf32>
    %672 = arith.addf %664, %671 : vector<8x16x20xf32>
    %673 = vector.extract_strided_slice %4 {offsets = [0, 2], sizes = [8, 20], strides = [1, 1]} : vector<8x23xf32> to vector<8x20xf32>
    %674 = vector.shape_cast %673 : vector<8x20xf32> to vector<8x1x20xf32>
    %675 = vector.extract_strided_slice %25 {offsets = [0, 19], sizes = [16, 1], strides = [1, 1]} : vector<16x30xf32> to vector<16x1xf32>
    %676 = vector.shape_cast %675 : vector<16x1xf32> to vector<1x16x1xf32>
    %677 = vector.broadcast %674 : vector<8x1x20xf32> to vector<8x16x20xf32>
    %678 = vector.broadcast %676 : vector<1x16x1xf32> to vector<8x16x20xf32>
    %679 = arith.mulf %677, %678 : vector<8x16x20xf32>
    %680 = arith.addf %672, %679 : vector<8x16x20xf32>
    %681 = vector.extract_strided_slice %6 {offsets = [0, 2], sizes = [8, 20], strides = [1, 1]} : vector<8x23xf32> to vector<8x20xf32>
    %682 = vector.shape_cast %681 : vector<8x20xf32> to vector<8x1x20xf32>
    %683 = vector.extract_strided_slice %25 {offsets = [0, 20], sizes = [16, 1], strides = [1, 1]} : vector<16x30xf32> to vector<16x1xf32>
    %684 = vector.shape_cast %683 : vector<16x1xf32> to vector<1x16x1xf32>
    %685 = vector.broadcast %682 : vector<8x1x20xf32> to vector<8x16x20xf32>
    %686 = vector.broadcast %684 : vector<1x16x1xf32> to vector<8x16x20xf32>
    %687 = arith.mulf %685, %686 : vector<8x16x20xf32>
    %688 = arith.addf %680, %687 : vector<8x16x20xf32>
    %689 = vector.extract_strided_slice %8 {offsets = [0, 2], sizes = [8, 20], strides = [1, 1]} : vector<8x23xf32> to vector<8x20xf32>
    %690 = vector.shape_cast %689 : vector<8x20xf32> to vector<8x1x20xf32>
    %691 = vector.extract_strided_slice %25 {offsets = [0, 21], sizes = [16, 1], strides = [1, 1]} : vector<16x30xf32> to vector<16x1xf32>
    %692 = vector.shape_cast %691 : vector<16x1xf32> to vector<1x16x1xf32>
    %693 = vector.broadcast %690 : vector<8x1x20xf32> to vector<8x16x20xf32>
    %694 = vector.broadcast %692 : vector<1x16x1xf32> to vector<8x16x20xf32>
    %695 = arith.mulf %693, %694 : vector<8x16x20xf32>
    %696 = arith.addf %688, %695 : vector<8x16x20xf32>
    %697 = vector.extract_strided_slice %10 {offsets = [0, 2], sizes = [8, 20], strides = [1, 1]} : vector<8x23xf32> to vector<8x20xf32>
    %698 = vector.shape_cast %697 : vector<8x20xf32> to vector<8x1x20xf32>
    %699 = vector.extract_strided_slice %25 {offsets = [0, 22], sizes = [16, 1], strides = [1, 1]} : vector<16x30xf32> to vector<16x1xf32>
    %700 = vector.shape_cast %699 : vector<16x1xf32> to vector<1x16x1xf32>
    %701 = vector.broadcast %698 : vector<8x1x20xf32> to vector<8x16x20xf32>
    %702 = vector.broadcast %700 : vector<1x16x1xf32> to vector<8x16x20xf32>
    %703 = arith.mulf %701, %702 : vector<8x16x20xf32>
    %704 = arith.addf %696, %703 : vector<8x16x20xf32>
    %705 = vector.extract_strided_slice %12 {offsets = [0, 2], sizes = [8, 20], strides = [1, 1]} : vector<8x23xf32> to vector<8x20xf32>
    %706 = vector.shape_cast %705 : vector<8x20xf32> to vector<8x1x20xf32>
    %707 = vector.extract_strided_slice %25 {offsets = [0, 23], sizes = [16, 1], strides = [1, 1]} : vector<16x30xf32> to vector<16x1xf32>
    %708 = vector.shape_cast %707 : vector<16x1xf32> to vector<1x16x1xf32>
    %709 = vector.broadcast %706 : vector<8x1x20xf32> to vector<8x16x20xf32>
    %710 = vector.broadcast %708 : vector<1x16x1xf32> to vector<8x16x20xf32>
    %711 = arith.mulf %709, %710 : vector<8x16x20xf32>
    %712 = arith.addf %704, %711 : vector<8x16x20xf32>
    %713 = vector.extract_strided_slice %14 {offsets = [0, 2], sizes = [8, 20], strides = [1, 1]} : vector<8x23xf32> to vector<8x20xf32>
    %714 = vector.shape_cast %713 : vector<8x20xf32> to vector<8x1x20xf32>
    %715 = vector.extract_strided_slice %25 {offsets = [0, 24], sizes = [16, 1], strides = [1, 1]} : vector<16x30xf32> to vector<16x1xf32>
    %716 = vector.shape_cast %715 : vector<16x1xf32> to vector<1x16x1xf32>
    %717 = vector.broadcast %714 : vector<8x1x20xf32> to vector<8x16x20xf32>
    %718 = vector.broadcast %716 : vector<1x16x1xf32> to vector<8x16x20xf32>
    %719 = arith.mulf %717, %718 : vector<8x16x20xf32>
    %720 = arith.addf %712, %719 : vector<8x16x20xf32>
    %721 = vector.extract_strided_slice %16 {offsets = [0, 2], sizes = [8, 20], strides = [1, 1]} : vector<8x23xf32> to vector<8x20xf32>
    %722 = vector.shape_cast %721 : vector<8x20xf32> to vector<8x1x20xf32>
    %723 = vector.extract_strided_slice %25 {offsets = [0, 25], sizes = [16, 1], strides = [1, 1]} : vector<16x30xf32> to vector<16x1xf32>
    %724 = vector.shape_cast %723 : vector<16x1xf32> to vector<1x16x1xf32>
    %725 = vector.broadcast %722 : vector<8x1x20xf32> to vector<8x16x20xf32>
    %726 = vector.broadcast %724 : vector<1x16x1xf32> to vector<8x16x20xf32>
    %727 = arith.mulf %725, %726 : vector<8x16x20xf32>
    %728 = arith.addf %720, %727 : vector<8x16x20xf32>
    %729 = vector.extract_strided_slice %18 {offsets = [0, 2], sizes = [8, 20], strides = [1, 1]} : vector<8x23xf32> to vector<8x20xf32>
    %730 = vector.shape_cast %729 : vector<8x20xf32> to vector<8x1x20xf32>
    %731 = vector.extract_strided_slice %25 {offsets = [0, 26], sizes = [16, 1], strides = [1, 1]} : vector<16x30xf32> to vector<16x1xf32>
    %732 = vector.shape_cast %731 : vector<16x1xf32> to vector<1x16x1xf32>
    %733 = vector.broadcast %730 : vector<8x1x20xf32> to vector<8x16x20xf32>
    %734 = vector.broadcast %732 : vector<1x16x1xf32> to vector<8x16x20xf32>
    %735 = arith.mulf %733, %734 : vector<8x16x20xf32>
    %736 = arith.addf %728, %735 : vector<8x16x20xf32>
    %737 = vector.extract_strided_slice %20 {offsets = [0, 2], sizes = [8, 20], strides = [1, 1]} : vector<8x23xf32> to vector<8x20xf32>
    %738 = vector.shape_cast %737 : vector<8x20xf32> to vector<8x1x20xf32>
    %739 = vector.extract_strided_slice %25 {offsets = [0, 27], sizes = [16, 1], strides = [1, 1]} : vector<16x30xf32> to vector<16x1xf32>
    %740 = vector.shape_cast %739 : vector<16x1xf32> to vector<1x16x1xf32>
    %741 = vector.broadcast %738 : vector<8x1x20xf32> to vector<8x16x20xf32>
    %742 = vector.broadcast %740 : vector<1x16x1xf32> to vector<8x16x20xf32>
    %743 = arith.mulf %741, %742 : vector<8x16x20xf32>
    %744 = arith.addf %736, %743 : vector<8x16x20xf32>
    %745 = vector.extract_strided_slice %22 {offsets = [0, 2], sizes = [8, 20], strides = [1, 1]} : vector<8x23xf32> to vector<8x20xf32>
    %746 = vector.shape_cast %745 : vector<8x20xf32> to vector<8x1x20xf32>
    %747 = vector.extract_strided_slice %25 {offsets = [0, 28], sizes = [16, 1], strides = [1, 1]} : vector<16x30xf32> to vector<16x1xf32>
    %748 = vector.shape_cast %747 : vector<16x1xf32> to vector<1x16x1xf32>
    %749 = vector.broadcast %746 : vector<8x1x20xf32> to vector<8x16x20xf32>
    %750 = vector.broadcast %748 : vector<1x16x1xf32> to vector<8x16x20xf32>
    %751 = arith.mulf %749, %750 : vector<8x16x20xf32>
    %752 = arith.addf %744, %751 : vector<8x16x20xf32>
    %753 = vector.extract_strided_slice %24 {offsets = [0, 2], sizes = [8, 20], strides = [1, 1]} : vector<8x23xf32> to vector<8x20xf32>
    %754 = vector.shape_cast %753 : vector<8x20xf32> to vector<8x1x20xf32>
    %755 = vector.extract_strided_slice %25 {offsets = [0, 29], sizes = [16, 1], strides = [1, 1]} : vector<16x30xf32> to vector<16x1xf32>
    %756 = vector.shape_cast %755 : vector<16x1xf32> to vector<1x16x1xf32>
    %757 = vector.broadcast %754 : vector<8x1x20xf32> to vector<8x16x20xf32>
    %758 = vector.broadcast %756 : vector<1x16x1xf32> to vector<8x16x20xf32>
    %759 = arith.mulf %757, %758 : vector<8x16x20xf32>
    %760 = arith.addf %752, %759 : vector<8x16x20xf32>
    %761 = vector.shape_cast %26 : vector<16x1xf32> to vector<1x16x1xf32>
    %762 = vector.broadcast %761 : vector<1x16x1xf32> to vector<8x16x20xf32>
    %763 = arith.addf %760, %762 : vector<8x16x20xf32>
    %cst_18 = arith.constant 0.000000e+00 : f32
    %764 = vector.broadcast %cst_18 : f32 to vector<8x16x20xf32>
    %765 = vector.extract_strided_slice %20 {offsets = [0, 0], sizes = [8, 20], strides = [1, 1]} : vector<8x23xf32> to vector<8x20xf32>
    %766 = vector.shape_cast %765 : vector<8x20xf32> to vector<8x1x20xf32>
    %767 = vector.extract_strided_slice %25 {offsets = [0, 0], sizes = [16, 1], strides = [1, 1]} : vector<16x30xf32> to vector<16x1xf32>
    %768 = vector.shape_cast %767 : vector<16x1xf32> to vector<1x16x1xf32>
    %769 = vector.broadcast %766 : vector<8x1x20xf32> to vector<8x16x20xf32>
    %770 = vector.broadcast %768 : vector<1x16x1xf32> to vector<8x16x20xf32>
    %771 = arith.mulf %769, %770 : vector<8x16x20xf32>
    %772 = arith.addf %764, %771 : vector<8x16x20xf32>
    %773 = vector.extract_strided_slice %22 {offsets = [0, 0], sizes = [8, 20], strides = [1, 1]} : vector<8x23xf32> to vector<8x20xf32>
    %774 = vector.shape_cast %773 : vector<8x20xf32> to vector<8x1x20xf32>
    %775 = vector.extract_strided_slice %25 {offsets = [0, 1], sizes = [16, 1], strides = [1, 1]} : vector<16x30xf32> to vector<16x1xf32>
    %776 = vector.shape_cast %775 : vector<16x1xf32> to vector<1x16x1xf32>
    %777 = vector.broadcast %774 : vector<8x1x20xf32> to vector<8x16x20xf32>
    %778 = vector.broadcast %776 : vector<1x16x1xf32> to vector<8x16x20xf32>
    %779 = arith.mulf %777, %778 : vector<8x16x20xf32>
    %780 = arith.addf %772, %779 : vector<8x16x20xf32>
    %781 = vector.extract_strided_slice %24 {offsets = [0, 0], sizes = [8, 20], strides = [1, 1]} : vector<8x23xf32> to vector<8x20xf32>
    %782 = vector.shape_cast %781 : vector<8x20xf32> to vector<8x1x20xf32>
    %783 = vector.extract_strided_slice %25 {offsets = [0, 2], sizes = [16, 1], strides = [1, 1]} : vector<16x30xf32> to vector<16x1xf32>
    %784 = vector.shape_cast %783 : vector<16x1xf32> to vector<1x16x1xf32>
    %785 = vector.broadcast %782 : vector<8x1x20xf32> to vector<8x16x20xf32>
    %786 = vector.broadcast %784 : vector<1x16x1xf32> to vector<8x16x20xf32>
    %787 = arith.mulf %785, %786 : vector<8x16x20xf32>
    %788 = arith.addf %780, %787 : vector<8x16x20xf32>
    %789 = vector.extract_strided_slice %2 {offsets = [0, 1], sizes = [8, 20], strides = [1, 1]} : vector<8x23xf32> to vector<8x20xf32>
    %790 = vector.shape_cast %789 : vector<8x20xf32> to vector<8x1x20xf32>
    %791 = vector.extract_strided_slice %25 {offsets = [0, 3], sizes = [16, 1], strides = [1, 1]} : vector<16x30xf32> to vector<16x1xf32>
    %792 = vector.shape_cast %791 : vector<16x1xf32> to vector<1x16x1xf32>
    %793 = vector.broadcast %790 : vector<8x1x20xf32> to vector<8x16x20xf32>
    %794 = vector.broadcast %792 : vector<1x16x1xf32> to vector<8x16x20xf32>
    %795 = arith.mulf %793, %794 : vector<8x16x20xf32>
    %796 = arith.addf %788, %795 : vector<8x16x20xf32>
    %797 = vector.extract_strided_slice %4 {offsets = [0, 1], sizes = [8, 20], strides = [1, 1]} : vector<8x23xf32> to vector<8x20xf32>
    %798 = vector.shape_cast %797 : vector<8x20xf32> to vector<8x1x20xf32>
    %799 = vector.extract_strided_slice %25 {offsets = [0, 4], sizes = [16, 1], strides = [1, 1]} : vector<16x30xf32> to vector<16x1xf32>
    %800 = vector.shape_cast %799 : vector<16x1xf32> to vector<1x16x1xf32>
    %801 = vector.broadcast %798 : vector<8x1x20xf32> to vector<8x16x20xf32>
    %802 = vector.broadcast %800 : vector<1x16x1xf32> to vector<8x16x20xf32>
    %803 = arith.mulf %801, %802 : vector<8x16x20xf32>
    %804 = arith.addf %796, %803 : vector<8x16x20xf32>
    %805 = vector.extract_strided_slice %6 {offsets = [0, 1], sizes = [8, 20], strides = [1, 1]} : vector<8x23xf32> to vector<8x20xf32>
    %806 = vector.shape_cast %805 : vector<8x20xf32> to vector<8x1x20xf32>
    %807 = vector.extract_strided_slice %25 {offsets = [0, 5], sizes = [16, 1], strides = [1, 1]} : vector<16x30xf32> to vector<16x1xf32>
    %808 = vector.shape_cast %807 : vector<16x1xf32> to vector<1x16x1xf32>
    %809 = vector.broadcast %806 : vector<8x1x20xf32> to vector<8x16x20xf32>
    %810 = vector.broadcast %808 : vector<1x16x1xf32> to vector<8x16x20xf32>
    %811 = arith.mulf %809, %810 : vector<8x16x20xf32>
    %812 = arith.addf %804, %811 : vector<8x16x20xf32>
    %813 = vector.extract_strided_slice %8 {offsets = [0, 1], sizes = [8, 20], strides = [1, 1]} : vector<8x23xf32> to vector<8x20xf32>
    %814 = vector.shape_cast %813 : vector<8x20xf32> to vector<8x1x20xf32>
    %815 = vector.extract_strided_slice %25 {offsets = [0, 6], sizes = [16, 1], strides = [1, 1]} : vector<16x30xf32> to vector<16x1xf32>
    %816 = vector.shape_cast %815 : vector<16x1xf32> to vector<1x16x1xf32>
    %817 = vector.broadcast %814 : vector<8x1x20xf32> to vector<8x16x20xf32>
    %818 = vector.broadcast %816 : vector<1x16x1xf32> to vector<8x16x20xf32>
    %819 = arith.mulf %817, %818 : vector<8x16x20xf32>
    %820 = arith.addf %812, %819 : vector<8x16x20xf32>
    %821 = vector.extract_strided_slice %10 {offsets = [0, 1], sizes = [8, 20], strides = [1, 1]} : vector<8x23xf32> to vector<8x20xf32>
    %822 = vector.shape_cast %821 : vector<8x20xf32> to vector<8x1x20xf32>
    %823 = vector.extract_strided_slice %25 {offsets = [0, 7], sizes = [16, 1], strides = [1, 1]} : vector<16x30xf32> to vector<16x1xf32>
    %824 = vector.shape_cast %823 : vector<16x1xf32> to vector<1x16x1xf32>
    %825 = vector.broadcast %822 : vector<8x1x20xf32> to vector<8x16x20xf32>
    %826 = vector.broadcast %824 : vector<1x16x1xf32> to vector<8x16x20xf32>
    %827 = arith.mulf %825, %826 : vector<8x16x20xf32>
    %828 = arith.addf %820, %827 : vector<8x16x20xf32>
    %829 = vector.extract_strided_slice %12 {offsets = [0, 1], sizes = [8, 20], strides = [1, 1]} : vector<8x23xf32> to vector<8x20xf32>
    %830 = vector.shape_cast %829 : vector<8x20xf32> to vector<8x1x20xf32>
    %831 = vector.extract_strided_slice %25 {offsets = [0, 8], sizes = [16, 1], strides = [1, 1]} : vector<16x30xf32> to vector<16x1xf32>
    %832 = vector.shape_cast %831 : vector<16x1xf32> to vector<1x16x1xf32>
    %833 = vector.broadcast %830 : vector<8x1x20xf32> to vector<8x16x20xf32>
    %834 = vector.broadcast %832 : vector<1x16x1xf32> to vector<8x16x20xf32>
    %835 = arith.mulf %833, %834 : vector<8x16x20xf32>
    %836 = arith.addf %828, %835 : vector<8x16x20xf32>
    %837 = vector.extract_strided_slice %14 {offsets = [0, 1], sizes = [8, 20], strides = [1, 1]} : vector<8x23xf32> to vector<8x20xf32>
    %838 = vector.shape_cast %837 : vector<8x20xf32> to vector<8x1x20xf32>
    %839 = vector.extract_strided_slice %25 {offsets = [0, 9], sizes = [16, 1], strides = [1, 1]} : vector<16x30xf32> to vector<16x1xf32>
    %840 = vector.shape_cast %839 : vector<16x1xf32> to vector<1x16x1xf32>
    %841 = vector.broadcast %838 : vector<8x1x20xf32> to vector<8x16x20xf32>
    %842 = vector.broadcast %840 : vector<1x16x1xf32> to vector<8x16x20xf32>
    %843 = arith.mulf %841, %842 : vector<8x16x20xf32>
    %844 = arith.addf %836, %843 : vector<8x16x20xf32>
    %845 = vector.extract_strided_slice %16 {offsets = [0, 1], sizes = [8, 20], strides = [1, 1]} : vector<8x23xf32> to vector<8x20xf32>
    %846 = vector.shape_cast %845 : vector<8x20xf32> to vector<8x1x20xf32>
    %847 = vector.extract_strided_slice %25 {offsets = [0, 10], sizes = [16, 1], strides = [1, 1]} : vector<16x30xf32> to vector<16x1xf32>
    %848 = vector.shape_cast %847 : vector<16x1xf32> to vector<1x16x1xf32>
    %849 = vector.broadcast %846 : vector<8x1x20xf32> to vector<8x16x20xf32>
    %850 = vector.broadcast %848 : vector<1x16x1xf32> to vector<8x16x20xf32>
    %851 = arith.mulf %849, %850 : vector<8x16x20xf32>
    %852 = arith.addf %844, %851 : vector<8x16x20xf32>
    %853 = vector.extract_strided_slice %18 {offsets = [0, 1], sizes = [8, 20], strides = [1, 1]} : vector<8x23xf32> to vector<8x20xf32>
    %854 = vector.shape_cast %853 : vector<8x20xf32> to vector<8x1x20xf32>
    %855 = vector.extract_strided_slice %25 {offsets = [0, 11], sizes = [16, 1], strides = [1, 1]} : vector<16x30xf32> to vector<16x1xf32>
    %856 = vector.shape_cast %855 : vector<16x1xf32> to vector<1x16x1xf32>
    %857 = vector.broadcast %854 : vector<8x1x20xf32> to vector<8x16x20xf32>
    %858 = vector.broadcast %856 : vector<1x16x1xf32> to vector<8x16x20xf32>
    %859 = arith.mulf %857, %858 : vector<8x16x20xf32>
    %860 = arith.addf %852, %859 : vector<8x16x20xf32>
    %861 = vector.extract_strided_slice %20 {offsets = [0, 1], sizes = [8, 20], strides = [1, 1]} : vector<8x23xf32> to vector<8x20xf32>
    %862 = vector.shape_cast %861 : vector<8x20xf32> to vector<8x1x20xf32>
    %863 = vector.extract_strided_slice %25 {offsets = [0, 12], sizes = [16, 1], strides = [1, 1]} : vector<16x30xf32> to vector<16x1xf32>
    %864 = vector.shape_cast %863 : vector<16x1xf32> to vector<1x16x1xf32>
    %865 = vector.broadcast %862 : vector<8x1x20xf32> to vector<8x16x20xf32>
    %866 = vector.broadcast %864 : vector<1x16x1xf32> to vector<8x16x20xf32>
    %867 = arith.mulf %865, %866 : vector<8x16x20xf32>
    %868 = arith.addf %860, %867 : vector<8x16x20xf32>
    %869 = vector.extract_strided_slice %22 {offsets = [0, 1], sizes = [8, 20], strides = [1, 1]} : vector<8x23xf32> to vector<8x20xf32>
    %870 = vector.shape_cast %869 : vector<8x20xf32> to vector<8x1x20xf32>
    %871 = vector.extract_strided_slice %25 {offsets = [0, 13], sizes = [16, 1], strides = [1, 1]} : vector<16x30xf32> to vector<16x1xf32>
    %872 = vector.shape_cast %871 : vector<16x1xf32> to vector<1x16x1xf32>
    %873 = vector.broadcast %870 : vector<8x1x20xf32> to vector<8x16x20xf32>
    %874 = vector.broadcast %872 : vector<1x16x1xf32> to vector<8x16x20xf32>
    %875 = arith.mulf %873, %874 : vector<8x16x20xf32>
    %876 = arith.addf %868, %875 : vector<8x16x20xf32>
    %877 = vector.extract_strided_slice %24 {offsets = [0, 1], sizes = [8, 20], strides = [1, 1]} : vector<8x23xf32> to vector<8x20xf32>
    %878 = vector.shape_cast %877 : vector<8x20xf32> to vector<8x1x20xf32>
    %879 = vector.extract_strided_slice %25 {offsets = [0, 14], sizes = [16, 1], strides = [1, 1]} : vector<16x30xf32> to vector<16x1xf32>
    %880 = vector.shape_cast %879 : vector<16x1xf32> to vector<1x16x1xf32>
    %881 = vector.broadcast %878 : vector<8x1x20xf32> to vector<8x16x20xf32>
    %882 = vector.broadcast %880 : vector<1x16x1xf32> to vector<8x16x20xf32>
    %883 = arith.mulf %881, %882 : vector<8x16x20xf32>
    %884 = arith.addf %876, %883 : vector<8x16x20xf32>
    %885 = vector.extract_strided_slice %2 {offsets = [0, 2], sizes = [8, 20], strides = [1, 1]} : vector<8x23xf32> to vector<8x20xf32>
    %886 = vector.shape_cast %885 : vector<8x20xf32> to vector<8x1x20xf32>
    %887 = vector.extract_strided_slice %25 {offsets = [0, 15], sizes = [16, 1], strides = [1, 1]} : vector<16x30xf32> to vector<16x1xf32>
    %888 = vector.shape_cast %887 : vector<16x1xf32> to vector<1x16x1xf32>
    %889 = vector.broadcast %886 : vector<8x1x20xf32> to vector<8x16x20xf32>
    %890 = vector.broadcast %888 : vector<1x16x1xf32> to vector<8x16x20xf32>
    %891 = arith.mulf %889, %890 : vector<8x16x20xf32>
    %892 = arith.addf %884, %891 : vector<8x16x20xf32>
    %893 = vector.extract_strided_slice %4 {offsets = [0, 2], sizes = [8, 20], strides = [1, 1]} : vector<8x23xf32> to vector<8x20xf32>
    %894 = vector.shape_cast %893 : vector<8x20xf32> to vector<8x1x20xf32>
    %895 = vector.extract_strided_slice %25 {offsets = [0, 16], sizes = [16, 1], strides = [1, 1]} : vector<16x30xf32> to vector<16x1xf32>
    %896 = vector.shape_cast %895 : vector<16x1xf32> to vector<1x16x1xf32>
    %897 = vector.broadcast %894 : vector<8x1x20xf32> to vector<8x16x20xf32>
    %898 = vector.broadcast %896 : vector<1x16x1xf32> to vector<8x16x20xf32>
    %899 = arith.mulf %897, %898 : vector<8x16x20xf32>
    %900 = arith.addf %892, %899 : vector<8x16x20xf32>
    %901 = vector.extract_strided_slice %6 {offsets = [0, 2], sizes = [8, 20], strides = [1, 1]} : vector<8x23xf32> to vector<8x20xf32>
    %902 = vector.shape_cast %901 : vector<8x20xf32> to vector<8x1x20xf32>
    %903 = vector.extract_strided_slice %25 {offsets = [0, 17], sizes = [16, 1], strides = [1, 1]} : vector<16x30xf32> to vector<16x1xf32>
    %904 = vector.shape_cast %903 : vector<16x1xf32> to vector<1x16x1xf32>
    %905 = vector.broadcast %902 : vector<8x1x20xf32> to vector<8x16x20xf32>
    %906 = vector.broadcast %904 : vector<1x16x1xf32> to vector<8x16x20xf32>
    %907 = arith.mulf %905, %906 : vector<8x16x20xf32>
    %908 = arith.addf %900, %907 : vector<8x16x20xf32>
    %909 = vector.extract_strided_slice %8 {offsets = [0, 2], sizes = [8, 20], strides = [1, 1]} : vector<8x23xf32> to vector<8x20xf32>
    %910 = vector.shape_cast %909 : vector<8x20xf32> to vector<8x1x20xf32>
    %911 = vector.extract_strided_slice %25 {offsets = [0, 18], sizes = [16, 1], strides = [1, 1]} : vector<16x30xf32> to vector<16x1xf32>
    %912 = vector.shape_cast %911 : vector<16x1xf32> to vector<1x16x1xf32>
    %913 = vector.broadcast %910 : vector<8x1x20xf32> to vector<8x16x20xf32>
    %914 = vector.broadcast %912 : vector<1x16x1xf32> to vector<8x16x20xf32>
    %915 = arith.mulf %913, %914 : vector<8x16x20xf32>
    %916 = arith.addf %908, %915 : vector<8x16x20xf32>
    %917 = vector.extract_strided_slice %10 {offsets = [0, 2], sizes = [8, 20], strides = [1, 1]} : vector<8x23xf32> to vector<8x20xf32>
    %918 = vector.shape_cast %917 : vector<8x20xf32> to vector<8x1x20xf32>
    %919 = vector.extract_strided_slice %25 {offsets = [0, 19], sizes = [16, 1], strides = [1, 1]} : vector<16x30xf32> to vector<16x1xf32>
    %920 = vector.shape_cast %919 : vector<16x1xf32> to vector<1x16x1xf32>
    %921 = vector.broadcast %918 : vector<8x1x20xf32> to vector<8x16x20xf32>
    %922 = vector.broadcast %920 : vector<1x16x1xf32> to vector<8x16x20xf32>
    %923 = arith.mulf %921, %922 : vector<8x16x20xf32>
    %924 = arith.addf %916, %923 : vector<8x16x20xf32>
    %925 = vector.extract_strided_slice %12 {offsets = [0, 2], sizes = [8, 20], strides = [1, 1]} : vector<8x23xf32> to vector<8x20xf32>
    %926 = vector.shape_cast %925 : vector<8x20xf32> to vector<8x1x20xf32>
    %927 = vector.extract_strided_slice %25 {offsets = [0, 20], sizes = [16, 1], strides = [1, 1]} : vector<16x30xf32> to vector<16x1xf32>
    %928 = vector.shape_cast %927 : vector<16x1xf32> to vector<1x16x1xf32>
    %929 = vector.broadcast %926 : vector<8x1x20xf32> to vector<8x16x20xf32>
    %930 = vector.broadcast %928 : vector<1x16x1xf32> to vector<8x16x20xf32>
    %931 = arith.mulf %929, %930 : vector<8x16x20xf32>
    %932 = arith.addf %924, %931 : vector<8x16x20xf32>
    %933 = vector.extract_strided_slice %14 {offsets = [0, 2], sizes = [8, 20], strides = [1, 1]} : vector<8x23xf32> to vector<8x20xf32>
    %934 = vector.shape_cast %933 : vector<8x20xf32> to vector<8x1x20xf32>
    %935 = vector.extract_strided_slice %25 {offsets = [0, 21], sizes = [16, 1], strides = [1, 1]} : vector<16x30xf32> to vector<16x1xf32>
    %936 = vector.shape_cast %935 : vector<16x1xf32> to vector<1x16x1xf32>
    %937 = vector.broadcast %934 : vector<8x1x20xf32> to vector<8x16x20xf32>
    %938 = vector.broadcast %936 : vector<1x16x1xf32> to vector<8x16x20xf32>
    %939 = arith.mulf %937, %938 : vector<8x16x20xf32>
    %940 = arith.addf %932, %939 : vector<8x16x20xf32>
    %941 = vector.extract_strided_slice %16 {offsets = [0, 2], sizes = [8, 20], strides = [1, 1]} : vector<8x23xf32> to vector<8x20xf32>
    %942 = vector.shape_cast %941 : vector<8x20xf32> to vector<8x1x20xf32>
    %943 = vector.extract_strided_slice %25 {offsets = [0, 22], sizes = [16, 1], strides = [1, 1]} : vector<16x30xf32> to vector<16x1xf32>
    %944 = vector.shape_cast %943 : vector<16x1xf32> to vector<1x16x1xf32>
    %945 = vector.broadcast %942 : vector<8x1x20xf32> to vector<8x16x20xf32>
    %946 = vector.broadcast %944 : vector<1x16x1xf32> to vector<8x16x20xf32>
    %947 = arith.mulf %945, %946 : vector<8x16x20xf32>
    %948 = arith.addf %940, %947 : vector<8x16x20xf32>
    %949 = vector.extract_strided_slice %18 {offsets = [0, 2], sizes = [8, 20], strides = [1, 1]} : vector<8x23xf32> to vector<8x20xf32>
    %950 = vector.shape_cast %949 : vector<8x20xf32> to vector<8x1x20xf32>
    %951 = vector.extract_strided_slice %25 {offsets = [0, 23], sizes = [16, 1], strides = [1, 1]} : vector<16x30xf32> to vector<16x1xf32>
    %952 = vector.shape_cast %951 : vector<16x1xf32> to vector<1x16x1xf32>
    %953 = vector.broadcast %950 : vector<8x1x20xf32> to vector<8x16x20xf32>
    %954 = vector.broadcast %952 : vector<1x16x1xf32> to vector<8x16x20xf32>
    %955 = arith.mulf %953, %954 : vector<8x16x20xf32>
    %956 = arith.addf %948, %955 : vector<8x16x20xf32>
    %957 = vector.extract_strided_slice %20 {offsets = [0, 2], sizes = [8, 20], strides = [1, 1]} : vector<8x23xf32> to vector<8x20xf32>
    %958 = vector.shape_cast %957 : vector<8x20xf32> to vector<8x1x20xf32>
    %959 = vector.extract_strided_slice %25 {offsets = [0, 24], sizes = [16, 1], strides = [1, 1]} : vector<16x30xf32> to vector<16x1xf32>
    %960 = vector.shape_cast %959 : vector<16x1xf32> to vector<1x16x1xf32>
    %961 = vector.broadcast %958 : vector<8x1x20xf32> to vector<8x16x20xf32>
    %962 = vector.broadcast %960 : vector<1x16x1xf32> to vector<8x16x20xf32>
    %963 = arith.mulf %961, %962 : vector<8x16x20xf32>
    %964 = arith.addf %956, %963 : vector<8x16x20xf32>
    %965 = vector.extract_strided_slice %22 {offsets = [0, 2], sizes = [8, 20], strides = [1, 1]} : vector<8x23xf32> to vector<8x20xf32>
    %966 = vector.shape_cast %965 : vector<8x20xf32> to vector<8x1x20xf32>
    %967 = vector.extract_strided_slice %25 {offsets = [0, 25], sizes = [16, 1], strides = [1, 1]} : vector<16x30xf32> to vector<16x1xf32>
    %968 = vector.shape_cast %967 : vector<16x1xf32> to vector<1x16x1xf32>
    %969 = vector.broadcast %966 : vector<8x1x20xf32> to vector<8x16x20xf32>
    %970 = vector.broadcast %968 : vector<1x16x1xf32> to vector<8x16x20xf32>
    %971 = arith.mulf %969, %970 : vector<8x16x20xf32>
    %972 = arith.addf %964, %971 : vector<8x16x20xf32>
    %973 = vector.extract_strided_slice %24 {offsets = [0, 2], sizes = [8, 20], strides = [1, 1]} : vector<8x23xf32> to vector<8x20xf32>
    %974 = vector.shape_cast %973 : vector<8x20xf32> to vector<8x1x20xf32>
    %975 = vector.extract_strided_slice %25 {offsets = [0, 26], sizes = [16, 1], strides = [1, 1]} : vector<16x30xf32> to vector<16x1xf32>
    %976 = vector.shape_cast %975 : vector<16x1xf32> to vector<1x16x1xf32>
    %977 = vector.broadcast %974 : vector<8x1x20xf32> to vector<8x16x20xf32>
    %978 = vector.broadcast %976 : vector<1x16x1xf32> to vector<8x16x20xf32>
    %979 = arith.mulf %977, %978 : vector<8x16x20xf32>
    %980 = arith.addf %972, %979 : vector<8x16x20xf32>
    %981 = vector.extract_strided_slice %2 {offsets = [0, 3], sizes = [8, 20], strides = [1, 1]} : vector<8x23xf32> to vector<8x20xf32>
    %982 = vector.shape_cast %981 : vector<8x20xf32> to vector<8x1x20xf32>
    %983 = vector.extract_strided_slice %25 {offsets = [0, 27], sizes = [16, 1], strides = [1, 1]} : vector<16x30xf32> to vector<16x1xf32>
    %984 = vector.shape_cast %983 : vector<16x1xf32> to vector<1x16x1xf32>
    %985 = vector.broadcast %982 : vector<8x1x20xf32> to vector<8x16x20xf32>
    %986 = vector.broadcast %984 : vector<1x16x1xf32> to vector<8x16x20xf32>
    %987 = arith.mulf %985, %986 : vector<8x16x20xf32>
    %988 = arith.addf %980, %987 : vector<8x16x20xf32>
    %989 = vector.extract_strided_slice %4 {offsets = [0, 3], sizes = [8, 20], strides = [1, 1]} : vector<8x23xf32> to vector<8x20xf32>
    %990 = vector.shape_cast %989 : vector<8x20xf32> to vector<8x1x20xf32>
    %991 = vector.extract_strided_slice %25 {offsets = [0, 28], sizes = [16, 1], strides = [1, 1]} : vector<16x30xf32> to vector<16x1xf32>
    %992 = vector.shape_cast %991 : vector<16x1xf32> to vector<1x16x1xf32>
    %993 = vector.broadcast %990 : vector<8x1x20xf32> to vector<8x16x20xf32>
    %994 = vector.broadcast %992 : vector<1x16x1xf32> to vector<8x16x20xf32>
    %995 = arith.mulf %993, %994 : vector<8x16x20xf32>
    %996 = arith.addf %988, %995 : vector<8x16x20xf32>
    %997 = vector.extract_strided_slice %6 {offsets = [0, 3], sizes = [8, 20], strides = [1, 1]} : vector<8x23xf32> to vector<8x20xf32>
    %998 = vector.shape_cast %997 : vector<8x20xf32> to vector<8x1x20xf32>
    %999 = vector.extract_strided_slice %25 {offsets = [0, 29], sizes = [16, 1], strides = [1, 1]} : vector<16x30xf32> to vector<16x1xf32>
    %1000 = vector.shape_cast %999 : vector<16x1xf32> to vector<1x16x1xf32>
    %1001 = vector.broadcast %998 : vector<8x1x20xf32> to vector<8x16x20xf32>
    %1002 = vector.broadcast %1000 : vector<1x16x1xf32> to vector<8x16x20xf32>
    %1003 = arith.mulf %1001, %1002 : vector<8x16x20xf32>
    %1004 = arith.addf %996, %1003 : vector<8x16x20xf32>
    %1005 = vector.shape_cast %26 : vector<16x1xf32> to vector<1x16x1xf32>
    %1006 = vector.broadcast %1005 : vector<1x16x1xf32> to vector<8x16x20xf32>
    %1007 = arith.addf %1004, %1006 : vector<8x16x20xf32>
    %1008 = vector.extract_strided_slice %275 {offsets = [0, 0, 0], sizes = [1, 16, 21], strides = [1, 1, 1]} : vector<8x16x21xf32> to vector<1x16x21xf32>
    %1009 = vector.shape_cast %1008 : vector<1x16x21xf32> to vector<16x21xf32>
    %1010 = vector.extract_strided_slice %275 {offsets = [1, 0, 0], sizes = [1, 16, 21], strides = [1, 1, 1]} : vector<8x16x21xf32> to vector<1x16x21xf32>
    %1011 = vector.shape_cast %1010 : vector<1x16x21xf32> to vector<16x21xf32>
    %1012 = vector.extract_strided_slice %275 {offsets = [2, 0, 0], sizes = [1, 16, 21], strides = [1, 1, 1]} : vector<8x16x21xf32> to vector<1x16x21xf32>
    %1013 = vector.shape_cast %1012 : vector<1x16x21xf32> to vector<16x21xf32>
    %1014 = vector.extract_strided_slice %275 {offsets = [3, 0, 0], sizes = [1, 16, 21], strides = [1, 1, 1]} : vector<8x16x21xf32> to vector<1x16x21xf32>
    %1015 = vector.shape_cast %1014 : vector<1x16x21xf32> to vector<16x21xf32>
    %1016 = tpu.concatenate %1009, %1011, %1013, %1015 in 0 : vector<16x21xf32>, vector<16x21xf32>, vector<16x21xf32>, vector<16x21xf32> -> vector<64x21xf32>
    %1017 = vector.extract_strided_slice %519 {offsets = [0, 0, 0], sizes = [1, 16, 20], strides = [1, 1, 1]} : vector<8x16x20xf32> to vector<1x16x20xf32>
    %1018 = vector.shape_cast %1017 : vector<1x16x20xf32> to vector<16x20xf32>
    %1019 = vector.extract_strided_slice %519 {offsets = [1, 0, 0], sizes = [1, 16, 20], strides = [1, 1, 1]} : vector<8x16x20xf32> to vector<1x16x20xf32>
    %1020 = vector.shape_cast %1019 : vector<1x16x20xf32> to vector<16x20xf32>
    %1021 = vector.extract_strided_slice %519 {offsets = [2, 0, 0], sizes = [1, 16, 20], strides = [1, 1, 1]} : vector<8x16x20xf32> to vector<1x16x20xf32>
    %1022 = vector.shape_cast %1021 : vector<1x16x20xf32> to vector<16x20xf32>
    %1023 = vector.extract_strided_slice %519 {offsets = [3, 0, 0], sizes = [1, 16, 20], strides = [1, 1, 1]} : vector<8x16x20xf32> to vector<1x16x20xf32>
    %1024 = vector.shape_cast %1023 : vector<1x16x20xf32> to vector<16x20xf32>
    %1025 = tpu.concatenate %1018, %1020, %1022, %1024 in 0 : vector<16x20xf32>, vector<16x20xf32>, vector<16x20xf32>, vector<16x20xf32> -> vector<64x20xf32>
    %1026 = vector.extract_strided_slice %763 {offsets = [0, 0, 0], sizes = [1, 16, 20], strides = [1, 1, 1]} : vector<8x16x20xf32> to vector<1x16x20xf32>
    %1027 = vector.shape_cast %1026 : vector<1x16x20xf32> to vector<16x20xf32>
    %1028 = vector.extract_strided_slice %763 {offsets = [1, 0, 0], sizes = [1, 16, 20], strides = [1, 1, 1]} : vector<8x16x20xf32> to vector<1x16x20xf32>
    %1029 = vector.shape_cast %1028 : vector<1x16x20xf32> to vector<16x20xf32>
    %1030 = vector.extract_strided_slice %763 {offsets = [2, 0, 0], sizes = [1, 16, 20], strides = [1, 1, 1]} : vector<8x16x20xf32> to vector<1x16x20xf32>
    %1031 = vector.shape_cast %1030 : vector<1x16x20xf32> to vector<16x20xf32>
    %1032 = vector.extract_strided_slice %763 {offsets = [3, 0, 0], sizes = [1, 16, 20], strides = [1, 1, 1]} : vector<8x16x20xf32> to vector<1x16x20xf32>
    %1033 = vector.shape_cast %1032 : vector<1x16x20xf32> to vector<16x20xf32>
    %1034 = tpu.concatenate %1027, %1029, %1031, %1033 in 0 : vector<16x20xf32>, vector<16x20xf32>, vector<16x20xf32>, vector<16x20xf32> -> vector<64x20xf32>
    %1035 = vector.extract_strided_slice %1007 {offsets = [0, 0, 0], sizes = [1, 16, 20], strides = [1, 1, 1]} : vector<8x16x20xf32> to vector<1x16x20xf32>
    %1036 = vector.shape_cast %1035 : vector<1x16x20xf32> to vector<16x20xf32>
    %1037 = vector.extract_strided_slice %1007 {offsets = [1, 0, 0], sizes = [1, 16, 20], strides = [1, 1, 1]} : vector<8x16x20xf32> to vector<1x16x20xf32>
    %1038 = vector.shape_cast %1037 : vector<1x16x20xf32> to vector<16x20xf32>
    %1039 = vector.extract_strided_slice %1007 {offsets = [2, 0, 0], sizes = [1, 16, 20], strides = [1, 1, 1]} : vector<8x16x20xf32> to vector<1x16x20xf32>
    %1040 = vector.shape_cast %1039 : vector<1x16x20xf32> to vector<16x20xf32>
    %1041 = vector.extract_strided_slice %1007 {offsets = [3, 0, 0], sizes = [1, 16, 20], strides = [1, 1, 1]} : vector<8x16x20xf32> to vector<1x16x20xf32>
    %1042 = vector.shape_cast %1041 : vector<1x16x20xf32> to vector<16x20xf32>
    %1043 = tpu.concatenate %1036, %1038, %1040, %1042 in 0 : vector<16x20xf32>, vector<16x20xf32>, vector<16x20xf32>, vector<16x20xf32> -> vector<64x20xf32>
    %cst_19 = arith.constant 0.000000e+00 : f32
    %1044 = vector.broadcast %cst_19 : f32 to vector<64x2xf32>
    %cst_20 = arith.constant 0.000000e+00 : f32
    %1045 = vector.broadcast %cst_20 : f32 to vector<64x1xf32>
    %1046 = tpu.concatenate %1044, %1043, %1045 in 1 : vector<64x2xf32>, vector<64x20xf32>, vector<64x1xf32> -> vector<64x23xf32>
    %cst_21 = arith.constant 0.000000e+00 : f32
    %1047 = vector.broadcast %cst_21 : f32 to vector<64x1xf32>
    %cst_22 = arith.constant 0.000000e+00 : f32
    %1048 = vector.broadcast %cst_22 : f32 to vector<64x1xf32>
    %1049 = tpu.concatenate %1047, %1016, %1048 in 1 : vector<64x1xf32>, vector<64x21xf32>, vector<64x1xf32> -> vector<64x23xf32>
    %cst_23 = arith.constant 0.000000e+00 : f32
    %1050 = vector.broadcast %cst_23 : f32 to vector<64x1xf32>
    %cst_24 = arith.constant 0.000000e+00 : f32
    %1051 = vector.broadcast %cst_24 : f32 to vector<64x2xf32>
    %1052 = tpu.concatenate %1050, %1025, %1051 in 1 : vector<64x1xf32>, vector<64x20xf32>, vector<64x2xf32> -> vector<64x23xf32>
    %cst_25 = arith.constant 0.000000e+00 : f32
    %1053 = vector.broadcast %cst_25 : f32 to vector<64x1xf32>
    %cst_26 = arith.constant 0.000000e+00 : f32
    %1054 = vector.broadcast %cst_26 : f32 to vector<64x1xf32>
    %1055 = tpu.concatenate %1053, %1034, %1054 in 1 : vector<64x1xf32>, vector<64x20xf32>, vector<64x1xf32> -> vector<64x22xf32>
    %1056 = vector.extract_strided_slice %275 {offsets = [4, 0, 0], sizes = [1, 16, 21], strides = [1, 1, 1]} : vector<8x16x21xf32> to vector<1x16x21xf32>
    %1057 = vector.shape_cast %1056 : vector<1x16x21xf32> to vector<16x21xf32>
    %1058 = vector.extract_strided_slice %275 {offsets = [5, 0, 0], sizes = [1, 16, 21], strides = [1, 1, 1]} : vector<8x16x21xf32> to vector<1x16x21xf32>
    %1059 = vector.shape_cast %1058 : vector<1x16x21xf32> to vector<16x21xf32>
    %1060 = vector.extract_strided_slice %275 {offsets = [6, 0, 0], sizes = [1, 16, 21], strides = [1, 1, 1]} : vector<8x16x21xf32> to vector<1x16x21xf32>
    %1061 = vector.shape_cast %1060 : vector<1x16x21xf32> to vector<16x21xf32>
    %1062 = vector.extract_strided_slice %275 {offsets = [7, 0, 0], sizes = [1, 16, 21], strides = [1, 1, 1]} : vector<8x16x21xf32> to vector<1x16x21xf32>
    %1063 = vector.shape_cast %1062 : vector<1x16x21xf32> to vector<16x21xf32>
    %1064 = tpu.concatenate %1057, %1059, %1061, %1063 in 0 : vector<16x21xf32>, vector<16x21xf32>, vector<16x21xf32>, vector<16x21xf32> -> vector<64x21xf32>
    %1065 = vector.extract_strided_slice %519 {offsets = [4, 0, 0], sizes = [1, 16, 20], strides = [1, 1, 1]} : vector<8x16x20xf32> to vector<1x16x20xf32>
    %1066 = vector.shape_cast %1065 : vector<1x16x20xf32> to vector<16x20xf32>
    %1067 = vector.extract_strided_slice %519 {offsets = [5, 0, 0], sizes = [1, 16, 20], strides = [1, 1, 1]} : vector<8x16x20xf32> to vector<1x16x20xf32>
    %1068 = vector.shape_cast %1067 : vector<1x16x20xf32> to vector<16x20xf32>
    %1069 = vector.extract_strided_slice %519 {offsets = [6, 0, 0], sizes = [1, 16, 20], strides = [1, 1, 1]} : vector<8x16x20xf32> to vector<1x16x20xf32>
    %1070 = vector.shape_cast %1069 : vector<1x16x20xf32> to vector<16x20xf32>
    %1071 = vector.extract_strided_slice %519 {offsets = [7, 0, 0], sizes = [1, 16, 20], strides = [1, 1, 1]} : vector<8x16x20xf32> to vector<1x16x20xf32>
    %1072 = vector.shape_cast %1071 : vector<1x16x20xf32> to vector<16x20xf32>
    %1073 = tpu.concatenate %1066, %1068, %1070, %1072 in 0 : vector<16x20xf32>, vector<16x20xf32>, vector<16x20xf32>, vector<16x20xf32> -> vector<64x20xf32>
    %1074 = vector.extract_strided_slice %763 {offsets = [4, 0, 0], sizes = [1, 16, 20], strides = [1, 1, 1]} : vector<8x16x20xf32> to vector<1x16x20xf32>
    %1075 = vector.shape_cast %1074 : vector<1x16x20xf32> to vector<16x20xf32>
    %1076 = vector.extract_strided_slice %763 {offsets = [5, 0, 0], sizes = [1, 16, 20], strides = [1, 1, 1]} : vector<8x16x20xf32> to vector<1x16x20xf32>
    %1077 = vector.shape_cast %1076 : vector<1x16x20xf32> to vector<16x20xf32>
    %1078 = vector.extract_strided_slice %763 {offsets = [6, 0, 0], sizes = [1, 16, 20], strides = [1, 1, 1]} : vector<8x16x20xf32> to vector<1x16x20xf32>
    %1079 = vector.shape_cast %1078 : vector<1x16x20xf32> to vector<16x20xf32>
    %1080 = vector.extract_strided_slice %763 {offsets = [7, 0, 0], sizes = [1, 16, 20], strides = [1, 1, 1]} : vector<8x16x20xf32> to vector<1x16x20xf32>
    %1081 = vector.shape_cast %1080 : vector<1x16x20xf32> to vector<16x20xf32>
    %1082 = tpu.concatenate %1075, %1077, %1079, %1081 in 0 : vector<16x20xf32>, vector<16x20xf32>, vector<16x20xf32>, vector<16x20xf32> -> vector<64x20xf32>
    %1083 = vector.extract_strided_slice %1007 {offsets = [4, 0, 0], sizes = [1, 16, 20], strides = [1, 1, 1]} : vector<8x16x20xf32> to vector<1x16x20xf32>
    %1084 = vector.shape_cast %1083 : vector<1x16x20xf32> to vector<16x20xf32>
    %1085 = vector.extract_strided_slice %1007 {offsets = [5, 0, 0], sizes = [1, 16, 20], strides = [1, 1, 1]} : vector<8x16x20xf32> to vector<1x16x20xf32>
    %1086 = vector.shape_cast %1085 : vector<1x16x20xf32> to vector<16x20xf32>
    %1087 = vector.extract_strided_slice %1007 {offsets = [6, 0, 0], sizes = [1, 16, 20], strides = [1, 1, 1]} : vector<8x16x20xf32> to vector<1x16x20xf32>
    %1088 = vector.shape_cast %1087 : vector<1x16x20xf32> to vector<16x20xf32>
    %1089 = vector.extract_strided_slice %1007 {offsets = [7, 0, 0], sizes = [1, 16, 20], strides = [1, 1, 1]} : vector<8x16x20xf32> to vector<1x16x20xf32>
    %1090 = vector.shape_cast %1089 : vector<1x16x20xf32> to vector<16x20xf32>
    %1091 = tpu.concatenate %1084, %1086, %1088, %1090 in 0 : vector<16x20xf32>, vector<16x20xf32>, vector<16x20xf32>, vector<16x20xf32> -> vector<64x20xf32>
    %cst_27 = arith.constant 0.000000e+00 : f32
    %1092 = vector.broadcast %cst_27 : f32 to vector<64x2xf32>
    %cst_28 = arith.constant 0.000000e+00 : f32
    %1093 = vector.broadcast %cst_28 : f32 to vector<64x1xf32>
    %1094 = tpu.concatenate %1092, %1091, %1093 in 1 : vector<64x2xf32>, vector<64x20xf32>, vector<64x1xf32> -> vector<64x23xf32>
    %cst_29 = arith.constant 0.000000e+00 : f32
    %1095 = vector.broadcast %cst_29 : f32 to vector<64x1xf32>
    %cst_30 = arith.constant 0.000000e+00 : f32
    %1096 = vector.broadcast %cst_30 : f32 to vector<64x1xf32>
    %1097 = tpu.concatenate %1095, %1064, %1096 in 1 : vector<64x1xf32>, vector<64x21xf32>, vector<64x1xf32> -> vector<64x23xf32>
    %cst_31 = arith.constant 0.000000e+00 : f32
    %1098 = vector.broadcast %cst_31 : f32 to vector<64x1xf32>
    %cst_32 = arith.constant 0.000000e+00 : f32
    %1099 = vector.broadcast %cst_32 : f32 to vector<64x2xf32>
    %1100 = tpu.concatenate %1098, %1073, %1099 in 1 : vector<64x1xf32>, vector<64x20xf32>, vector<64x2xf32> -> vector<64x23xf32>
    %cst_33 = arith.constant 0.000000e+00 : f32
    %1101 = vector.broadcast %cst_33 : f32 to vector<64x1xf32>
    %cst_34 = arith.constant 0.000000e+00 : f32
    %1102 = vector.broadcast %cst_34 : f32 to vector<64x1xf32>
    %1103 = tpu.concatenate %1101, %1082, %1102 in 1 : vector<64x1xf32>, vector<64x20xf32>, vector<64x1xf32> -> vector<64x22xf32>
    %1104 = tpu.concatenate %1046, %1049, %1052, %1055, %1094, %1097, %1100, %1103 in 1 : vector<64x23xf32>, vector<64x23xf32>, vector<64x23xf32>, vector<64x22xf32>, vector<64x23xf32>, vector<64x23xf32>, vector<64x23xf32>, vector<64x22xf32> -> vector<64x182xf32>
    %cst_35 = arith.constant dense<0.000000e+00> : vector<16x182xf32>
    %1105 = tpu.matmul %27, %1104, %cst_35 {dimension_numbers = #tpu.dot_dimension_numbers<[1], [0], [0], [1], [0, 0, 1, 1], [], []>} : vector<16x64xf32>, vector<64x182xf32>, vector<16x182xf32> -> vector<16x182xf32>
    %cst_36 = arith.constant dense<0.000000e+00> : vector<16xf32>
    %1106 = vector.multi_reduction <add>, %1105, %cst_36 [1] : vector<16x182xf32> to vector<16xf32>
    %1107 = vector.shape_cast %1106 : vector<16xf32> to vector<16x1xf32>
    %cst_37 = arith.constant 1.820000e+02 : f32
    %1108 = vector.broadcast %cst_37 : f32 to vector<16x1xf32>
    %1109 = arith.divf %1107, %1108 : vector<16x1xf32>
    %1110 = vector.broadcast %1109 : vector<16x1xf32> to vector<16x182xf32>
    %1111 = arith.subf %1105, %1110 : vector<16x182xf32>
    %1112 = arith.mulf %1111, %1111 : vector<16x182xf32>
    %cst_38 = arith.constant dense<0.000000e+00> : vector<16xf32>
    %1113 = vector.multi_reduction <add>, %1112, %cst_38 [1] : vector<16x182xf32> to vector<16xf32>
    %1114 = vector.shape_cast %1113 : vector<16xf32> to vector<16x1xf32>
    %cst_39 = arith.constant 1.820000e+02 : f32
    %1115 = vector.broadcast %cst_39 : f32 to vector<16x1xf32>
    %1116 = arith.divf %1114, %1115 : vector<16x1xf32>
    %cst_40 = arith.constant 9.99999974E-6 : f32
    %1117 = vector.broadcast %cst_40 : f32 to vector<16x1xf32>
    %1118 = arith.addf %1116, %1117 : vector<16x1xf32>
    %1119 = math.rsqrt %1118 : vector<16x1xf32>
    %1120 = arith.mulf %28, %1119 : vector<16x1xf32>
    %1121 = arith.mulf %1109, %1120 : vector<16x1xf32>
    %1122 = arith.subf %29, %1121 : vector<16x1xf32>
    %1123 = vector.broadcast %1120 : vector<16x1xf32> to vector<16x182xf32>
    %1124 = arith.mulf %1105, %1123 : vector<16x182xf32>
    %1125 = vector.broadcast %1122 : vector<16x1xf32> to vector<16x182xf32>
    %1126 = arith.addf %1124, %1125 : vector<16x182xf32>
    %cst_41 = arith.constant 0.000000e+00 : f32
    %1127 = vector.broadcast %cst_41 : f32 to vector<16x182xf32>
    %1128 = arith.maximumf %1126, %1127 : vector<16x182xf32>
    %1129 = vector.extract_strided_slice %1128 {offsets = [0, 0], sizes = [16, 23], strides = [1, 1]} : vector<16x182xf32> to vector<16x23xf32>
    %1130 = vector.extract_strided_slice %1128 {offsets = [0, 23], sizes = [16, 23], strides = [1, 1]} : vector<16x182xf32> to vector<16x23xf32>
    %1131 = vector.extract_strided_slice %1128 {offsets = [0, 46], sizes = [16, 23], strides = [1, 1]} : vector<16x182xf32> to vector<16x23xf32>
    %1132 = vector.extract_strided_slice %1128 {offsets = [0, 69], sizes = [16, 22], strides = [1, 1]} : vector<16x182xf32> to vector<16x22xf32>
    %1133 = vector.extract_strided_slice %1129 {offsets = [0, 0], sizes = [16, 18], strides = [1, 1]} : vector<16x23xf32> to vector<16x18xf32>
    %cst_42 = arith.constant 0.000000e+00 : f32
    %1134 = vector.broadcast %cst_42 : f32 to vector<16x18xf32>
    %1135 = arith.addf %1134, %1133 : vector<16x18xf32>
    %1136 = vector.extract_strided_slice %1130 {offsets = [0, 0], sizes = [16, 18], strides = [1, 1]} : vector<16x23xf32> to vector<16x18xf32>
    %1137 = arith.addf %1135, %1136 : vector<16x18xf32>
    %1138 = vector.extract_strided_slice %1131 {offsets = [0, 0], sizes = [16, 18], strides = [1, 1]} : vector<16x23xf32> to vector<16x18xf32>
    %1139 = arith.addf %1137, %1138 : vector<16x18xf32>
    %1140 = vector.extract_strided_slice %1132 {offsets = [0, 0], sizes = [16, 18], strides = [1, 1]} : vector<16x22xf32> to vector<16x18xf32>
    %1141 = arith.addf %1139, %1140 : vector<16x18xf32>
    %1142 = vector.extract_strided_slice %1129 {offsets = [0, 1], sizes = [16, 18], strides = [1, 1]} : vector<16x23xf32> to vector<16x18xf32>
    %1143 = arith.addf %1141, %1142 : vector<16x18xf32>
    %1144 = vector.extract_strided_slice %1130 {offsets = [0, 1], sizes = [16, 18], strides = [1, 1]} : vector<16x23xf32> to vector<16x18xf32>
    %1145 = arith.addf %1143, %1144 : vector<16x18xf32>
    %1146 = vector.extract_strided_slice %1131 {offsets = [0, 1], sizes = [16, 18], strides = [1, 1]} : vector<16x23xf32> to vector<16x18xf32>
    %1147 = arith.addf %1145, %1146 : vector<16x18xf32>
    %1148 = vector.extract_strided_slice %1132 {offsets = [0, 1], sizes = [16, 18], strides = [1, 1]} : vector<16x22xf32> to vector<16x18xf32>
    %1149 = arith.addf %1147, %1148 : vector<16x18xf32>
    %1150 = vector.extract_strided_slice %1129 {offsets = [0, 2], sizes = [16, 18], strides = [1, 1]} : vector<16x23xf32> to vector<16x18xf32>
    %1151 = arith.addf %1149, %1150 : vector<16x18xf32>
    %1152 = vector.extract_strided_slice %1130 {offsets = [0, 2], sizes = [16, 18], strides = [1, 1]} : vector<16x23xf32> to vector<16x18xf32>
    %1153 = arith.addf %1151, %1152 : vector<16x18xf32>
    %1154 = vector.extract_strided_slice %1131 {offsets = [0, 2], sizes = [16, 18], strides = [1, 1]} : vector<16x23xf32> to vector<16x18xf32>
    %1155 = arith.addf %1153, %1154 : vector<16x18xf32>
    %1156 = vector.extract_strided_slice %1132 {offsets = [0, 2], sizes = [16, 18], strides = [1, 1]} : vector<16x22xf32> to vector<16x18xf32>
    %1157 = arith.addf %1155, %1156 : vector<16x18xf32>
    %1158 = vector.extract_strided_slice %1129 {offsets = [0, 3], sizes = [16, 18], strides = [1, 1]} : vector<16x23xf32> to vector<16x18xf32>
    %1159 = arith.addf %1157, %1158 : vector<16x18xf32>
    %1160 = vector.extract_strided_slice %1130 {offsets = [0, 3], sizes = [16, 18], strides = [1, 1]} : vector<16x23xf32> to vector<16x18xf32>
    %1161 = arith.addf %1159, %1160 : vector<16x18xf32>
    %1162 = vector.extract_strided_slice %1131 {offsets = [0, 3], sizes = [16, 18], strides = [1, 1]} : vector<16x23xf32> to vector<16x18xf32>
    %1163 = arith.addf %1161, %1162 : vector<16x18xf32>
    %1164 = vector.extract_strided_slice %1132 {offsets = [0, 3], sizes = [16, 18], strides = [1, 1]} : vector<16x22xf32> to vector<16x18xf32>
    %1165 = arith.addf %1163, %1164 : vector<16x18xf32>
    %1166 = vector.extract_strided_slice %1129 {offsets = [0, 4], sizes = [16, 18], strides = [1, 1]} : vector<16x23xf32> to vector<16x18xf32>
    %1167 = arith.addf %1165, %1166 : vector<16x18xf32>
    %1168 = vector.extract_strided_slice %1130 {offsets = [0, 4], sizes = [16, 18], strides = [1, 1]} : vector<16x23xf32> to vector<16x18xf32>
    %1169 = arith.addf %1167, %1168 : vector<16x18xf32>
    %1170 = vector.extract_strided_slice %1131 {offsets = [0, 4], sizes = [16, 18], strides = [1, 1]} : vector<16x23xf32> to vector<16x18xf32>
    %1171 = arith.addf %1169, %1170 : vector<16x18xf32>
    %1172 = vector.extract_strided_slice %1132 {offsets = [0, 4], sizes = [16, 18], strides = [1, 1]} : vector<16x22xf32> to vector<16x18xf32>
    %1173 = arith.addf %1171, %1172 : vector<16x18xf32>
    %1174 = vector.extract_strided_slice %1131 {offsets = [0, 0], sizes = [16, 18], strides = [1, 1]} : vector<16x23xf32> to vector<16x18xf32>
    %cst_43 = arith.constant 0.000000e+00 : f32
    %1175 = vector.broadcast %cst_43 : f32 to vector<16x18xf32>
    %1176 = arith.addf %1175, %1174 : vector<16x18xf32>
    %1177 = vector.extract_strided_slice %1132 {offsets = [0, 0], sizes = [16, 18], strides = [1, 1]} : vector<16x22xf32> to vector<16x18xf32>
    %1178 = arith.addf %1176, %1177 : vector<16x18xf32>
    %1179 = vector.extract_strided_slice %1129 {offsets = [0, 1], sizes = [16, 18], strides = [1, 1]} : vector<16x23xf32> to vector<16x18xf32>
    %1180 = arith.addf %1178, %1179 : vector<16x18xf32>
    %1181 = vector.extract_strided_slice %1130 {offsets = [0, 1], sizes = [16, 18], strides = [1, 1]} : vector<16x23xf32> to vector<16x18xf32>
    %1182 = arith.addf %1180, %1181 : vector<16x18xf32>
    %1183 = vector.extract_strided_slice %1131 {offsets = [0, 1], sizes = [16, 18], strides = [1, 1]} : vector<16x23xf32> to vector<16x18xf32>
    %1184 = arith.addf %1182, %1183 : vector<16x18xf32>
    %1185 = vector.extract_strided_slice %1132 {offsets = [0, 1], sizes = [16, 18], strides = [1, 1]} : vector<16x22xf32> to vector<16x18xf32>
    %1186 = arith.addf %1184, %1185 : vector<16x18xf32>
    %1187 = vector.extract_strided_slice %1129 {offsets = [0, 2], sizes = [16, 18], strides = [1, 1]} : vector<16x23xf32> to vector<16x18xf32>
    %1188 = arith.addf %1186, %1187 : vector<16x18xf32>
    %1189 = vector.extract_strided_slice %1130 {offsets = [0, 2], sizes = [16, 18], strides = [1, 1]} : vector<16x23xf32> to vector<16x18xf32>
    %1190 = arith.addf %1188, %1189 : vector<16x18xf32>
    %1191 = vector.extract_strided_slice %1131 {offsets = [0, 2], sizes = [16, 18], strides = [1, 1]} : vector<16x23xf32> to vector<16x18xf32>
    %1192 = arith.addf %1190, %1191 : vector<16x18xf32>
    %1193 = vector.extract_strided_slice %1132 {offsets = [0, 2], sizes = [16, 18], strides = [1, 1]} : vector<16x22xf32> to vector<16x18xf32>
    %1194 = arith.addf %1192, %1193 : vector<16x18xf32>
    %1195 = vector.extract_strided_slice %1129 {offsets = [0, 3], sizes = [16, 18], strides = [1, 1]} : vector<16x23xf32> to vector<16x18xf32>
    %1196 = arith.addf %1194, %1195 : vector<16x18xf32>
    %1197 = vector.extract_strided_slice %1130 {offsets = [0, 3], sizes = [16, 18], strides = [1, 1]} : vector<16x23xf32> to vector<16x18xf32>
    %1198 = arith.addf %1196, %1197 : vector<16x18xf32>
    %1199 = vector.extract_strided_slice %1131 {offsets = [0, 3], sizes = [16, 18], strides = [1, 1]} : vector<16x23xf32> to vector<16x18xf32>
    %1200 = arith.addf %1198, %1199 : vector<16x18xf32>
    %1201 = vector.extract_strided_slice %1132 {offsets = [0, 3], sizes = [16, 18], strides = [1, 1]} : vector<16x22xf32> to vector<16x18xf32>
    %1202 = arith.addf %1200, %1201 : vector<16x18xf32>
    %1203 = vector.extract_strided_slice %1129 {offsets = [0, 4], sizes = [16, 18], strides = [1, 1]} : vector<16x23xf32> to vector<16x18xf32>
    %1204 = arith.addf %1202, %1203 : vector<16x18xf32>
    %1205 = vector.extract_strided_slice %1130 {offsets = [0, 4], sizes = [16, 18], strides = [1, 1]} : vector<16x23xf32> to vector<16x18xf32>
    %1206 = arith.addf %1204, %1205 : vector<16x18xf32>
    %1207 = vector.extract_strided_slice %1131 {offsets = [0, 4], sizes = [16, 18], strides = [1, 1]} : vector<16x23xf32> to vector<16x18xf32>
    %1208 = arith.addf %1206, %1207 : vector<16x18xf32>
    %1209 = vector.extract_strided_slice %1132 {offsets = [0, 4], sizes = [16, 18], strides = [1, 1]} : vector<16x22xf32> to vector<16x18xf32>
    %1210 = arith.addf %1208, %1209 : vector<16x18xf32>
    %1211 = vector.extract_strided_slice %1129 {offsets = [0, 5], sizes = [16, 18], strides = [1, 1]} : vector<16x23xf32> to vector<16x18xf32>
    %1212 = arith.addf %1210, %1211 : vector<16x18xf32>
    %1213 = vector.extract_strided_slice %1130 {offsets = [0, 5], sizes = [16, 18], strides = [1, 1]} : vector<16x23xf32> to vector<16x18xf32>
    %1214 = arith.addf %1212, %1213 : vector<16x18xf32>
    %cst_44 = arith.constant 0.000000e+00 : f32
    %1215 = vector.broadcast %cst_44 : f32 to vector<16x2xf32>
    %1216 = vector.extract_strided_slice %1173 {offsets = [0, 0], sizes = [16, 16], strides = [1, 1]} : vector<16x18xf32> to vector<16x16xf32>
    %1217 = tpu.concatenate %1215, %1216 in 1 : vector<16x2xf32>, vector<16x16xf32> -> vector<16x18xf32>
    %cst_45 = arith.constant 0.000000e+00 : f32
    %1218 = vector.broadcast %cst_45 : f32 to vector<16x2xf32>
    %1219 = vector.extract_strided_slice %1214 {offsets = [0, 0], sizes = [16, 16], strides = [1, 1]} : vector<16x18xf32> to vector<16x16xf32>
    %1220 = tpu.concatenate %1218, %1219 in 1 : vector<16x2xf32>, vector<16x16xf32> -> vector<16x18xf32>
    %cst_46 = arith.constant 0.000000e+00 : f32
    %1221 = vector.broadcast %cst_46 : f32 to vector<16x1xf32>
    %1222 = vector.extract_strided_slice %1173 {offsets = [0, 0], sizes = [16, 17], strides = [1, 1]} : vector<16x18xf32> to vector<16x17xf32>
    %1223 = tpu.concatenate %1221, %1222 in 1 : vector<16x1xf32>, vector<16x17xf32> -> vector<16x18xf32>
    %cst_47 = arith.constant 0.000000e+00 : f32
    %1224 = vector.broadcast %cst_47 : f32 to vector<16x1xf32>
    %1225 = vector.extract_strided_slice %1214 {offsets = [0, 0], sizes = [16, 17], strides = [1, 1]} : vector<16x18xf32> to vector<16x17xf32>
    %1226 = tpu.concatenate %1224, %1225 in 1 : vector<16x1xf32>, vector<16x17xf32> -> vector<16x18xf32>
    %1227 = vector.extract_strided_slice %1173 {offsets = [0, 1], sizes = [16, 17], strides = [1, 1]} : vector<16x18xf32> to vector<16x17xf32>
    %cst_48 = arith.constant 0.000000e+00 : f32
    %1228 = vector.broadcast %cst_48 : f32 to vector<16x1xf32>
    %1229 = tpu.concatenate %1227, %1228 in 1 : vector<16x17xf32>, vector<16x1xf32> -> vector<16x18xf32>
    %1230 = vector.extract_strided_slice %1214 {offsets = [0, 1], sizes = [16, 17], strides = [1, 1]} : vector<16x18xf32> to vector<16x17xf32>
    %cst_49 = arith.constant 0.000000e+00 : f32
    %1231 = vector.broadcast %cst_49 : f32 to vector<16x1xf32>
    %1232 = tpu.concatenate %1230, %1231 in 1 : vector<16x17xf32>, vector<16x1xf32> -> vector<16x18xf32>
    %1233 = vector.extract_strided_slice %1173 {offsets = [0, 2], sizes = [16, 16], strides = [1, 1]} : vector<16x18xf32> to vector<16x16xf32>
    %cst_50 = arith.constant 0.000000e+00 : f32
    %1234 = vector.broadcast %cst_50 : f32 to vector<16x2xf32>
    %1235 = tpu.concatenate %1233, %1234 in 1 : vector<16x16xf32>, vector<16x2xf32> -> vector<16x18xf32>
    %1236 = vector.extract_strided_slice %1214 {offsets = [0, 2], sizes = [16, 16], strides = [1, 1]} : vector<16x18xf32> to vector<16x16xf32>
    %cst_51 = arith.constant 0.000000e+00 : f32
    %1237 = vector.broadcast %cst_51 : f32 to vector<16x2xf32>
    %1238 = tpu.concatenate %1236, %1237 in 1 : vector<16x16xf32>, vector<16x2xf32> -> vector<16x18xf32>
    %1239 = tpu.concatenate %1217, %1220, %1223, %1226, %1173, %1214, %1229, %1232, %1235, %1238 in 0 : vector<16x18xf32>, vector<16x18xf32>, vector<16x18xf32>, vector<16x18xf32>, vector<16x18xf32>, vector<16x18xf32>, vector<16x18xf32>, vector<16x18xf32>, vector<16x18xf32>, vector<16x18xf32> -> vector<160x18xf32>
    %1240 = vector.extract_strided_slice %1128 {offsets = [0, 91], sizes = [16, 23], strides = [1, 1]} : vector<16x182xf32> to vector<16x23xf32>
    %1241 = vector.extract_strided_slice %1128 {offsets = [0, 114], sizes = [16, 23], strides = [1, 1]} : vector<16x182xf32> to vector<16x23xf32>
    %1242 = vector.extract_strided_slice %1128 {offsets = [0, 137], sizes = [16, 23], strides = [1, 1]} : vector<16x182xf32> to vector<16x23xf32>
    %1243 = vector.extract_strided_slice %1128 {offsets = [0, 160], sizes = [16, 22], strides = [1, 1]} : vector<16x182xf32> to vector<16x22xf32>
    %1244 = vector.extract_strided_slice %1240 {offsets = [0, 0], sizes = [16, 18], strides = [1, 1]} : vector<16x23xf32> to vector<16x18xf32>
    %cst_52 = arith.constant 0.000000e+00 : f32
    %1245 = vector.broadcast %cst_52 : f32 to vector<16x18xf32>
    %1246 = arith.addf %1245, %1244 : vector<16x18xf32>
    %1247 = vector.extract_strided_slice %1241 {offsets = [0, 0], sizes = [16, 18], strides = [1, 1]} : vector<16x23xf32> to vector<16x18xf32>
    %1248 = arith.addf %1246, %1247 : vector<16x18xf32>
    %1249 = vector.extract_strided_slice %1242 {offsets = [0, 0], sizes = [16, 18], strides = [1, 1]} : vector<16x23xf32> to vector<16x18xf32>
    %1250 = arith.addf %1248, %1249 : vector<16x18xf32>
    %1251 = vector.extract_strided_slice %1243 {offsets = [0, 0], sizes = [16, 18], strides = [1, 1]} : vector<16x22xf32> to vector<16x18xf32>
    %1252 = arith.addf %1250, %1251 : vector<16x18xf32>
    %1253 = vector.extract_strided_slice %1240 {offsets = [0, 1], sizes = [16, 18], strides = [1, 1]} : vector<16x23xf32> to vector<16x18xf32>
    %1254 = arith.addf %1252, %1253 : vector<16x18xf32>
    %1255 = vector.extract_strided_slice %1241 {offsets = [0, 1], sizes = [16, 18], strides = [1, 1]} : vector<16x23xf32> to vector<16x18xf32>
    %1256 = arith.addf %1254, %1255 : vector<16x18xf32>
    %1257 = vector.extract_strided_slice %1242 {offsets = [0, 1], sizes = [16, 18], strides = [1, 1]} : vector<16x23xf32> to vector<16x18xf32>
    %1258 = arith.addf %1256, %1257 : vector<16x18xf32>
    %1259 = vector.extract_strided_slice %1243 {offsets = [0, 1], sizes = [16, 18], strides = [1, 1]} : vector<16x22xf32> to vector<16x18xf32>
    %1260 = arith.addf %1258, %1259 : vector<16x18xf32>
    %1261 = vector.extract_strided_slice %1240 {offsets = [0, 2], sizes = [16, 18], strides = [1, 1]} : vector<16x23xf32> to vector<16x18xf32>
    %1262 = arith.addf %1260, %1261 : vector<16x18xf32>
    %1263 = vector.extract_strided_slice %1241 {offsets = [0, 2], sizes = [16, 18], strides = [1, 1]} : vector<16x23xf32> to vector<16x18xf32>
    %1264 = arith.addf %1262, %1263 : vector<16x18xf32>
    %1265 = vector.extract_strided_slice %1242 {offsets = [0, 2], sizes = [16, 18], strides = [1, 1]} : vector<16x23xf32> to vector<16x18xf32>
    %1266 = arith.addf %1264, %1265 : vector<16x18xf32>
    %1267 = vector.extract_strided_slice %1243 {offsets = [0, 2], sizes = [16, 18], strides = [1, 1]} : vector<16x22xf32> to vector<16x18xf32>
    %1268 = arith.addf %1266, %1267 : vector<16x18xf32>
    %1269 = vector.extract_strided_slice %1240 {offsets = [0, 3], sizes = [16, 18], strides = [1, 1]} : vector<16x23xf32> to vector<16x18xf32>
    %1270 = arith.addf %1268, %1269 : vector<16x18xf32>
    %1271 = vector.extract_strided_slice %1241 {offsets = [0, 3], sizes = [16, 18], strides = [1, 1]} : vector<16x23xf32> to vector<16x18xf32>
    %1272 = arith.addf %1270, %1271 : vector<16x18xf32>
    %1273 = vector.extract_strided_slice %1242 {offsets = [0, 3], sizes = [16, 18], strides = [1, 1]} : vector<16x23xf32> to vector<16x18xf32>
    %1274 = arith.addf %1272, %1273 : vector<16x18xf32>
    %1275 = vector.extract_strided_slice %1243 {offsets = [0, 3], sizes = [16, 18], strides = [1, 1]} : vector<16x22xf32> to vector<16x18xf32>
    %1276 = arith.addf %1274, %1275 : vector<16x18xf32>
    %1277 = vector.extract_strided_slice %1240 {offsets = [0, 4], sizes = [16, 18], strides = [1, 1]} : vector<16x23xf32> to vector<16x18xf32>
    %1278 = arith.addf %1276, %1277 : vector<16x18xf32>
    %1279 = vector.extract_strided_slice %1241 {offsets = [0, 4], sizes = [16, 18], strides = [1, 1]} : vector<16x23xf32> to vector<16x18xf32>
    %1280 = arith.addf %1278, %1279 : vector<16x18xf32>
    %1281 = vector.extract_strided_slice %1242 {offsets = [0, 4], sizes = [16, 18], strides = [1, 1]} : vector<16x23xf32> to vector<16x18xf32>
    %1282 = arith.addf %1280, %1281 : vector<16x18xf32>
    %1283 = vector.extract_strided_slice %1243 {offsets = [0, 4], sizes = [16, 18], strides = [1, 1]} : vector<16x22xf32> to vector<16x18xf32>
    %1284 = arith.addf %1282, %1283 : vector<16x18xf32>
    %1285 = vector.extract_strided_slice %1242 {offsets = [0, 0], sizes = [16, 18], strides = [1, 1]} : vector<16x23xf32> to vector<16x18xf32>
    %cst_53 = arith.constant 0.000000e+00 : f32
    %1286 = vector.broadcast %cst_53 : f32 to vector<16x18xf32>
    %1287 = arith.addf %1286, %1285 : vector<16x18xf32>
    %1288 = vector.extract_strided_slice %1243 {offsets = [0, 0], sizes = [16, 18], strides = [1, 1]} : vector<16x22xf32> to vector<16x18xf32>
    %1289 = arith.addf %1287, %1288 : vector<16x18xf32>
    %1290 = vector.extract_strided_slice %1240 {offsets = [0, 1], sizes = [16, 18], strides = [1, 1]} : vector<16x23xf32> to vector<16x18xf32>
    %1291 = arith.addf %1289, %1290 : vector<16x18xf32>
    %1292 = vector.extract_strided_slice %1241 {offsets = [0, 1], sizes = [16, 18], strides = [1, 1]} : vector<16x23xf32> to vector<16x18xf32>
    %1293 = arith.addf %1291, %1292 : vector<16x18xf32>
    %1294 = vector.extract_strided_slice %1242 {offsets = [0, 1], sizes = [16, 18], strides = [1, 1]} : vector<16x23xf32> to vector<16x18xf32>
    %1295 = arith.addf %1293, %1294 : vector<16x18xf32>
    %1296 = vector.extract_strided_slice %1243 {offsets = [0, 1], sizes = [16, 18], strides = [1, 1]} : vector<16x22xf32> to vector<16x18xf32>
    %1297 = arith.addf %1295, %1296 : vector<16x18xf32>
    %1298 = vector.extract_strided_slice %1240 {offsets = [0, 2], sizes = [16, 18], strides = [1, 1]} : vector<16x23xf32> to vector<16x18xf32>
    %1299 = arith.addf %1297, %1298 : vector<16x18xf32>
    %1300 = vector.extract_strided_slice %1241 {offsets = [0, 2], sizes = [16, 18], strides = [1, 1]} : vector<16x23xf32> to vector<16x18xf32>
    %1301 = arith.addf %1299, %1300 : vector<16x18xf32>
    %1302 = vector.extract_strided_slice %1242 {offsets = [0, 2], sizes = [16, 18], strides = [1, 1]} : vector<16x23xf32> to vector<16x18xf32>
    %1303 = arith.addf %1301, %1302 : vector<16x18xf32>
    %1304 = vector.extract_strided_slice %1243 {offsets = [0, 2], sizes = [16, 18], strides = [1, 1]} : vector<16x22xf32> to vector<16x18xf32>
    %1305 = arith.addf %1303, %1304 : vector<16x18xf32>
    %1306 = vector.extract_strided_slice %1240 {offsets = [0, 3], sizes = [16, 18], strides = [1, 1]} : vector<16x23xf32> to vector<16x18xf32>
    %1307 = arith.addf %1305, %1306 : vector<16x18xf32>
    %1308 = vector.extract_strided_slice %1241 {offsets = [0, 3], sizes = [16, 18], strides = [1, 1]} : vector<16x23xf32> to vector<16x18xf32>
    %1309 = arith.addf %1307, %1308 : vector<16x18xf32>
    %1310 = vector.extract_strided_slice %1242 {offsets = [0, 3], sizes = [16, 18], strides = [1, 1]} : vector<16x23xf32> to vector<16x18xf32>
    %1311 = arith.addf %1309, %1310 : vector<16x18xf32>
    %1312 = vector.extract_strided_slice %1243 {offsets = [0, 3], sizes = [16, 18], strides = [1, 1]} : vector<16x22xf32> to vector<16x18xf32>
    %1313 = arith.addf %1311, %1312 : vector<16x18xf32>
    %1314 = vector.extract_strided_slice %1240 {offsets = [0, 4], sizes = [16, 18], strides = [1, 1]} : vector<16x23xf32> to vector<16x18xf32>
    %1315 = arith.addf %1313, %1314 : vector<16x18xf32>
    %1316 = vector.extract_strided_slice %1241 {offsets = [0, 4], sizes = [16, 18], strides = [1, 1]} : vector<16x23xf32> to vector<16x18xf32>
    %1317 = arith.addf %1315, %1316 : vector<16x18xf32>
    %1318 = vector.extract_strided_slice %1242 {offsets = [0, 4], sizes = [16, 18], strides = [1, 1]} : vector<16x23xf32> to vector<16x18xf32>
    %1319 = arith.addf %1317, %1318 : vector<16x18xf32>
    %1320 = vector.extract_strided_slice %1243 {offsets = [0, 4], sizes = [16, 18], strides = [1, 1]} : vector<16x22xf32> to vector<16x18xf32>
    %1321 = arith.addf %1319, %1320 : vector<16x18xf32>
    %1322 = vector.extract_strided_slice %1240 {offsets = [0, 5], sizes = [16, 18], strides = [1, 1]} : vector<16x23xf32> to vector<16x18xf32>
    %1323 = arith.addf %1321, %1322 : vector<16x18xf32>
    %1324 = vector.extract_strided_slice %1241 {offsets = [0, 5], sizes = [16, 18], strides = [1, 1]} : vector<16x23xf32> to vector<16x18xf32>
    %1325 = arith.addf %1323, %1324 : vector<16x18xf32>
    %cst_54 = arith.constant 0.000000e+00 : f32
    %1326 = vector.broadcast %cst_54 : f32 to vector<16x2xf32>
    %1327 = vector.extract_strided_slice %1284 {offsets = [0, 0], sizes = [16, 16], strides = [1, 1]} : vector<16x18xf32> to vector<16x16xf32>
    %1328 = tpu.concatenate %1326, %1327 in 1 : vector<16x2xf32>, vector<16x16xf32> -> vector<16x18xf32>
    %cst_55 = arith.constant 0.000000e+00 : f32
    %1329 = vector.broadcast %cst_55 : f32 to vector<16x2xf32>
    %1330 = vector.extract_strided_slice %1325 {offsets = [0, 0], sizes = [16, 16], strides = [1, 1]} : vector<16x18xf32> to vector<16x16xf32>
    %1331 = tpu.concatenate %1329, %1330 in 1 : vector<16x2xf32>, vector<16x16xf32> -> vector<16x18xf32>
    %cst_56 = arith.constant 0.000000e+00 : f32
    %1332 = vector.broadcast %cst_56 : f32 to vector<16x1xf32>
    %1333 = vector.extract_strided_slice %1284 {offsets = [0, 0], sizes = [16, 17], strides = [1, 1]} : vector<16x18xf32> to vector<16x17xf32>
    %1334 = tpu.concatenate %1332, %1333 in 1 : vector<16x1xf32>, vector<16x17xf32> -> vector<16x18xf32>
    %cst_57 = arith.constant 0.000000e+00 : f32
    %1335 = vector.broadcast %cst_57 : f32 to vector<16x1xf32>
    %1336 = vector.extract_strided_slice %1325 {offsets = [0, 0], sizes = [16, 17], strides = [1, 1]} : vector<16x18xf32> to vector<16x17xf32>
    %1337 = tpu.concatenate %1335, %1336 in 1 : vector<16x1xf32>, vector<16x17xf32> -> vector<16x18xf32>
    %1338 = vector.extract_strided_slice %1284 {offsets = [0, 1], sizes = [16, 17], strides = [1, 1]} : vector<16x18xf32> to vector<16x17xf32>
    %cst_58 = arith.constant 0.000000e+00 : f32
    %1339 = vector.broadcast %cst_58 : f32 to vector<16x1xf32>
    %1340 = tpu.concatenate %1338, %1339 in 1 : vector<16x17xf32>, vector<16x1xf32> -> vector<16x18xf32>
    %1341 = vector.extract_strided_slice %1325 {offsets = [0, 1], sizes = [16, 17], strides = [1, 1]} : vector<16x18xf32> to vector<16x17xf32>
    %cst_59 = arith.constant 0.000000e+00 : f32
    %1342 = vector.broadcast %cst_59 : f32 to vector<16x1xf32>
    %1343 = tpu.concatenate %1341, %1342 in 1 : vector<16x17xf32>, vector<16x1xf32> -> vector<16x18xf32>
    %1344 = vector.extract_strided_slice %1284 {offsets = [0, 2], sizes = [16, 16], strides = [1, 1]} : vector<16x18xf32> to vector<16x16xf32>
    %cst_60 = arith.constant 0.000000e+00 : f32
    %1345 = vector.broadcast %cst_60 : f32 to vector<16x2xf32>
    %1346 = tpu.concatenate %1344, %1345 in 1 : vector<16x16xf32>, vector<16x2xf32> -> vector<16x18xf32>
    %1347 = vector.extract_strided_slice %1325 {offsets = [0, 2], sizes = [16, 16], strides = [1, 1]} : vector<16x18xf32> to vector<16x16xf32>
    %cst_61 = arith.constant 0.000000e+00 : f32
    %1348 = vector.broadcast %cst_61 : f32 to vector<16x2xf32>
    %1349 = tpu.concatenate %1347, %1348 in 1 : vector<16x16xf32>, vector<16x2xf32> -> vector<16x18xf32>
    %1350 = tpu.concatenate %1328, %1331, %1334, %1337, %1284, %1325, %1340, %1343, %1346, %1349 in 0 : vector<16x18xf32>, vector<16x18xf32>, vector<16x18xf32>, vector<16x18xf32>, vector<16x18xf32>, vector<16x18xf32>, vector<16x18xf32>, vector<16x18xf32>, vector<16x18xf32>, vector<16x18xf32> -> vector<160x18xf32>
    %1351 = tpu.concatenate %1239, %1350 in 1 : vector<160x18xf32>, vector<160x18xf32> -> vector<160x36xf32>
    %cst_62 = arith.constant dense<0.000000e+00> : vector<16x36xf32>
    %1352 = tpu.matmul %30, %1351, %cst_62 {dimension_numbers = #tpu.dot_dimension_numbers<[1], [0], [0], [1], [0, 0, 1, 1], [], []>} : vector<16x160xf32>, vector<160x36xf32>, vector<16x36xf32> -> vector<16x36xf32>
    %1353 = vector.broadcast %31 : vector<16x1xf32> to vector<16x36xf32>
    %1354 = arith.addf %1352, %1353 : vector<16x36xf32>
    %1355 = vector.extract_strided_slice %1354 {offsets = [0, 0], sizes = [16, 18], strides = [1, 1]} : vector<16x36xf32> to vector<16x18xf32>
    %c0_63 = arith.constant 0 : index
    %c0_64 = arith.constant 0 : index
    %c0_65 = arith.constant 0 : index
    %1356 = vector.load %arg8[%c0_63, %c0_64, %c0_65] : memref<2x16x18xf32, #tpu.memory_space<vmem>>, vector<1x16x18xf32>
    %1357 = vector.shape_cast %1356 : vector<1x16x18xf32> to vector<16x18xf32>
    %1358 = vector.shape_cast %1355 : vector<16x18xf32> to vector<1x16x18xf32>
    tpu.vector_store %arg8[%c0_63, %c0_64, %c0_65], %1358 {strides = array<i32>} : memref<2x16x18xf32, #tpu.memory_space<vmem>>, vector<1x16x18xf32>,
    %1359 = vector.extract_strided_slice %1354 {offsets = [0, 18], sizes = [16, 18], strides = [1, 1]} : vector<16x36xf32> to vector<16x18xf32>
    %c1 = arith.constant 1 : index
    %c0_66 = arith.constant 0 : index
    %c0_67 = arith.constant 0 : index
    %1360 = vector.load %arg8[%c1, %c0_66, %c0_67] : memref<2x16x18xf32, #tpu.memory_space<vmem>>, vector<1x16x18xf32>
    %1361 = vector.shape_cast %1360 : vector<1x16x18xf32> to vector<16x18xf32>
    %1362 = vector.shape_cast %1359 : vector<16x18xf32> to vector<1x16x18xf32>
    tpu.vector_store %arg8[%c1, %c0_66, %c0_67], %1362 {strides = array<i32>} : memref<2x16x18xf32, #tpu.memory_space<vmem>>, vector<1x16x18xf32>,
    return
  }
}

</mosaic_0001>

<llo_original>
// kernel: tpu_custom_call.1
$region0: #{tpu_custom_call.1}
  #allocation0 [shape = 'u32[]', space=smem, size = 0x4, offset = 0x4, fixed_abs, tag = 'smem constant byte address 0x4 - core index']
  #allocation1 [shape = 'u32[72,128]{1,0:T(1,128)}', space=vmem, size = 0x9000, scoped, tag = 'internal scratch']
  %s0 = inlined_call_operand.hbm [shape: f32[12,8,23], index: 0, kind: input, shape index: {}]
  %s1 = inlined_call_operand.vmem [shape: f32[16,30], index: 1, kind: input, shape index: {}]
  %s2 = inlined_call_operand.vmem [shape: f32[16,1], index: 2, kind: input, shape index: {}]
  %s3 = inlined_call_operand.vmem [shape: f32[16,64], index: 3, kind: input, shape index: {}]
  %s4 = inlined_call_operand.vmem [shape: f32[16,1], index: 4, kind: input, shape index: {}]
  %s5 = inlined_call_operand.vmem [shape: f32[16,1], index: 5, kind: input, shape index: {}]
  %s6 = inlined_call_operand.vmem [shape: f32[16,160], index: 6, kind: input, shape index: {}]
  %s7 = inlined_call_operand.vmem [shape: f32[16,1], index: 7, kind: input, shape index: {}]
  %s8 = inlined_call_operand.hbm [shape: f32[2,16,18], index: 8, kind: output, shape index: {}]
  %s9 = sld [smem:[#allocation0]]
  $region46: #{tpu_custom_call.1} parent=0
    _
  %s11 = ssub.s32 1, %s9
  %s12 = scalar_select 0, %s11, %s9
  $region1: #{tpu_custom_call.1} parent=0
    #allocation2 [shape = 'u8[49152]{0}', space=vmem, size = 0xc000, scoped, tag = 'input window, operand 0, single buffered']
    #allocation3 [shape = 's32[1]{0}', space=sflag, size = 0x4, scoped, tag = 'scoped memory for tpu_custom_call.1']
    #allocation4 [shape = 's32[1]{0}', space=sflag, size = 0x4, scoped, tag = 'scoped memory for tpu_custom_call.1']
    #allocation5 [shape = 'u8[16384]{0}', space=vmem, size = 0x4000, scoped, tag = 'output window, operand 0, single buffered']
    %13 = vsyncpa [#allocation3], 0
    %14 = vsyncpa [#allocation4], 0
    // Predicated region
    $region2: #{tpu_custom_call.1} parent=1 // pred_check
      _
    $region3: #{tpu_custom_call.1} parent=1 // pred_check_branch
      %16 = sbr.rel (0) target = $region5
    $region4: #{tpu_custom_call.1} parent=1 // pred_region
      %18 = vsyncadd [#allocation3], 0
      %s19 = sshll.u32 %s0, 4
      %s20 = int_to_ptr.hbm [resolvable:$true] %s19
      %s21 = sshll.u32 [#allocation2], 4
      %s22 = int_to_ptr.vmem [resolvable:$true] %s21
      %27 = dma.hbm_to_vmem [thread:$0]  %s20, 1536, %s22, [#allocation3], 128, 128, 8
    $region5: #{tpu_custom_call.1} parent=1 // pred_fallthru
      _
    // Predicated region
    $region6: #{tpu_custom_call.1} parent=1 // pred_check
      _
    $region7: #{tpu_custom_call.1} parent=1 // pred_check_branch
      %29 = sbr.rel (0) target = $region9
    $region8: #{tpu_custom_call.1} parent=1 // pred_region
      _
    $region9: #{tpu_custom_call.1} parent=1 // pred_fallthru
      _
    // Predicated region
    $region10: #{tpu_custom_call.1} parent=1 // pred_check
      _
    $region11: #{tpu_custom_call.1} parent=1 // pred_check_branch
      %31 = sbr.rel (0) target = $region13
    $region12: #{tpu_custom_call.1} parent=1 // pred_region
      _
    $region13: #{tpu_custom_call.1} parent=1 // pred_fallthru
      _
    // Predicated region
    $region14: #{tpu_custom_call.1} parent=1 // pred_check
      _
    $region15: #{tpu_custom_call.1} parent=1 // pred_check_branch
      %33 = sbr.rel (0) target = $region17
    $region16: #{tpu_custom_call.1} parent=1 // pred_region
      _
    $region17: #{tpu_custom_call.1} parent=1 // pred_fallthru
      _
    // Predicated region
    $region18: #{tpu_custom_call.1} parent=1 // pred_check
      _
    $region19: #{tpu_custom_call.1} parent=1 // pred_check_branch
      %35 = sbr.rel (0) target = $region21
    $region20: #{tpu_custom_call.1} parent=1 // pred_region
      _
    $region21: #{tpu_custom_call.1} parent=1 // pred_fallthru
      _
    // Predicated region
    $region22: #{tpu_custom_call.1} parent=1 // pred_check
      _
    $region23: #{tpu_custom_call.1} parent=1 // pred_check_branch
      %37 = sbr.rel (0) target = $region25
    $region24: #{tpu_custom_call.1} parent=1 // pred_region
      _
    $region25: #{tpu_custom_call.1} parent=1 // pred_fallthru
      _
    // Predicated region
    $region26: #{tpu_custom_call.1} parent=1 // pred_check
      _
    $region27: #{tpu_custom_call.1} parent=1 // pred_check_branch
      %39 = sbr.rel (0) target = $region29
    $region28: #{tpu_custom_call.1} parent=1 // pred_region
      _
    $region29: #{tpu_custom_call.1} parent=1 // pred_fallthru
      _
    // Predicated region
    $region30: #{tpu_custom_call.1} parent=1 // pred_check
      _
    $region31: #{tpu_custom_call.1} parent=1 // pred_check_branch
      %41 = sbr.rel (0) target = $region33
    $region32: #{tpu_custom_call.1} parent=1 // pred_region
      _
    $region33: #{tpu_custom_call.1} parent=1 // pred_fallthru
      _
    // Predicated region
    $region34: #{tpu_custom_call.1} parent=1 // pred_check
      _
    $region35: #{tpu_custom_call.1} parent=1 // pred_check_branch
      %43 = sbr.rel (0) target = $region37
    $region36: #{tpu_custom_call.1} parent=1 // pred_region
      %45 = dma.done [#allocation3], 1536
    $region37: #{tpu_custom_call.1} parent=1 // pred_fallthru
      _
    %v46 = vld [vmem:[#allocation2] sm:$0xff]
    %v47 = vld [vmem:[#allocation2 + $0x8] sm:$0xff]
    %v48 = vld [vmem:[#allocation2 + $0x10] sm:$0xff]
    %v49 = vld [vmem:[#allocation2 + $0x18] sm:$0xff]
    %v50 = vld [vmem:[#allocation2 + $0x20] sm:$0xff]
    %v51 = vld [vmem:[#allocation2 + $0x28] sm:$0xff]
    %v52 = vld [vmem:[#allocation2 + $0x30] sm:$0xff]
    %v53 = vld [vmem:[#allocation2 + $0x38] sm:$0xff]
    %v54 = vld [vmem:[#allocation2 + $0x40] sm:$0xff]
    %v55 = vld [vmem:[#allocation2 + $0x48] sm:$0xff]
    %v56 = vld [vmem:[#allocation2 + $0x50] sm:$0xff]
    %v57 = vld [vmem:[#allocation2 + $0x58] sm:$0xff]
    %v58 = vld [vmem:[%s1] sm:$0xff]
    %v59 = vld [vmem:[%s1 + $0x8] sm:$0xff]
    %v60 = vld [vmem:[%s2] sm:$0xff]
    %v61 = vld [vmem:[%s2 + $0x8] sm:$0xff]
    %v62 = vld [vmem:[%s3] sm:$0xff]
    %v63 = vld [vmem:[%s3 + $0x8] sm:$0xff]
    %v64 = vld [vmem:[%s4] sm:$0xff]
    %v65 = vld [vmem:[%s4 + $0x8] sm:$0xff]
    %v66 = vld [vmem:[%s5] sm:$0xff]
    %v67 = vld [vmem:[%s5 + $0x8] sm:$0xff]
    %v68 = vld [vmem:[%s6] sm:$0xff]
    %v69 = vld [vmem:[%s6 + $0x8] sm:$0xff]
    %v70 = vld [vmem:[%s6 + $0x10] sm:$0xff]
    %v71 = vld [vmem:[%s6 + $0x18] sm:$0xff]
    %v72 = vld [vmem:[%s7] sm:$0xff]
    %v73 = vld [vmem:[%s7 + $0x8] sm:$0xff]
    %v75 = vrot.slane %v46, 1
    %v76 = vrot.slane %v46, 2
    %v77 = vrot.slane %v46, 3
    %v78 = vrot.slane %v46, 4
    %v79 = vrot.slane %v46, 5
    %v80 = vrot.slane %v46, 6
    %v81 = vrot.slane %v46, 7
    %v82 = vperm.slane %v46, 0
    %v83 = vperm.slane %v75, 0
    %v84 = vperm.slane %v76, 0
    %v85 = vperm.slane %v77, 0
    %v86 = vperm.slane %v78, 0
    %v87 = vperm.slane %v79, 0
    %v88 = vperm.slane %v80, 0
    %v89 = vperm.slane %v81, 0
    %99 = vset.pattern.permute.xlu0 0
    %100 = vperm.xlu0 %99, %v58
    %v101 = vpop.permute.xlu0 %100
    %104 = vset.pattern.permute.xlu0 0
    %105 = vperm.xlu0 %104, %v59
    %v106 = vpop.permute.xlu0 %105
    %v108 = vmul.f32 %v82, %v101
    %v109 = vmul.f32 %v82, %v106
    %v110 = vmul.f32 %v83, %v101
    %v111 = vmul.f32 %v83, %v106
    %v112 = vmul.f32 %v84, %v101
    %v113 = vmul.f32 %v84, %v106
    %v114 = vmul.f32 %v85, %v101
    %v115 = vmul.f32 %v85, %v106
    %v116 = vmul.f32 %v86, %v101
    %v117 = vmul.f32 %v86, %v106
    %v118 = vmul.f32 %v87, %v101
    %v119 = vmul.f32 %v87, %v106
    %v120 = vmul.f32 %v88, %v101
    %v121 = vmul.f32 %v88, %v106
    %v122 = vmul.f32 %v89, %v101
    %v123 = vmul.f32 %v89, %v106
    %v124 = vadd.f32 %v108, 0.0
    %v125 = vadd.f32 %v109, 0.0
    %v126 = vadd.f32 %v110, 0.0
    %v127 = vadd.f32 %v111, 0.0
    %v128 = vadd.f32 %v112, 0.0
    %v129 = vadd.f32 %v113, 0.0
    %v130 = vadd.f32 %v114, 0.0
    %v131 = vadd.f32 %v115, 0.0
    %v132 = vadd.f32 %v116, 0.0
    %v133 = vadd.f32 %v117, 0.0
    %v134 = vadd.f32 %v118, 0.0
    %v135 = vadd.f32 %v119, 0.0
    %v136 = vadd.f32 %v120, 0.0
    %v137 = vadd.f32 %v121, 0.0
    %v138 = vadd.f32 %v122, 0.0
    %v139 = vadd.f32 %v123, 0.0
    %v141 = vrot.slane %v47, 1
    %v142 = vrot.slane %v47, 2
    %v143 = vrot.slane %v47, 3
    %v144 = vrot.slane %v47, 4
    %v145 = vrot.slane %v47, 5
    %v146 = vrot.slane %v47, 6
    %v147 = vrot.slane %v47, 7
    %v148 = vperm.slane %v47, 0
    %v149 = vperm.slane %v141, 0
    %v150 = vperm.slane %v142, 0
    %v151 = vperm.slane %v143, 0
    %v152 = vperm.slane %v144, 0
    %v153 = vperm.slane %v145, 0
    %v154 = vperm.slane %v146, 0
    %v155 = vperm.slane %v147, 0
    %164 = vset.pattern.permute.xlu0 1
    %165 = vperm.xlu0 %164, %v58
    %v166 = vpop.permute.xlu0 %165
    %168 = vset.pattern.permute.xlu0 1
    %169 = vperm.xlu0 %168, %v59
    %v170 = vpop.permute.xlu0 %169
    %v172 = vmul.f32 %v148, %v166
    %v173 = vmul.f32 %v148, %v170
    %v174 = vmul.f32 %v149, %v166
    %v175 = vmul.f32 %v149, %v170
    %v176 = vmul.f32 %v150, %v166
    %v177 = vmul.f32 %v150, %v170
    %v178 = vmul.f32 %v151, %v166
    %v179 = vmul.f32 %v151, %v170
    %v180 = vmul.f32 %v152, %v166
    %v181 = vmul.f32 %v152, %v170
    %v182 = vmul.f32 %v153, %v166
    %v183 = vmul.f32 %v153, %v170
    %v184 = vmul.f32 %v154, %v166
    %v185 = vmul.f32 %v154, %v170
    %v186 = vmul.f32 %v155, %v166
    %v187 = vmul.f32 %v155, %v170
    %v188 = vadd.f32 %v124, %v172
    %v189 = vadd.f32 %v125, %v173
    %v190 = vadd.f32 %v126, %v174
    %v191 = vadd.f32 %v127, %v175
    %v192 = vadd.f32 %v128, %v176
    %v193 = vadd.f32 %v129, %v177
    %v194 = vadd.f32 %v130, %v178
    %v195 = vadd.f32 %v131, %v179
    %v196 = vadd.f32 %v132, %v180
    %v197 = vadd.f32 %v133, %v181
    %v198 = vadd.f32 %v134, %v182
    %v199 = vadd.f32 %v135, %v183
    %v200 = vadd.f32 %v136, %v184
    %v201 = vadd.f32 %v137, %v185
    %v202 = vadd.f32 %v138, %v186
    %v203 = vadd.f32 %v139, %v187
    %v205 = vrot.slane %v48, 1
    %v206 = vrot.slane %v48, 2
    %v207 = vrot.slane %v48, 3
    %v208 = vrot.slane %v48, 4
    %v209 = vrot.slane %v48, 5
    %v210 = vrot.slane %v48, 6
    %v211 = vrot.slane %v48, 7
    %v212 = vperm.slane %v48, 0
    %v213 = vperm.slane %v205, 0
    %v214 = vperm.slane %v206, 0
    %v215 = vperm.slane %v207, 0
    %v216 = vperm.slane %v208, 0
    %v217 = vperm.slane %v209, 0
    %v218 = vperm.slane %v210, 0
    %v219 = vperm.slane %v211, 0
    %228 = vset.pattern.permute.xlu0 2
    %229 = vperm.xlu0 %228, %v58
    %v230 = vpop.permute.xlu0 %229
    %232 = vset.pattern.permute.xlu0 2
    %233 = vperm.xlu0 %232, %v59
    %v234 = vpop.permute.xlu0 %233
    %v236 = vmul.f32 %v212, %v230
    %v237 = vmul.f32 %v212, %v234
    %v238 = vmul.f32 %v213, %v230
    %v239 = vmul.f32 %v213, %v234
    %v240 = vmul.f32 %v214, %v230
    %v241 = vmul.f32 %v214, %v234
    %v242 = vmul.f32 %v215, %v230
    %v243 = vmul.f32 %v215, %v234
    %v244 = vmul.f32 %v216, %v230
    %v245 = vmul.f32 %v216, %v234
    %v246 = vmul.f32 %v217, %v230
    %v247 = vmul.f32 %v217, %v234
    %v248 = vmul.f32 %v218, %v230
    %v249 = vmul.f32 %v218, %v234
    %v250 = vmul.f32 %v219, %v230
    %v251 = vmul.f32 %v219, %v234
    %v252 = vadd.f32 %v188, %v236
    %v253 = vadd.f32 %v189, %v237
    %v254 = vadd.f32 %v190, %v238
    %v255 = vadd.f32 %v191, %v239
    %v256 = vadd.f32 %v192, %v240
    %v257 = vadd.f32 %v193, %v241
    %v258 = vadd.f32 %v194, %v242
    %v259 = vadd.f32 %v195, %v243
    %v260 = vadd.f32 %v196, %v244
    %v261 = vadd.f32 %v197, %v245
    %v262 = vadd.f32 %v198, %v246
    %v263 = vadd.f32 %v199, %v247
    %v264 = vadd.f32 %v200, %v248
    %v265 = vadd.f32 %v201, %v249
    %v266 = vadd.f32 %v202, %v250
    %v267 = vadd.f32 %v203, %v251
    %v269 = vrot.slane %v49, 1
    %v270 = vrot.slane %v49, 2
    %v271 = vrot.slane %v49, 3
    %v272 = vrot.slane %v49, 4
    %v273 = vrot.slane %v49, 5
    %v274 = vrot.slane %v49, 6
    %v275 = vrot.slane %v49, 7
    %v276 = vperm.slane %v49, 0
    %v277 = vperm.slane %v269, 0
    %v278 = vperm.slane %v270, 0
    %v279 = vperm.slane %v271, 0
    %v280 = vperm.slane %v272, 0
    %v281 = vperm.slane %v273, 0
    %v282 = vperm.slane %v274, 0
    %v283 = vperm.slane %v275, 0
    %292 = vset.pattern.permute.xlu0 3
    %293 = vperm.xlu0 %292, %v58
    %v294 = vpop.permute.xlu0 %293
    %296 = vset.pattern.permute.xlu0 3
    %297 = vperm.xlu0 %296, %v59
    %v298 = vpop.permute.xlu0 %297
    %v300 = vmul.f32 %v276, %v294
    %v301 = vmul.f32 %v276, %v298
    %v302 = vmul.f32 %v277, %v294
    %v303 = vmul.f32 %v277, %v298
    %v304 = vmul.f32 %v278, %v294
    %v305 = vmul.f32 %v278, %v298
    %v306 = vmul.f32 %v279, %v294
    %v307 = vmul.f32 %v279, %v298
    %v308 = vmul.f32 %v280, %v294
    %v309 = vmul.f32 %v280, %v298
    %v310 = vmul.f32 %v281, %v294
    %v311 = vmul.f32 %v281, %v298
    %v312 = vmul.f32 %v282, %v294
    %v313 = vmul.f32 %v282, %v298
    %v314 = vmul.f32 %v283, %v294
    %v315 = vmul.f32 %v283, %v298
    %v316 = vadd.f32 %v252, %v300
    %v317 = vadd.f32 %v253, %v301
    %v318 = vadd.f32 %v254, %v302
    %v319 = vadd.f32 %v255, %v303
    %v320 = vadd.f32 %v256, %v304
    %v321 = vadd.f32 %v257, %v305
    %v322 = vadd.f32 %v258, %v306
    %v323 = vadd.f32 %v259, %v307
    %v324 = vadd.f32 %v260, %v308
    %v325 = vadd.f32 %v261, %v309
    %v326 = vadd.f32 %v262, %v310
    %v327 = vadd.f32 %v263, %v311
    %v328 = vadd.f32 %v264, %v312
    %v329 = vadd.f32 %v265, %v313
    %v330 = vadd.f32 %v266, %v314
    %v331 = vadd.f32 %v267, %v315
    %v333 = vrot.slane %v50, 1
    %v334 = vrot.slane %v50, 2
    %v335 = vrot.slane %v50, 3
    %v336 = vrot.slane %v50, 4
    %v337 = vrot.slane %v50, 5
    %v338 = vrot.slane %v50, 6
    %v339 = vrot.slane %v50, 7
    %v340 = vperm.slane %v50, 0
    %v341 = vperm.slane %v333, 0
    %v342 = vperm.slane %v334, 0
    %v343 = vperm.slane %v335, 0
    %v344 = vperm.slane %v336, 0
    %v345 = vperm.slane %v337, 0
    %v346 = vperm.slane %v338, 0
    %v347 = vperm.slane %v339, 0
    %356 = vset.pattern.permute.xlu0 4
    %357 = vperm.xlu0 %356, %v58
    %v358 = vpop.permute.xlu0 %357
    %360 = vset.pattern.permute.xlu0 4
    %361 = vperm.xlu0 %360, %v59
    %v362 = vpop.permute.xlu0 %361
    %v364 = vmul.f32 %v340, %v358
    %v365 = vmul.f32 %v340, %v362
    %v366 = vmul.f32 %v341, %v358
    %v367 = vmul.f32 %v341, %v362
    %v368 = vmul.f32 %v342, %v358
    %v369 = vmul.f32 %v342, %v362
    %v370 = vmul.f32 %v343, %v358
    %v371 = vmul.f32 %v343, %v362
    %v372 = vmul.f32 %v344, %v358
    %v373 = vmul.f32 %v344, %v362
    %v374 = vmul.f32 %v345, %v358
    %v375 = vmul.f32 %v345, %v362
    %v376 = vmul.f32 %v346, %v358
    %v377 = vmul.f32 %v346, %v362
    %v378 = vmul.f32 %v347, %v358
    %v379 = vmul.f32 %v347, %v362
    %v380 = vadd.f32 %v316, %v364
    %v381 = vadd.f32 %v317, %v365
    %v382 = vadd.f32 %v318, %v366
    %v383 = vadd.f32 %v319, %v367
    %v384 = vadd.f32 %v320, %v368
    %v385 = vadd.f32 %v321, %v369
    %v386 = vadd.f32 %v322, %v370
    %v387 = vadd.f32 %v323, %v371
    %v388 = vadd.f32 %v324, %v372
    %v389 = vadd.f32 %v325, %v373
    %v390 = vadd.f32 %v326, %v374
    %v391 = vadd.f32 %v327, %v375
    %v392 = vadd.f32 %v328, %v376
    %v393 = vadd.f32 %v329, %v377
    %v394 = vadd.f32 %v330, %v378
    %v395 = vadd.f32 %v331, %v379
    %v397 = vrot.slane %v51, 1
    %v398 = vrot.slane %v51, 2
    %v399 = vrot.slane %v51, 3
    %v400 = vrot.slane %v51, 4
    %v401 = vrot.slane %v51, 5
    %v402 = vrot.slane %v51, 6
    %v403 = vrot.slane %v51, 7
    %v404 = vperm.slane %v51, 0
    %v405 = vperm.slane %v397, 0
    %v406 = vperm.slane %v398, 0
    %v407 = vperm.slane %v399, 0
    %v408 = vperm.slane %v400, 0
    %v409 = vperm.slane %v401, 0
    %v410 = vperm.slane %v402, 0
    %v411 = vperm.slane %v403, 0
    %420 = vset.pattern.permute.xlu0 5
    %421 = vperm.xlu0 %420, %v58
    %v422 = vpop.permute.xlu0 %421
    %424 = vset.pattern.permute.xlu0 5
    %425 = vperm.xlu0 %424, %v59
    %v426 = vpop.permute.xlu0 %425
    %v428 = vmul.f32 %v404, %v422
    %v429 = vmul.f32 %v404, %v426
    %v430 = vmul.f32 %v405, %v422
    %v431 = vmul.f32 %v405, %v426
    %v432 = vmul.f32 %v406, %v422
    %v433 = vmul.f32 %v406, %v426
    %v434 = vmul.f32 %v407, %v422
    %v435 = vmul.f32 %v407, %v426
    %v436 = vmul.f32 %v408, %v422
    %v437 = vmul.f32 %v408, %v426
    %v438 = vmul.f32 %v409, %v422
    %v439 = vmul.f32 %v409, %v426
    %v440 = vmul.f32 %v410, %v422
    %v441 = vmul.f32 %v410, %v426
    %v442 = vmul.f32 %v411, %v422
    %v443 = vmul.f32 %v411, %v426
    %v444 = vadd.f32 %v380, %v428
    %v445 = vadd.f32 %v381, %v429
    %v446 = vadd.f32 %v382, %v430
    %v447 = vadd.f32 %v383, %v431
    %v448 = vadd.f32 %v384, %v432
    %v449 = vadd.f32 %v385, %v433
    %v450 = vadd.f32 %v386, %v434
    %v451 = vadd.f32 %v387, %v435
    %v452 = vadd.f32 %v388, %v436
    %v453 = vadd.f32 %v389, %v437
    %v454 = vadd.f32 %v390, %v438
    %v455 = vadd.f32 %v391, %v439
    %v456 = vadd.f32 %v392, %v440
    %v457 = vadd.f32 %v393, %v441
    %v458 = vadd.f32 %v394, %v442
    %v459 = vadd.f32 %v395, %v443
    %v461 = vrot.slane %v52, 1
    %v462 = vrot.slane %v52, 2
    %v463 = vrot.slane %v52, 3
    %v464 = vrot.slane %v52, 4
    %v465 = vrot.slane %v52, 5
    %v466 = vrot.slane %v52, 6
    %v467 = vrot.slane %v52, 7
    %v468 = vperm.slane %v52, 0
    %v469 = vperm.slane %v461, 0
    %v470 = vperm.slane %v462, 0
    %v471 = vperm.slane %v463, 0
    %v472 = vperm.slane %v464, 0
    %v473 = vperm.slane %v465, 0
    %v474 = vperm.slane %v466, 0
    %v475 = vperm.slane %v467, 0
    %484 = vset.pattern.permute.xlu0 6
    %485 = vperm.xlu0 %484, %v58
    %v486 = vpop.permute.xlu0 %485
    %488 = vset.pattern.permute.xlu0 6
    %489 = vperm.xlu0 %488, %v59
    %v490 = vpop.permute.xlu0 %489
    %v492 = vmul.f32 %v468, %v486
    %v493 = vmul.f32 %v468, %v490
    %v494 = vmul.f32 %v469, %v486
    %v495 = vmul.f32 %v469, %v490
    %v496 = vmul.f32 %v470, %v486
    %v497 = vmul.f32 %v470, %v490
    %v498 = vmul.f32 %v471, %v486
    %v499 = vmul.f32 %v471, %v490
    %v500 = vmul.f32 %v472, %v486
    %v501 = vmul.f32 %v472, %v490
    %v502 = vmul.f32 %v473, %v486
    %v503 = vmul.f32 %v473, %v490
    %v504 = vmul.f32 %v474, %v486
    %v505 = vmul.f32 %v474, %v490
    %v506 = vmul.f32 %v475, %v486
    %v507 = vmul.f32 %v475, %v490
    %v508 = vadd.f32 %v444, %v492
    %v509 = vadd.f32 %v445, %v493
    %v510 = vadd.f32 %v446, %v494
    %v511 = vadd.f32 %v447, %v495
    %v512 = vadd.f32 %v448, %v496
    %v513 = vadd.f32 %v449, %v497
    %v514 = vadd.f32 %v450, %v498
    %v515 = vadd.f32 %v451, %v499
    %v516 = vadd.f32 %v452, %v500
    %v517 = vadd.f32 %v453, %v501
    %v518 = vadd.f32 %v454, %v502
    %v519 = vadd.f32 %v455, %v503
    %v520 = vadd.f32 %v456, %v504
    %v521 = vadd.f32 %v457, %v505
    %v522 = vadd.f32 %v458, %v506
    %v523 = vadd.f32 %v459, %v507
    %v525 = vrot.slane %v53, 1
    %v526 = vrot.slane %v53, 2
    %v527 = vrot.slane %v53, 3
    %v528 = vrot.slane %v53, 4
    %v529 = vrot.slane %v53, 5
    %v530 = vrot.slane %v53, 6
    %v531 = vrot.slane %v53, 7
    %v532 = vperm.slane %v53, 0
    %v533 = vperm.slane %v525, 0
    %v534 = vperm.slane %v526, 0
    %v535 = vperm.slane %v527, 0
    %v536 = vperm.slane %v528, 0
    %v537 = vperm.slane %v529, 0
    %v538 = vperm.slane %v530, 0
    %v539 = vperm.slane %v531, 0
    %548 = vset.pattern.permute.xlu0 7
    %549 = vperm.xlu0 %548, %v58
    %v550 = vpop.permute.xlu0 %549
    %552 = vset.pattern.permute.xlu0 7
    %553 = vperm.xlu0 %552, %v59
    %v554 = vpop.permute.xlu0 %553
    %v556 = vmul.f32 %v532, %v550
    %v557 = vmul.f32 %v532, %v554
    %v558 = vmul.f32 %v533, %v550
    %v559 = vmul.f32 %v533, %v554
    %v560 = vmul.f32 %v534, %v550
    %v561 = vmul.f32 %v534, %v554
    %v562 = vmul.f32 %v535, %v550
    %v563 = vmul.f32 %v535, %v554
    %v564 = vmul.f32 %v536, %v550
    %v565 = vmul.f32 %v536, %v554
    %v566 = vmul.f32 %v537, %v550
    %v567 = vmul.f32 %v537, %v554
    %v568 = vmul.f32 %v538, %v550
    %v569 = vmul.f32 %v538, %v554
    %v570 = vmul.f32 %v539, %v550
    %v571 = vmul.f32 %v539, %v554
    %v572 = vadd.f32 %v508, %v556
    %v573 = vadd.f32 %v509, %v557
    %v574 = vadd.f32 %v510, %v558
    %v575 = vadd.f32 %v511, %v559
    %v576 = vadd.f32 %v512, %v560
    %v577 = vadd.f32 %v513, %v561
    %v578 = vadd.f32 %v514, %v562
    %v579 = vadd.f32 %v515, %v563
    %v580 = vadd.f32 %v516, %v564
    %v581 = vadd.f32 %v517, %v565
    %v582 = vadd.f32 %v518, %v566
    %v583 = vadd.f32 %v519, %v567
    %v584 = vadd.f32 %v520, %v568
    %v585 = vadd.f32 %v521, %v569
    %v586 = vadd.f32 %v522, %v570
    %v587 = vadd.f32 %v523, %v571
    %v589 = vrot.slane %v54, 1
    %v590 = vrot.slane %v54, 2
    %v591 = vrot.slane %v54, 3
    %v592 = vrot.slane %v54, 4
    %v593 = vrot.slane %v54, 5
    %v594 = vrot.slane %v54, 6
    %v595 = vrot.slane %v54, 7
    %v596 = vperm.slane %v54, 0
    %v597 = vperm.slane %v589, 0
    %v598 = vperm.slane %v590, 0
    %v599 = vperm.slane %v591, 0
    %v600 = vperm.slane %v592, 0
    %v601 = vperm.slane %v593, 0
    %v602 = vperm.slane %v594, 0
    %v603 = vperm.slane %v595, 0
    %612 = vset.pattern.permute.xlu0 8
    %613 = vperm.xlu0 %612, %v58
    %v614 = vpop.permute.xlu0 %613
    %616 = vset.pattern.permute.xlu0 8
    %617 = vperm.xlu0 %616, %v59
    %v618 = vpop.permute.xlu0 %617
    %v620 = vmul.f32 %v596, %v614
    %v621 = vmul.f32 %v596, %v618
    %v622 = vmul.f32 %v597, %v614
    %v623 = vmul.f32 %v597, %v618
    %v624 = vmul.f32 %v598, %v614
    %v625 = vmul.f32 %v598, %v618
    %v626 = vmul.f32 %v599, %v614
    %v627 = vmul.f32 %v599, %v618
    %v628 = vmul.f32 %v600, %v614
    %v629 = vmul.f32 %v600, %v618
    %v630 = vmul.f32 %v601, %v614
    %v631 = vmul.f32 %v601, %v618
    %v632 = vmul.f32 %v602, %v614
    %v633 = vmul.f32 %v602, %v618
    %v634 = vmul.f32 %v603, %v614
    %v635 = vmul.f32 %v603, %v618
    %v636 = vadd.f32 %v572, %v620
    %v637 = vadd.f32 %v573, %v621
    %v638 = vadd.f32 %v574, %v622
    %v639 = vadd.f32 %v575, %v623
    %v640 = vadd.f32 %v576, %v624
    %v641 = vadd.f32 %v577, %v625
    %v642 = vadd.f32 %v578, %v626
    %v643 = vadd.f32 %v579, %v627
    %v644 = vadd.f32 %v580, %v628
    %v645 = vadd.f32 %v581, %v629
    %v646 = vadd.f32 %v582, %v630
    %v647 = vadd.f32 %v583, %v631
    %v648 = vadd.f32 %v584, %v632
    %v649 = vadd.f32 %v585, %v633
    %v650 = vadd.f32 %v586, %v634
    %v651 = vadd.f32 %v587, %v635
    %v653 = vrot.slane %v55, 1
    %v654 = vrot.slane %v55, 2
    %v655 = vrot.slane %v55, 3
    %v656 = vrot.slane %v55, 4
    %v657 = vrot.slane %v55, 5
    %v658 = vrot.slane %v55, 6
    %v659 = vrot.slane %v55, 7
    %v660 = vperm.slane %v55, 0
    %v661 = vperm.slane %v653, 0
    %v662 = vperm.slane %v654, 0
    %v663 = vperm.slane %v655, 0
    %v664 = vperm.slane %v656, 0
    %v665 = vperm.slane %v657, 0
    %v666 = vperm.slane %v658, 0
    %v667 = vperm.slane %v659, 0
    %676 = vset.pattern.permute.xlu0 9
    %677 = vperm.xlu0 %676, %v58
    %v678 = vpop.permute.xlu0 %677
    %680 = vset.pattern.permute.xlu0 9
    %681 = vperm.xlu0 %680, %v59
    %v682 = vpop.permute.xlu0 %681
    %v684 = vmul.f32 %v660, %v678
    %v685 = vmul.f32 %v660, %v682
    %v686 = vmul.f32 %v661, %v678
    %v687 = vmul.f32 %v661, %v682
    %v688 = vmul.f32 %v662, %v678
    %v689 = vmul.f32 %v662, %v682
    %v690 = vmul.f32 %v663, %v678
    %v691 = vmul.f32 %v663, %v682
    %v692 = vmul.f32 %v664, %v678
    %v693 = vmul.f32 %v664, %v682
    %v694 = vmul.f32 %v665, %v678
    %v695 = vmul.f32 %v665, %v682
    %v696 = vmul.f32 %v666, %v678
    %v697 = vmul.f32 %v666, %v682
    %v698 = vmul.f32 %v667, %v678
    %v699 = vmul.f32 %v667, %v682
    %v700 = vadd.f32 %v636, %v684
    %v701 = vadd.f32 %v637, %v685
    %v702 = vadd.f32 %v638, %v686
    %v703 = vadd.f32 %v639, %v687
    %v704 = vadd.f32 %v640, %v688
    %v705 = vadd.f32 %v641, %v689
    %v706 = vadd.f32 %v642, %v690
    %v707 = vadd.f32 %v643, %v691
    %v708 = vadd.f32 %v644, %v692
    %v709 = vadd.f32 %v645, %v693
    %v710 = vadd.f32 %v646, %v694
    %v711 = vadd.f32 %v647, %v695
    %v712 = vadd.f32 %v648, %v696
    %v713 = vadd.f32 %v649, %v697
    %v714 = vadd.f32 %v650, %v698
    %v715 = vadd.f32 %v651, %v699
    %v717 = vrot.slane %v56, 1
    %v718 = vrot.slane %v56, 2
    %v719 = vrot.slane %v56, 3
    %v720 = vrot.slane %v56, 4
    %v721 = vrot.slane %v56, 5
    %v722 = vrot.slane %v56, 6
    %v723 = vrot.slane %v56, 7
    %v724 = vperm.slane %v56, 0
    %v725 = vperm.slane %v717, 0
    %v726 = vperm.slane %v718, 0
    %v727 = vperm.slane %v719, 0
    %v728 = vperm.slane %v720, 0
    %v729 = vperm.slane %v721, 0
    %v730 = vperm.slane %v722, 0
    %v731 = vperm.slane %v723, 0
    %740 = vset.pattern.permute.xlu0 10
    %741 = vperm.xlu0 %740, %v58
    %v742 = vpop.permute.xlu0 %741
    %744 = vset.pattern.permute.xlu0 10
    %745 = vperm.xlu0 %744, %v59
    %v746 = vpop.permute.xlu0 %745
    %v748 = vmul.f32 %v724, %v742
    %v749 = vmul.f32 %v724, %v746
    %v750 = vmul.f32 %v725, %v742
    %v751 = vmul.f32 %v725, %v746
    %v752 = vmul.f32 %v726, %v742
    %v753 = vmul.f32 %v726, %v746
    %v754 = vmul.f32 %v727, %v742
    %v755 = vmul.f32 %v727, %v746
    %v756 = vmul.f32 %v728, %v742
    %v757 = vmul.f32 %v728, %v746
    %v758 = vmul.f32 %v729, %v742
    %v759 = vmul.f32 %v729, %v746
    %v760 = vmul.f32 %v730, %v742
    %v761 = vmul.f32 %v730, %v746
    %v762 = vmul.f32 %v731, %v742
    %v763 = vmul.f32 %v731, %v746
    %v764 = vadd.f32 %v700, %v748
    %v765 = vadd.f32 %v701, %v749
    %v766 = vadd.f32 %v702, %v750
    %v767 = vadd.f32 %v703, %v751
    %v768 = vadd.f32 %v704, %v752
    %v769 = vadd.f32 %v705, %v753
    %v770 = vadd.f32 %v706, %v754
    %v771 = vadd.f32 %v707, %v755
    %v772 = vadd.f32 %v708, %v756
    %v773 = vadd.f32 %v709, %v757
    %v774 = vadd.f32 %v710, %v758
    %v775 = vadd.f32 %v711, %v759
    %v776 = vadd.f32 %v712, %v760
    %v777 = vadd.f32 %v713, %v761
    %v778 = vadd.f32 %v714, %v762
    %v779 = vadd.f32 %v715, %v763
    %v781 = vrot.slane %v57, 1
    %v782 = vrot.slane %v57, 2
    %v783 = vrot.slane %v57, 3
    %v784 = vrot.slane %v57, 4
    %v785 = vrot.slane %v57, 5
    %v786 = vrot.slane %v57, 6
    %v787 = vrot.slane %v57, 7
    %v788 = vperm.slane %v57, 0
    %v789 = vperm.slane %v781, 0
    %v790 = vperm.slane %v782, 0
    %v791 = vperm.slane %v783, 0
    %v792 = vperm.slane %v784, 0
    %v793 = vperm.slane %v785, 0
    %v794 = vperm.slane %v786, 0
    %v795 = vperm.slane %v787, 0
    %804 = vset.pattern.permute.xlu0 11
    %805 = vperm.xlu0 %804, %v58
    %v806 = vpop.permute.xlu0 %805
    %808 = vset.pattern.permute.xlu0 11
    %809 = vperm.xlu0 %808, %v59
    %v810 = vpop.permute.xlu0 %809
    %v812 = vmul.f32 %v788, %v806
    %v813 = vmul.f32 %v788, %v810
    %v814 = vmul.f32 %v789, %v806
    %v815 = vmul.f32 %v789, %v810
    %v816 = vmul.f32 %v790, %v806
    %v817 = vmul.f32 %v790, %v810
    %v818 = vmul.f32 %v791, %v806
    %v819 = vmul.f32 %v791, %v810
    %v820 = vmul.f32 %v792, %v806
    %v821 = vmul.f32 %v792, %v810
    %v822 = vmul.f32 %v793, %v806
    %v823 = vmul.f32 %v793, %v810
    %v824 = vmul.f32 %v794, %v806
    %v825 = vmul.f32 %v794, %v810
    %v826 = vmul.f32 %v795, %v806
    %v827 = vmul.f32 %v795, %v810
    %v828 = vadd.f32 %v764, %v812
    %v829 = vadd.f32 %v765, %v813
    %v830 = vadd.f32 %v766, %v814
    %v831 = vadd.f32 %v767, %v815
    %v832 = vadd.f32 %v768, %v816
    %v833 = vadd.f32 %v769, %v817
    %v834 = vadd.f32 %v770, %v818
    %v835 = vadd.f32 %v771, %v819
    %v836 = vadd.f32 %v772, %v820
    %v837 = vadd.f32 %v773, %v821
    %v838 = vadd.f32 %v774, %v822
    %v839 = vadd.f32 %v775, %v823
    %v840 = vadd.f32 %v776, %v824
    %v841 = vadd.f32 %v777, %v825
    %v842 = vadd.f32 %v778, %v826
    %v843 = vadd.f32 %v779, %v827
    %844 = vset.pattern.permute.xlu0 12
    %845 = vperm.xlu0 %844, %v58
    %v846 = vpop.permute.xlu0 %845
    %848 = vset.pattern.permute.xlu0 12
    %849 = vperm.xlu0 %848, %v59
    %v850 = vpop.permute.xlu0 %849
    %v852 = vmul.f32 %v82, %v846
    %v853 = vmul.f32 %v82, %v850
    %v854 = vmul.f32 %v83, %v846
    %v855 = vmul.f32 %v83, %v850
    %v856 = vmul.f32 %v84, %v846
    %v857 = vmul.f32 %v84, %v850
    %v858 = vmul.f32 %v85, %v846
    %v859 = vmul.f32 %v85, %v850
    %v860 = vmul.f32 %v86, %v846
    %v861 = vmul.f32 %v86, %v850
    %v862 = vmul.f32 %v87, %v846
    %v863 = vmul.f32 %v87, %v850
    %v864 = vmul.f32 %v88, %v846
    %v865 = vmul.f32 %v88, %v850
    %v866 = vmul.f32 %v89, %v846
    %v867 = vmul.f32 %v89, %v850
    %884 = vrot.lane.b32.xlu0 %v852, 127
    %v885 = vpop.permute.xlu0 %884
    %886 = vrot.lane.b32.xlu0 %v853, 127
    %v887 = vpop.permute.xlu0 %886
    %888 = vrot.lane.b32.xlu0 %v854, 127
    %v889 = vpop.permute.xlu0 %888
    %890 = vrot.lane.b32.xlu0 %v855, 127
    %v891 = vpop.permute.xlu0 %890
    %892 = vrot.lane.b32.xlu0 %v856, 127
    %v893 = vpop.permute.xlu0 %892
    %894 = vrot.lane.b32.xlu0 %v857, 127
    %v895 = vpop.permute.xlu0 %894
    %896 = vrot.lane.b32.xlu0 %v858, 127
    %v897 = vpop.permute.xlu0 %896
    %898 = vrot.lane.b32.xlu0 %v859, 127
    %v899 = vpop.permute.xlu0 %898
    %900 = vrot.lane.b32.xlu0 %v860, 127
    %v901 = vpop.permute.xlu0 %900
    %902 = vrot.lane.b32.xlu0 %v861, 127
    %v903 = vpop.permute.xlu0 %902
    %904 = vrot.lane.b32.xlu0 %v862, 127
    %v905 = vpop.permute.xlu0 %904
    %906 = vrot.lane.b32.xlu0 %v863, 127
    %v907 = vpop.permute.xlu0 %906
    %908 = vrot.lane.b32.xlu0 %v864, 127
    %v909 = vpop.permute.xlu0 %908
    %910 = vrot.lane.b32.xlu0 %v865, 127
    %v911 = vpop.permute.xlu0 %910
    %912 = vrot.lane.b32.xlu0 %v866, 127
    %v913 = vpop.permute.xlu0 %912
    %914 = vrot.lane.b32.xlu0 %v867, 127
    %v915 = vpop.permute.xlu0 %914
    %v932 = vadd.f32 %v828, %v885
    %v933 = vadd.f32 %v829, %v887
    %v934 = vadd.f32 %v830, %v889
    %v935 = vadd.f32 %v831, %v891
    %v936 = vadd.f32 %v832, %v893
    %v937 = vadd.f32 %v833, %v895
    %v938 = vadd.f32 %v834, %v897
    %v939 = vadd.f32 %v835, %v899
    %v940 = vadd.f32 %v836, %v901
    %v941 = vadd.f32 %v837, %v903
    %v942 = vadd.f32 %v838, %v905
    %v943 = vadd.f32 %v839, %v907
    %v944 = vadd.f32 %v840, %v909
    %v945 = vadd.f32 %v841, %v911
    %v946 = vadd.f32 %v842, %v913
    %v947 = vadd.f32 %v843, %v915
    %948 = vset.pattern.permute.xlu0 13
    %949 = vperm.xlu0 %948, %v58
    %v950 = vpop.permute.xlu0 %949
    %952 = vset.pattern.permute.xlu0 13
    %953 = vperm.xlu0 %952, %v59
    %v954 = vpop.permute.xlu0 %953
    %v956 = vmul.f32 %v148, %v950
    %v957 = vmul.f32 %v148, %v954
    %v958 = vmul.f32 %v149, %v950
    %v959 = vmul.f32 %v149, %v954
    %v960 = vmul.f32 %v150, %v950
    %v961 = vmul.f32 %v150, %v954
    %v962 = vmul.f32 %v151, %v950
    %v963 = vmul.f32 %v151, %v954
    %v964 = vmul.f32 %v152, %v950
    %v965 = vmul.f32 %v152, %v954
    %v966 = vmul.f32 %v153, %v950
    %v967 = vmul.f32 %v153, %v954
    %v968 = vmul.f32 %v154, %v950
    %v969 = vmul.f32 %v154, %v954
    %v970 = vmul.f32 %v155, %v950
    %v971 = vmul.f32 %v155, %v954
    %988 = vrot.lane.b32.xlu0 %v956, 127
    %v989 = vpop.permute.xlu0 %988
    %990 = vrot.lane.b32.xlu0 %v957, 127
    %v991 = vpop.permute.xlu0 %990
    %992 = vrot.lane.b32.xlu0 %v958, 127
    %v993 = vpop.permute.xlu0 %992
    %994 = vrot.lane.b32.xlu0 %v959, 127
    %v995 = vpop.permute.xlu0 %994
    %996 = vrot.lane.b32.xlu0 %v960, 127
    %v997 = vpop.permute.xlu0 %996
    %998 = vrot.lane.b32.xlu0 %v961, 127
    %v999 = vpop.permute.xlu0 %998
    %1000 = vrot.lane.b32.xlu0 %v962, 127
    %v1001 = vpop.permute.xlu0 %1000
    %1002 = vrot.lane.b32.xlu0 %v963, 127
    %v1003 = vpop.permute.xlu0 %1002
    %1004 = vrot.lane.b32.xlu0 %v964, 127
    %v1005 = vpop.permute.xlu0 %1004
    %1006 = vrot.lane.b32.xlu0 %v965, 127
    %v1007 = vpop.permute.xlu0 %1006
    %1008 = vrot.lane.b32.xlu0 %v966, 127
    %v1009 = vpop.permute.xlu0 %1008
    %1010 = vrot.lane.b32.xlu0 %v967, 127
    %v1011 = vpop.permute.xlu0 %1010
    %1012 = vrot.lane.b32.xlu0 %v968, 127
    %v1013 = vpop.permute.xlu0 %1012
    %1014 = vrot.lane.b32.xlu0 %v969, 127
    %v1015 = vpop.permute.xlu0 %1014
    %1016 = vrot.lane.b32.xlu0 %v970, 127
    %v1017 = vpop.permute.xlu0 %1016
    %1018 = vrot.lane.b32.xlu0 %v971, 127
    %v1019 = vpop.permute.xlu0 %1018
    %v1036 = vadd.f32 %v932, %v989
    %v1037 = vadd.f32 %v933, %v991
    %v1038 = vadd.f32 %v934, %v993
    %v1039 = vadd.f32 %v935, %v995
    %v1040 = vadd.f32 %v936, %v997
    %v1041 = vadd.f32 %v937, %v999
    %v1042 = vadd.f32 %v938, %v1001
    %v1043 = vadd.f32 %v939, %v1003
    %v1044 = vadd.f32 %v940, %v1005
    %v1045 = vadd.f32 %v941, %v1007
    %v1046 = vadd.f32 %v942, %v1009
    %v1047 = vadd.f32 %v943, %v1011
    %v1048 = vadd.f32 %v944, %v1013
    %v1049 = vadd.f32 %v945, %v1015
    %v1050 = vadd.f32 %v946, %v1017
    %v1051 = vadd.f32 %v947, %v1019
    %1052 = vset.pattern.permute.xlu0 14
    %1053 = vperm.xlu0 %1052, %v58
    %v1054 = vpop.permute.xlu0 %1053
    %1056 = vset.pattern.permute.xlu0 14
    %1057 = vperm.xlu0 %1056, %v59
    %v1058 = vpop.permute.xlu0 %1057
    %v1060 = vmul.f32 %v212, %v1054
    %v1061 = vmul.f32 %v212, %v1058
    %v1062 = vmul.f32 %v213, %v1054
    %v1063 = vmul.f32 %v213, %v1058
    %v1064 = vmul.f32 %v214, %v1054
    %v1065 = vmul.f32 %v214, %v1058
    %v1066 = vmul.f32 %v215, %v1054
    %v1067 = vmul.f32 %v215, %v1058
    %v1068 = vmul.f32 %v216, %v1054
    %v1069 = vmul.f32 %v216, %v1058
    %v1070 = vmul.f32 %v217, %v1054
    %v1071 = vmul.f32 %v217, %v1058
    %v1072 = vmul.f32 %v218, %v1054
    %v1073 = vmul.f32 %v218, %v1058
    %v1074 = vmul.f32 %v219, %v1054
    %v1075 = vmul.f32 %v219, %v1058
    %1092 = vrot.lane.b32.xlu0 %v1060, 127
    %v1093 = vpop.permute.xlu0 %1092
    %1094 = vrot.lane.b32.xlu0 %v1061, 127
    %v1095 = vpop.permute.xlu0 %1094
    %1096 = vrot.lane.b32.xlu0 %v1062, 127
    %v1097 = vpop.permute.xlu0 %1096
    %1098 = vrot.lane.b32.xlu0 %v1063, 127
    %v1099 = vpop.permute.xlu0 %1098
    %1100 = vrot.lane.b32.xlu0 %v1064, 127
    %v1101 = vpop.permute.xlu0 %1100
    %1102 = vrot.lane.b32.xlu0 %v1065, 127
    %v1103 = vpop.permute.xlu0 %1102
    %1104 = vrot.lane.b32.xlu0 %v1066, 127
    %v1105 = vpop.permute.xlu0 %1104
    %1106 = vrot.lane.b32.xlu0 %v1067, 127
    %v1107 = vpop.permute.xlu0 %1106
    %1108 = vrot.lane.b32.xlu0 %v1068, 127
    %v1109 = vpop.permute.xlu0 %1108
    %1110 = vrot.lane.b32.xlu0 %v1069, 127
    %v1111 = vpop.permute.xlu0 %1110
    %1112 = vrot.lane.b32.xlu0 %v1070, 127
    %v1113 = vpop.permute.xlu0 %1112
    %1114 = vrot.lane.b32.xlu0 %v1071, 127
    %v1115 = vpop.permute.xlu0 %1114
    %1116 = vrot.lane.b32.xlu0 %v1072, 127
    %v1117 = vpop.permute.xlu0 %1116
    %1118 = vrot.lane.b32.xlu0 %v1073, 127
    %v1119 = vpop.permute.xlu0 %1118
    %1120 = vrot.lane.b32.xlu0 %v1074, 127
    %v1121 = vpop.permute.xlu0 %1120
    %1122 = vrot.lane.b32.xlu0 %v1075, 127
    %v1123 = vpop.permute.xlu0 %1122
    %v1140 = vadd.f32 %v1036, %v1093
    %v1141 = vadd.f32 %v1037, %v1095
    %v1142 = vadd.f32 %v1038, %v1097
    %v1143 = vadd.f32 %v1039, %v1099
    %v1144 = vadd.f32 %v1040, %v1101
    %v1145 = vadd.f32 %v1041, %v1103
    %v1146 = vadd.f32 %v1042, %v1105
    %v1147 = vadd.f32 %v1043, %v1107
    %v1148 = vadd.f32 %v1044, %v1109
    %v1149 = vadd.f32 %v1045, %v1111
    %v1150 = vadd.f32 %v1046, %v1113
    %v1151 = vadd.f32 %v1047, %v1115
    %v1152 = vadd.f32 %v1048, %v1117
    %v1153 = vadd.f32 %v1049, %v1119
    %v1154 = vadd.f32 %v1050, %v1121
    %v1155 = vadd.f32 %v1051, %v1123
    %1156 = vset.pattern.permute.xlu0 15
    %1157 = vperm.xlu0 %1156, %v58
    %v1158 = vpop.permute.xlu0 %1157
    %1160 = vset.pattern.permute.xlu0 15
    %1161 = vperm.xlu0 %1160, %v59
    %v1162 = vpop.permute.xlu0 %1161
    %v1164 = vmul.f32 %v276, %v1158
    %v1165 = vmul.f32 %v276, %v1162
    %v1166 = vmul.f32 %v277, %v1158
    %v1167 = vmul.f32 %v277, %v1162
    %v1168 = vmul.f32 %v278, %v1158
    %v1169 = vmul.f32 %v278, %v1162
    %v1170 = vmul.f32 %v279, %v1158
    %v1171 = vmul.f32 %v279, %v1162
    %v1172 = vmul.f32 %v280, %v1158
    %v1173 = vmul.f32 %v280, %v1162
    %v1174 = vmul.f32 %v281, %v1158
    %v1175 = vmul.f32 %v281, %v1162
    %v1176 = vmul.f32 %v282, %v1158
    %v1177 = vmul.f32 %v282, %v1162
    %v1178 = vmul.f32 %v283, %v1158
    %v1179 = vmul.f32 %v283, %v1162
    %1196 = vrot.lane.b32.xlu0 %v1164, 127
    %v1197 = vpop.permute.xlu0 %1196
    %1198 = vrot.lane.b32.xlu0 %v1165, 127
    %v1199 = vpop.permute.xlu0 %1198
    %1200 = vrot.lane.b32.xlu0 %v1166, 127
    %v1201 = vpop.permute.xlu0 %1200
    %1202 = vrot.lane.b32.xlu0 %v1167, 127
    %v1203 = vpop.permute.xlu0 %1202
    %1204 = vrot.lane.b32.xlu0 %v1168, 127
    %v1205 = vpop.permute.xlu0 %1204
    %1206 = vrot.lane.b32.xlu0 %v1169, 127
    %v1207 = vpop.permute.xlu0 %1206
    %1208 = vrot.lane.b32.xlu0 %v1170, 127
    %v1209 = vpop.permute.xlu0 %1208
    %1210 = vrot.lane.b32.xlu0 %v1171, 127
    %v1211 = vpop.permute.xlu0 %1210
    %1212 = vrot.lane.b32.xlu0 %v1172, 127
    %v1213 = vpop.permute.xlu0 %1212
    %1214 = vrot.lane.b32.xlu0 %v1173, 127
    %v1215 = vpop.permute.xlu0 %1214
    %1216 = vrot.lane.b32.xlu0 %v1174, 127
    %v1217 = vpop.permute.xlu0 %1216
    %1218 = vrot.lane.b32.xlu0 %v1175, 127
    %v1219 = vpop.permute.xlu0 %1218
    %1220 = vrot.lane.b32.xlu0 %v1176, 127
    %v1221 = vpop.permute.xlu0 %1220
    %1222 = vrot.lane.b32.xlu0 %v1177, 127
    %v1223 = vpop.permute.xlu0 %1222
    %1224 = vrot.lane.b32.xlu0 %v1178, 127
    %v1225 = vpop.permute.xlu0 %1224
    %1226 = vrot.lane.b32.xlu0 %v1179, 127
    %v1227 = vpop.permute.xlu0 %1226
    %v1244 = vadd.f32 %v1140, %v1197
    %v1245 = vadd.f32 %v1141, %v1199
    %v1246 = vadd.f32 %v1142, %v1201
    %v1247 = vadd.f32 %v1143, %v1203
    %v1248 = vadd.f32 %v1144, %v1205
    %v1249 = vadd.f32 %v1145, %v1207
    %v1250 = vadd.f32 %v1146, %v1209
    %v1251 = vadd.f32 %v1147, %v1211
    %v1252 = vadd.f32 %v1148, %v1213
    %v1253 = vadd.f32 %v1149, %v1215
    %v1254 = vadd.f32 %v1150, %v1217
    %v1255 = vadd.f32 %v1151, %v1219
    %v1256 = vadd.f32 %v1152, %v1221
    %v1257 = vadd.f32 %v1153, %v1223
    %v1258 = vadd.f32 %v1154, %v1225
    %v1259 = vadd.f32 %v1155, %v1227
    %1260 = vset.pattern.permute.xlu0 16
    %1261 = vperm.xlu0 %1260, %v58
    %v1262 = vpop.permute.xlu0 %1261
    %1264 = vset.pattern.permute.xlu0 16
    %1265 = vperm.xlu0 %1264, %v59
    %v1266 = vpop.permute.xlu0 %1265
    %v1268 = vmul.f32 %v340, %v1262
    %v1269 = vmul.f32 %v340, %v1266
    %v1270 = vmul.f32 %v341, %v1262
    %v1271 = vmul.f32 %v341, %v1266
    %v1272 = vmul.f32 %v342, %v1262
    %v1273 = vmul.f32 %v342, %v1266
    %v1274 = vmul.f32 %v343, %v1262
    %v1275 = vmul.f32 %v343, %v1266
    %v1276 = vmul.f32 %v344, %v1262
    %v1277 = vmul.f32 %v344, %v1266
    %v1278 = vmul.f32 %v345, %v1262
    %v1279 = vmul.f32 %v345, %v1266
    %v1280 = vmul.f32 %v346, %v1262
    %v1281 = vmul.f32 %v346, %v1266
    %v1282 = vmul.f32 %v347, %v1262
    %v1283 = vmul.f32 %v347, %v1266
    %1300 = vrot.lane.b32.xlu0 %v1268, 127
    %v1301 = vpop.permute.xlu0 %1300
    %1302 = vrot.lane.b32.xlu0 %v1269, 127
    %v1303 = vpop.permute.xlu0 %1302
    %1304 = vrot.lane.b32.xlu0 %v1270, 127
    %v1305 = vpop.permute.xlu0 %1304
    %1306 = vrot.lane.b32.xlu0 %v1271, 127
    %v1307 = vpop.permute.xlu0 %1306
    %1308 = vrot.lane.b32.xlu0 %v1272, 127
    %v1309 = vpop.permute.xlu0 %1308
    %1310 = vrot.lane.b32.xlu0 %v1273, 127
    %v1311 = vpop.permute.xlu0 %1310
    %1312 = vrot.lane.b32.xlu0 %v1274, 127
    %v1313 = vpop.permute.xlu0 %1312
    %1314 = vrot.lane.b32.xlu0 %v1275, 127
    %v1315 = vpop.permute.xlu0 %1314
    %1316 = vrot.lane.b32.xlu0 %v1276, 127
    %v1317 = vpop.permute.xlu0 %1316
    %1318 = vrot.lane.b32.xlu0 %v1277, 127
    %v1319 = vpop.permute.xlu0 %1318
    %1320 = vrot.lane.b32.xlu0 %v1278, 127
    %v1321 = vpop.permute.xlu0 %1320
    %1322 = vrot.lane.b32.xlu0 %v1279, 127
    %v1323 = vpop.permute.xlu0 %1322
    %1324 = vrot.lane.b32.xlu0 %v1280, 127
    %v1325 = vpop.permute.xlu0 %1324
    %1326 = vrot.lane.b32.xlu0 %v1281, 127
    %v1327 = vpop.permute.xlu0 %1326
    %1328 = vrot.lane.b32.xlu0 %v1282, 127
    %v1329 = vpop.permute.xlu0 %1328
    %1330 = vrot.lane.b32.xlu0 %v1283, 127
    %v1331 = vpop.permute.xlu0 %1330
    %v1348 = vadd.f32 %v1244, %v1301
    %v1349 = vadd.f32 %v1245, %v1303
    %v1350 = vadd.f32 %v1246, %v1305
    %v1351 = vadd.f32 %v1247, %v1307
    %v1352 = vadd.f32 %v1248, %v1309
    %v1353 = vadd.f32 %v1249, %v1311
    %v1354 = vadd.f32 %v1250, %v1313
    %v1355 = vadd.f32 %v1251, %v1315
    %v1356 = vadd.f32 %v1252, %v1317
    %v1357 = vadd.f32 %v1253, %v1319
    %v1358 = vadd.f32 %v1254, %v1321
    %v1359 = vadd.f32 %v1255, %v1323
    %v1360 = vadd.f32 %v1256, %v1325
    %v1361 = vadd.f32 %v1257, %v1327
    %v1362 = vadd.f32 %v1258, %v1329
    %v1363 = vadd.f32 %v1259, %v1331
    %1364 = vset.pattern.permute.xlu0 17
    %1365 = vperm.xlu0 %1364, %v58
    %v1366 = vpop.permute.xlu0 %1365
    %1368 = vset.pattern.permute.xlu0 17
    %1369 = vperm.xlu0 %1368, %v59
    %v1370 = vpop.permute.xlu0 %1369
    %v1372 = vmul.f32 %v404, %v1366
    %v1373 = vmul.f32 %v404, %v1370
    %v1374 = vmul.f32 %v405, %v1366
    %v1375 = vmul.f32 %v405, %v1370
    %v1376 = vmul.f32 %v406, %v1366
    %v1377 = vmul.f32 %v406, %v1370
    %v1378 = vmul.f32 %v407, %v1366
    %v1379 = vmul.f32 %v407, %v1370
    %v1380 = vmul.f32 %v408, %v1366
    %v1381 = vmul.f32 %v408, %v1370
    %v1382 = vmul.f32 %v409, %v1366
    %v1383 = vmul.f32 %v409, %v1370
    %v1384 = vmul.f32 %v410, %v1366
    %v1385 = vmul.f32 %v410, %v1370
    %v1386 = vmul.f32 %v411, %v1366
    %v1387 = vmul.f32 %v411, %v1370
    %1404 = vrot.lane.b32.xlu0 %v1372, 127
    %v1405 = vpop.permute.xlu0 %1404
    %1406 = vrot.lane.b32.xlu0 %v1373, 127
    %v1407 = vpop.permute.xlu0 %1406
    %1408 = vrot.lane.b32.xlu0 %v1374, 127
    %v1409 = vpop.permute.xlu0 %1408
    %1410 = vrot.lane.b32.xlu0 %v1375, 127
    %v1411 = vpop.permute.xlu0 %1410
    %1412 = vrot.lane.b32.xlu0 %v1376, 127
    %v1413 = vpop.permute.xlu0 %1412
    %1414 = vrot.lane.b32.xlu0 %v1377, 127
    %v1415 = vpop.permute.xlu0 %1414
    %1416 = vrot.lane.b32.xlu0 %v1378, 127
    %v1417 = vpop.permute.xlu0 %1416
    %1418 = vrot.lane.b32.xlu0 %v1379, 127
    %v1419 = vpop.permute.xlu0 %1418
    %1420 = vrot.lane.b32.xlu0 %v1380, 127
    %v1421 = vpop.permute.xlu0 %1420
    %1422 = vrot.lane.b32.xlu0 %v1381, 127
    %v1423 = vpop.permute.xlu0 %1422
    %1424 = vrot.lane.b32.xlu0 %v1382, 127
    %v1425 = vpop.permute.xlu0 %1424
    %1426 = vrot.lane.b32.xlu0 %v1383, 127
    %v1427 = vpop.permute.xlu0 %1426
    %1428 = vrot.lane.b32.xlu0 %v1384, 127
    %v1429 = vpop.permute.xlu0 %1428
    %1430 = vrot.lane.b32.xlu0 %v1385, 127
    %v1431 = vpop.permute.xlu0 %1430
    %1432 = vrot.lane.b32.xlu0 %v1386, 127
    %v1433 = vpop.permute.xlu0 %1432
    %1434 = vrot.lane.b32.xlu0 %v1387, 127
    %v1435 = vpop.permute.xlu0 %1434
    %v1452 = vadd.f32 %v1348, %v1405
    %v1453 = vadd.f32 %v1349, %v1407
    %v1454 = vadd.f32 %v1350, %v1409
    %v1455 = vadd.f32 %v1351, %v1411
    %v1456 = vadd.f32 %v1352, %v1413
    %v1457 = vadd.f32 %v1353, %v1415
    %v1458 = vadd.f32 %v1354, %v1417
    %v1459 = vadd.f32 %v1355, %v1419
    %v1460 = vadd.f32 %v1356, %v1421
    %v1461 = vadd.f32 %v1357, %v1423
    %v1462 = vadd.f32 %v1358, %v1425
    %v1463 = vadd.f32 %v1359, %v1427
    %v1464 = vadd.f32 %v1360, %v1429
    %v1465 = vadd.f32 %v1361, %v1431
    %v1466 = vadd.f32 %v1362, %v1433
    %v1467 = vadd.f32 %v1363, %v1435
    %1468 = vset.pattern.permute.xlu0 18
    %1469 = vperm.xlu0 %1468, %v58
    %v1470 = vpop.permute.xlu0 %1469
    %1472 = vset.pattern.permute.xlu0 18
    %1473 = vperm.xlu0 %1472, %v59
    %v1474 = vpop.permute.xlu0 %1473
    %v1476 = vmul.f32 %v468, %v1470
    %v1477 = vmul.f32 %v468, %v1474
    %v1478 = vmul.f32 %v469, %v1470
    %v1479 = vmul.f32 %v469, %v1474
    %v1480 = vmul.f32 %v470, %v1470
    %v1481 = vmul.f32 %v470, %v1474
    %v1482 = vmul.f32 %v471, %v1470
    %v1483 = vmul.f32 %v471, %v1474
    %v1484 = vmul.f32 %v472, %v1470
    %v1485 = vmul.f32 %v472, %v1474
    %v1486 = vmul.f32 %v473, %v1470
    %v1487 = vmul.f32 %v473, %v1474
    %v1488 = vmul.f32 %v474, %v1470
    %v1489 = vmul.f32 %v474, %v1474
    %v1490 = vmul.f32 %v475, %v1470
    %v1491 = vmul.f32 %v475, %v1474
    %1508 = vrot.lane.b32.xlu0 %v1476, 127
    %v1509 = vpop.permute.xlu0 %1508
    %1510 = vrot.lane.b32.xlu0 %v1477, 127
    %v1511 = vpop.permute.xlu0 %1510
    %1512 = vrot.lane.b32.xlu0 %v1478, 127
    %v1513 = vpop.permute.xlu0 %1512
    %1514 = vrot.lane.b32.xlu0 %v1479, 127
    %v1515 = vpop.permute.xlu0 %1514
    %1516 = vrot.lane.b32.xlu0 %v1480, 127
    %v1517 = vpop.permute.xlu0 %1516
    %1518 = vrot.lane.b32.xlu0 %v1481, 127
    %v1519 = vpop.permute.xlu0 %1518
    %1520 = vrot.lane.b32.xlu0 %v1482, 127
    %v1521 = vpop.permute.xlu0 %1520
    %1522 = vrot.lane.b32.xlu0 %v1483, 127
    %v1523 = vpop.permute.xlu0 %1522
    %1524 = vrot.lane.b32.xlu0 %v1484, 127
    %v1525 = vpop.permute.xlu0 %1524
    %1526 = vrot.lane.b32.xlu0 %v1485, 127
    %v1527 = vpop.permute.xlu0 %1526
    %1528 = vrot.lane.b32.xlu0 %v1486, 127
    %v1529 = vpop.permute.xlu0 %1528
    %1530 = vrot.lane.b32.xlu0 %v1487, 127
    %v1531 = vpop.permute.xlu0 %1530
    %1532 = vrot.lane.b32.xlu0 %v1488, 127
    %v1533 = vpop.permute.xlu0 %1532
    %1534 = vrot.lane.b32.xlu0 %v1489, 127
    %v1535 = vpop.permute.xlu0 %1534
    %1536 = vrot.lane.b32.xlu0 %v1490, 127
    %v1537 = vpop.permute.xlu0 %1536
    %1538 = vrot.lane.b32.xlu0 %v1491, 127
    %v1539 = vpop.permute.xlu0 %1538
    %v1556 = vadd.f32 %v1452, %v1509
    %v1557 = vadd.f32 %v1453, %v1511
    %v1558 = vadd.f32 %v1454, %v1513
    %v1559 = vadd.f32 %v1455, %v1515
    %v1560 = vadd.f32 %v1456, %v1517
    %v1561 = vadd.f32 %v1457, %v1519
    %v1562 = vadd.f32 %v1458, %v1521
    %v1563 = vadd.f32 %v1459, %v1523
    %v1564 = vadd.f32 %v1460, %v1525
    %v1565 = vadd.f32 %v1461, %v1527
    %v1566 = vadd.f32 %v1462, %v1529
    %v1567 = vadd.f32 %v1463, %v1531
    %v1568 = vadd.f32 %v1464, %v1533
    %v1569 = vadd.f32 %v1465, %v1535
    %v1570 = vadd.f32 %v1466, %v1537
    %v1571 = vadd.f32 %v1467, %v1539
    %1572 = vset.pattern.permute.xlu0 19
    %1573 = vperm.xlu0 %1572, %v58
    %v1574 = vpop.permute.xlu0 %1573
    %1576 = vset.pattern.permute.xlu0 19
    %1577 = vperm.xlu0 %1576, %v59
    %v1578 = vpop.permute.xlu0 %1577
    %v1580 = vmul.f32 %v532, %v1574
    %v1581 = vmul.f32 %v532, %v1578
    %v1582 = vmul.f32 %v533, %v1574
    %v1583 = vmul.f32 %v533, %v1578
    %v1584 = vmul.f32 %v534, %v1574
    %v1585 = vmul.f32 %v534, %v1578
    %v1586 = vmul.f32 %v535, %v1574
    %v1587 = vmul.f32 %v535, %v1578
    %v1588 = vmul.f32 %v536, %v1574
    %v1589 = vmul.f32 %v536, %v1578
    %v1590 = vmul.f32 %v537, %v1574
    %v1591 = vmul.f32 %v537, %v1578
    %v1592 = vmul.f32 %v538, %v1574
    %v1593 = vmul.f32 %v538, %v1578
    %v1594 = vmul.f32 %v539, %v1574
    %v1595 = vmul.f32 %v539, %v1578
    %1612 = vrot.lane.b32.xlu0 %v1580, 127
    %v1613 = vpop.permute.xlu0 %1612
    %1614 = vrot.lane.b32.xlu0 %v1581, 127
    %v1615 = vpop.permute.xlu0 %1614
    %1616 = vrot.lane.b32.xlu0 %v1582, 127
    %v1617 = vpop.permute.xlu0 %1616
    %1618 = vrot.lane.b32.xlu0 %v1583, 127
    %v1619 = vpop.permute.xlu0 %1618
    %1620 = vrot.lane.b32.xlu0 %v1584, 127
    %v1621 = vpop.permute.xlu0 %1620
    %1622 = vrot.lane.b32.xlu0 %v1585, 127
    %v1623 = vpop.permute.xlu0 %1622
    %1624 = vrot.lane.b32.xlu0 %v1586, 127
    %v1625 = vpop.permute.xlu0 %1624
    %1626 = vrot.lane.b32.xlu0 %v1587, 127
    %v1627 = vpop.permute.xlu0 %1626
    %1628 = vrot.lane.b32.xlu0 %v1588, 127
    %v1629 = vpop.permute.xlu0 %1628
    %1630 = vrot.lane.b32.xlu0 %v1589, 127
    %v1631 = vpop.permute.xlu0 %1630
    %1632 = vrot.lane.b32.xlu0 %v1590, 127
    %v1633 = vpop.permute.xlu0 %1632
    %1634 = vrot.lane.b32.xlu0 %v1591, 127
    %v1635 = vpop.permute.xlu0 %1634
    %1636 = vrot.lane.b32.xlu0 %v1592, 127
    %v1637 = vpop.permute.xlu0 %1636
    %1638 = vrot.lane.b32.xlu0 %v1593, 127
    %v1639 = vpop.permute.xlu0 %1638
    %1640 = vrot.lane.b32.xlu0 %v1594, 127
    %v1641 = vpop.permute.xlu0 %1640
    %1642 = vrot.lane.b32.xlu0 %v1595, 127
    %v1643 = vpop.permute.xlu0 %1642
    %v1660 = vadd.f32 %v1556, %v1613
    %v1661 = vadd.f32 %v1557, %v1615
    %v1662 = vadd.f32 %v1558, %v1617
    %v1663 = vadd.f32 %v1559, %v1619
    %v1664 = vadd.f32 %v1560, %v1621
    %v1665 = vadd.f32 %v1561, %v1623
    %v1666 = vadd.f32 %v1562, %v1625
    %v1667 = vadd.f32 %v1563, %v1627
    %v1668 = vadd.f32 %v1564, %v1629
    %v1669 = vadd.f32 %v1565, %v1631
    %v1670 = vadd.f32 %v1566, %v1633
    %v1671 = vadd.f32 %v1567, %v1635
    %v1672 = vadd.f32 %v1568, %v1637
    %v1673 = vadd.f32 %v1569, %v1639
    %v1674 = vadd.f32 %v1570, %v1641
    %v1675 = vadd.f32 %v1571, %v1643
    %1676 = vset.pattern.permute.xlu0 20
    %1677 = vperm.xlu0 %1676, %v58
    %v1678 = vpop.permute.xlu0 %1677
    %1680 = vset.pattern.permute.xlu0 20
    %1681 = vperm.xlu0 %1680, %v59
    %v1682 = vpop.permute.xlu0 %1681
    %v1684 = vmul.f32 %v596, %v1678
    %v1685 = vmul.f32 %v596, %v1682
    %v1686 = vmul.f32 %v597, %v1678
    %v1687 = vmul.f32 %v597, %v1682
    %v1688 = vmul.f32 %v598, %v1678
    %v1689 = vmul.f32 %v598, %v1682
    %v1690 = vmul.f32 %v599, %v1678
    %v1691 = vmul.f32 %v599, %v1682
    %v1692 = vmul.f32 %v600, %v1678
    %v1693 = vmul.f32 %v600, %v1682
    %v1694 = vmul.f32 %v601, %v1678
    %v1695 = vmul.f32 %v601, %v1682
    %v1696 = vmul.f32 %v602, %v1678
    %v1697 = vmul.f32 %v602, %v1682
    %v1698 = vmul.f32 %v603, %v1678
    %v1699 = vmul.f32 %v603, %v1682
    %1716 = vrot.lane.b32.xlu0 %v1684, 127
    %v1717 = vpop.permute.xlu0 %1716
    %1718 = vrot.lane.b32.xlu0 %v1685, 127
    %v1719 = vpop.permute.xlu0 %1718
    %1720 = vrot.lane.b32.xlu0 %v1686, 127
    %v1721 = vpop.permute.xlu0 %1720
    %1722 = vrot.lane.b32.xlu0 %v1687, 127
    %v1723 = vpop.permute.xlu0 %1722
    %1724 = vrot.lane.b32.xlu0 %v1688, 127
    %v1725 = vpop.permute.xlu0 %1724
    %1726 = vrot.lane.b32.xlu0 %v1689, 127
    %v1727 = vpop.permute.xlu0 %1726
    %1728 = vrot.lane.b32.xlu0 %v1690, 127
    %v1729 = vpop.permute.xlu0 %1728
    %1730 = vrot.lane.b32.xlu0 %v1691, 127
    %v1731 = vpop.permute.xlu0 %1730
    %1732 = vrot.lane.b32.xlu0 %v1692, 127
    %v1733 = vpop.permute.xlu0 %1732
    %1734 = vrot.lane.b32.xlu0 %v1693, 127
    %v1735 = vpop.permute.xlu0 %1734
    %1736 = vrot.lane.b32.xlu0 %v1694, 127
    %v1737 = vpop.permute.xlu0 %1736
    %1738 = vrot.lane.b32.xlu0 %v1695, 127
    %v1739 = vpop.permute.xlu0 %1738
    %1740 = vrot.lane.b32.xlu0 %v1696, 127
    %v1741 = vpop.permute.xlu0 %1740
    %1742 = vrot.lane.b32.xlu0 %v1697, 127
    %v1743 = vpop.permute.xlu0 %1742
    %1744 = vrot.lane.b32.xlu0 %v1698, 127
    %v1745 = vpop.permute.xlu0 %1744
    %1746 = vrot.lane.b32.xlu0 %v1699, 127
    %v1747 = vpop.permute.xlu0 %1746
    %v1764 = vadd.f32 %v1660, %v1717
    %v1765 = vadd.f32 %v1661, %v1719
    %v1766 = vadd.f32 %v1662, %v1721
    %v1767 = vadd.f32 %v1663, %v1723
    %v1768 = vadd.f32 %v1664, %v1725
    %v1769 = vadd.f32 %v1665, %v1727
    %v1770 = vadd.f32 %v1666, %v1729
    %v1771 = vadd.f32 %v1667, %v1731
    %v1772 = vadd.f32 %v1668, %v1733
    %v1773 = vadd.f32 %v1669, %v1735
    %v1774 = vadd.f32 %v1670, %v1737
    %v1775 = vadd.f32 %v1671, %v1739
    %v1776 = vadd.f32 %v1672, %v1741
    %v1777 = vadd.f32 %v1673, %v1743
    %v1778 = vadd.f32 %v1674, %v1745
    %v1779 = vadd.f32 %v1675, %v1747
    %1780 = vset.pattern.permute.xlu0 21
    %1781 = vperm.xlu0 %1780, %v58
    %v1782 = vpop.permute.xlu0 %1781
    %1784 = vset.pattern.permute.xlu0 21
    %1785 = vperm.xlu0 %1784, %v59
    %v1786 = vpop.permute.xlu0 %1785
    %v1788 = vmul.f32 %v660, %v1782
    %v1789 = vmul.f32 %v660, %v1786
    %v1790 = vmul.f32 %v661, %v1782
    %v1791 = vmul.f32 %v661, %v1786
    %v1792 = vmul.f32 %v662, %v1782
    %v1793 = vmul.f32 %v662, %v1786
    %v1794 = vmul.f32 %v663, %v1782
    %v1795 = vmul.f32 %v663, %v1786
    %v1796 = vmul.f32 %v664, %v1782
    %v1797 = vmul.f32 %v664, %v1786
    %v1798 = vmul.f32 %v665, %v1782
    %v1799 = vmul.f32 %v665, %v1786
    %v1800 = vmul.f32 %v666, %v1782
    %v1801 = vmul.f32 %v666, %v1786
    %v1802 = vmul.f32 %v667, %v1782
    %v1803 = vmul.f32 %v667, %v1786
    %1820 = vrot.lane.b32.xlu0 %v1788, 127
    %v1821 = vpop.permute.xlu0 %1820
    %1822 = vrot.lane.b32.xlu0 %v1789, 127
    %v1823 = vpop.permute.xlu0 %1822
    %1824 = vrot.lane.b32.xlu0 %v1790, 127
    %v1825 = vpop.permute.xlu0 %1824
    %1826 = vrot.lane.b32.xlu0 %v1791, 127
    %v1827 = vpop.permute.xlu0 %1826
    %1828 = vrot.lane.b32.xlu0 %v1792, 127
    %v1829 = vpop.permute.xlu0 %1828
    %1830 = vrot.lane.b32.xlu0 %v1793, 127
    %v1831 = vpop.permute.xlu0 %1830
    %1832 = vrot.lane.b32.xlu0 %v1794, 127
    %v1833 = vpop.permute.xlu0 %1832
    %1834 = vrot.lane.b32.xlu0 %v1795, 127
    %v1835 = vpop.permute.xlu0 %1834
    %1836 = vrot.lane.b32.xlu0 %v1796, 127
    %v1837 = vpop.permute.xlu0 %1836
    %1838 = vrot.lane.b32.xlu0 %v1797, 127
    %v1839 = vpop.permute.xlu0 %1838
    %1840 = vrot.lane.b32.xlu0 %v1798, 127
    %v1841 = vpop.permute.xlu0 %1840
    %1842 = vrot.lane.b32.xlu0 %v1799, 127
    %v1843 = vpop.permute.xlu0 %1842
    %1844 = vrot.lane.b32.xlu0 %v1800, 127
    %v1845 = vpop.permute.xlu0 %1844
    %1846 = vrot.lane.b32.xlu0 %v1801, 127
    %v1847 = vpop.permute.xlu0 %1846
    %1848 = vrot.lane.b32.xlu0 %v1802, 127
    %v1849 = vpop.permute.xlu0 %1848
    %1850 = vrot.lane.b32.xlu0 %v1803, 127
    %v1851 = vpop.permute.xlu0 %1850
    %v1868 = vadd.f32 %v1764, %v1821
    %v1869 = vadd.f32 %v1765, %v1823
    %v1870 = vadd.f32 %v1766, %v1825
    %v1871 = vadd.f32 %v1767, %v1827
    %v1872 = vadd.f32 %v1768, %v1829
    %v1873 = vadd.f32 %v1769, %v1831
    %v1874 = vadd.f32 %v1770, %v1833
    %v1875 = vadd.f32 %v1771, %v1835
    %v1876 = vadd.f32 %v1772, %v1837
    %v1877 = vadd.f32 %v1773, %v1839
    %v1878 = vadd.f32 %v1774, %v1841
    %v1879 = vadd.f32 %v1775, %v1843
    %v1880 = vadd.f32 %v1776, %v1845
    %v1881 = vadd.f32 %v1777, %v1847
    %v1882 = vadd.f32 %v1778, %v1849
    %v1883 = vadd.f32 %v1779, %v1851
    %1884 = vset.pattern.permute.xlu0 22
    %1885 = vperm.xlu0 %1884, %v58
    %v1886 = vpop.permute.xlu0 %1885
    %1888 = vset.pattern.permute.xlu0 22
    %1889 = vperm.xlu0 %1888, %v59
    %v1890 = vpop.permute.xlu0 %1889
    %v1892 = vmul.f32 %v724, %v1886
    %v1893 = vmul.f32 %v724, %v1890
    %v1894 = vmul.f32 %v725, %v1886
    %v1895 = vmul.f32 %v725, %v1890
    %v1896 = vmul.f32 %v726, %v1886
    %v1897 = vmul.f32 %v726, %v1890
    %v1898 = vmul.f32 %v727, %v1886
    %v1899 = vmul.f32 %v727, %v1890
    %v1900 = vmul.f32 %v728, %v1886
    %v1901 = vmul.f32 %v728, %v1890
    %v1902 = vmul.f32 %v729, %v1886
    %v1903 = vmul.f32 %v729, %v1890
    %v1904 = vmul.f32 %v730, %v1886
    %v1905 = vmul.f32 %v730, %v1890
    %v1906 = vmul.f32 %v731, %v1886
    %v1907 = vmul.f32 %v731, %v1890
    %1924 = vrot.lane.b32.xlu0 %v1892, 127
    %v1925 = vpop.permute.xlu0 %1924
    %1926 = vrot.lane.b32.xlu0 %v1893, 127
    %v1927 = vpop.permute.xlu0 %1926
    %1928 = vrot.lane.b32.xlu0 %v1894, 127
    %v1929 = vpop.permute.xlu0 %1928
    %1930 = vrot.lane.b32.xlu0 %v1895, 127
    %v1931 = vpop.permute.xlu0 %1930
    %1932 = vrot.lane.b32.xlu0 %v1896, 127
    %v1933 = vpop.permute.xlu0 %1932
    %1934 = vrot.lane.b32.xlu0 %v1897, 127
    %v1935 = vpop.permute.xlu0 %1934
    %1936 = vrot.lane.b32.xlu0 %v1898, 127
    %v1937 = vpop.permute.xlu0 %1936
    %1938 = vrot.lane.b32.xlu0 %v1899, 127
    %v1939 = vpop.permute.xlu0 %1938
    %1940 = vrot.lane.b32.xlu0 %v1900, 127
    %v1941 = vpop.permute.xlu0 %1940
    %1942 = vrot.lane.b32.xlu0 %v1901, 127
    %v1943 = vpop.permute.xlu0 %1942
    %1944 = vrot.lane.b32.xlu0 %v1902, 127
    %v1945 = vpop.permute.xlu0 %1944
    %1946 = vrot.lane.b32.xlu0 %v1903, 127
    %v1947 = vpop.permute.xlu0 %1946
    %1948 = vrot.lane.b32.xlu0 %v1904, 127
    %v1949 = vpop.permute.xlu0 %1948
    %1950 = vrot.lane.b32.xlu0 %v1905, 127
    %v1951 = vpop.permute.xlu0 %1950
    %1952 = vrot.lane.b32.xlu0 %v1906, 127
    %v1953 = vpop.permute.xlu0 %1952
    %1954 = vrot.lane.b32.xlu0 %v1907, 127
    %v1955 = vpop.permute.xlu0 %1954
    %v1972 = vadd.f32 %v1868, %v1925
    %v1973 = vadd.f32 %v1869, %v1927
    %v1974 = vadd.f32 %v1870, %v1929
    %v1975 = vadd.f32 %v1871, %v1931
    %v1976 = vadd.f32 %v1872, %v1933
    %v1977 = vadd.f32 %v1873, %v1935
    %v1978 = vadd.f32 %v1874, %v1937
    %v1979 = vadd.f32 %v1875, %v1939
    %v1980 = vadd.f32 %v1876, %v1941
    %v1981 = vadd.f32 %v1877, %v1943
    %v1982 = vadd.f32 %v1878, %v1945
    %v1983 = vadd.f32 %v1879, %v1947
    %v1984 = vadd.f32 %v1880, %v1949
    %v1985 = vadd.f32 %v1881, %v1951
    %v1986 = vadd.f32 %v1882, %v1953
    %v1987 = vadd.f32 %v1883, %v1955
    %1988 = vset.pattern.permute.xlu0 23
    %1989 = vperm.xlu0 %1988, %v58
    %v1990 = vpop.permute.xlu0 %1989
    %1992 = vset.pattern.permute.xlu0 23
    %1993 = vperm.xlu0 %1992, %v59
    %v1994 = vpop.permute.xlu0 %1993
    %v1996 = vmul.f32 %v788, %v1990
    %v1997 = vmul.f32 %v788, %v1994
    %v1998 = vmul.f32 %v789, %v1990
    %v1999 = vmul.f32 %v789, %v1994
    %v2000 = vmul.f32 %v790, %v1990
    %v2001 = vmul.f32 %v790, %v1994
    %v2002 = vmul.f32 %v791, %v1990
    %v2003 = vmul.f32 %v791, %v1994
    %v2004 = vmul.f32 %v792, %v1990
    %v2005 = vmul.f32 %v792, %v1994
    %v2006 = vmul.f32 %v793, %v1990
    %v2007 = vmul.f32 %v793, %v1994
    %v2008 = vmul.f32 %v794, %v1990
    %v2009 = vmul.f32 %v794, %v1994
    %v2010 = vmul.f32 %v795, %v1990
    %v2011 = vmul.f32 %v795, %v1994
    %2028 = vrot.lane.b32.xlu0 %v1996, 127
    %v2029 = vpop.permute.xlu0 %2028
    %2030 = vrot.lane.b32.xlu0 %v1997, 127
    %v2031 = vpop.permute.xlu0 %2030
    %2032 = vrot.lane.b32.xlu0 %v1998, 127
    %v2033 = vpop.permute.xlu0 %2032
    %2034 = vrot.lane.b32.xlu0 %v1999, 127
    %v2035 = vpop.permute.xlu0 %2034
    %2036 = vrot.lane.b32.xlu0 %v2000, 127
    %v2037 = vpop.permute.xlu0 %2036
    %2038 = vrot.lane.b32.xlu0 %v2001, 127
    %v2039 = vpop.permute.xlu0 %2038
    %2040 = vrot.lane.b32.xlu0 %v2002, 127
    %v2041 = vpop.permute.xlu0 %2040
    %2042 = vrot.lane.b32.xlu0 %v2003, 127
    %v2043 = vpop.permute.xlu0 %2042
    %2044 = vrot.lane.b32.xlu0 %v2004, 127
    %v2045 = vpop.permute.xlu0 %2044
    %2046 = vrot.lane.b32.xlu0 %v2005, 127
    %v2047 = vpop.permute.xlu0 %2046
    %2048 = vrot.lane.b32.xlu0 %v2006, 127
    %v2049 = vpop.permute.xlu0 %2048
    %2050 = vrot.lane.b32.xlu0 %v2007, 127
    %v2051 = vpop.permute.xlu0 %2050
    %2052 = vrot.lane.b32.xlu0 %v2008, 127
    %v2053 = vpop.permute.xlu0 %2052
    %2054 = vrot.lane.b32.xlu0 %v2009, 127
    %v2055 = vpop.permute.xlu0 %2054
    %2056 = vrot.lane.b32.xlu0 %v2010, 127
    %v2057 = vpop.permute.xlu0 %2056
    %2058 = vrot.lane.b32.xlu0 %v2011, 127
    %v2059 = vpop.permute.xlu0 %2058
    %v2076 = vadd.f32 %v1972, %v2029
    %v2077 = vadd.f32 %v1973, %v2031
    %v2078 = vadd.f32 %v1974, %v2033
    %v2079 = vadd.f32 %v1975, %v2035
    %v2080 = vadd.f32 %v1976, %v2037
    %v2081 = vadd.f32 %v1977, %v2039
    %v2082 = vadd.f32 %v1978, %v2041
    %v2083 = vadd.f32 %v1979, %v2043
    %v2084 = vadd.f32 %v1980, %v2045
    %v2085 = vadd.f32 %v1981, %v2047
    %v2086 = vadd.f32 %v1982, %v2049
    %v2087 = vadd.f32 %v1983, %v2051
    %v2088 = vadd.f32 %v1984, %v2053
    %v2089 = vadd.f32 %v1985, %v2055
    %v2090 = vadd.f32 %v1986, %v2057
    %v2091 = vadd.f32 %v1987, %v2059
    %2092 = vset.pattern.permute.xlu0 24
    %2093 = vperm.xlu0 %2092, %v58
    %v2094 = vpop.permute.xlu0 %2093
    %2096 = vset.pattern.permute.xlu0 24
    %2097 = vperm.xlu0 %2096, %v59
    %v2098 = vpop.permute.xlu0 %2097
    %v2100 = vmul.f32 %v82, %v2094
    %v2101 = vmul.f32 %v82, %v2098
    %v2102 = vmul.f32 %v83, %v2094
    %v2103 = vmul.f32 %v83, %v2098
    %v2104 = vmul.f32 %v84, %v2094
    %v2105 = vmul.f32 %v84, %v2098
    %v2106 = vmul.f32 %v85, %v2094
    %v2107 = vmul.f32 %v85, %v2098
    %v2108 = vmul.f32 %v86, %v2094
    %v2109 = vmul.f32 %v86, %v2098
    %v2110 = vmul.f32 %v87, %v2094
    %v2111 = vmul.f32 %v87, %v2098
    %v2112 = vmul.f32 %v88, %v2094
    %v2113 = vmul.f32 %v88, %v2098
    %v2114 = vmul.f32 %v89, %v2094
    %v2115 = vmul.f32 %v89, %v2098
    %2132 = vrot.lane.b32.xlu0 %v2100, 126
    %v2133 = vpop.permute.xlu0 %2132
    %2134 = vrot.lane.b32.xlu0 %v2101, 126
    %v2135 = vpop.permute.xlu0 %2134
    %2136 = vrot.lane.b32.xlu0 %v2102, 126
    %v2137 = vpop.permute.xlu0 %2136
    %2138 = vrot.lane.b32.xlu0 %v2103, 126
    %v2139 = vpop.permute.xlu0 %2138
    %2140 = vrot.lane.b32.xlu0 %v2104, 126
    %v2141 = vpop.permute.xlu0 %2140
    %2142 = vrot.lane.b32.xlu0 %v2105, 126
    %v2143 = vpop.permute.xlu0 %2142
    %2144 = vrot.lane.b32.xlu0 %v2106, 126
    %v2145 = vpop.permute.xlu0 %2144
    %2146 = vrot.lane.b32.xlu0 %v2107, 126
    %v2147 = vpop.permute.xlu0 %2146
    %2148 = vrot.lane.b32.xlu0 %v2108, 126
    %v2149 = vpop.permute.xlu0 %2148
    %2150 = vrot.lane.b32.xlu0 %v2109, 126
    %v2151 = vpop.permute.xlu0 %2150
    %2152 = vrot.lane.b32.xlu0 %v2110, 126
    %v2153 = vpop.permute.xlu0 %2152
    %2154 = vrot.lane.b32.xlu0 %v2111, 126
    %v2155 = vpop.permute.xlu0 %2154
    %2156 = vrot.lane.b32.xlu0 %v2112, 126
    %v2157 = vpop.permute.xlu0 %2156
    %2158 = vrot.lane.b32.xlu0 %v2113, 126
    %v2159 = vpop.permute.xlu0 %2158
    %2160 = vrot.lane.b32.xlu0 %v2114, 126
    %v2161 = vpop.permute.xlu0 %2160
    %2162 = vrot.lane.b32.xlu0 %v2115, 126
    %v2163 = vpop.permute.xlu0 %2162
    %v2180 = vadd.f32 %v2076, %v2133
    %v2181 = vadd.f32 %v2077, %v2135
    %v2182 = vadd.f32 %v2078, %v2137
    %v2183 = vadd.f32 %v2079, %v2139
    %v2184 = vadd.f32 %v2080, %v2141
    %v2185 = vadd.f32 %v2081, %v2143
    %v2186 = vadd.f32 %v2082, %v2145
    %v2187 = vadd.f32 %v2083, %v2147
    %v2188 = vadd.f32 %v2084, %v2149
    %v2189 = vadd.f32 %v2085, %v2151
    %v2190 = vadd.f32 %v2086, %v2153
    %v2191 = vadd.f32 %v2087, %v2155
    %v2192 = vadd.f32 %v2088, %v2157
    %v2193 = vadd.f32 %v2089, %v2159
    %v2194 = vadd.f32 %v2090, %v2161
    %v2195 = vadd.f32 %v2091, %v2163
    %2196 = vset.pattern.permute.xlu0 25
    %2197 = vperm.xlu0 %2196, %v58
    %v2198 = vpop.permute.xlu0 %2197
    %2200 = vset.pattern.permute.xlu0 25
    %2201 = vperm.xlu0 %2200, %v59
    %v2202 = vpop.permute.xlu0 %2201
    %v2204 = vmul.f32 %v148, %v2198
    %v2205 = vmul.f32 %v148, %v2202
    %v2206 = vmul.f32 %v149, %v2198
    %v2207 = vmul.f32 %v149, %v2202
    %v2208 = vmul.f32 %v150, %v2198
    %v2209 = vmul.f32 %v150, %v2202
    %v2210 = vmul.f32 %v151, %v2198
    %v2211 = vmul.f32 %v151, %v2202
    %v2212 = vmul.f32 %v152, %v2198
    %v2213 = vmul.f32 %v152, %v2202
    %v2214 = vmul.f32 %v153, %v2198
    %v2215 = vmul.f32 %v153, %v2202
    %v2216 = vmul.f32 %v154, %v2198
    %v2217 = vmul.f32 %v154, %v2202
    %v2218 = vmul.f32 %v155, %v2198
    %v2219 = vmul.f32 %v155, %v2202
    %2236 = vrot.lane.b32.xlu0 %v2204, 126
    %v2237 = vpop.permute.xlu0 %2236
    %2238 = vrot.lane.b32.xlu0 %v2205, 126
    %v2239 = vpop.permute.xlu0 %2238
    %2240 = vrot.lane.b32.xlu0 %v2206, 126
    %v2241 = vpop.permute.xlu0 %2240
    %2242 = vrot.lane.b32.xlu0 %v2207, 126
    %v2243 = vpop.permute.xlu0 %2242
    %2244 = vrot.lane.b32.xlu0 %v2208, 126
    %v2245 = vpop.permute.xlu0 %2244
    %2246 = vrot.lane.b32.xlu0 %v2209, 126
    %v2247 = vpop.permute.xlu0 %2246
    %2248 = vrot.lane.b32.xlu0 %v2210, 126
    %v2249 = vpop.permute.xlu0 %2248
    %2250 = vrot.lane.b32.xlu0 %v2211, 126
    %v2251 = vpop.permute.xlu0 %2250
    %2252 = vrot.lane.b32.xlu0 %v2212, 126
    %v2253 = vpop.permute.xlu0 %2252
    %2254 = vrot.lane.b32.xlu0 %v2213, 126
    %v2255 = vpop.permute.xlu0 %2254
    %2256 = vrot.lane.b32.xlu0 %v2214, 126
    %v2257 = vpop.permute.xlu0 %2256
    %2258 = vrot.lane.b32.xlu0 %v2215, 126
    %v2259 = vpop.permute.xlu0 %2258
    %2260 = vrot.lane.b32.xlu0 %v2216, 126
    %v2261 = vpop.permute.xlu0 %2260
    %2262 = vrot.lane.b32.xlu0 %v2217, 126
    %v2263 = vpop.permute.xlu0 %2262
    %2264 = vrot.lane.b32.xlu0 %v2218, 126
    %v2265 = vpop.permute.xlu0 %2264
    %2266 = vrot.lane.b32.xlu0 %v2219, 126
    %v2267 = vpop.permute.xlu0 %2266
    %v2284 = vadd.f32 %v2180, %v2237
    %v2285 = vadd.f32 %v2181, %v2239
    %v2286 = vadd.f32 %v2182, %v2241
    %v2287 = vadd.f32 %v2183, %v2243
    %v2288 = vadd.f32 %v2184, %v2245
    %v2289 = vadd.f32 %v2185, %v2247
    %v2290 = vadd.f32 %v2186, %v2249
    %v2291 = vadd.f32 %v2187, %v2251
    %v2292 = vadd.f32 %v2188, %v2253
    %v2293 = vadd.f32 %v2189, %v2255
    %v2294 = vadd.f32 %v2190, %v2257
    %v2295 = vadd.f32 %v2191, %v2259
    %v2296 = vadd.f32 %v2192, %v2261
    %v2297 = vadd.f32 %v2193, %v2263
    %v2298 = vadd.f32 %v2194, %v2265
    %v2299 = vadd.f32 %v2195, %v2267
    %2300 = vset.pattern.permute.xlu0 26
    %2301 = vperm.xlu0 %2300, %v58
    %v2302 = vpop.permute.xlu0 %2301
    %2304 = vset.pattern.permute.xlu0 26
    %2305 = vperm.xlu0 %2304, %v59
    %v2306 = vpop.permute.xlu0 %2305
    %v2308 = vmul.f32 %v212, %v2302
    %v2309 = vmul.f32 %v212, %v2306
    %v2310 = vmul.f32 %v213, %v2302
    %v2311 = vmul.f32 %v213, %v2306
    %v2312 = vmul.f32 %v214, %v2302
    %v2313 = vmul.f32 %v214, %v2306
    %v2314 = vmul.f32 %v215, %v2302
    %v2315 = vmul.f32 %v215, %v2306
    %v2316 = vmul.f32 %v216, %v2302
    %v2317 = vmul.f32 %v216, %v2306
    %v2318 = vmul.f32 %v217, %v2302
    %v2319 = vmul.f32 %v217, %v2306
    %v2320 = vmul.f32 %v218, %v2302
    %v2321 = vmul.f32 %v218, %v2306
    %v2322 = vmul.f32 %v219, %v2302
    %v2323 = vmul.f32 %v219, %v2306
    %2340 = vrot.lane.b32.xlu0 %v2308, 126
    %v2341 = vpop.permute.xlu0 %2340
    %2342 = vrot.lane.b32.xlu0 %v2309, 126
    %v2343 = vpop.permute.xlu0 %2342
    %2344 = vrot.lane.b32.xlu0 %v2310, 126
    %v2345 = vpop.permute.xlu0 %2344
    %2346 = vrot.lane.b32.xlu0 %v2311, 126
    %v2347 = vpop.permute.xlu0 %2346
    %2348 = vrot.lane.b32.xlu0 %v2312, 126
    %v2349 = vpop.permute.xlu0 %2348
    %2350 = vrot.lane.b32.xlu0 %v2313, 126
    %v2351 = vpop.permute.xlu0 %2350
    %2352 = vrot.lane.b32.xlu0 %v2314, 126
    %v2353 = vpop.permute.xlu0 %2352
    %2354 = vrot.lane.b32.xlu0 %v2315, 126
    %v2355 = vpop.permute.xlu0 %2354
    %2356 = vrot.lane.b32.xlu0 %v2316, 126
    %v2357 = vpop.permute.xlu0 %2356
    %2358 = vrot.lane.b32.xlu0 %v2317, 126
    %v2359 = vpop.permute.xlu0 %2358
    %2360 = vrot.lane.b32.xlu0 %v2318, 126
    %v2361 = vpop.permute.xlu0 %2360
    %2362 = vrot.lane.b32.xlu0 %v2319, 126
    %v2363 = vpop.permute.xlu0 %2362
    %2364 = vrot.lane.b32.xlu0 %v2320, 126
    %v2365 = vpop.permute.xlu0 %2364
    %2366 = vrot.lane.b32.xlu0 %v2321, 126
    %v2367 = vpop.permute.xlu0 %2366
    %2368 = vrot.lane.b32.xlu0 %v2322, 126
    %v2369 = vpop.permute.xlu0 %2368
    %2370 = vrot.lane.b32.xlu0 %v2323, 126
    %v2371 = vpop.permute.xlu0 %2370
    %v2388 = vadd.f32 %v2284, %v2341
    %v2389 = vadd.f32 %v2285, %v2343
    %v2390 = vadd.f32 %v2286, %v2345
    %v2391 = vadd.f32 %v2287, %v2347
    %v2392 = vadd.f32 %v2288, %v2349
    %v2393 = vadd.f32 %v2289, %v2351
    %v2394 = vadd.f32 %v2290, %v2353
    %v2395 = vadd.f32 %v2291, %v2355
    %v2396 = vadd.f32 %v2292, %v2357
    %v2397 = vadd.f32 %v2293, %v2359
    %v2398 = vadd.f32 %v2294, %v2361
    %v2399 = vadd.f32 %v2295, %v2363
    %v2400 = vadd.f32 %v2296, %v2365
    %v2401 = vadd.f32 %v2297, %v2367
    %v2402 = vadd.f32 %v2298, %v2369
    %v2403 = vadd.f32 %v2299, %v2371
    %2404 = vset.pattern.permute.xlu0 27
    %2405 = vperm.xlu0 %2404, %v58
    %v2406 = vpop.permute.xlu0 %2405
    %2408 = vset.pattern.permute.xlu0 27
    %2409 = vperm.xlu0 %2408, %v59
    %v2410 = vpop.permute.xlu0 %2409
    %v2412 = vmul.f32 %v276, %v2406
    %v2413 = vmul.f32 %v276, %v2410
    %v2414 = vmul.f32 %v277, %v2406
    %v2415 = vmul.f32 %v277, %v2410
    %v2416 = vmul.f32 %v278, %v2406
    %v2417 = vmul.f32 %v278, %v2410
    %v2418 = vmul.f32 %v279, %v2406
    %v2419 = vmul.f32 %v279, %v2410
    %v2420 = vmul.f32 %v280, %v2406
    %v2421 = vmul.f32 %v280, %v2410
    %v2422 = vmul.f32 %v281, %v2406
    %v2423 = vmul.f32 %v281, %v2410
    %v2424 = vmul.f32 %v282, %v2406
    %v2425 = vmul.f32 %v282, %v2410
    %v2426 = vmul.f32 %v283, %v2406
    %v2427 = vmul.f32 %v283, %v2410
    %2444 = vrot.lane.b32.xlu0 %v2412, 126
    %v2445 = vpop.permute.xlu0 %2444
    %2446 = vrot.lane.b32.xlu0 %v2413, 126
    %v2447 = vpop.permute.xlu0 %2446
    %2448 = vrot.lane.b32.xlu0 %v2414, 126
    %v2449 = vpop.permute.xlu0 %2448
    %2450 = vrot.lane.b32.xlu0 %v2415, 126
    %v2451 = vpop.permute.xlu0 %2450
    %2452 = vrot.lane.b32.xlu0 %v2416, 126
    %v2453 = vpop.permute.xlu0 %2452
    %2454 = vrot.lane.b32.xlu0 %v2417, 126
    %v2455 = vpop.permute.xlu0 %2454
    %2456 = vrot.lane.b32.xlu0 %v2418, 126
    %v2457 = vpop.permute.xlu0 %2456
    %2458 = vrot.lane.b32.xlu0 %v2419, 126
    %v2459 = vpop.permute.xlu0 %2458
    %2460 = vrot.lane.b32.xlu0 %v2420, 126
    %v2461 = vpop.permute.xlu0 %2460
    %2462 = vrot.lane.b32.xlu0 %v2421, 126
    %v2463 = vpop.permute.xlu0 %2462
    %2464 = vrot.lane.b32.xlu0 %v2422, 126
    %v2465 = vpop.permute.xlu0 %2464
    %2466 = vrot.lane.b32.xlu0 %v2423, 126
    %v2467 = vpop.permute.xlu0 %2466
    %2468 = vrot.lane.b32.xlu0 %v2424, 126
    %v2469 = vpop.permute.xlu0 %2468
    %2470 = vrot.lane.b32.xlu0 %v2425, 126
    %v2471 = vpop.permute.xlu0 %2470
    %2472 = vrot.lane.b32.xlu0 %v2426, 126
    %v2473 = vpop.permute.xlu0 %2472
    %2474 = vrot.lane.b32.xlu0 %v2427, 126
    %v2475 = vpop.permute.xlu0 %2474
    %v2492 = vadd.f32 %v2388, %v2445
    %v2493 = vadd.f32 %v2389, %v2447
    %v2494 = vadd.f32 %v2390, %v2449
    %v2495 = vadd.f32 %v2391, %v2451
    %v2496 = vadd.f32 %v2392, %v2453
    %v2497 = vadd.f32 %v2393, %v2455
    %v2498 = vadd.f32 %v2394, %v2457
    %v2499 = vadd.f32 %v2395, %v2459
    %v2500 = vadd.f32 %v2396, %v2461
    %v2501 = vadd.f32 %v2397, %v2463
    %v2502 = vadd.f32 %v2398, %v2465
    %v2503 = vadd.f32 %v2399, %v2467
    %v2504 = vadd.f32 %v2400, %v2469
    %v2505 = vadd.f32 %v2401, %v2471
    %v2506 = vadd.f32 %v2402, %v2473
    %v2507 = vadd.f32 %v2403, %v2475
    %2508 = vset.pattern.permute.xlu0 28
    %2509 = vperm.xlu0 %2508, %v58
    %v2510 = vpop.permute.xlu0 %2509
    %2512 = vset.pattern.permute.xlu0 28
    %2513 = vperm.xlu0 %2512, %v59
    %v2514 = vpop.permute.xlu0 %2513
    %v2516 = vmul.f32 %v340, %v2510
    %v2517 = vmul.f32 %v340, %v2514
    %v2518 = vmul.f32 %v341, %v2510
    %v2519 = vmul.f32 %v341, %v2514
    %v2520 = vmul.f32 %v342, %v2510
    %v2521 = vmul.f32 %v342, %v2514
    %v2522 = vmul.f32 %v343, %v2510
    %v2523 = vmul.f32 %v343, %v2514
    %v2524 = vmul.f32 %v344, %v2510
    %v2525 = vmul.f32 %v344, %v2514
    %v2526 = vmul.f32 %v345, %v2510
    %v2527 = vmul.f32 %v345, %v2514
    %v2528 = vmul.f32 %v346, %v2510
    %v2529 = vmul.f32 %v346, %v2514
    %v2530 = vmul.f32 %v347, %v2510
    %v2531 = vmul.f32 %v347, %v2514
    %2548 = vrot.lane.b32.xlu0 %v2516, 126
    %v2549 = vpop.permute.xlu0 %2548
    %2550 = vrot.lane.b32.xlu0 %v2517, 126
    %v2551 = vpop.permute.xlu0 %2550
    %2552 = vrot.lane.b32.xlu0 %v2518, 126
    %v2553 = vpop.permute.xlu0 %2552
    %2554 = vrot.lane.b32.xlu0 %v2519, 126
    %v2555 = vpop.permute.xlu0 %2554
    %2556 = vrot.lane.b32.xlu0 %v2520, 126
    %v2557 = vpop.permute.xlu0 %2556
    %2558 = vrot.lane.b32.xlu0 %v2521, 126
    %v2559 = vpop.permute.xlu0 %2558
    %2560 = vrot.lane.b32.xlu0 %v2522, 126
    %v2561 = vpop.permute.xlu0 %2560
    %2562 = vrot.lane.b32.xlu0 %v2523, 126
    %v2563 = vpop.permute.xlu0 %2562
    %2564 = vrot.lane.b32.xlu0 %v2524, 126
    %v2565 = vpop.permute.xlu0 %2564
    %2566 = vrot.lane.b32.xlu0 %v2525, 126
    %v2567 = vpop.permute.xlu0 %2566
    %2568 = vrot.lane.b32.xlu0 %v2526, 126
    %v2569 = vpop.permute.xlu0 %2568
    %2570 = vrot.lane.b32.xlu0 %v2527, 126
    %v2571 = vpop.permute.xlu0 %2570
    %2572 = vrot.lane.b32.xlu0 %v2528, 126
    %v2573 = vpop.permute.xlu0 %2572
    %2574 = vrot.lane.b32.xlu0 %v2529, 126
    %v2575 = vpop.permute.xlu0 %2574
    %2576 = vrot.lane.b32.xlu0 %v2530, 126
    %v2577 = vpop.permute.xlu0 %2576
    %2578 = vrot.lane.b32.xlu0 %v2531, 126
    %v2579 = vpop.permute.xlu0 %2578
    %v2596 = vadd.f32 %v2492, %v2549
    %v2597 = vadd.f32 %v2493, %v2551
    %v2598 = vadd.f32 %v2494, %v2553
    %v2599 = vadd.f32 %v2495, %v2555
    %v2600 = vadd.f32 %v2496, %v2557
    %v2601 = vadd.f32 %v2497, %v2559
    %v2602 = vadd.f32 %v2498, %v2561
    %v2603 = vadd.f32 %v2499, %v2563
    %v2604 = vadd.f32 %v2500, %v2565
    %v2605 = vadd.f32 %v2501, %v2567
    %v2606 = vadd.f32 %v2502, %v2569
    %v2607 = vadd.f32 %v2503, %v2571
    %v2608 = vadd.f32 %v2504, %v2573
    %v2609 = vadd.f32 %v2505, %v2575
    %v2610 = vadd.f32 %v2506, %v2577
    %v2611 = vadd.f32 %v2507, %v2579
    %2612 = vset.pattern.permute.xlu0 29
    %2613 = vperm.xlu0 %2612, %v58
    %v2614 = vpop.permute.xlu0 %2613
    %2616 = vset.pattern.permute.xlu0 29
    %2617 = vperm.xlu0 %2616, %v59
    %v2618 = vpop.permute.xlu0 %2617
    %v2620 = vmul.f32 %v404, %v2614
    %v2621 = vmul.f32 %v404, %v2618
    %v2622 = vmul.f32 %v405, %v2614
    %v2623 = vmul.f32 %v405, %v2618
    %v2624 = vmul.f32 %v406, %v2614
    %v2625 = vmul.f32 %v406, %v2618
    %v2626 = vmul.f32 %v407, %v2614
    %v2627 = vmul.f32 %v407, %v2618
    %v2628 = vmul.f32 %v408, %v2614
    %v2629 = vmul.f32 %v408, %v2618
    %v2630 = vmul.f32 %v409, %v2614
    %v2631 = vmul.f32 %v409, %v2618
    %v2632 = vmul.f32 %v410, %v2614
    %v2633 = vmul.f32 %v410, %v2618
    %v2634 = vmul.f32 %v411, %v2614
    %v2635 = vmul.f32 %v411, %v2618
    %2652 = vrot.lane.b32.xlu0 %v2620, 126
    %v2653 = vpop.permute.xlu0 %2652
    %2654 = vrot.lane.b32.xlu0 %v2621, 126
    %v2655 = vpop.permute.xlu0 %2654
    %2656 = vrot.lane.b32.xlu0 %v2622, 126
    %v2657 = vpop.permute.xlu0 %2656
    %2658 = vrot.lane.b32.xlu0 %v2623, 126
    %v2659 = vpop.permute.xlu0 %2658
    %2660 = vrot.lane.b32.xlu0 %v2624, 126
    %v2661 = vpop.permute.xlu0 %2660
    %2662 = vrot.lane.b32.xlu0 %v2625, 126
    %v2663 = vpop.permute.xlu0 %2662
    %2664 = vrot.lane.b32.xlu0 %v2626, 126
    %v2665 = vpop.permute.xlu0 %2664
    %2666 = vrot.lane.b32.xlu0 %v2627, 126
    %v2667 = vpop.permute.xlu0 %2666
    %2668 = vrot.lane.b32.xlu0 %v2628, 126
    %v2669 = vpop.permute.xlu0 %2668
    %2670 = vrot.lane.b32.xlu0 %v2629, 126
    %v2671 = vpop.permute.xlu0 %2670
    %2672 = vrot.lane.b32.xlu0 %v2630, 126
    %v2673 = vpop.permute.xlu0 %2672
    %2674 = vrot.lane.b32.xlu0 %v2631, 126
    %v2675 = vpop.permute.xlu0 %2674
    %2676 = vrot.lane.b32.xlu0 %v2632, 126
    %v2677 = vpop.permute.xlu0 %2676
    %2678 = vrot.lane.b32.xlu0 %v2633, 126
    %v2679 = vpop.permute.xlu0 %2678
    %2680 = vrot.lane.b32.xlu0 %v2634, 126
    %v2681 = vpop.permute.xlu0 %2680
    %2682 = vrot.lane.b32.xlu0 %v2635, 126
    %v2683 = vpop.permute.xlu0 %2682
    %v2700 = vadd.f32 %v2596, %v2653
    %v2701 = vadd.f32 %v2597, %v2655
    %v2702 = vadd.f32 %v2598, %v2657
    %v2703 = vadd.f32 %v2599, %v2659
    %v2704 = vadd.f32 %v2600, %v2661
    %v2705 = vadd.f32 %v2601, %v2663
    %v2706 = vadd.f32 %v2602, %v2665
    %v2707 = vadd.f32 %v2603, %v2667
    %v2708 = vadd.f32 %v2604, %v2669
    %v2709 = vadd.f32 %v2605, %v2671
    %v2710 = vadd.f32 %v2606, %v2673
    %v2711 = vadd.f32 %v2607, %v2675
    %v2712 = vadd.f32 %v2608, %v2677
    %v2713 = vadd.f32 %v2609, %v2679
    %v2714 = vadd.f32 %v2610, %v2681
    %v2715 = vadd.f32 %v2611, %v2683
    %2717 = vset.pattern.permute.xlu0 0
    %2718 = vperm.xlu0 %2717, %v60
    %v2719 = vpop.permute.xlu0 %2718
    %2722 = vset.pattern.permute.xlu0 0
    %2723 = vperm.xlu0 %2722, %v61
    %v2724 = vpop.permute.xlu0 %2723
    %v2726 = vadd.f32 %v2700, %v2719
    %v2727 = vadd.f32 %v2701, %v2724
    %v2728 = vadd.f32 %v2702, %v2719
    %v2729 = vadd.f32 %v2703, %v2724
    %v2730 = vadd.f32 %v2704, %v2719
    %v2731 = vadd.f32 %v2705, %v2724
    %v2732 = vadd.f32 %v2706, %v2719
    %v2733 = vadd.f32 %v2707, %v2724
    %v2734 = vadd.f32 %v2708, %v2719
    %v2735 = vadd.f32 %v2709, %v2724
    %v2736 = vadd.f32 %v2710, %v2719
    %v2737 = vadd.f32 %v2711, %v2724
    %v2738 = vadd.f32 %v2712, %v2719
    %v2739 = vadd.f32 %v2713, %v2724
    %v2740 = vadd.f32 %v2714, %v2719
    %v2741 = vadd.f32 %v2715, %v2724
    %v2742 = vmul.f32 %v276, %v101
    %v2743 = vmul.f32 %v276, %v106
    %v2744 = vmul.f32 %v277, %v101
    %v2745 = vmul.f32 %v277, %v106
    %v2746 = vmul.f32 %v278, %v101
    %v2747 = vmul.f32 %v278, %v106
    %v2748 = vmul.f32 %v279, %v101
    %v2749 = vmul.f32 %v279, %v106
    %v2750 = vmul.f32 %v280, %v101
    %v2751 = vmul.f32 %v280, %v106
    %v2752 = vmul.f32 %v281, %v101
    %v2753 = vmul.f32 %v281, %v106
    %v2754 = vmul.f32 %v282, %v101
    %v2755 = vmul.f32 %v282, %v106
    %v2756 = vmul.f32 %v283, %v101
    %v2757 = vmul.f32 %v283, %v106
    %v2758 = vadd.f32 %v2742, 0.0
    %v2759 = vadd.f32 %v2743, 0.0
    %v2760 = vadd.f32 %v2744, 0.0
    %v2761 = vadd.f32 %v2745, 0.0
    %v2762 = vadd.f32 %v2746, 0.0
    %v2763 = vadd.f32 %v2747, 0.0
    %v2764 = vadd.f32 %v2748, 0.0
    %v2765 = vadd.f32 %v2749, 0.0
    %v2766 = vadd.f32 %v2750, 0.0
    %v2767 = vadd.f32 %v2751, 0.0
    %v2768 = vadd.f32 %v2752, 0.0
    %v2769 = vadd.f32 %v2753, 0.0
    %v2770 = vadd.f32 %v2754, 0.0
    %v2771 = vadd.f32 %v2755, 0.0
    %v2772 = vadd.f32 %v2756, 0.0
    %v2773 = vadd.f32 %v2757, 0.0
    %v2774 = vmul.f32 %v340, %v166
    %v2775 = vmul.f32 %v340, %v170
    %v2776 = vmul.f32 %v341, %v166
    %v2777 = vmul.f32 %v341, %v170
    %v2778 = vmul.f32 %v342, %v166
    %v2779 = vmul.f32 %v342, %v170
    %v2780 = vmul.f32 %v343, %v166
    %v2781 = vmul.f32 %v343, %v170
    %v2782 = vmul.f32 %v344, %v166
    %v2783 = vmul.f32 %v344, %v170
    %v2784 = vmul.f32 %v345, %v166
    %v2785 = vmul.f32 %v345, %v170
    %v2786 = vmul.f32 %v346, %v166
    %v2787 = vmul.f32 %v346, %v170
    %v2788 = vmul.f32 %v347, %v166
    %v2789 = vmul.f32 %v347, %v170
    %v2790 = vadd.f32 %v2758, %v2774
    %v2791 = vadd.f32 %v2759, %v2775
    %v2792 = vadd.f32 %v2760, %v2776
    %v2793 = vadd.f32 %v2761, %v2777
    %v2794 = vadd.f32 %v2762, %v2778
    %v2795 = vadd.f32 %v2763, %v2779
    %v2796 = vadd.f32 %v2764, %v2780
    %v2797 = vadd.f32 %v2765, %v2781
    %v2798 = vadd.f32 %v2766, %v2782
    %v2799 = vadd.f32 %v2767, %v2783
    %v2800 = vadd.f32 %v2768, %v2784
    %v2801 = vadd.f32 %v2769, %v2785
    %v2802 = vadd.f32 %v2770, %v2786
    %v2803 = vadd.f32 %v2771, %v2787
    %v2804 = vadd.f32 %v2772, %v2788
    %v2805 = vadd.f32 %v2773, %v2789
    %v2806 = vmul.f32 %v404, %v230
    %v2807 = vmul.f32 %v404, %v234
    %v2808 = vmul.f32 %v405, %v230
    %v2809 = vmul.f32 %v405, %v234
    %v2810 = vmul.f32 %v406, %v230
    %v2811 = vmul.f32 %v406, %v234
    %v2812 = vmul.f32 %v407, %v230
    %v2813 = vmul.f32 %v407, %v234
    %v2814 = vmul.f32 %v408, %v230
    %v2815 = vmul.f32 %v408, %v234
    %v2816 = vmul.f32 %v409, %v230
    %v2817 = vmul.f32 %v409, %v234
    %v2818 = vmul.f32 %v410, %v230
    %v2819 = vmul.f32 %v410, %v234
    %v2820 = vmul.f32 %v411, %v230
    %v2821 = vmul.f32 %v411, %v234
    %v2822 = vadd.f32 %v2790, %v2806
    %v2823 = vadd.f32 %v2791, %v2807
    %v2824 = vadd.f32 %v2792, %v2808
    %v2825 = vadd.f32 %v2793, %v2809
    %v2826 = vadd.f32 %v2794, %v2810
    %v2827 = vadd.f32 %v2795, %v2811
    %v2828 = vadd.f32 %v2796, %v2812
    %v2829 = vadd.f32 %v2797, %v2813
    %v2830 = vadd.f32 %v2798, %v2814
    %v2831 = vadd.f32 %v2799, %v2815
    %v2832 = vadd.f32 %v2800, %v2816
    %v2833 = vadd.f32 %v2801, %v2817
    %v2834 = vadd.f32 %v2802, %v2818
    %v2835 = vadd.f32 %v2803, %v2819
    %v2836 = vadd.f32 %v2804, %v2820
    %v2837 = vadd.f32 %v2805, %v2821
    %v2838 = vmul.f32 %v468, %v294
    %v2839 = vmul.f32 %v468, %v298
    %v2840 = vmul.f32 %v469, %v294
    %v2841 = vmul.f32 %v469, %v298
    %v2842 = vmul.f32 %v470, %v294
    %v2843 = vmul.f32 %v470, %v298
    %v2844 = vmul.f32 %v471, %v294
    %v2845 = vmul.f32 %v471, %v298
    %v2846 = vmul.f32 %v472, %v294
    %v2847 = vmul.f32 %v472, %v298
    %v2848 = vmul.f32 %v473, %v294
    %v2849 = vmul.f32 %v473, %v298
    %v2850 = vmul.f32 %v474, %v294
    %v2851 = vmul.f32 %v474, %v298
    %v2852 = vmul.f32 %v475, %v294
    %v2853 = vmul.f32 %v475, %v298
    %v2854 = vadd.f32 %v2822, %v2838
    %v2855 = vadd.f32 %v2823, %v2839
    %v2856 = vadd.f32 %v2824, %v2840
    %v2857 = vadd.f32 %v2825, %v2841
    %v2858 = vadd.f32 %v2826, %v2842
    %v2859 = vadd.f32 %v2827, %v2843
    %v2860 = vadd.f32 %v2828, %v2844
    %v2861 = vadd.f32 %v2829, %v2845
    %v2862 = vadd.f32 %v2830, %v2846
    %v2863 = vadd.f32 %v2831, %v2847
    %v2864 = vadd.f32 %v2832, %v2848
    %v2865 = vadd.f32 %v2833, %v2849
    %v2866 = vadd.f32 %v2834, %v2850
    %v2867 = vadd.f32 %v2835, %v2851
    %v2868 = vadd.f32 %v2836, %v2852
    %v2869 = vadd.f32 %v2837, %v2853
    %v2870 = vmul.f32 %v532, %v358
    %v2871 = vmul.f32 %v532, %v362
    %v2872 = vmul.f32 %v533, %v358
    %v2873 = vmul.f32 %v533, %v362
    %v2874 = vmul.f32 %v534, %v358
    %v2875 = vmul.f32 %v534, %v362
    %v2876 = vmul.f32 %v535, %v358
    %v2877 = vmul.f32 %v535, %v362
    %v2878 = vmul.f32 %v536, %v358
    %v2879 = vmul.f32 %v536, %v362
    %v2880 = vmul.f32 %v537, %v358
    %v2881 = vmul.f32 %v537, %v362
    %v2882 = vmul.f32 %v538, %v358
    %v2883 = vmul.f32 %v538, %v362
    %v2884 = vmul.f32 %v539, %v358
    %v2885 = vmul.f32 %v539, %v362
    %v2886 = vadd.f32 %v2854, %v2870
    %v2887 = vadd.f32 %v2855, %v2871
    %v2888 = vadd.f32 %v2856, %v2872
    %v2889 = vadd.f32 %v2857, %v2873
    %v2890 = vadd.f32 %v2858, %v2874
    %v2891 = vadd.f32 %v2859, %v2875
    %v2892 = vadd.f32 %v2860, %v2876
    %v2893 = vadd.f32 %v2861, %v2877
    %v2894 = vadd.f32 %v2862, %v2878
    %v2895 = vadd.f32 %v2863, %v2879
    %v2896 = vadd.f32 %v2864, %v2880
    %v2897 = vadd.f32 %v2865, %v2881
    %v2898 = vadd.f32 %v2866, %v2882
    %v2899 = vadd.f32 %v2867, %v2883
    %v2900 = vadd.f32 %v2868, %v2884
    %v2901 = vadd.f32 %v2869, %v2885
    %v2902 = vmul.f32 %v596, %v422
    %v2903 = vmul.f32 %v596, %v426
    %v2904 = vmul.f32 %v597, %v422
    %v2905 = vmul.f32 %v597, %v426
    %v2906 = vmul.f32 %v598, %v422
    %v2907 = vmul.f32 %v598, %v426
    %v2908 = vmul.f32 %v599, %v422
    %v2909 = vmul.f32 %v599, %v426
    %v2910 = vmul.f32 %v600, %v422
    %v2911 = vmul.f32 %v600, %v426
    %v2912 = vmul.f32 %v601, %v422
    %v2913 = vmul.f32 %v601, %v426
    %v2914 = vmul.f32 %v602, %v422
    %v2915 = vmul.f32 %v602, %v426
    %v2916 = vmul.f32 %v603, %v422
    %v2917 = vmul.f32 %v603, %v426
    %v2918 = vadd.f32 %v2886, %v2902
    %v2919 = vadd.f32 %v2887, %v2903
    %v2920 = vadd.f32 %v2888, %v2904
    %v2921 = vadd.f32 %v2889, %v2905
    %v2922 = vadd.f32 %v2890, %v2906
    %v2923 = vadd.f32 %v2891, %v2907
    %v2924 = vadd.f32 %v2892, %v2908
    %v2925 = vadd.f32 %v2893, %v2909
    %v2926 = vadd.f32 %v2894, %v2910
    %v2927 = vadd.f32 %v2895, %v2911
    %v2928 = vadd.f32 %v2896, %v2912
    %v2929 = vadd.f32 %v2897, %v2913
    %v2930 = vadd.f32 %v2898, %v2914
    %v2931 = vadd.f32 %v2899, %v2915
    %v2932 = vadd.f32 %v2900, %v2916
    %v2933 = vadd.f32 %v2901, %v2917
    %v2934 = vmul.f32 %v660, %v486
    %v2935 = vmul.f32 %v660, %v490
    %v2936 = vmul.f32 %v661, %v486
    %v2937 = vmul.f32 %v661, %v490
    %v2938 = vmul.f32 %v662, %v486
    %v2939 = vmul.f32 %v662, %v490
    %v2940 = vmul.f32 %v663, %v486
    %v2941 = vmul.f32 %v663, %v490
    %v2942 = vmul.f32 %v664, %v486
    %v2943 = vmul.f32 %v664, %v490
    %v2944 = vmul.f32 %v665, %v486
    %v2945 = vmul.f32 %v665, %v490
    %v2946 = vmul.f32 %v666, %v486
    %v2947 = vmul.f32 %v666, %v490
    %v2948 = vmul.f32 %v667, %v486
    %v2949 = vmul.f32 %v667, %v490
    %v2950 = vadd.f32 %v2918, %v2934
    %v2951 = vadd.f32 %v2919, %v2935
    %v2952 = vadd.f32 %v2920, %v2936
    %v2953 = vadd.f32 %v2921, %v2937
    %v2954 = vadd.f32 %v2922, %v2938
    %v2955 = vadd.f32 %v2923, %v2939
    %v2956 = vadd.f32 %v2924, %v2940
    %v2957 = vadd.f32 %v2925, %v2941
    %v2958 = vadd.f32 %v2926, %v2942
    %v2959 = vadd.f32 %v2927, %v2943
    %v2960 = vadd.f32 %v2928, %v2944
    %v2961 = vadd.f32 %v2929, %v2945
    %v2962 = vadd.f32 %v2930, %v2946
    %v2963 = vadd.f32 %v2931, %v2947
    %v2964 = vadd.f32 %v2932, %v2948
    %v2965 = vadd.f32 %v2933, %v2949
    %v2966 = vmul.f32 %v724, %v550
    %v2967 = vmul.f32 %v724, %v554
    %v2968 = vmul.f32 %v725, %v550
    %v2969 = vmul.f32 %v725, %v554
    %v2970 = vmul.f32 %v726, %v550
    %v2971 = vmul.f32 %v726, %v554
    %v2972 = vmul.f32 %v727, %v550
    %v2973 = vmul.f32 %v727, %v554
    %v2974 = vmul.f32 %v728, %v550
    %v2975 = vmul.f32 %v728, %v554
    %v2976 = vmul.f32 %v729, %v550
    %v2977 = vmul.f32 %v729, %v554
    %v2978 = vmul.f32 %v730, %v550
    %v2979 = vmul.f32 %v730, %v554
    %v2980 = vmul.f32 %v731, %v550
    %v2981 = vmul.f32 %v731, %v554
    %v2982 = vadd.f32 %v2950, %v2966
    %v2983 = vadd.f32 %v2951, %v2967
    %v2984 = vadd.f32 %v2952, %v2968
    %v2985 = vadd.f32 %v2953, %v2969
    %v2986 = vadd.f32 %v2954, %v2970
    %v2987 = vadd.f32 %v2955, %v2971
    %v2988 = vadd.f32 %v2956, %v2972
    %v2989 = vadd.f32 %v2957, %v2973
    %v2990 = vadd.f32 %v2958, %v2974
    %v2991 = vadd.f32 %v2959, %v2975
    %v2992 = vadd.f32 %v2960, %v2976
    %v2993 = vadd.f32 %v2961, %v2977
    %v2994 = vadd.f32 %v2962, %v2978
    %v2995 = vadd.f32 %v2963, %v2979
    %v2996 = vadd.f32 %v2964, %v2980
    %v2997 = vadd.f32 %v2965, %v2981
    %v2998 = vmul.f32 %v788, %v614
    %v2999 = vmul.f32 %v788, %v618
    %v3000 = vmul.f32 %v789, %v614
    %v3001 = vmul.f32 %v789, %v618
    %v3002 = vmul.f32 %v790, %v614
    %v3003 = vmul.f32 %v790, %v618
    %v3004 = vmul.f32 %v791, %v614
    %v3005 = vmul.f32 %v791, %v618
    %v3006 = vmul.f32 %v792, %v614
    %v3007 = vmul.f32 %v792, %v618
    %v3008 = vmul.f32 %v793, %v614
    %v3009 = vmul.f32 %v793, %v618
    %v3010 = vmul.f32 %v794, %v614
    %v3011 = vmul.f32 %v794, %v618
    %v3012 = vmul.f32 %v795, %v614
    %v3013 = vmul.f32 %v795, %v618
    %v3014 = vadd.f32 %v2982, %v2998
    %v3015 = vadd.f32 %v2983, %v2999
    %v3016 = vadd.f32 %v2984, %v3000
    %v3017 = vadd.f32 %v2985, %v3001
    %v3018 = vadd.f32 %v2986, %v3002
    %v3019 = vadd.f32 %v2987, %v3003
    %v3020 = vadd.f32 %v2988, %v3004
    %v3021 = vadd.f32 %v2989, %v3005
    %v3022 = vadd.f32 %v2990, %v3006
    %v3023 = vadd.f32 %v2991, %v3007
    %v3024 = vadd.f32 %v2992, %v3008
    %v3025 = vadd.f32 %v2993, %v3009
    %v3026 = vadd.f32 %v2994, %v3010
    %v3027 = vadd.f32 %v2995, %v3011
    %v3028 = vadd.f32 %v2996, %v3012
    %v3029 = vadd.f32 %v2997, %v3013
    %v3030 = vmul.f32 %v82, %v678
    %v3031 = vmul.f32 %v82, %v682
    %v3032 = vmul.f32 %v83, %v678
    %v3033 = vmul.f32 %v83, %v682
    %v3034 = vmul.f32 %v84, %v678
    %v3035 = vmul.f32 %v84, %v682
    %v3036 = vmul.f32 %v85, %v678
    %v3037 = vmul.f32 %v85, %v682
    %v3038 = vmul.f32 %v86, %v678
    %v3039 = vmul.f32 %v86, %v682
    %v3040 = vmul.f32 %v87, %v678
    %v3041 = vmul.f32 %v87, %v682
    %v3042 = vmul.f32 %v88, %v678
    %v3043 = vmul.f32 %v88, %v682
    %v3044 = vmul.f32 %v89, %v678
    %v3045 = vmul.f32 %v89, %v682
    %3062 = vrot.lane.b32.xlu0 %v3030, 127
    %v3063 = vpop.permute.xlu0 %3062
    %3064 = vrot.lane.b32.xlu0 %v3031, 127
    %v3065 = vpop.permute.xlu0 %3064
    %3066 = vrot.lane.b32.xlu0 %v3032, 127
    %v3067 = vpop.permute.xlu0 %3066
    %3068 = vrot.lane.b32.xlu0 %v3033, 127
    %v3069 = vpop.permute.xlu0 %3068
    %3070 = vrot.lane.b32.xlu0 %v3034, 127
    %v3071 = vpop.permute.xlu0 %3070
    %3072 = vrot.lane.b32.xlu0 %v3035, 127
    %v3073 = vpop.permute.xlu0 %3072
    %3074 = vrot.lane.b32.xlu0 %v3036, 127
    %v3075 = vpop.permute.xlu0 %3074
    %3076 = vrot.lane.b32.xlu0 %v3037, 127
    %v3077 = vpop.permute.xlu0 %3076
    %3078 = vrot.lane.b32.xlu0 %v3038, 127
    %v3079 = vpop.permute.xlu0 %3078
    %3080 = vrot.lane.b32.xlu0 %v3039, 127
    %v3081 = vpop.permute.xlu0 %3080
    %3082 = vrot.lane.b32.xlu0 %v3040, 127
    %v3083 = vpop.permute.xlu0 %3082
    %3084 = vrot.lane.b32.xlu0 %v3041, 127
    %v3085 = vpop.permute.xlu0 %3084
    %3086 = vrot.lane.b32.xlu0 %v3042, 127
    %v3087 = vpop.permute.xlu0 %3086
    %3088 = vrot.lane.b32.xlu0 %v3043, 127
    %v3089 = vpop.permute.xlu0 %3088
    %3090 = vrot.lane.b32.xlu0 %v3044, 127
    %v3091 = vpop.permute.xlu0 %3090
    %3092 = vrot.lane.b32.xlu0 %v3045, 127
    %v3093 = vpop.permute.xlu0 %3092
    %v3110 = vadd.f32 %v3014, %v3063
    %v3111 = vadd.f32 %v3015, %v3065
    %v3112 = vadd.f32 %v3016, %v3067
    %v3113 = vadd.f32 %v3017, %v3069
    %v3114 = vadd.f32 %v3018, %v3071
    %v3115 = vadd.f32 %v3019, %v3073
    %v3116 = vadd.f32 %v3020, %v3075
    %v3117 = vadd.f32 %v3021, %v3077
    %v3118 = vadd.f32 %v3022, %v3079
    %v3119 = vadd.f32 %v3023, %v3081
    %v3120 = vadd.f32 %v3024, %v3083
    %v3121 = vadd.f32 %v3025, %v3085
    %v3122 = vadd.f32 %v3026, %v3087
    %v3123 = vadd.f32 %v3027, %v3089
    %v3124 = vadd.f32 %v3028, %v3091
    %v3125 = vadd.f32 %v3029, %v3093
    %v3126 = vmul.f32 %v148, %v742
    %v3127 = vmul.f32 %v148, %v746
    %v3128 = vmul.f32 %v149, %v742
    %v3129 = vmul.f32 %v149, %v746
    %v3130 = vmul.f32 %v150, %v742
    %v3131 = vmul.f32 %v150, %v746
    %v3132 = vmul.f32 %v151, %v742
    %v3133 = vmul.f32 %v151, %v746
    %v3134 = vmul.f32 %v152, %v742
    %v3135 = vmul.f32 %v152, %v746
    %v3136 = vmul.f32 %v153, %v742
    %v3137 = vmul.f32 %v153, %v746
    %v3138 = vmul.f32 %v154, %v742
    %v3139 = vmul.f32 %v154, %v746
    %v3140 = vmul.f32 %v155, %v742
    %v3141 = vmul.f32 %v155, %v746
    %3158 = vrot.lane.b32.xlu0 %v3126, 127
    %v3159 = vpop.permute.xlu0 %3158
    %3160 = vrot.lane.b32.xlu0 %v3127, 127
    %v3161 = vpop.permute.xlu0 %3160
    %3162 = vrot.lane.b32.xlu0 %v3128, 127
    %v3163 = vpop.permute.xlu0 %3162
    %3164 = vrot.lane.b32.xlu0 %v3129, 127
    %v3165 = vpop.permute.xlu0 %3164
    %3166 = vrot.lane.b32.xlu0 %v3130, 127
    %v3167 = vpop.permute.xlu0 %3166
    %3168 = vrot.lane.b32.xlu0 %v3131, 127
    %v3169 = vpop.permute.xlu0 %3168
    %3170 = vrot.lane.b32.xlu0 %v3132, 127
    %v3171 = vpop.permute.xlu0 %3170
    %3172 = vrot.lane.b32.xlu0 %v3133, 127
    %v3173 = vpop.permute.xlu0 %3172
    %3174 = vrot.lane.b32.xlu0 %v3134, 127
    %v3175 = vpop.permute.xlu0 %3174
    %3176 = vrot.lane.b32.xlu0 %v3135, 127
    %v3177 = vpop.permute.xlu0 %3176
    %3178 = vrot.lane.b32.xlu0 %v3136, 127
    %v3179 = vpop.permute.xlu0 %3178
    %3180 = vrot.lane.b32.xlu0 %v3137, 127
    %v3181 = vpop.permute.xlu0 %3180
    %3182 = vrot.lane.b32.xlu0 %v3138, 127
    %v3183 = vpop.permute.xlu0 %3182
    %3184 = vrot.lane.b32.xlu0 %v3139, 127
    %v3185 = vpop.permute.xlu0 %3184
    %3186 = vrot.lane.b32.xlu0 %v3140, 127
    %v3187 = vpop.permute.xlu0 %3186
    %3188 = vrot.lane.b32.xlu0 %v3141, 127
    %v3189 = vpop.permute.xlu0 %3188
    %v3206 = vadd.f32 %v3110, %v3159
    %v3207 = vadd.f32 %v3111, %v3161
    %v3208 = vadd.f32 %v3112, %v3163
    %v3209 = vadd.f32 %v3113, %v3165
    %v3210 = vadd.f32 %v3114, %v3167
    %v3211 = vadd.f32 %v3115, %v3169
    %v3212 = vadd.f32 %v3116, %v3171
    %v3213 = vadd.f32 %v3117, %v3173
    %v3214 = vadd.f32 %v3118, %v3175
    %v3215 = vadd.f32 %v3119, %v3177
    %v3216 = vadd.f32 %v3120, %v3179
    %v3217 = vadd.f32 %v3121, %v3181
    %v3218 = vadd.f32 %v3122, %v3183
    %v3219 = vadd.f32 %v3123, %v3185
    %v3220 = vadd.f32 %v3124, %v3187
    %v3221 = vadd.f32 %v3125, %v3189
    %v3222 = vmul.f32 %v212, %v806
    %v3223 = vmul.f32 %v212, %v810
    %v3224 = vmul.f32 %v213, %v806
    %v3225 = vmul.f32 %v213, %v810
    %v3226 = vmul.f32 %v214, %v806
    %v3227 = vmul.f32 %v214, %v810
    %v3228 = vmul.f32 %v215, %v806
    %v3229 = vmul.f32 %v215, %v810
    %v3230 = vmul.f32 %v216, %v806
    %v3231 = vmul.f32 %v216, %v810
    %v3232 = vmul.f32 %v217, %v806
    %v3233 = vmul.f32 %v217, %v810
    %v3234 = vmul.f32 %v218, %v806
    %v3235 = vmul.f32 %v218, %v810
    %v3236 = vmul.f32 %v219, %v806
    %v3237 = vmul.f32 %v219, %v810
    %3254 = vrot.lane.b32.xlu0 %v3222, 127
    %v3255 = vpop.permute.xlu0 %3254
    %3256 = vrot.lane.b32.xlu0 %v3223, 127
    %v3257 = vpop.permute.xlu0 %3256
    %3258 = vrot.lane.b32.xlu0 %v3224, 127
    %v3259 = vpop.permute.xlu0 %3258
    %3260 = vrot.lane.b32.xlu0 %v3225, 127
    %v3261 = vpop.permute.xlu0 %3260
    %3262 = vrot.lane.b32.xlu0 %v3226, 127
    %v3263 = vpop.permute.xlu0 %3262
    %3264 = vrot.lane.b32.xlu0 %v3227, 127
    %v3265 = vpop.permute.xlu0 %3264
    %3266 = vrot.lane.b32.xlu0 %v3228, 127
    %v3267 = vpop.permute.xlu0 %3266
    %3268 = vrot.lane.b32.xlu0 %v3229, 127
    %v3269 = vpop.permute.xlu0 %3268
    %3270 = vrot.lane.b32.xlu0 %v3230, 127
    %v3271 = vpop.permute.xlu0 %3270
    %3272 = vrot.lane.b32.xlu0 %v3231, 127
    %v3273 = vpop.permute.xlu0 %3272
    %3274 = vrot.lane.b32.xlu0 %v3232, 127
    %v3275 = vpop.permute.xlu0 %3274
    %3276 = vrot.lane.b32.xlu0 %v3233, 127
    %v3277 = vpop.permute.xlu0 %3276
    %3278 = vrot.lane.b32.xlu0 %v3234, 127
    %v3279 = vpop.permute.xlu0 %3278
    %3280 = vrot.lane.b32.xlu0 %v3235, 127
    %v3281 = vpop.permute.xlu0 %3280
    %3282 = vrot.lane.b32.xlu0 %v3236, 127
    %v3283 = vpop.permute.xlu0 %3282
    %3284 = vrot.lane.b32.xlu0 %v3237, 127
    %v3285 = vpop.permute.xlu0 %3284
    %v3302 = vadd.f32 %v3206, %v3255
    %v3303 = vadd.f32 %v3207, %v3257
    %v3304 = vadd.f32 %v3208, %v3259
    %v3305 = vadd.f32 %v3209, %v3261
    %v3306 = vadd.f32 %v3210, %v3263
    %v3307 = vadd.f32 %v3211, %v3265
    %v3308 = vadd.f32 %v3212, %v3267
    %v3309 = vadd.f32 %v3213, %v3269
    %v3310 = vadd.f32 %v3214, %v3271
    %v3311 = vadd.f32 %v3215, %v3273
    %v3312 = vadd.f32 %v3216, %v3275
    %v3313 = vadd.f32 %v3217, %v3277
    %v3314 = vadd.f32 %v3218, %v3279
    %v3315 = vadd.f32 %v3219, %v3281
    %v3316 = vadd.f32 %v3220, %v3283
    %v3317 = vadd.f32 %v3221, %v3285
    %v3318 = vmul.f32 %v276, %v846
    %v3319 = vmul.f32 %v276, %v850
    %v3320 = vmul.f32 %v277, %v846
    %v3321 = vmul.f32 %v277, %v850
    %v3322 = vmul.f32 %v278, %v846
    %v3323 = vmul.f32 %v278, %v850
    %v3324 = vmul.f32 %v279, %v846
    %v3325 = vmul.f32 %v279, %v850
    %v3326 = vmul.f32 %v280, %v846
    %v3327 = vmul.f32 %v280, %v850
    %v3328 = vmul.f32 %v281, %v846
    %v3329 = vmul.f32 %v281, %v850
    %v3330 = vmul.f32 %v282, %v846
    %v3331 = vmul.f32 %v282, %v850
    %v3332 = vmul.f32 %v283, %v846
    %v3333 = vmul.f32 %v283, %v850
    %3350 = vrot.lane.b32.xlu0 %v3318, 127
    %v3351 = vpop.permute.xlu0 %3350
    %3352 = vrot.lane.b32.xlu0 %v3319, 127
    %v3353 = vpop.permute.xlu0 %3352
    %3354 = vrot.lane.b32.xlu0 %v3320, 127
    %v3355 = vpop.permute.xlu0 %3354
    %3356 = vrot.lane.b32.xlu0 %v3321, 127
    %v3357 = vpop.permute.xlu0 %3356
    %3358 = vrot.lane.b32.xlu0 %v3322, 127
    %v3359 = vpop.permute.xlu0 %3358
    %3360 = vrot.lane.b32.xlu0 %v3323, 127
    %v3361 = vpop.permute.xlu0 %3360
    %3362 = vrot.lane.b32.xlu0 %v3324, 127
    %v3363 = vpop.permute.xlu0 %3362
    %3364 = vrot.lane.b32.xlu0 %v3325, 127
    %v3365 = vpop.permute.xlu0 %3364
    %3366 = vrot.lane.b32.xlu0 %v3326, 127
    %v3367 = vpop.permute.xlu0 %3366
    %3368 = vrot.lane.b32.xlu0 %v3327, 127
    %v3369 = vpop.permute.xlu0 %3368
    %3370 = vrot.lane.b32.xlu0 %v3328, 127
    %v3371 = vpop.permute.xlu0 %3370
    %3372 = vrot.lane.b32.xlu0 %v3329, 127
    %v3373 = vpop.permute.xlu0 %3372
    %3374 = vrot.lane.b32.xlu0 %v3330, 127
    %v3375 = vpop.permute.xlu0 %3374
    %3376 = vrot.lane.b32.xlu0 %v3331, 127
    %v3377 = vpop.permute.xlu0 %3376
    %3378 = vrot.lane.b32.xlu0 %v3332, 127
    %v3379 = vpop.permute.xlu0 %3378
    %3380 = vrot.lane.b32.xlu0 %v3333, 127
    %v3381 = vpop.permute.xlu0 %3380
    %v3398 = vadd.f32 %v3302, %v3351
    %v3399 = vadd.f32 %v3303, %v3353
    %v3400 = vadd.f32 %v3304, %v3355
    %v3401 = vadd.f32 %v3305, %v3357
    %v3402 = vadd.f32 %v3306, %v3359
    %v3403 = vadd.f32 %v3307, %v3361
    %v3404 = vadd.f32 %v3308, %v3363
    %v3405 = vadd.f32 %v3309, %v3365
    %v3406 = vadd.f32 %v3310, %v3367
    %v3407 = vadd.f32 %v3311, %v3369
    %v3408 = vadd.f32 %v3312, %v3371
    %v3409 = vadd.f32 %v3313, %v3373
    %v3410 = vadd.f32 %v3314, %v3375
    %v3411 = vadd.f32 %v3315, %v3377
    %v3412 = vadd.f32 %v3316, %v3379
    %v3413 = vadd.f32 %v3317, %v3381
    %v3414 = vmul.f32 %v340, %v950
    %v3415 = vmul.f32 %v340, %v954
    %v3416 = vmul.f32 %v341, %v950
    %v3417 = vmul.f32 %v341, %v954
    %v3418 = vmul.f32 %v342, %v950
    %v3419 = vmul.f32 %v342, %v954
    %v3420 = vmul.f32 %v343, %v950
    %v3421 = vmul.f32 %v343, %v954
    %v3422 = vmul.f32 %v344, %v950
    %v3423 = vmul.f32 %v344, %v954
    %v3424 = vmul.f32 %v345, %v950
    %v3425 = vmul.f32 %v345, %v954
    %v3426 = vmul.f32 %v346, %v950
    %v3427 = vmul.f32 %v346, %v954
    %v3428 = vmul.f32 %v347, %v950
    %v3429 = vmul.f32 %v347, %v954
    %3446 = vrot.lane.b32.xlu0 %v3414, 127
    %v3447 = vpop.permute.xlu0 %3446
    %3448 = vrot.lane.b32.xlu0 %v3415, 127
    %v3449 = vpop.permute.xlu0 %3448
    %3450 = vrot.lane.b32.xlu0 %v3416, 127
    %v3451 = vpop.permute.xlu0 %3450
    %3452 = vrot.lane.b32.xlu0 %v3417, 127
    %v3453 = vpop.permute.xlu0 %3452
    %3454 = vrot.lane.b32.xlu0 %v3418, 127
    %v3455 = vpop.permute.xlu0 %3454
    %3456 = vrot.lane.b32.xlu0 %v3419, 127
    %v3457 = vpop.permute.xlu0 %3456
    %3458 = vrot.lane.b32.xlu0 %v3420, 127
    %v3459 = vpop.permute.xlu0 %3458
    %3460 = vrot.lane.b32.xlu0 %v3421, 127
    %v3461 = vpop.permute.xlu0 %3460
    %3462 = vrot.lane.b32.xlu0 %v3422, 127
    %v3463 = vpop.permute.xlu0 %3462
    %3464 = vrot.lane.b32.xlu0 %v3423, 127
    %v3465 = vpop.permute.xlu0 %3464
    %3466 = vrot.lane.b32.xlu0 %v3424, 127
    %v3467 = vpop.permute.xlu0 %3466
    %3468 = vrot.lane.b32.xlu0 %v3425, 127
    %v3469 = vpop.permute.xlu0 %3468
    %3470 = vrot.lane.b32.xlu0 %v3426, 127
    %v3471 = vpop.permute.xlu0 %3470
    %3472 = vrot.lane.b32.xlu0 %v3427, 127
    %v3473 = vpop.permute.xlu0 %3472
    %3474 = vrot.lane.b32.xlu0 %v3428, 127
    %v3475 = vpop.permute.xlu0 %3474
    %3476 = vrot.lane.b32.xlu0 %v3429, 127
    %v3477 = vpop.permute.xlu0 %3476
    %v3494 = vadd.f32 %v3398, %v3447
    %v3495 = vadd.f32 %v3399, %v3449
    %v3496 = vadd.f32 %v3400, %v3451
    %v3497 = vadd.f32 %v3401, %v3453
    %v3498 = vadd.f32 %v3402, %v3455
    %v3499 = vadd.f32 %v3403, %v3457
    %v3500 = vadd.f32 %v3404, %v3459
    %v3501 = vadd.f32 %v3405, %v3461
    %v3502 = vadd.f32 %v3406, %v3463
    %v3503 = vadd.f32 %v3407, %v3465
    %v3504 = vadd.f32 %v3408, %v3467
    %v3505 = vadd.f32 %v3409, %v3469
    %v3506 = vadd.f32 %v3410, %v3471
    %v3507 = vadd.f32 %v3411, %v3473
    %v3508 = vadd.f32 %v3412, %v3475
    %v3509 = vadd.f32 %v3413, %v3477
    %v3510 = vmul.f32 %v404, %v1054
    %v3511 = vmul.f32 %v404, %v1058
    %v3512 = vmul.f32 %v405, %v1054
    %v3513 = vmul.f32 %v405, %v1058
    %v3514 = vmul.f32 %v406, %v1054
    %v3515 = vmul.f32 %v406, %v1058
    %v3516 = vmul.f32 %v407, %v1054
    %v3517 = vmul.f32 %v407, %v1058
    %v3518 = vmul.f32 %v408, %v1054
    %v3519 = vmul.f32 %v408, %v1058
    %v3520 = vmul.f32 %v409, %v1054
    %v3521 = vmul.f32 %v409, %v1058
    %v3522 = vmul.f32 %v410, %v1054
    %v3523 = vmul.f32 %v410, %v1058
    %v3524 = vmul.f32 %v411, %v1054
    %v3525 = vmul.f32 %v411, %v1058
    %3542 = vrot.lane.b32.xlu0 %v3510, 127
    %v3543 = vpop.permute.xlu0 %3542
    %3544 = vrot.lane.b32.xlu0 %v3511, 127
    %v3545 = vpop.permute.xlu0 %3544
    %3546 = vrot.lane.b32.xlu0 %v3512, 127
    %v3547 = vpop.permute.xlu0 %3546
    %3548 = vrot.lane.b32.xlu0 %v3513, 127
    %v3549 = vpop.permute.xlu0 %3548
    %3550 = vrot.lane.b32.xlu0 %v3514, 127
    %v3551 = vpop.permute.xlu0 %3550
    %3552 = vrot.lane.b32.xlu0 %v3515, 127
    %v3553 = vpop.permute.xlu0 %3552
    %3554 = vrot.lane.b32.xlu0 %v3516, 127
    %v3555 = vpop.permute.xlu0 %3554
    %3556 = vrot.lane.b32.xlu0 %v3517, 127
    %v3557 = vpop.permute.xlu0 %3556
    %3558 = vrot.lane.b32.xlu0 %v3518, 127
    %v3559 = vpop.permute.xlu0 %3558
    %3560 = vrot.lane.b32.xlu0 %v3519, 127
    %v3561 = vpop.permute.xlu0 %3560
    %3562 = vrot.lane.b32.xlu0 %v3520, 127
    %v3563 = vpop.permute.xlu0 %3562
    %3564 = vrot.lane.b32.xlu0 %v3521, 127
    %v3565 = vpop.permute.xlu0 %3564
    %3566 = vrot.lane.b32.xlu0 %v3522, 127
    %v3567 = vpop.permute.xlu0 %3566
    %3568 = vrot.lane.b32.xlu0 %v3523, 127
    %v3569 = vpop.permute.xlu0 %3568
    %3570 = vrot.lane.b32.xlu0 %v3524, 127
    %v3571 = vpop.permute.xlu0 %3570
    %3572 = vrot.lane.b32.xlu0 %v3525, 127
    %v3573 = vpop.permute.xlu0 %3572
    %v3590 = vadd.f32 %v3494, %v3543
    %v3591 = vadd.f32 %v3495, %v3545
    %v3592 = vadd.f32 %v3496, %v3547
    %v3593 = vadd.f32 %v3497, %v3549
    %v3594 = vadd.f32 %v3498, %v3551
    %v3595 = vadd.f32 %v3499, %v3553
    %v3596 = vadd.f32 %v3500, %v3555
    %v3597 = vadd.f32 %v3501, %v3557
    %v3598 = vadd.f32 %v3502, %v3559
    %v3599 = vadd.f32 %v3503, %v3561
    %v3600 = vadd.f32 %v3504, %v3563
    %v3601 = vadd.f32 %v3505, %v3565
    %v3602 = vadd.f32 %v3506, %v3567
    %v3603 = vadd.f32 %v3507, %v3569
    %v3604 = vadd.f32 %v3508, %v3571
    %v3605 = vadd.f32 %v3509, %v3573
    %v3606 = vmul.f32 %v468, %v1158
    %v3607 = vmul.f32 %v468, %v1162
    %v3608 = vmul.f32 %v469, %v1158
    %v3609 = vmul.f32 %v469, %v1162
    %v3610 = vmul.f32 %v470, %v1158
    %v3611 = vmul.f32 %v470, %v1162
    %v3612 = vmul.f32 %v471, %v1158
    %v3613 = vmul.f32 %v471, %v1162
    %v3614 = vmul.f32 %v472, %v1158
    %v3615 = vmul.f32 %v472, %v1162
    %v3616 = vmul.f32 %v473, %v1158
    %v3617 = vmul.f32 %v473, %v1162
    %v3618 = vmul.f32 %v474, %v1158
    %v3619 = vmul.f32 %v474, %v1162
    %v3620 = vmul.f32 %v475, %v1158
    %v3621 = vmul.f32 %v475, %v1162
    %3638 = vrot.lane.b32.xlu0 %v3606, 127
    %v3639 = vpop.permute.xlu0 %3638
    %3640 = vrot.lane.b32.xlu0 %v3607, 127
    %v3641 = vpop.permute.xlu0 %3640
    %3642 = vrot.lane.b32.xlu0 %v3608, 127
    %v3643 = vpop.permute.xlu0 %3642
    %3644 = vrot.lane.b32.xlu0 %v3609, 127
    %v3645 = vpop.permute.xlu0 %3644
    %3646 = vrot.lane.b32.xlu0 %v3610, 127
    %v3647 = vpop.permute.xlu0 %3646
    %3648 = vrot.lane.b32.xlu0 %v3611, 127
    %v3649 = vpop.permute.xlu0 %3648
    %3650 = vrot.lane.b32.xlu0 %v3612, 127
    %v3651 = vpop.permute.xlu0 %3650
    %3652 = vrot.lane.b32.xlu0 %v3613, 127
    %v3653 = vpop.permute.xlu0 %3652
    %3654 = vrot.lane.b32.xlu0 %v3614, 127
    %v3655 = vpop.permute.xlu0 %3654
    %3656 = vrot.lane.b32.xlu0 %v3615, 127
    %v3657 = vpop.permute.xlu0 %3656
    %3658 = vrot.lane.b32.xlu0 %v3616, 127
    %v3659 = vpop.permute.xlu0 %3658
    %3660 = vrot.lane.b32.xlu0 %v3617, 127
    %v3661 = vpop.permute.xlu0 %3660
    %3662 = vrot.lane.b32.xlu0 %v3618, 127
    %v3663 = vpop.permute.xlu0 %3662
    %3664 = vrot.lane.b32.xlu0 %v3619, 127
    %v3665 = vpop.permute.xlu0 %3664
    %3666 = vrot.lane.b32.xlu0 %v3620, 127
    %v3667 = vpop.permute.xlu0 %3666
    %3668 = vrot.lane.b32.xlu0 %v3621, 127
    %v3669 = vpop.permute.xlu0 %3668
    %v3686 = vadd.f32 %v3590, %v3639
    %v3687 = vadd.f32 %v3591, %v3641
    %v3688 = vadd.f32 %v3592, %v3643
    %v3689 = vadd.f32 %v3593, %v3645
    %v3690 = vadd.f32 %v3594, %v3647
    %v3691 = vadd.f32 %v3595, %v3649
    %v3692 = vadd.f32 %v3596, %v3651
    %v3693 = vadd.f32 %v3597, %v3653
    %v3694 = vadd.f32 %v3598, %v3655
    %v3695 = vadd.f32 %v3599, %v3657
    %v3696 = vadd.f32 %v3600, %v3659
    %v3697 = vadd.f32 %v3601, %v3661
    %v3698 = vadd.f32 %v3602, %v3663
    %v3699 = vadd.f32 %v3603, %v3665
    %v3700 = vadd.f32 %v3604, %v3667
    %v3701 = vadd.f32 %v3605, %v3669
    %v3702 = vmul.f32 %v532, %v1262
    %v3703 = vmul.f32 %v532, %v1266
    %v3704 = vmul.f32 %v533, %v1262
    %v3705 = vmul.f32 %v533, %v1266
    %v3706 = vmul.f32 %v534, %v1262
    %v3707 = vmul.f32 %v534, %v1266
    %v3708 = vmul.f32 %v535, %v1262
    %v3709 = vmul.f32 %v535, %v1266
    %v3710 = vmul.f32 %v536, %v1262
    %v3711 = vmul.f32 %v536, %v1266
    %v3712 = vmul.f32 %v537, %v1262
    %v3713 = vmul.f32 %v537, %v1266
    %v3714 = vmul.f32 %v538, %v1262
    %v3715 = vmul.f32 %v538, %v1266
    %v3716 = vmul.f32 %v539, %v1262
    %v3717 = vmul.f32 %v539, %v1266
    %3734 = vrot.lane.b32.xlu0 %v3702, 127
    %v3735 = vpop.permute.xlu0 %3734
    %3736 = vrot.lane.b32.xlu0 %v3703, 127
    %v3737 = vpop.permute.xlu0 %3736
    %3738 = vrot.lane.b32.xlu0 %v3704, 127
    %v3739 = vpop.permute.xlu0 %3738
    %3740 = vrot.lane.b32.xlu0 %v3705, 127
    %v3741 = vpop.permute.xlu0 %3740
    %3742 = vrot.lane.b32.xlu0 %v3706, 127
    %v3743 = vpop.permute.xlu0 %3742
    %3744 = vrot.lane.b32.xlu0 %v3707, 127
    %v3745 = vpop.permute.xlu0 %3744
    %3746 = vrot.lane.b32.xlu0 %v3708, 127
    %v3747 = vpop.permute.xlu0 %3746
    %3748 = vrot.lane.b32.xlu0 %v3709, 127
    %v3749 = vpop.permute.xlu0 %3748
    %3750 = vrot.lane.b32.xlu0 %v3710, 127
    %v3751 = vpop.permute.xlu0 %3750
    %3752 = vrot.lane.b32.xlu0 %v3711, 127
    %v3753 = vpop.permute.xlu0 %3752
    %3754 = vrot.lane.b32.xlu0 %v3712, 127
    %v3755 = vpop.permute.xlu0 %3754
    %3756 = vrot.lane.b32.xlu0 %v3713, 127
    %v3757 = vpop.permute.xlu0 %3756
    %3758 = vrot.lane.b32.xlu0 %v3714, 127
    %v3759 = vpop.permute.xlu0 %3758
    %3760 = vrot.lane.b32.xlu0 %v3715, 127
    %v3761 = vpop.permute.xlu0 %3760
    %3762 = vrot.lane.b32.xlu0 %v3716, 127
    %v3763 = vpop.permute.xlu0 %3762
    %3764 = vrot.lane.b32.xlu0 %v3717, 127
    %v3765 = vpop.permute.xlu0 %3764
    %v3782 = vadd.f32 %v3686, %v3735
    %v3783 = vadd.f32 %v3687, %v3737
    %v3784 = vadd.f32 %v3688, %v3739
    %v3785 = vadd.f32 %v3689, %v3741
    %v3786 = vadd.f32 %v3690, %v3743
    %v3787 = vadd.f32 %v3691, %v3745
    %v3788 = vadd.f32 %v3692, %v3747
    %v3789 = vadd.f32 %v3693, %v3749
    %v3790 = vadd.f32 %v3694, %v3751
    %v3791 = vadd.f32 %v3695, %v3753
    %v3792 = vadd.f32 %v3696, %v3755
    %v3793 = vadd.f32 %v3697, %v3757
    %v3794 = vadd.f32 %v3698, %v3759
    %v3795 = vadd.f32 %v3699, %v3761
    %v3796 = vadd.f32 %v3700, %v3763
    %v3797 = vadd.f32 %v3701, %v3765
    %v3798 = vmul.f32 %v596, %v1366
    %v3799 = vmul.f32 %v596, %v1370
    %v3800 = vmul.f32 %v597, %v1366
    %v3801 = vmul.f32 %v597, %v1370
    %v3802 = vmul.f32 %v598, %v1366
    %v3803 = vmul.f32 %v598, %v1370
    %v3804 = vmul.f32 %v599, %v1366
    %v3805 = vmul.f32 %v599, %v1370
    %v3806 = vmul.f32 %v600, %v1366
    %v3807 = vmul.f32 %v600, %v1370
    %v3808 = vmul.f32 %v601, %v1366
    %v3809 = vmul.f32 %v601, %v1370
    %v3810 = vmul.f32 %v602, %v1366
    %v3811 = vmul.f32 %v602, %v1370
    %v3812 = vmul.f32 %v603, %v1366
    %v3813 = vmul.f32 %v603, %v1370
    %3830 = vrot.lane.b32.xlu0 %v3798, 127
    %v3831 = vpop.permute.xlu0 %3830
    %3832 = vrot.lane.b32.xlu0 %v3799, 127
    %v3833 = vpop.permute.xlu0 %3832
    %3834 = vrot.lane.b32.xlu0 %v3800, 127
    %v3835 = vpop.permute.xlu0 %3834
    %3836 = vrot.lane.b32.xlu0 %v3801, 127
    %v3837 = vpop.permute.xlu0 %3836
    %3838 = vrot.lane.b32.xlu0 %v3802, 127
    %v3839 = vpop.permute.xlu0 %3838
    %3840 = vrot.lane.b32.xlu0 %v3803, 127
    %v3841 = vpop.permute.xlu0 %3840
    %3842 = vrot.lane.b32.xlu0 %v3804, 127
    %v3843 = vpop.permute.xlu0 %3842
    %3844 = vrot.lane.b32.xlu0 %v3805, 127
    %v3845 = vpop.permute.xlu0 %3844
    %3846 = vrot.lane.b32.xlu0 %v3806, 127
    %v3847 = vpop.permute.xlu0 %3846
    %3848 = vrot.lane.b32.xlu0 %v3807, 127
    %v3849 = vpop.permute.xlu0 %3848
    %3850 = vrot.lane.b32.xlu0 %v3808, 127
    %v3851 = vpop.permute.xlu0 %3850
    %3852 = vrot.lane.b32.xlu0 %v3809, 127
    %v3853 = vpop.permute.xlu0 %3852
    %3854 = vrot.lane.b32.xlu0 %v3810, 127
    %v3855 = vpop.permute.xlu0 %3854
    %3856 = vrot.lane.b32.xlu0 %v3811, 127
    %v3857 = vpop.permute.xlu0 %3856
    %3858 = vrot.lane.b32.xlu0 %v3812, 127
    %v3859 = vpop.permute.xlu0 %3858
    %3860 = vrot.lane.b32.xlu0 %v3813, 127
    %v3861 = vpop.permute.xlu0 %3860
    %v3878 = vadd.f32 %v3782, %v3831
    %v3879 = vadd.f32 %v3783, %v3833
    %v3880 = vadd.f32 %v3784, %v3835
    %v3881 = vadd.f32 %v3785, %v3837
    %v3882 = vadd.f32 %v3786, %v3839
    %v3883 = vadd.f32 %v3787, %v3841
    %v3884 = vadd.f32 %v3788, %v3843
    %v3885 = vadd.f32 %v3789, %v3845
    %v3886 = vadd.f32 %v3790, %v3847
    %v3887 = vadd.f32 %v3791, %v3849
    %v3888 = vadd.f32 %v3792, %v3851
    %v3889 = vadd.f32 %v3793, %v3853
    %v3890 = vadd.f32 %v3794, %v3855
    %v3891 = vadd.f32 %v3795, %v3857
    %v3892 = vadd.f32 %v3796, %v3859
    %v3893 = vadd.f32 %v3797, %v3861
    %v3894 = vmul.f32 %v660, %v1470
    %v3895 = vmul.f32 %v660, %v1474
    %v3896 = vmul.f32 %v661, %v1470
    %v3897 = vmul.f32 %v661, %v1474
    %v3898 = vmul.f32 %v662, %v1470
    %v3899 = vmul.f32 %v662, %v1474
    %v3900 = vmul.f32 %v663, %v1470
    %v3901 = vmul.f32 %v663, %v1474
    %v3902 = vmul.f32 %v664, %v1470
    %v3903 = vmul.f32 %v664, %v1474
    %v3904 = vmul.f32 %v665, %v1470
    %v3905 = vmul.f32 %v665, %v1474
    %v3906 = vmul.f32 %v666, %v1470
    %v3907 = vmul.f32 %v666, %v1474
    %v3908 = vmul.f32 %v667, %v1470
    %v3909 = vmul.f32 %v667, %v1474
    %3926 = vrot.lane.b32.xlu0 %v3894, 127
    %v3927 = vpop.permute.xlu0 %3926
    %3928 = vrot.lane.b32.xlu0 %v3895, 127
    %v3929 = vpop.permute.xlu0 %3928
    %3930 = vrot.lane.b32.xlu0 %v3896, 127
    %v3931 = vpop.permute.xlu0 %3930
    %3932 = vrot.lane.b32.xlu0 %v3897, 127
    %v3933 = vpop.permute.xlu0 %3932
    %3934 = vrot.lane.b32.xlu0 %v3898, 127
    %v3935 = vpop.permute.xlu0 %3934
    %3936 = vrot.lane.b32.xlu0 %v3899, 127
    %v3937 = vpop.permute.xlu0 %3936
    %3938 = vrot.lane.b32.xlu0 %v3900, 127
    %v3939 = vpop.permute.xlu0 %3938
    %3940 = vrot.lane.b32.xlu0 %v3901, 127
    %v3941 = vpop.permute.xlu0 %3940
    %3942 = vrot.lane.b32.xlu0 %v3902, 127
    %v3943 = vpop.permute.xlu0 %3942
    %3944 = vrot.lane.b32.xlu0 %v3903, 127
    %v3945 = vpop.permute.xlu0 %3944
    %3946 = vrot.lane.b32.xlu0 %v3904, 127
    %v3947 = vpop.permute.xlu0 %3946
    %3948 = vrot.lane.b32.xlu0 %v3905, 127
    %v3949 = vpop.permute.xlu0 %3948
    %3950 = vrot.lane.b32.xlu0 %v3906, 127
    %v3951 = vpop.permute.xlu0 %3950
    %3952 = vrot.lane.b32.xlu0 %v3907, 127
    %v3953 = vpop.permute.xlu0 %3952
    %3954 = vrot.lane.b32.xlu0 %v3908, 127
    %v3955 = vpop.permute.xlu0 %3954
    %3956 = vrot.lane.b32.xlu0 %v3909, 127
    %v3957 = vpop.permute.xlu0 %3956
    %v3974 = vadd.f32 %v3878, %v3927
    %v3975 = vadd.f32 %v3879, %v3929
    %v3976 = vadd.f32 %v3880, %v3931
    %v3977 = vadd.f32 %v3881, %v3933
    %v3978 = vadd.f32 %v3882, %v3935
    %v3979 = vadd.f32 %v3883, %v3937
    %v3980 = vadd.f32 %v3884, %v3939
    %v3981 = vadd.f32 %v3885, %v3941
    %v3982 = vadd.f32 %v3886, %v3943
    %v3983 = vadd.f32 %v3887, %v3945
    %v3984 = vadd.f32 %v3888, %v3947
    %v3985 = vadd.f32 %v3889, %v3949
    %v3986 = vadd.f32 %v3890, %v3951
    %v3987 = vadd.f32 %v3891, %v3953
    %v3988 = vadd.f32 %v3892, %v3955
    %v3989 = vadd.f32 %v3893, %v3957
    %v3990 = vmul.f32 %v724, %v1574
    %v3991 = vmul.f32 %v724, %v1578
    %v3992 = vmul.f32 %v725, %v1574
    %v3993 = vmul.f32 %v725, %v1578
    %v3994 = vmul.f32 %v726, %v1574
    %v3995 = vmul.f32 %v726, %v1578
    %v3996 = vmul.f32 %v727, %v1574
    %v3997 = vmul.f32 %v727, %v1578
    %v3998 = vmul.f32 %v728, %v1574
    %v3999 = vmul.f32 %v728, %v1578
    %v4000 = vmul.f32 %v729, %v1574
    %v4001 = vmul.f32 %v729, %v1578
    %v4002 = vmul.f32 %v730, %v1574
    %v4003 = vmul.f32 %v730, %v1578
    %v4004 = vmul.f32 %v731, %v1574
    %v4005 = vmul.f32 %v731, %v1578
    %4022 = vrot.lane.b32.xlu0 %v3990, 127
    %v4023 = vpop.permute.xlu0 %4022
    %4024 = vrot.lane.b32.xlu0 %v3991, 127
    %v4025 = vpop.permute.xlu0 %4024
    %4026 = vrot.lane.b32.xlu0 %v3992, 127
    %v4027 = vpop.permute.xlu0 %4026
    %4028 = vrot.lane.b32.xlu0 %v3993, 127
    %v4029 = vpop.permute.xlu0 %4028
    %4030 = vrot.lane.b32.xlu0 %v3994, 127
    %v4031 = vpop.permute.xlu0 %4030
    %4032 = vrot.lane.b32.xlu0 %v3995, 127
    %v4033 = vpop.permute.xlu0 %4032
    %4034 = vrot.lane.b32.xlu0 %v3996, 127
    %v4035 = vpop.permute.xlu0 %4034
    %4036 = vrot.lane.b32.xlu0 %v3997, 127
    %v4037 = vpop.permute.xlu0 %4036
    %4038 = vrot.lane.b32.xlu0 %v3998, 127
    %v4039 = vpop.permute.xlu0 %4038
    %4040 = vrot.lane.b32.xlu0 %v3999, 127
    %v4041 = vpop.permute.xlu0 %4040
    %4042 = vrot.lane.b32.xlu0 %v4000, 127
    %v4043 = vpop.permute.xlu0 %4042
    %4044 = vrot.lane.b32.xlu0 %v4001, 127
    %v4045 = vpop.permute.xlu0 %4044
    %4046 = vrot.lane.b32.xlu0 %v4002, 127
    %v4047 = vpop.permute.xlu0 %4046
    %4048 = vrot.lane.b32.xlu0 %v4003, 127
    %v4049 = vpop.permute.xlu0 %4048
    %4050 = vrot.lane.b32.xlu0 %v4004, 127
    %v4051 = vpop.permute.xlu0 %4050
    %4052 = vrot.lane.b32.xlu0 %v4005, 127
    %v4053 = vpop.permute.xlu0 %4052
    %v4070 = vadd.f32 %v3974, %v4023
    %v4071 = vadd.f32 %v3975, %v4025
    %v4072 = vadd.f32 %v3976, %v4027
    %v4073 = vadd.f32 %v3977, %v4029
    %v4074 = vadd.f32 %v3978, %v4031
    %v4075 = vadd.f32 %v3979, %v4033
    %v4076 = vadd.f32 %v3980, %v4035
    %v4077 = vadd.f32 %v3981, %v4037
    %v4078 = vadd.f32 %v3982, %v4039
    %v4079 = vadd.f32 %v3983, %v4041
    %v4080 = vadd.f32 %v3984, %v4043
    %v4081 = vadd.f32 %v3985, %v4045
    %v4082 = vadd.f32 %v3986, %v4047
    %v4083 = vadd.f32 %v3987, %v4049
    %v4084 = vadd.f32 %v3988, %v4051
    %v4085 = vadd.f32 %v3989, %v4053
    %v4086 = vmul.f32 %v788, %v1678
    %v4087 = vmul.f32 %v788, %v1682
    %v4088 = vmul.f32 %v789, %v1678
    %v4089 = vmul.f32 %v789, %v1682
    %v4090 = vmul.f32 %v790, %v1678
    %v4091 = vmul.f32 %v790, %v1682
    %v4092 = vmul.f32 %v791, %v1678
    %v4093 = vmul.f32 %v791, %v1682
    %v4094 = vmul.f32 %v792, %v1678
    %v4095 = vmul.f32 %v792, %v1682
    %v4096 = vmul.f32 %v793, %v1678
    %v4097 = vmul.f32 %v793, %v1682
    %v4098 = vmul.f32 %v794, %v1678
    %v4099 = vmul.f32 %v794, %v1682
    %v4100 = vmul.f32 %v795, %v1678
    %v4101 = vmul.f32 %v795, %v1682
    %4118 = vrot.lane.b32.xlu0 %v4086, 127
    %v4119 = vpop.permute.xlu0 %4118
    %4120 = vrot.lane.b32.xlu0 %v4087, 127
    %v4121 = vpop.permute.xlu0 %4120
    %4122 = vrot.lane.b32.xlu0 %v4088, 127
    %v4123 = vpop.permute.xlu0 %4122
    %4124 = vrot.lane.b32.xlu0 %v4089, 127
    %v4125 = vpop.permute.xlu0 %4124
    %4126 = vrot.lane.b32.xlu0 %v4090, 127
    %v4127 = vpop.permute.xlu0 %4126
    %4128 = vrot.lane.b32.xlu0 %v4091, 127
    %v4129 = vpop.permute.xlu0 %4128
    %4130 = vrot.lane.b32.xlu0 %v4092, 127
    %v4131 = vpop.permute.xlu0 %4130
    %4132 = vrot.lane.b32.xlu0 %v4093, 127
    %v4133 = vpop.permute.xlu0 %4132
    %4134 = vrot.lane.b32.xlu0 %v4094, 127
    %v4135 = vpop.permute.xlu0 %4134
    %4136 = vrot.lane.b32.xlu0 %v4095, 127
    %v4137 = vpop.permute.xlu0 %4136
    %4138 = vrot.lane.b32.xlu0 %v4096, 127
    %v4139 = vpop.permute.xlu0 %4138
    %4140 = vrot.lane.b32.xlu0 %v4097, 127
    %v4141 = vpop.permute.xlu0 %4140
    %4142 = vrot.lane.b32.xlu0 %v4098, 127
    %v4143 = vpop.permute.xlu0 %4142
    %4144 = vrot.lane.b32.xlu0 %v4099, 127
    %v4145 = vpop.permute.xlu0 %4144
    %4146 = vrot.lane.b32.xlu0 %v4100, 127
    %v4147 = vpop.permute.xlu0 %4146
    %4148 = vrot.lane.b32.xlu0 %v4101, 127
    %v4149 = vpop.permute.xlu0 %4148
    %v4166 = vadd.f32 %v4070, %v4119
    %v4167 = vadd.f32 %v4071, %v4121
    %v4168 = vadd.f32 %v4072, %v4123
    %v4169 = vadd.f32 %v4073, %v4125
    %v4170 = vadd.f32 %v4074, %v4127
    %v4171 = vadd.f32 %v4075, %v4129
    %v4172 = vadd.f32 %v4076, %v4131
    %v4173 = vadd.f32 %v4077, %v4133
    %v4174 = vadd.f32 %v4078, %v4135
    %v4175 = vadd.f32 %v4079, %v4137
    %v4176 = vadd.f32 %v4080, %v4139
    %v4177 = vadd.f32 %v4081, %v4141
    %v4178 = vadd.f32 %v4082, %v4143
    %v4179 = vadd.f32 %v4083, %v4145
    %v4180 = vadd.f32 %v4084, %v4147
    %v4181 = vadd.f32 %v4085, %v4149
    %v4182 = vmul.f32 %v82, %v1782
    %v4183 = vmul.f32 %v82, %v1786
    %v4184 = vmul.f32 %v83, %v1782
    %v4185 = vmul.f32 %v83, %v1786
    %v4186 = vmul.f32 %v84, %v1782
    %v4187 = vmul.f32 %v84, %v1786
    %v4188 = vmul.f32 %v85, %v1782
    %v4189 = vmul.f32 %v85, %v1786
    %v4190 = vmul.f32 %v86, %v1782
    %v4191 = vmul.f32 %v86, %v1786
    %v4192 = vmul.f32 %v87, %v1782
    %v4193 = vmul.f32 %v87, %v1786
    %v4194 = vmul.f32 %v88, %v1782
    %v4195 = vmul.f32 %v88, %v1786
    %v4196 = vmul.f32 %v89, %v1782
    %v4197 = vmul.f32 %v89, %v1786
    %4214 = vrot.lane.b32.xlu0 %v4182, 126
    %v4215 = vpop.permute.xlu0 %4214
    %4216 = vrot.lane.b32.xlu0 %v4183, 126
    %v4217 = vpop.permute.xlu0 %4216
    %4218 = vrot.lane.b32.xlu0 %v4184, 126
    %v4219 = vpop.permute.xlu0 %4218
    %4220 = vrot.lane.b32.xlu0 %v4185, 126
    %v4221 = vpop.permute.xlu0 %4220
    %4222 = vrot.lane.b32.xlu0 %v4186, 126
    %v4223 = vpop.permute.xlu0 %4222
    %4224 = vrot.lane.b32.xlu0 %v4187, 126
    %v4225 = vpop.permute.xlu0 %4224
    %4226 = vrot.lane.b32.xlu0 %v4188, 126
    %v4227 = vpop.permute.xlu0 %4226
    %4228 = vrot.lane.b32.xlu0 %v4189, 126
    %v4229 = vpop.permute.xlu0 %4228
    %4230 = vrot.lane.b32.xlu0 %v4190, 126
    %v4231 = vpop.permute.xlu0 %4230
    %4232 = vrot.lane.b32.xlu0 %v4191, 126
    %v4233 = vpop.permute.xlu0 %4232
    %4234 = vrot.lane.b32.xlu0 %v4192, 126
    %v4235 = vpop.permute.xlu0 %4234
    %4236 = vrot.lane.b32.xlu0 %v4193, 126
    %v4237 = vpop.permute.xlu0 %4236
    %4238 = vrot.lane.b32.xlu0 %v4194, 126
    %v4239 = vpop.permute.xlu0 %4238
    %4240 = vrot.lane.b32.xlu0 %v4195, 126
    %v4241 = vpop.permute.xlu0 %4240
    %4242 = vrot.lane.b32.xlu0 %v4196, 126
    %v4243 = vpop.permute.xlu0 %4242
    %4244 = vrot.lane.b32.xlu0 %v4197, 126
    %v4245 = vpop.permute.xlu0 %4244
    %v4262 = vadd.f32 %v4166, %v4215
    %v4263 = vadd.f32 %v4167, %v4217
    %v4264 = vadd.f32 %v4168, %v4219
    %v4265 = vadd.f32 %v4169, %v4221
    %v4266 = vadd.f32 %v4170, %v4223
    %v4267 = vadd.f32 %v4171, %v4225
    %v4268 = vadd.f32 %v4172, %v4227
    %v4269 = vadd.f32 %v4173, %v4229
    %v4270 = vadd.f32 %v4174, %v4231
    %v4271 = vadd.f32 %v4175, %v4233
    %v4272 = vadd.f32 %v4176, %v4235
    %v4273 = vadd.f32 %v4177, %v4237
    %v4274 = vadd.f32 %v4178, %v4239
    %v4275 = vadd.f32 %v4179, %v4241
    %v4276 = vadd.f32 %v4180, %v4243
    %v4277 = vadd.f32 %v4181, %v4245
    %v4278 = vmul.f32 %v148, %v1886
    %v4279 = vmul.f32 %v148, %v1890
    %v4280 = vmul.f32 %v149, %v1886
    %v4281 = vmul.f32 %v149, %v1890
    %v4282 = vmul.f32 %v150, %v1886
    %v4283 = vmul.f32 %v150, %v1890
    %v4284 = vmul.f32 %v151, %v1886
    %v4285 = vmul.f32 %v151, %v1890
    %v4286 = vmul.f32 %v152, %v1886
    %v4287 = vmul.f32 %v152, %v1890
    %v4288 = vmul.f32 %v153, %v1886
    %v4289 = vmul.f32 %v153, %v1890
    %v4290 = vmul.f32 %v154, %v1886
    %v4291 = vmul.f32 %v154, %v1890
    %v4292 = vmul.f32 %v155, %v1886
    %v4293 = vmul.f32 %v155, %v1890
    %4310 = vrot.lane.b32.xlu0 %v4278, 126
    %v4311 = vpop.permute.xlu0 %4310
    %4312 = vrot.lane.b32.xlu0 %v4279, 126
    %v4313 = vpop.permute.xlu0 %4312
    %4314 = vrot.lane.b32.xlu0 %v4280, 126
    %v4315 = vpop.permute.xlu0 %4314
    %4316 = vrot.lane.b32.xlu0 %v4281, 126
    %v4317 = vpop.permute.xlu0 %4316
    %4318 = vrot.lane.b32.xlu0 %v4282, 126
    %v4319 = vpop.permute.xlu0 %4318
    %4320 = vrot.lane.b32.xlu0 %v4283, 126
    %v4321 = vpop.permute.xlu0 %4320
    %4322 = vrot.lane.b32.xlu0 %v4284, 126
    %v4323 = vpop.permute.xlu0 %4322
    %4324 = vrot.lane.b32.xlu0 %v4285, 126
    %v4325 = vpop.permute.xlu0 %4324
    %4326 = vrot.lane.b32.xlu0 %v4286, 126
    %v4327 = vpop.permute.xlu0 %4326
    %4328 = vrot.lane.b32.xlu0 %v4287, 126
    %v4329 = vpop.permute.xlu0 %4328
    %4330 = vrot.lane.b32.xlu0 %v4288, 126
    %v4331 = vpop.permute.xlu0 %4330
    %4332 = vrot.lane.b32.xlu0 %v4289, 126
    %v4333 = vpop.permute.xlu0 %4332
    %4334 = vrot.lane.b32.xlu0 %v4290, 126
    %v4335 = vpop.permute.xlu0 %4334
    %4336 = vrot.lane.b32.xlu0 %v4291, 126
    %v4337 = vpop.permute.xlu0 %4336
    %4338 = vrot.lane.b32.xlu0 %v4292, 126
    %v4339 = vpop.permute.xlu0 %4338
    %4340 = vrot.lane.b32.xlu0 %v4293, 126
    %v4341 = vpop.permute.xlu0 %4340
    %v4358 = vadd.f32 %v4262, %v4311
    %v4359 = vadd.f32 %v4263, %v4313
    %v4360 = vadd.f32 %v4264, %v4315
    %v4361 = vadd.f32 %v4265, %v4317
    %v4362 = vadd.f32 %v4266, %v4319
    %v4363 = vadd.f32 %v4267, %v4321
    %v4364 = vadd.f32 %v4268, %v4323
    %v4365 = vadd.f32 %v4269, %v4325
    %v4366 = vadd.f32 %v4270, %v4327
    %v4367 = vadd.f32 %v4271, %v4329
    %v4368 = vadd.f32 %v4272, %v4331
    %v4369 = vadd.f32 %v4273, %v4333
    %v4370 = vadd.f32 %v4274, %v4335
    %v4371 = vadd.f32 %v4275, %v4337
    %v4372 = vadd.f32 %v4276, %v4339
    %v4373 = vadd.f32 %v4277, %v4341
    %v4374 = vmul.f32 %v212, %v1990
    %v4375 = vmul.f32 %v212, %v1994
    %v4376 = vmul.f32 %v213, %v1990
    %v4377 = vmul.f32 %v213, %v1994
    %v4378 = vmul.f32 %v214, %v1990
    %v4379 = vmul.f32 %v214, %v1994
    %v4380 = vmul.f32 %v215, %v1990
    %v4381 = vmul.f32 %v215, %v1994
    %v4382 = vmul.f32 %v216, %v1990
    %v4383 = vmul.f32 %v216, %v1994
    %v4384 = vmul.f32 %v217, %v1990
    %v4385 = vmul.f32 %v217, %v1994
    %v4386 = vmul.f32 %v218, %v1990
    %v4387 = vmul.f32 %v218, %v1994
    %v4388 = vmul.f32 %v219, %v1990
    %v4389 = vmul.f32 %v219, %v1994
    %4406 = vrot.lane.b32.xlu0 %v4374, 126
    %v4407 = vpop.permute.xlu0 %4406
    %4408 = vrot.lane.b32.xlu0 %v4375, 126
    %v4409 = vpop.permute.xlu0 %4408
    %4410 = vrot.lane.b32.xlu0 %v4376, 126
    %v4411 = vpop.permute.xlu0 %4410
    %4412 = vrot.lane.b32.xlu0 %v4377, 126
    %v4413 = vpop.permute.xlu0 %4412
    %4414 = vrot.lane.b32.xlu0 %v4378, 126
    %v4415 = vpop.permute.xlu0 %4414
    %4416 = vrot.lane.b32.xlu0 %v4379, 126
    %v4417 = vpop.permute.xlu0 %4416
    %4418 = vrot.lane.b32.xlu0 %v4380, 126
    %v4419 = vpop.permute.xlu0 %4418
    %4420 = vrot.lane.b32.xlu0 %v4381, 126
    %v4421 = vpop.permute.xlu0 %4420
    %4422 = vrot.lane.b32.xlu0 %v4382, 126
    %v4423 = vpop.permute.xlu0 %4422
    %4424 = vrot.lane.b32.xlu0 %v4383, 126
    %v4425 = vpop.permute.xlu0 %4424
    %4426 = vrot.lane.b32.xlu0 %v4384, 126
    %v4427 = vpop.permute.xlu0 %4426
    %4428 = vrot.lane.b32.xlu0 %v4385, 126
    %v4429 = vpop.permute.xlu0 %4428
    %4430 = vrot.lane.b32.xlu0 %v4386, 126
    %v4431 = vpop.permute.xlu0 %4430
    %4432 = vrot.lane.b32.xlu0 %v4387, 126
    %v4433 = vpop.permute.xlu0 %4432
    %4434 = vrot.lane.b32.xlu0 %v4388, 126
    %v4435 = vpop.permute.xlu0 %4434
    %4436 = vrot.lane.b32.xlu0 %v4389, 126
    %v4437 = vpop.permute.xlu0 %4436
    %v4454 = vadd.f32 %v4358, %v4407
    %v4455 = vadd.f32 %v4359, %v4409
    %v4456 = vadd.f32 %v4360, %v4411
    %v4457 = vadd.f32 %v4361, %v4413
    %v4458 = vadd.f32 %v4362, %v4415
    %v4459 = vadd.f32 %v4363, %v4417
    %v4460 = vadd.f32 %v4364, %v4419
    %v4461 = vadd.f32 %v4365, %v4421
    %v4462 = vadd.f32 %v4366, %v4423
    %v4463 = vadd.f32 %v4367, %v4425
    %v4464 = vadd.f32 %v4368, %v4427
    %v4465 = vadd.f32 %v4369, %v4429
    %v4466 = vadd.f32 %v4370, %v4431
    %v4467 = vadd.f32 %v4371, %v4433
    %v4468 = vadd.f32 %v4372, %v4435
    %v4469 = vadd.f32 %v4373, %v4437
    %v4470 = vmul.f32 %v276, %v2094
    %v4471 = vmul.f32 %v276, %v2098
    %v4472 = vmul.f32 %v277, %v2094
    %v4473 = vmul.f32 %v277, %v2098
    %v4474 = vmul.f32 %v278, %v2094
    %v4475 = vmul.f32 %v278, %v2098
    %v4476 = vmul.f32 %v279, %v2094
    %v4477 = vmul.f32 %v279, %v2098
    %v4478 = vmul.f32 %v280, %v2094
    %v4479 = vmul.f32 %v280, %v2098
    %v4480 = vmul.f32 %v281, %v2094
    %v4481 = vmul.f32 %v281, %v2098
    %v4482 = vmul.f32 %v282, %v2094
    %v4483 = vmul.f32 %v282, %v2098
    %v4484 = vmul.f32 %v283, %v2094
    %v4485 = vmul.f32 %v283, %v2098
    %4502 = vrot.lane.b32.xlu0 %v4470, 126
    %v4503 = vpop.permute.xlu0 %4502
    %4504 = vrot.lane.b32.xlu0 %v4471, 126
    %v4505 = vpop.permute.xlu0 %4504
    %4506 = vrot.lane.b32.xlu0 %v4472, 126
    %v4507 = vpop.permute.xlu0 %4506
    %4508 = vrot.lane.b32.xlu0 %v4473, 126
    %v4509 = vpop.permute.xlu0 %4508
    %4510 = vrot.lane.b32.xlu0 %v4474, 126
    %v4511 = vpop.permute.xlu0 %4510
    %4512 = vrot.lane.b32.xlu0 %v4475, 126
    %v4513 = vpop.permute.xlu0 %4512
    %4514 = vrot.lane.b32.xlu0 %v4476, 126
    %v4515 = vpop.permute.xlu0 %4514
    %4516 = vrot.lane.b32.xlu0 %v4477, 126
    %v4517 = vpop.permute.xlu0 %4516
    %4518 = vrot.lane.b32.xlu0 %v4478, 126
    %v4519 = vpop.permute.xlu0 %4518
    %4520 = vrot.lane.b32.xlu0 %v4479, 126
    %v4521 = vpop.permute.xlu0 %4520
    %4522 = vrot.lane.b32.xlu0 %v4480, 126
    %v4523 = vpop.permute.xlu0 %4522
    %4524 = vrot.lane.b32.xlu0 %v4481, 126
    %v4525 = vpop.permute.xlu0 %4524
    %4526 = vrot.lane.b32.xlu0 %v4482, 126
    %v4527 = vpop.permute.xlu0 %4526
    %4528 = vrot.lane.b32.xlu0 %v4483, 126
    %v4529 = vpop.permute.xlu0 %4528
    %4530 = vrot.lane.b32.xlu0 %v4484, 126
    %v4531 = vpop.permute.xlu0 %4530
    %4532 = vrot.lane.b32.xlu0 %v4485, 126
    %v4533 = vpop.permute.xlu0 %4532
    %v4550 = vadd.f32 %v4454, %v4503
    %v4551 = vadd.f32 %v4455, %v4505
    %v4552 = vadd.f32 %v4456, %v4507
    %v4553 = vadd.f32 %v4457, %v4509
    %v4554 = vadd.f32 %v4458, %v4511
    %v4555 = vadd.f32 %v4459, %v4513
    %v4556 = vadd.f32 %v4460, %v4515
    %v4557 = vadd.f32 %v4461, %v4517
    %v4558 = vadd.f32 %v4462, %v4519
    %v4559 = vadd.f32 %v4463, %v4521
    %v4560 = vadd.f32 %v4464, %v4523
    %v4561 = vadd.f32 %v4465, %v4525
    %v4562 = vadd.f32 %v4466, %v4527
    %v4563 = vadd.f32 %v4467, %v4529
    %v4564 = vadd.f32 %v4468, %v4531
    %v4565 = vadd.f32 %v4469, %v4533
    %v4566 = vmul.f32 %v340, %v2198
    %v4567 = vmul.f32 %v340, %v2202
    %v4568 = vmul.f32 %v341, %v2198
    %v4569 = vmul.f32 %v341, %v2202
    %v4570 = vmul.f32 %v342, %v2198
    %v4571 = vmul.f32 %v342, %v2202
    %v4572 = vmul.f32 %v343, %v2198
    %v4573 = vmul.f32 %v343, %v2202
    %v4574 = vmul.f32 %v344, %v2198
    %v4575 = vmul.f32 %v344, %v2202
    %v4576 = vmul.f32 %v345, %v2198
    %v4577 = vmul.f32 %v345, %v2202
    %v4578 = vmul.f32 %v346, %v2198
    %v4579 = vmul.f32 %v346, %v2202
    %v4580 = vmul.f32 %v347, %v2198
    %v4581 = vmul.f32 %v347, %v2202
    %4598 = vrot.lane.b32.xlu0 %v4566, 126
    %v4599 = vpop.permute.xlu0 %4598
    %4600 = vrot.lane.b32.xlu0 %v4567, 126
    %v4601 = vpop.permute.xlu0 %4600
    %4602 = vrot.lane.b32.xlu0 %v4568, 126
    %v4603 = vpop.permute.xlu0 %4602
    %4604 = vrot.lane.b32.xlu0 %v4569, 126
    %v4605 = vpop.permute.xlu0 %4604
    %4606 = vrot.lane.b32.xlu0 %v4570, 126
    %v4607 = vpop.permute.xlu0 %4606
    %4608 = vrot.lane.b32.xlu0 %v4571, 126
    %v4609 = vpop.permute.xlu0 %4608
    %4610 = vrot.lane.b32.xlu0 %v4572, 126
    %v4611 = vpop.permute.xlu0 %4610
    %4612 = vrot.lane.b32.xlu0 %v4573, 126
    %v4613 = vpop.permute.xlu0 %4612
    %4614 = vrot.lane.b32.xlu0 %v4574, 126
    %v4615 = vpop.permute.xlu0 %4614
    %4616 = vrot.lane.b32.xlu0 %v4575, 126
    %v4617 = vpop.permute.xlu0 %4616
    %4618 = vrot.lane.b32.xlu0 %v4576, 126
    %v4619 = vpop.permute.xlu0 %4618
    %4620 = vrot.lane.b32.xlu0 %v4577, 126
    %v4621 = vpop.permute.xlu0 %4620
    %4622 = vrot.lane.b32.xlu0 %v4578, 126
    %v4623 = vpop.permute.xlu0 %4622
    %4624 = vrot.lane.b32.xlu0 %v4579, 126
    %v4625 = vpop.permute.xlu0 %4624
    %4626 = vrot.lane.b32.xlu0 %v4580, 126
    %v4627 = vpop.permute.xlu0 %4626
    %4628 = vrot.lane.b32.xlu0 %v4581, 126
    %v4629 = vpop.permute.xlu0 %4628
    %v4646 = vadd.f32 %v4550, %v4599
    %v4647 = vadd.f32 %v4551, %v4601
    %v4648 = vadd.f32 %v4552, %v4603
    %v4649 = vadd.f32 %v4553, %v4605
    %v4650 = vadd.f32 %v4554, %v4607
    %v4651 = vadd.f32 %v4555, %v4609
    %v4652 = vadd.f32 %v4556, %v4611
    %v4653 = vadd.f32 %v4557, %v4613
    %v4654 = vadd.f32 %v4558, %v4615
    %v4655 = vadd.f32 %v4559, %v4617
    %v4656 = vadd.f32 %v4560, %v4619
    %v4657 = vadd.f32 %v4561, %v4621
    %v4658 = vadd.f32 %v4562, %v4623
    %v4659 = vadd.f32 %v4563, %v4625
    %v4660 = vadd.f32 %v4564, %v4627
    %v4661 = vadd.f32 %v4565, %v4629
    %v4662 = vmul.f32 %v404, %v2302
    %v4663 = vmul.f32 %v404, %v2306
    %v4664 = vmul.f32 %v405, %v2302
    %v4665 = vmul.f32 %v405, %v2306
    %v4666 = vmul.f32 %v406, %v2302
    %v4667 = vmul.f32 %v406, %v2306
    %v4668 = vmul.f32 %v407, %v2302
    %v4669 = vmul.f32 %v407, %v2306
    %v4670 = vmul.f32 %v408, %v2302
    %v4671 = vmul.f32 %v408, %v2306
    %v4672 = vmul.f32 %v409, %v2302
    %v4673 = vmul.f32 %v409, %v2306
    %v4674 = vmul.f32 %v410, %v2302
    %v4675 = vmul.f32 %v410, %v2306
    %v4676 = vmul.f32 %v411, %v2302
    %v4677 = vmul.f32 %v411, %v2306
    %4694 = vrot.lane.b32.xlu0 %v4662, 126
    %v4695 = vpop.permute.xlu0 %4694
    %4696 = vrot.lane.b32.xlu0 %v4663, 126
    %v4697 = vpop.permute.xlu0 %4696
    %4698 = vrot.lane.b32.xlu0 %v4664, 126
    %v4699 = vpop.permute.xlu0 %4698
    %4700 = vrot.lane.b32.xlu0 %v4665, 126
    %v4701 = vpop.permute.xlu0 %4700
    %4702 = vrot.lane.b32.xlu0 %v4666, 126
    %v4703 = vpop.permute.xlu0 %4702
    %4704 = vrot.lane.b32.xlu0 %v4667, 126
    %v4705 = vpop.permute.xlu0 %4704
    %4706 = vrot.lane.b32.xlu0 %v4668, 126
    %v4707 = vpop.permute.xlu0 %4706
    %4708 = vrot.lane.b32.xlu0 %v4669, 126
    %v4709 = vpop.permute.xlu0 %4708
    %4710 = vrot.lane.b32.xlu0 %v4670, 126
    %v4711 = vpop.permute.xlu0 %4710
    %4712 = vrot.lane.b32.xlu0 %v4671, 126
    %v4713 = vpop.permute.xlu0 %4712
    %4714 = vrot.lane.b32.xlu0 %v4672, 126
    %v4715 = vpop.permute.xlu0 %4714
    %4716 = vrot.lane.b32.xlu0 %v4673, 126
    %v4717 = vpop.permute.xlu0 %4716
    %4718 = vrot.lane.b32.xlu0 %v4674, 126
    %v4719 = vpop.permute.xlu0 %4718
    %4720 = vrot.lane.b32.xlu0 %v4675, 126
    %v4721 = vpop.permute.xlu0 %4720
    %4722 = vrot.lane.b32.xlu0 %v4676, 126
    %v4723 = vpop.permute.xlu0 %4722
    %4724 = vrot.lane.b32.xlu0 %v4677, 126
    %v4725 = vpop.permute.xlu0 %4724
    %v4742 = vadd.f32 %v4646, %v4695
    %v4743 = vadd.f32 %v4647, %v4697
    %v4744 = vadd.f32 %v4648, %v4699
    %v4745 = vadd.f32 %v4649, %v4701
    %v4746 = vadd.f32 %v4650, %v4703
    %v4747 = vadd.f32 %v4651, %v4705
    %v4748 = vadd.f32 %v4652, %v4707
    %v4749 = vadd.f32 %v4653, %v4709
    %v4750 = vadd.f32 %v4654, %v4711
    %v4751 = vadd.f32 %v4655, %v4713
    %v4752 = vadd.f32 %v4656, %v4715
    %v4753 = vadd.f32 %v4657, %v4717
    %v4754 = vadd.f32 %v4658, %v4719
    %v4755 = vadd.f32 %v4659, %v4721
    %v4756 = vadd.f32 %v4660, %v4723
    %v4757 = vadd.f32 %v4661, %v4725
    %v4758 = vmul.f32 %v468, %v2406
    %v4759 = vmul.f32 %v468, %v2410
    %v4760 = vmul.f32 %v469, %v2406
    %v4761 = vmul.f32 %v469, %v2410
    %v4762 = vmul.f32 %v470, %v2406
    %v4763 = vmul.f32 %v470, %v2410
    %v4764 = vmul.f32 %v471, %v2406
    %v4765 = vmul.f32 %v471, %v2410
    %v4766 = vmul.f32 %v472, %v2406
    %v4767 = vmul.f32 %v472, %v2410
    %v4768 = vmul.f32 %v473, %v2406
    %v4769 = vmul.f32 %v473, %v2410
    %v4770 = vmul.f32 %v474, %v2406
    %v4771 = vmul.f32 %v474, %v2410
    %v4772 = vmul.f32 %v475, %v2406
    %v4773 = vmul.f32 %v475, %v2410
    %4790 = vrot.lane.b32.xlu0 %v4758, 126
    %v4791 = vpop.permute.xlu0 %4790
    %4792 = vrot.lane.b32.xlu0 %v4759, 126
    %v4793 = vpop.permute.xlu0 %4792
    %4794 = vrot.lane.b32.xlu0 %v4760, 126
    %v4795 = vpop.permute.xlu0 %4794
    %4796 = vrot.lane.b32.xlu0 %v4761, 126
    %v4797 = vpop.permute.xlu0 %4796
    %4798 = vrot.lane.b32.xlu0 %v4762, 126
    %v4799 = vpop.permute.xlu0 %4798
    %4800 = vrot.lane.b32.xlu0 %v4763, 126
    %v4801 = vpop.permute.xlu0 %4800
    %4802 = vrot.lane.b32.xlu0 %v4764, 126
    %v4803 = vpop.permute.xlu0 %4802
    %4804 = vrot.lane.b32.xlu0 %v4765, 126
    %v4805 = vpop.permute.xlu0 %4804
    %4806 = vrot.lane.b32.xlu0 %v4766, 126
    %v4807 = vpop.permute.xlu0 %4806
    %4808 = vrot.lane.b32.xlu0 %v4767, 126
    %v4809 = vpop.permute.xlu0 %4808
    %4810 = vrot.lane.b32.xlu0 %v4768, 126
    %v4811 = vpop.permute.xlu0 %4810
    %4812 = vrot.lane.b32.xlu0 %v4769, 126
    %v4813 = vpop.permute.xlu0 %4812
    %4814 = vrot.lane.b32.xlu0 %v4770, 126
    %v4815 = vpop.permute.xlu0 %4814
    %4816 = vrot.lane.b32.xlu0 %v4771, 126
    %v4817 = vpop.permute.xlu0 %4816
    %4818 = vrot.lane.b32.xlu0 %v4772, 126
    %v4819 = vpop.permute.xlu0 %4818
    %4820 = vrot.lane.b32.xlu0 %v4773, 126
    %v4821 = vpop.permute.xlu0 %4820
    %v4838 = vadd.f32 %v4742, %v4791
    %v4839 = vadd.f32 %v4743, %v4793
    %v4840 = vadd.f32 %v4744, %v4795
    %v4841 = vadd.f32 %v4745, %v4797
    %v4842 = vadd.f32 %v4746, %v4799
    %v4843 = vadd.f32 %v4747, %v4801
    %v4844 = vadd.f32 %v4748, %v4803
    %v4845 = vadd.f32 %v4749, %v4805
    %v4846 = vadd.f32 %v4750, %v4807
    %v4847 = vadd.f32 %v4751, %v4809
    %v4848 = vadd.f32 %v4752, %v4811
    %v4849 = vadd.f32 %v4753, %v4813
    %v4850 = vadd.f32 %v4754, %v4815
    %v4851 = vadd.f32 %v4755, %v4817
    %v4852 = vadd.f32 %v4756, %v4819
    %v4853 = vadd.f32 %v4757, %v4821
    %v4854 = vmul.f32 %v532, %v2510
    %v4855 = vmul.f32 %v532, %v2514
    %v4856 = vmul.f32 %v533, %v2510
    %v4857 = vmul.f32 %v533, %v2514
    %v4858 = vmul.f32 %v534, %v2510
    %v4859 = vmul.f32 %v534, %v2514
    %v4860 = vmul.f32 %v535, %v2510
    %v4861 = vmul.f32 %v535, %v2514
    %v4862 = vmul.f32 %v536, %v2510
    %v4863 = vmul.f32 %v536, %v2514
    %v4864 = vmul.f32 %v537, %v2510
    %v4865 = vmul.f32 %v537, %v2514
    %v4866 = vmul.f32 %v538, %v2510
    %v4867 = vmul.f32 %v538, %v2514
    %v4868 = vmul.f32 %v539, %v2510
    %v4869 = vmul.f32 %v539, %v2514
    %4886 = vrot.lane.b32.xlu0 %v4854, 126
    %v4887 = vpop.permute.xlu0 %4886
    %4888 = vrot.lane.b32.xlu0 %v4855, 126
    %v4889 = vpop.permute.xlu0 %4888
    %4890 = vrot.lane.b32.xlu0 %v4856, 126
    %v4891 = vpop.permute.xlu0 %4890
    %4892 = vrot.lane.b32.xlu0 %v4857, 126
    %v4893 = vpop.permute.xlu0 %4892
    %4894 = vrot.lane.b32.xlu0 %v4858, 126
    %v4895 = vpop.permute.xlu0 %4894
    %4896 = vrot.lane.b32.xlu0 %v4859, 126
    %v4897 = vpop.permute.xlu0 %4896
    %4898 = vrot.lane.b32.xlu0 %v4860, 126
    %v4899 = vpop.permute.xlu0 %4898
    %4900 = vrot.lane.b32.xlu0 %v4861, 126
    %v4901 = vpop.permute.xlu0 %4900
    %4902 = vrot.lane.b32.xlu0 %v4862, 126
    %v4903 = vpop.permute.xlu0 %4902
    %4904 = vrot.lane.b32.xlu0 %v4863, 126
    %v4905 = vpop.permute.xlu0 %4904
    %4906 = vrot.lane.b32.xlu0 %v4864, 126
    %v4907 = vpop.permute.xlu0 %4906
    %4908 = vrot.lane.b32.xlu0 %v4865, 126
    %v4909 = vpop.permute.xlu0 %4908
    %4910 = vrot.lane.b32.xlu0 %v4866, 126
    %v4911 = vpop.permute.xlu0 %4910
    %4912 = vrot.lane.b32.xlu0 %v4867, 126
    %v4913 = vpop.permute.xlu0 %4912
    %4914 = vrot.lane.b32.xlu0 %v4868, 126
    %v4915 = vpop.permute.xlu0 %4914
    %4916 = vrot.lane.b32.xlu0 %v4869, 126
    %v4917 = vpop.permute.xlu0 %4916
    %v4934 = vadd.f32 %v4838, %v4887
    %v4935 = vadd.f32 %v4839, %v4889
    %v4936 = vadd.f32 %v4840, %v4891
    %v4937 = vadd.f32 %v4841, %v4893
    %v4938 = vadd.f32 %v4842, %v4895
    %v4939 = vadd.f32 %v4843, %v4897
    %v4940 = vadd.f32 %v4844, %v4899
    %v4941 = vadd.f32 %v4845, %v4901
    %v4942 = vadd.f32 %v4846, %v4903
    %v4943 = vadd.f32 %v4847, %v4905
    %v4944 = vadd.f32 %v4848, %v4907
    %v4945 = vadd.f32 %v4849, %v4909
    %v4946 = vadd.f32 %v4850, %v4911
    %v4947 = vadd.f32 %v4851, %v4913
    %v4948 = vadd.f32 %v4852, %v4915
    %v4949 = vadd.f32 %v4853, %v4917
    %v4950 = vmul.f32 %v596, %v2614
    %v4951 = vmul.f32 %v596, %v2618
    %v4952 = vmul.f32 %v597, %v2614
    %v4953 = vmul.f32 %v597, %v2618
    %v4954 = vmul.f32 %v598, %v2614
    %v4955 = vmul.f32 %v598, %v2618
    %v4956 = vmul.f32 %v599, %v2614
    %v4957 = vmul.f32 %v599, %v2618
    %v4958 = vmul.f32 %v600, %v2614
    %v4959 = vmul.f32 %v600, %v2618
    %v4960 = vmul.f32 %v601, %v2614
    %v4961 = vmul.f32 %v601, %v2618
    %v4962 = vmul.f32 %v602, %v2614
    %v4963 = vmul.f32 %v602, %v2618
    %v4964 = vmul.f32 %v603, %v2614
    %v4965 = vmul.f32 %v603, %v2618
    %4982 = vrot.lane.b32.xlu0 %v4950, 126
    %v4983 = vpop.permute.xlu0 %4982
    %4984 = vrot.lane.b32.xlu0 %v4951, 126
    %v4985 = vpop.permute.xlu0 %4984
    %4986 = vrot.lane.b32.xlu0 %v4952, 126
    %v4987 = vpop.permute.xlu0 %4986
    %4988 = vrot.lane.b32.xlu0 %v4953, 126
    %v4989 = vpop.permute.xlu0 %4988
    %4990 = vrot.lane.b32.xlu0 %v4954, 126
    %v4991 = vpop.permute.xlu0 %4990
    %4992 = vrot.lane.b32.xlu0 %v4955, 126
    %v4993 = vpop.permute.xlu0 %4992
    %4994 = vrot.lane.b32.xlu0 %v4956, 126
    %v4995 = vpop.permute.xlu0 %4994
    %4996 = vrot.lane.b32.xlu0 %v4957, 126
    %v4997 = vpop.permute.xlu0 %4996
    %4998 = vrot.lane.b32.xlu0 %v4958, 126
    %v4999 = vpop.permute.xlu0 %4998
    %5000 = vrot.lane.b32.xlu0 %v4959, 126
    %v5001 = vpop.permute.xlu0 %5000
    %5002 = vrot.lane.b32.xlu0 %v4960, 126
    %v5003 = vpop.permute.xlu0 %5002
    %5004 = vrot.lane.b32.xlu0 %v4961, 126
    %v5005 = vpop.permute.xlu0 %5004
    %5006 = vrot.lane.b32.xlu0 %v4962, 126
    %v5007 = vpop.permute.xlu0 %5006
    %5008 = vrot.lane.b32.xlu0 %v4963, 126
    %v5009 = vpop.permute.xlu0 %5008
    %5010 = vrot.lane.b32.xlu0 %v4964, 126
    %v5011 = vpop.permute.xlu0 %5010
    %5012 = vrot.lane.b32.xlu0 %v4965, 126
    %v5013 = vpop.permute.xlu0 %5012
    %v5030 = vadd.f32 %v4934, %v4983
    %v5031 = vadd.f32 %v4935, %v4985
    %v5032 = vadd.f32 %v4936, %v4987
    %v5033 = vadd.f32 %v4937, %v4989
    %v5034 = vadd.f32 %v4938, %v4991
    %v5035 = vadd.f32 %v4939, %v4993
    %v5036 = vadd.f32 %v4940, %v4995
    %v5037 = vadd.f32 %v4941, %v4997
    %v5038 = vadd.f32 %v4942, %v4999
    %v5039 = vadd.f32 %v4943, %v5001
    %v5040 = vadd.f32 %v4944, %v5003
    %v5041 = vadd.f32 %v4945, %v5005
    %v5042 = vadd.f32 %v4946, %v5007
    %v5043 = vadd.f32 %v4947, %v5009
    %v5044 = vadd.f32 %v4948, %v5011
    %v5045 = vadd.f32 %v4949, %v5013
    %v5046 = vadd.f32 %v5030, %v2719
    %v5047 = vadd.f32 %v5031, %v2724
    %v5048 = vadd.f32 %v5032, %v2719
    %v5049 = vadd.f32 %v5033, %v2724
    %v5050 = vadd.f32 %v5034, %v2719
    %v5051 = vadd.f32 %v5035, %v2724
    %v5052 = vadd.f32 %v5036, %v2719
    %v5053 = vadd.f32 %v5037, %v2724
    %v5054 = vadd.f32 %v5038, %v2719
    %v5055 = vadd.f32 %v5039, %v2724
    %v5056 = vadd.f32 %v5040, %v2719
    %v5057 = vadd.f32 %v5041, %v2724
    %v5058 = vadd.f32 %v5042, %v2719
    %v5059 = vadd.f32 %v5043, %v2724
    %v5060 = vadd.f32 %v5044, %v2719
    %v5061 = vadd.f32 %v5045, %v2724
    %v5062 = vmul.f32 %v468, %v101
    %v5063 = vmul.f32 %v468, %v106
    %v5064 = vmul.f32 %v469, %v101
    %v5065 = vmul.f32 %v469, %v106
    %v5066 = vmul.f32 %v470, %v101
    %v5067 = vmul.f32 %v470, %v106
    %v5068 = vmul.f32 %v471, %v101
    %v5069 = vmul.f32 %v471, %v106
    %v5070 = vmul.f32 %v472, %v101
    %v5071 = vmul.f32 %v472, %v106
    %v5072 = vmul.f32 %v473, %v101
    %v5073 = vmul.f32 %v473, %v106
    %v5074 = vmul.f32 %v474, %v101
    %v5075 = vmul.f32 %v474, %v106
    %v5076 = vmul.f32 %v475, %v101
    %v5077 = vmul.f32 %v475, %v106
    %v5078 = vadd.f32 %v5062, 0.0
    %v5079 = vadd.f32 %v5063, 0.0
    %v5080 = vadd.f32 %v5064, 0.0
    %v5081 = vadd.f32 %v5065, 0.0
    %v5082 = vadd.f32 %v5066, 0.0
    %v5083 = vadd.f32 %v5067, 0.0
    %v5084 = vadd.f32 %v5068, 0.0
    %v5085 = vadd.f32 %v5069, 0.0
    %v5086 = vadd.f32 %v5070, 0.0
    %v5087 = vadd.f32 %v5071, 0.0
    %v5088 = vadd.f32 %v5072, 0.0
    %v5089 = vadd.f32 %v5073, 0.0
    %v5090 = vadd.f32 %v5074, 0.0
    %v5091 = vadd.f32 %v5075, 0.0
    %v5092 = vadd.f32 %v5076, 0.0
    %v5093 = vadd.f32 %v5077, 0.0
    %v5094 = vmul.f32 %v532, %v166
    %v5095 = vmul.f32 %v532, %v170
    %v5096 = vmul.f32 %v533, %v166
    %v5097 = vmul.f32 %v533, %v170
    %v5098 = vmul.f32 %v534, %v166
    %v5099 = vmul.f32 %v534, %v170
    %v5100 = vmul.f32 %v535, %v166
    %v5101 = vmul.f32 %v535, %v170
    %v5102 = vmul.f32 %v536, %v166
    %v5103 = vmul.f32 %v536, %v170
    %v5104 = vmul.f32 %v537, %v166
    %v5105 = vmul.f32 %v537, %v170
    %v5106 = vmul.f32 %v538, %v166
    %v5107 = vmul.f32 %v538, %v170
    %v5108 = vmul.f32 %v539, %v166
    %v5109 = vmul.f32 %v539, %v170
    %v5110 = vadd.f32 %v5078, %v5094
    %v5111 = vadd.f32 %v5079, %v5095
    %v5112 = vadd.f32 %v5080, %v5096
    %v5113 = vadd.f32 %v5081, %v5097
    %v5114 = vadd.f32 %v5082, %v5098
    %v5115 = vadd.f32 %v5083, %v5099
    %v5116 = vadd.f32 %v5084, %v5100
    %v5117 = vadd.f32 %v5085, %v5101
    %v5118 = vadd.f32 %v5086, %v5102
    %v5119 = vadd.f32 %v5087, %v5103
    %v5120 = vadd.f32 %v5088, %v5104
    %v5121 = vadd.f32 %v5089, %v5105
    %v5122 = vadd.f32 %v5090, %v5106
    %v5123 = vadd.f32 %v5091, %v5107
    %v5124 = vadd.f32 %v5092, %v5108
    %v5125 = vadd.f32 %v5093, %v5109
    %v5126 = vmul.f32 %v596, %v230
    %v5127 = vmul.f32 %v596, %v234
    %v5128 = vmul.f32 %v597, %v230
    %v5129 = vmul.f32 %v597, %v234
    %v5130 = vmul.f32 %v598, %v230
    %v5131 = vmul.f32 %v598, %v234
    %v5132 = vmul.f32 %v599, %v230
    %v5133 = vmul.f32 %v599, %v234
    %v5134 = vmul.f32 %v600, %v230
    %v5135 = vmul.f32 %v600, %v234
    %v5136 = vmul.f32 %v601, %v230
    %v5137 = vmul.f32 %v601, %v234
    %v5138 = vmul.f32 %v602, %v230
    %v5139 = vmul.f32 %v602, %v234
    %v5140 = vmul.f32 %v603, %v230
    %v5141 = vmul.f32 %v603, %v234
    %v5142 = vadd.f32 %v5110, %v5126
    %v5143 = vadd.f32 %v5111, %v5127
    %v5144 = vadd.f32 %v5112, %v5128
    %v5145 = vadd.f32 %v5113, %v5129
    %v5146 = vadd.f32 %v5114, %v5130
    %v5147 = vadd.f32 %v5115, %v5131
    %v5148 = vadd.f32 %v5116, %v5132
    %v5149 = vadd.f32 %v5117, %v5133
    %v5150 = vadd.f32 %v5118, %v5134
    %v5151 = vadd.f32 %v5119, %v5135
    %v5152 = vadd.f32 %v5120, %v5136
    %v5153 = vadd.f32 %v5121, %v5137
    %v5154 = vadd.f32 %v5122, %v5138
    %v5155 = vadd.f32 %v5123, %v5139
    %v5156 = vadd.f32 %v5124, %v5140
    %v5157 = vadd.f32 %v5125, %v5141
    %v5158 = vmul.f32 %v660, %v294
    %v5159 = vmul.f32 %v660, %v298
    %v5160 = vmul.f32 %v661, %v294
    %v5161 = vmul.f32 %v661, %v298
    %v5162 = vmul.f32 %v662, %v294
    %v5163 = vmul.f32 %v662, %v298
    %v5164 = vmul.f32 %v663, %v294
    %v5165 = vmul.f32 %v663, %v298
    %v5166 = vmul.f32 %v664, %v294
    %v5167 = vmul.f32 %v664, %v298
    %v5168 = vmul.f32 %v665, %v294
    %v5169 = vmul.f32 %v665, %v298
    %v5170 = vmul.f32 %v666, %v294
    %v5171 = vmul.f32 %v666, %v298
    %v5172 = vmul.f32 %v667, %v294
    %v5173 = vmul.f32 %v667, %v298
    %v5174 = vadd.f32 %v5142, %v5158
    %v5175 = vadd.f32 %v5143, %v5159
    %v5176 = vadd.f32 %v5144, %v5160
    %v5177 = vadd.f32 %v5145, %v5161
    %v5178 = vadd.f32 %v5146, %v5162
    %v5179 = vadd.f32 %v5147, %v5163
    %v5180 = vadd.f32 %v5148, %v5164
    %v5181 = vadd.f32 %v5149, %v5165
    %v5182 = vadd.f32 %v5150, %v5166
    %v5183 = vadd.f32 %v5151, %v5167
    %v5184 = vadd.f32 %v5152, %v5168
    %v5185 = vadd.f32 %v5153, %v5169
    %v5186 = vadd.f32 %v5154, %v5170
    %v5187 = vadd.f32 %v5155, %v5171
    %v5188 = vadd.f32 %v5156, %v5172
    %v5189 = vadd.f32 %v5157, %v5173
    %v5190 = vmul.f32 %v724, %v358
    %v5191 = vmul.f32 %v724, %v362
    %v5192 = vmul.f32 %v725, %v358
    %v5193 = vmul.f32 %v725, %v362
    %v5194 = vmul.f32 %v726, %v358
    %v5195 = vmul.f32 %v726, %v362
    %v5196 = vmul.f32 %v727, %v358
    %v5197 = vmul.f32 %v727, %v362
    %v5198 = vmul.f32 %v728, %v358
    %v5199 = vmul.f32 %v728, %v362
    %v5200 = vmul.f32 %v729, %v358
    %v5201 = vmul.f32 %v729, %v362
    %v5202 = vmul.f32 %v730, %v358
    %v5203 = vmul.f32 %v730, %v362
    %v5204 = vmul.f32 %v731, %v358
    %v5205 = vmul.f32 %v731, %v362
    %v5206 = vadd.f32 %v5174, %v5190
    %v5207 = vadd.f32 %v5175, %v5191
    %v5208 = vadd.f32 %v5176, %v5192
    %v5209 = vadd.f32 %v5177, %v5193
    %v5210 = vadd.f32 %v5178, %v5194
    %v5211 = vadd.f32 %v5179, %v5195
    %v5212 = vadd.f32 %v5180, %v5196
    %v5213 = vadd.f32 %v5181, %v5197
    %v5214 = vadd.f32 %v5182, %v5198
    %v5215 = vadd.f32 %v5183, %v5199
    %v5216 = vadd.f32 %v5184, %v5200
    %v5217 = vadd.f32 %v5185, %v5201
    %v5218 = vadd.f32 %v5186, %v5202
    %v5219 = vadd.f32 %v5187, %v5203
    %v5220 = vadd.f32 %v5188, %v5204
    %v5221 = vadd.f32 %v5189, %v5205
    %v5222 = vmul.f32 %v788, %v422
    %v5223 = vmul.f32 %v788, %v426
    %v5224 = vmul.f32 %v789, %v422
    %v5225 = vmul.f32 %v789, %v426
    %v5226 = vmul.f32 %v790, %v422
    %v5227 = vmul.f32 %v790, %v426
    %v5228 = vmul.f32 %v791, %v422
    %v5229 = vmul.f32 %v791, %v426
    %v5230 = vmul.f32 %v792, %v422
    %v5231 = vmul.f32 %v792, %v426
    %v5232 = vmul.f32 %v793, %v422
    %v5233 = vmul.f32 %v793, %v426
    %v5234 = vmul.f32 %v794, %v422
    %v5235 = vmul.f32 %v794, %v426
    %v5236 = vmul.f32 %v795, %v422
    %v5237 = vmul.f32 %v795, %v426
    %v5238 = vadd.f32 %v5206, %v5222
    %v5239 = vadd.f32 %v5207, %v5223
    %v5240 = vadd.f32 %v5208, %v5224
    %v5241 = vadd.f32 %v5209, %v5225
    %v5242 = vadd.f32 %v5210, %v5226
    %v5243 = vadd.f32 %v5211, %v5227
    %v5244 = vadd.f32 %v5212, %v5228
    %v5245 = vadd.f32 %v5213, %v5229
    %v5246 = vadd.f32 %v5214, %v5230
    %v5247 = vadd.f32 %v5215, %v5231
    %v5248 = vadd.f32 %v5216, %v5232
    %v5249 = vadd.f32 %v5217, %v5233
    %v5250 = vadd.f32 %v5218, %v5234
    %v5251 = vadd.f32 %v5219, %v5235
    %v5252 = vadd.f32 %v5220, %v5236
    %v5253 = vadd.f32 %v5221, %v5237
    %v5254 = vmul.f32 %v82, %v486
    %v5255 = vmul.f32 %v82, %v490
    %v5256 = vmul.f32 %v83, %v486
    %v5257 = vmul.f32 %v83, %v490
    %v5258 = vmul.f32 %v84, %v486
    %v5259 = vmul.f32 %v84, %v490
    %v5260 = vmul.f32 %v85, %v486
    %v5261 = vmul.f32 %v85, %v490
    %v5262 = vmul.f32 %v86, %v486
    %v5263 = vmul.f32 %v86, %v490
    %v5264 = vmul.f32 %v87, %v486
    %v5265 = vmul.f32 %v87, %v490
    %v5266 = vmul.f32 %v88, %v486
    %v5267 = vmul.f32 %v88, %v490
    %v5268 = vmul.f32 %v89, %v486
    %v5269 = vmul.f32 %v89, %v490
    %5286 = vrot.lane.b32.xlu0 %v5254, 127
    %v5287 = vpop.permute.xlu0 %5286
    %5288 = vrot.lane.b32.xlu0 %v5255, 127
    %v5289 = vpop.permute.xlu0 %5288
    %5290 = vrot.lane.b32.xlu0 %v5256, 127
    %v5291 = vpop.permute.xlu0 %5290
    %5292 = vrot.lane.b32.xlu0 %v5257, 127
    %v5293 = vpop.permute.xlu0 %5292
    %5294 = vrot.lane.b32.xlu0 %v5258, 127
    %v5295 = vpop.permute.xlu0 %5294
    %5296 = vrot.lane.b32.xlu0 %v5259, 127
    %v5297 = vpop.permute.xlu0 %5296
    %5298 = vrot.lane.b32.xlu0 %v5260, 127
    %v5299 = vpop.permute.xlu0 %5298
    %5300 = vrot.lane.b32.xlu0 %v5261, 127
    %v5301 = vpop.permute.xlu0 %5300
    %5302 = vrot.lane.b32.xlu0 %v5262, 127
    %v5303 = vpop.permute.xlu0 %5302
    %5304 = vrot.lane.b32.xlu0 %v5263, 127
    %v5305 = vpop.permute.xlu0 %5304
    %5306 = vrot.lane.b32.xlu0 %v5264, 127
    %v5307 = vpop.permute.xlu0 %5306
    %5308 = vrot.lane.b32.xlu0 %v5265, 127
    %v5309 = vpop.permute.xlu0 %5308
    %5310 = vrot.lane.b32.xlu0 %v5266, 127
    %v5311 = vpop.permute.xlu0 %5310
    %5312 = vrot.lane.b32.xlu0 %v5267, 127
    %v5313 = vpop.permute.xlu0 %5312
    %5314 = vrot.lane.b32.xlu0 %v5268, 127
    %v5315 = vpop.permute.xlu0 %5314
    %5316 = vrot.lane.b32.xlu0 %v5269, 127
    %v5317 = vpop.permute.xlu0 %5316
    %v5334 = vadd.f32 %v5238, %v5287
    %v5335 = vadd.f32 %v5239, %v5289
    %v5336 = vadd.f32 %v5240, %v5291
    %v5337 = vadd.f32 %v5241, %v5293
    %v5338 = vadd.f32 %v5242, %v5295
    %v5339 = vadd.f32 %v5243, %v5297
    %v5340 = vadd.f32 %v5244, %v5299
    %v5341 = vadd.f32 %v5245, %v5301
    %v5342 = vadd.f32 %v5246, %v5303
    %v5343 = vadd.f32 %v5247, %v5305
    %v5344 = vadd.f32 %v5248, %v5307
    %v5345 = vadd.f32 %v5249, %v5309
    %v5346 = vadd.f32 %v5250, %v5311
    %v5347 = vadd.f32 %v5251, %v5313
    %v5348 = vadd.f32 %v5252, %v5315
    %v5349 = vadd.f32 %v5253, %v5317
    %v5350 = vmul.f32 %v148, %v550
    %v5351 = vmul.f32 %v148, %v554
    %v5352 = vmul.f32 %v149, %v550
    %v5353 = vmul.f32 %v149, %v554
    %v5354 = vmul.f32 %v150, %v550
    %v5355 = vmul.f32 %v150, %v554
    %v5356 = vmul.f32 %v151, %v550
    %v5357 = vmul.f32 %v151, %v554
    %v5358 = vmul.f32 %v152, %v550
    %v5359 = vmul.f32 %v152, %v554
    %v5360 = vmul.f32 %v153, %v550
    %v5361 = vmul.f32 %v153, %v554
    %v5362 = vmul.f32 %v154, %v550
    %v5363 = vmul.f32 %v154, %v554
    %v5364 = vmul.f32 %v155, %v550
    %v5365 = vmul.f32 %v155, %v554
    %5382 = vrot.lane.b32.xlu0 %v5350, 127
    %v5383 = vpop.permute.xlu0 %5382
    %5384 = vrot.lane.b32.xlu0 %v5351, 127
    %v5385 = vpop.permute.xlu0 %5384
    %5386 = vrot.lane.b32.xlu0 %v5352, 127
    %v5387 = vpop.permute.xlu0 %5386
    %5388 = vrot.lane.b32.xlu0 %v5353, 127
    %v5389 = vpop.permute.xlu0 %5388
    %5390 = vrot.lane.b32.xlu0 %v5354, 127
    %v5391 = vpop.permute.xlu0 %5390
    %5392 = vrot.lane.b32.xlu0 %v5355, 127
    %v5393 = vpop.permute.xlu0 %5392
    %5394 = vrot.lane.b32.xlu0 %v5356, 127
    %v5395 = vpop.permute.xlu0 %5394
    %5396 = vrot.lane.b32.xlu0 %v5357, 127
    %v5397 = vpop.permute.xlu0 %5396
    %5398 = vrot.lane.b32.xlu0 %v5358, 127
    %v5399 = vpop.permute.xlu0 %5398
    %5400 = vrot.lane.b32.xlu0 %v5359, 127
    %v5401 = vpop.permute.xlu0 %5400
    %5402 = vrot.lane.b32.xlu0 %v5360, 127
    %v5403 = vpop.permute.xlu0 %5402
    %5404 = vrot.lane.b32.xlu0 %v5361, 127
    %v5405 = vpop.permute.xlu0 %5404
    %5406 = vrot.lane.b32.xlu0 %v5362, 127
    %v5407 = vpop.permute.xlu0 %5406
    %5408 = vrot.lane.b32.xlu0 %v5363, 127
    %v5409 = vpop.permute.xlu0 %5408
    %5410 = vrot.lane.b32.xlu0 %v5364, 127
    %v5411 = vpop.permute.xlu0 %5410
    %5412 = vrot.lane.b32.xlu0 %v5365, 127
    %v5413 = vpop.permute.xlu0 %5412
    %v5430 = vadd.f32 %v5334, %v5383
    %v5431 = vadd.f32 %v5335, %v5385
    %v5432 = vadd.f32 %v5336, %v5387
    %v5433 = vadd.f32 %v5337, %v5389
    %v5434 = vadd.f32 %v5338, %v5391
    %v5435 = vadd.f32 %v5339, %v5393
    %v5436 = vadd.f32 %v5340, %v5395
    %v5437 = vadd.f32 %v5341, %v5397
    %v5438 = vadd.f32 %v5342, %v5399
    %v5439 = vadd.f32 %v5343, %v5401
    %v5440 = vadd.f32 %v5344, %v5403
    %v5441 = vadd.f32 %v5345, %v5405
    %v5442 = vadd.f32 %v5346, %v5407
    %v5443 = vadd.f32 %v5347, %v5409
    %v5444 = vadd.f32 %v5348, %v5411
    %v5445 = vadd.f32 %v5349, %v5413
    %v5446 = vmul.f32 %v212, %v614
    %v5447 = vmul.f32 %v212, %v618
    %v5448 = vmul.f32 %v213, %v614
    %v5449 = vmul.f32 %v213, %v618
    %v5450 = vmul.f32 %v214, %v614
    %v5451 = vmul.f32 %v214, %v618
    %v5452 = vmul.f32 %v215, %v614
    %v5453 = vmul.f32 %v215, %v618
    %v5454 = vmul.f32 %v216, %v614
    %v5455 = vmul.f32 %v216, %v618
    %v5456 = vmul.f32 %v217, %v614
    %v5457 = vmul.f32 %v217, %v618
    %v5458 = vmul.f32 %v218, %v614
    %v5459 = vmul.f32 %v218, %v618
    %v5460 = vmul.f32 %v219, %v614
    %v5461 = vmul.f32 %v219, %v618
    %5478 = vrot.lane.b32.xlu0 %v5446, 127
    %v5479 = vpop.permute.xlu0 %5478
    %5480 = vrot.lane.b32.xlu0 %v5447, 127
    %v5481 = vpop.permute.xlu0 %5480
    %5482 = vrot.lane.b32.xlu0 %v5448, 127
    %v5483 = vpop.permute.xlu0 %5482
    %5484 = vrot.lane.b32.xlu0 %v5449, 127
    %v5485 = vpop.permute.xlu0 %5484
    %5486 = vrot.lane.b32.xlu0 %v5450, 127
    %v5487 = vpop.permute.xlu0 %5486
    %5488 = vrot.lane.b32.xlu0 %v5451, 127
    %v5489 = vpop.permute.xlu0 %5488
    %5490 = vrot.lane.b32.xlu0 %v5452, 127
    %v5491 = vpop.permute.xlu0 %5490
    %5492 = vrot.lane.b32.xlu0 %v5453, 127
    %v5493 = vpop.permute.xlu0 %5492
    %5494 = vrot.lane.b32.xlu0 %v5454, 127
    %v5495 = vpop.permute.xlu0 %5494
    %5496 = vrot.lane.b32.xlu0 %v5455, 127
    %v5497 = vpop.permute.xlu0 %5496
    %5498 = vrot.lane.b32.xlu0 %v5456, 127
    %v5499 = vpop.permute.xlu0 %5498
    %5500 = vrot.lane.b32.xlu0 %v5457, 127
    %v5501 = vpop.permute.xlu0 %5500
    %5502 = vrot.lane.b32.xlu0 %v5458, 127
    %v5503 = vpop.permute.xlu0 %5502
    %5504 = vrot.lane.b32.xlu0 %v5459, 127
    %v5505 = vpop.permute.xlu0 %5504
    %5506 = vrot.lane.b32.xlu0 %v5460, 127
    %v5507 = vpop.permute.xlu0 %5506
    %5508 = vrot.lane.b32.xlu0 %v5461, 127
    %v5509 = vpop.permute.xlu0 %5508
    %v5526 = vadd.f32 %v5430, %v5479
    %v5527 = vadd.f32 %v5431, %v5481
    %v5528 = vadd.f32 %v5432, %v5483
    %v5529 = vadd.f32 %v5433, %v5485
    %v5530 = vadd.f32 %v5434, %v5487
    %v5531 = vadd.f32 %v5435, %v5489
    %v5532 = vadd.f32 %v5436, %v5491
    %v5533 = vadd.f32 %v5437, %v5493
    %v5534 = vadd.f32 %v5438, %v5495
    %v5535 = vadd.f32 %v5439, %v5497
    %v5536 = vadd.f32 %v5440, %v5499
    %v5537 = vadd.f32 %v5441, %v5501
    %v5538 = vadd.f32 %v5442, %v5503
    %v5539 = vadd.f32 %v5443, %v5505
    %v5540 = vadd.f32 %v5444, %v5507
    %v5541 = vadd.f32 %v5445, %v5509
    %v5542 = vmul.f32 %v276, %v678
    %v5543 = vmul.f32 %v276, %v682
    %v5544 = vmul.f32 %v277, %v678
    %v5545 = vmul.f32 %v277, %v682
    %v5546 = vmul.f32 %v278, %v678
    %v5547 = vmul.f32 %v278, %v682
    %v5548 = vmul.f32 %v279, %v678
    %v5549 = vmul.f32 %v279, %v682
    %v5550 = vmul.f32 %v280, %v678
    %v5551 = vmul.f32 %v280, %v682
    %v5552 = vmul.f32 %v281, %v678
    %v5553 = vmul.f32 %v281, %v682
    %v5554 = vmul.f32 %v282, %v678
    %v5555 = vmul.f32 %v282, %v682
    %v5556 = vmul.f32 %v283, %v678
    %v5557 = vmul.f32 %v283, %v682
    %5574 = vrot.lane.b32.xlu0 %v5542, 127
    %v5575 = vpop.permute.xlu0 %5574
    %5576 = vrot.lane.b32.xlu0 %v5543, 127
    %v5577 = vpop.permute.xlu0 %5576
    %5578 = vrot.lane.b32.xlu0 %v5544, 127
    %v5579 = vpop.permute.xlu0 %5578
    %5580 = vrot.lane.b32.xlu0 %v5545, 127
    %v5581 = vpop.permute.xlu0 %5580
    %5582 = vrot.lane.b32.xlu0 %v5546, 127
    %v5583 = vpop.permute.xlu0 %5582
    %5584 = vrot.lane.b32.xlu0 %v5547, 127
    %v5585 = vpop.permute.xlu0 %5584
    %5586 = vrot.lane.b32.xlu0 %v5548, 127
    %v5587 = vpop.permute.xlu0 %5586
    %5588 = vrot.lane.b32.xlu0 %v5549, 127
    %v5589 = vpop.permute.xlu0 %5588
    %5590 = vrot.lane.b32.xlu0 %v5550, 127
    %v5591 = vpop.permute.xlu0 %5590
    %5592 = vrot.lane.b32.xlu0 %v5551, 127
    %v5593 = vpop.permute.xlu0 %5592
    %5594 = vrot.lane.b32.xlu0 %v5552, 127
    %v5595 = vpop.permute.xlu0 %5594
    %5596 = vrot.lane.b32.xlu0 %v5553, 127
    %v5597 = vpop.permute.xlu0 %5596
    %5598 = vrot.lane.b32.xlu0 %v5554, 127
    %v5599 = vpop.permute.xlu0 %5598
    %5600 = vrot.lane.b32.xlu0 %v5555, 127
    %v5601 = vpop.permute.xlu0 %5600
    %5602 = vrot.lane.b32.xlu0 %v5556, 127
    %v5603 = vpop.permute.xlu0 %5602
    %5604 = vrot.lane.b32.xlu0 %v5557, 127
    %v5605 = vpop.permute.xlu0 %5604
    %v5622 = vadd.f32 %v5526, %v5575
    %v5623 = vadd.f32 %v5527, %v5577
    %v5624 = vadd.f32 %v5528, %v5579
    %v5625 = vadd.f32 %v5529, %v5581
    %v5626 = vadd.f32 %v5530, %v5583
    %v5627 = vadd.f32 %v5531, %v5585
    %v5628 = vadd.f32 %v5532, %v5587
    %v5629 = vadd.f32 %v5533, %v5589
    %v5630 = vadd.f32 %v5534, %v5591
    %v5631 = vadd.f32 %v5535, %v5593
    %v5632 = vadd.f32 %v5536, %v5595
    %v5633 = vadd.f32 %v5537, %v5597
    %v5634 = vadd.f32 %v5538, %v5599
    %v5635 = vadd.f32 %v5539, %v5601
    %v5636 = vadd.f32 %v5540, %v5603
    %v5637 = vadd.f32 %v5541, %v5605
    %v5638 = vmul.f32 %v340, %v742
    %v5639 = vmul.f32 %v340, %v746
    %v5640 = vmul.f32 %v341, %v742
    %v5641 = vmul.f32 %v341, %v746
    %v5642 = vmul.f32 %v342, %v742
    %v5643 = vmul.f32 %v342, %v746
    %v5644 = vmul.f32 %v343, %v742
    %v5645 = vmul.f32 %v343, %v746
    %v5646 = vmul.f32 %v344, %v742
    %v5647 = vmul.f32 %v344, %v746
    %v5648 = vmul.f32 %v345, %v742
    %v5649 = vmul.f32 %v345, %v746
    %v5650 = vmul.f32 %v346, %v742
    %v5651 = vmul.f32 %v346, %v746
    %v5652 = vmul.f32 %v347, %v742
    %v5653 = vmul.f32 %v347, %v746
    %5670 = vrot.lane.b32.xlu0 %v5638, 127
    %v5671 = vpop.permute.xlu0 %5670
    %5672 = vrot.lane.b32.xlu0 %v5639, 127
    %v5673 = vpop.permute.xlu0 %5672
    %5674 = vrot.lane.b32.xlu0 %v5640, 127
    %v5675 = vpop.permute.xlu0 %5674
    %5676 = vrot.lane.b32.xlu0 %v5641, 127
    %v5677 = vpop.permute.xlu0 %5676
    %5678 = vrot.lane.b32.xlu0 %v5642, 127
    %v5679 = vpop.permute.xlu0 %5678
    %5680 = vrot.lane.b32.xlu0 %v5643, 127
    %v5681 = vpop.permute.xlu0 %5680
    %5682 = vrot.lane.b32.xlu0 %v5644, 127
    %v5683 = vpop.permute.xlu0 %5682
    %5684 = vrot.lane.b32.xlu0 %v5645, 127
    %v5685 = vpop.permute.xlu0 %5684
    %5686 = vrot.lane.b32.xlu0 %v5646, 127
    %v5687 = vpop.permute.xlu0 %5686
    %5688 = vrot.lane.b32.xlu0 %v5647, 127
    %v5689 = vpop.permute.xlu0 %5688
    %5690 = vrot.lane.b32.xlu0 %v5648, 127
    %v5691 = vpop.permute.xlu0 %5690
    %5692 = vrot.lane.b32.xlu0 %v5649, 127
    %v5693 = vpop.permute.xlu0 %5692
    %5694 = vrot.lane.b32.xlu0 %v5650, 127
    %v5695 = vpop.permute.xlu0 %5694
    %5696 = vrot.lane.b32.xlu0 %v5651, 127
    %v5697 = vpop.permute.xlu0 %5696
    %5698 = vrot.lane.b32.xlu0 %v5652, 127
    %v5699 = vpop.permute.xlu0 %5698
    %5700 = vrot.lane.b32.xlu0 %v5653, 127
    %v5701 = vpop.permute.xlu0 %5700
    %v5718 = vadd.f32 %v5622, %v5671
    %v5719 = vadd.f32 %v5623, %v5673
    %v5720 = vadd.f32 %v5624, %v5675
    %v5721 = vadd.f32 %v5625, %v5677
    %v5722 = vadd.f32 %v5626, %v5679
    %v5723 = vadd.f32 %v5627, %v5681
    %v5724 = vadd.f32 %v5628, %v5683
    %v5725 = vadd.f32 %v5629, %v5685
    %v5726 = vadd.f32 %v5630, %v5687
    %v5727 = vadd.f32 %v5631, %v5689
    %v5728 = vadd.f32 %v5632, %v5691
    %v5729 = vadd.f32 %v5633, %v5693
    %v5730 = vadd.f32 %v5634, %v5695
    %v5731 = vadd.f32 %v5635, %v5697
    %v5732 = vadd.f32 %v5636, %v5699
    %v5733 = vadd.f32 %v5637, %v5701
    %v5734 = vmul.f32 %v404, %v806
    %v5735 = vmul.f32 %v404, %v810
    %v5736 = vmul.f32 %v405, %v806
    %v5737 = vmul.f32 %v405, %v810
    %v5738 = vmul.f32 %v406, %v806
    %v5739 = vmul.f32 %v406, %v810
    %v5740 = vmul.f32 %v407, %v806
    %v5741 = vmul.f32 %v407, %v810
    %v5742 = vmul.f32 %v408, %v806
    %v5743 = vmul.f32 %v408, %v810
    %v5744 = vmul.f32 %v409, %v806
    %v5745 = vmul.f32 %v409, %v810
    %v5746 = vmul.f32 %v410, %v806
    %v5747 = vmul.f32 %v410, %v810
    %v5748 = vmul.f32 %v411, %v806
    %v5749 = vmul.f32 %v411, %v810
    %5766 = vrot.lane.b32.xlu0 %v5734, 127
    %v5767 = vpop.permute.xlu0 %5766
    %5768 = vrot.lane.b32.xlu0 %v5735, 127
    %v5769 = vpop.permute.xlu0 %5768
    %5770 = vrot.lane.b32.xlu0 %v5736, 127
    %v5771 = vpop.permute.xlu0 %5770
    %5772 = vrot.lane.b32.xlu0 %v5737, 127
    %v5773 = vpop.permute.xlu0 %5772
    %5774 = vrot.lane.b32.xlu0 %v5738, 127
    %v5775 = vpop.permute.xlu0 %5774
    %5776 = vrot.lane.b32.xlu0 %v5739, 127
    %v5777 = vpop.permute.xlu0 %5776
    %5778 = vrot.lane.b32.xlu0 %v5740, 127
    %v5779 = vpop.permute.xlu0 %5778
    %5780 = vrot.lane.b32.xlu0 %v5741, 127
    %v5781 = vpop.permute.xlu0 %5780
    %5782 = vrot.lane.b32.xlu0 %v5742, 127
    %v5783 = vpop.permute.xlu0 %5782
    %5784 = vrot.lane.b32.xlu0 %v5743, 127
    %v5785 = vpop.permute.xlu0 %5784
    %5786 = vrot.lane.b32.xlu0 %v5744, 127
    %v5787 = vpop.permute.xlu0 %5786
    %5788 = vrot.lane.b32.xlu0 %v5745, 127
    %v5789 = vpop.permute.xlu0 %5788
    %5790 = vrot.lane.b32.xlu0 %v5746, 127
    %v5791 = vpop.permute.xlu0 %5790
    %5792 = vrot.lane.b32.xlu0 %v5747, 127
    %v5793 = vpop.permute.xlu0 %5792
    %5794 = vrot.lane.b32.xlu0 %v5748, 127
    %v5795 = vpop.permute.xlu0 %5794
    %5796 = vrot.lane.b32.xlu0 %v5749, 127
    %v5797 = vpop.permute.xlu0 %5796
    %v5814 = vadd.f32 %v5718, %v5767
    %v5815 = vadd.f32 %v5719, %v5769
    %v5816 = vadd.f32 %v5720, %v5771
    %v5817 = vadd.f32 %v5721, %v5773
    %v5818 = vadd.f32 %v5722, %v5775
    %v5819 = vadd.f32 %v5723, %v5777
    %v5820 = vadd.f32 %v5724, %v5779
    %v5821 = vadd.f32 %v5725, %v5781
    %v5822 = vadd.f32 %v5726, %v5783
    %v5823 = vadd.f32 %v5727, %v5785
    %v5824 = vadd.f32 %v5728, %v5787
    %v5825 = vadd.f32 %v5729, %v5789
    %v5826 = vadd.f32 %v5730, %v5791
    %v5827 = vadd.f32 %v5731, %v5793
    %v5828 = vadd.f32 %v5732, %v5795
    %v5829 = vadd.f32 %v5733, %v5797
    %v5830 = vmul.f32 %v468, %v846
    %v5831 = vmul.f32 %v468, %v850
    %v5832 = vmul.f32 %v469, %v846
    %v5833 = vmul.f32 %v469, %v850
    %v5834 = vmul.f32 %v470, %v846
    %v5835 = vmul.f32 %v470, %v850
    %v5836 = vmul.f32 %v471, %v846
    %v5837 = vmul.f32 %v471, %v850
    %v5838 = vmul.f32 %v472, %v846
    %v5839 = vmul.f32 %v472, %v850
    %v5840 = vmul.f32 %v473, %v846
    %v5841 = vmul.f32 %v473, %v850
    %v5842 = vmul.f32 %v474, %v846
    %v5843 = vmul.f32 %v474, %v850
    %v5844 = vmul.f32 %v475, %v846
    %v5845 = vmul.f32 %v475, %v850
    %5862 = vrot.lane.b32.xlu0 %v5830, 127
    %v5863 = vpop.permute.xlu0 %5862
    %5864 = vrot.lane.b32.xlu0 %v5831, 127
    %v5865 = vpop.permute.xlu0 %5864
    %5866 = vrot.lane.b32.xlu0 %v5832, 127
    %v5867 = vpop.permute.xlu0 %5866
    %5868 = vrot.lane.b32.xlu0 %v5833, 127
    %v5869 = vpop.permute.xlu0 %5868
    %5870 = vrot.lane.b32.xlu0 %v5834, 127
    %v5871 = vpop.permute.xlu0 %5870
    %5872 = vrot.lane.b32.xlu0 %v5835, 127
    %v5873 = vpop.permute.xlu0 %5872
    %5874 = vrot.lane.b32.xlu0 %v5836, 127
    %v5875 = vpop.permute.xlu0 %5874
    %5876 = vrot.lane.b32.xlu0 %v5837, 127
    %v5877 = vpop.permute.xlu0 %5876
    %5878 = vrot.lane.b32.xlu0 %v5838, 127
    %v5879 = vpop.permute.xlu0 %5878
    %5880 = vrot.lane.b32.xlu0 %v5839, 127
    %v5881 = vpop.permute.xlu0 %5880
    %5882 = vrot.lane.b32.xlu0 %v5840, 127
    %v5883 = vpop.permute.xlu0 %5882
    %5884 = vrot.lane.b32.xlu0 %v5841, 127
    %v5885 = vpop.permute.xlu0 %5884
    %5886 = vrot.lane.b32.xlu0 %v5842, 127
    %v5887 = vpop.permute.xlu0 %5886
    %5888 = vrot.lane.b32.xlu0 %v5843, 127
    %v5889 = vpop.permute.xlu0 %5888
    %5890 = vrot.lane.b32.xlu0 %v5844, 127
    %v5891 = vpop.permute.xlu0 %5890
    %5892 = vrot.lane.b32.xlu0 %v5845, 127
    %v5893 = vpop.permute.xlu0 %5892
    %v5910 = vadd.f32 %v5814, %v5863
    %v5911 = vadd.f32 %v5815, %v5865
    %v5912 = vadd.f32 %v5816, %v5867
    %v5913 = vadd.f32 %v5817, %v5869
    %v5914 = vadd.f32 %v5818, %v5871
    %v5915 = vadd.f32 %v5819, %v5873
    %v5916 = vadd.f32 %v5820, %v5875
    %v5917 = vadd.f32 %v5821, %v5877
    %v5918 = vadd.f32 %v5822, %v5879
    %v5919 = vadd.f32 %v5823, %v5881
    %v5920 = vadd.f32 %v5824, %v5883
    %v5921 = vadd.f32 %v5825, %v5885
    %v5922 = vadd.f32 %v5826, %v5887
    %v5923 = vadd.f32 %v5827, %v5889
    %v5924 = vadd.f32 %v5828, %v5891
    %v5925 = vadd.f32 %v5829, %v5893
    %v5926 = vmul.f32 %v532, %v950
    %v5927 = vmul.f32 %v532, %v954
    %v5928 = vmul.f32 %v533, %v950
    %v5929 = vmul.f32 %v533, %v954
    %v5930 = vmul.f32 %v534, %v950
    %v5931 = vmul.f32 %v534, %v954
    %v5932 = vmul.f32 %v535, %v950
    %v5933 = vmul.f32 %v535, %v954
    %v5934 = vmul.f32 %v536, %v950
    %v5935 = vmul.f32 %v536, %v954
    %v5936 = vmul.f32 %v537, %v950
    %v5937 = vmul.f32 %v537, %v954
    %v5938 = vmul.f32 %v538, %v950
    %v5939 = vmul.f32 %v538, %v954
    %v5940 = vmul.f32 %v539, %v950
    %v5941 = vmul.f32 %v539, %v954
    %5958 = vrot.lane.b32.xlu0 %v5926, 127
    %v5959 = vpop.permute.xlu0 %5958
    %5960 = vrot.lane.b32.xlu0 %v5927, 127
    %v5961 = vpop.permute.xlu0 %5960
    %5962 = vrot.lane.b32.xlu0 %v5928, 127
    %v5963 = vpop.permute.xlu0 %5962
    %5964 = vrot.lane.b32.xlu0 %v5929, 127
    %v5965 = vpop.permute.xlu0 %5964
    %5966 = vrot.lane.b32.xlu0 %v5930, 127
    %v5967 = vpop.permute.xlu0 %5966
    %5968 = vrot.lane.b32.xlu0 %v5931, 127
    %v5969 = vpop.permute.xlu0 %5968
    %5970 = vrot.lane.b32.xlu0 %v5932, 127
    %v5971 = vpop.permute.xlu0 %5970
    %5972 = vrot.lane.b32.xlu0 %v5933, 127
    %v5973 = vpop.permute.xlu0 %5972
    %5974 = vrot.lane.b32.xlu0 %v5934, 127
    %v5975 = vpop.permute.xlu0 %5974
    %5976 = vrot.lane.b32.xlu0 %v5935, 127
    %v5977 = vpop.permute.xlu0 %5976
    %5978 = vrot.lane.b32.xlu0 %v5936, 127
    %v5979 = vpop.permute.xlu0 %5978
    %5980 = vrot.lane.b32.xlu0 %v5937, 127
    %v5981 = vpop.permute.xlu0 %5980
    %5982 = vrot.lane.b32.xlu0 %v5938, 127
    %v5983 = vpop.permute.xlu0 %5982
    %5984 = vrot.lane.b32.xlu0 %v5939, 127
    %v5985 = vpop.permute.xlu0 %5984
    %5986 = vrot.lane.b32.xlu0 %v5940, 127
    %v5987 = vpop.permute.xlu0 %5986
    %5988 = vrot.lane.b32.xlu0 %v5941, 127
    %v5989 = vpop.permute.xlu0 %5988
    %v6006 = vadd.f32 %v5910, %v5959
    %v6007 = vadd.f32 %v5911, %v5961
    %v6008 = vadd.f32 %v5912, %v5963
    %v6009 = vadd.f32 %v5913, %v5965
    %v6010 = vadd.f32 %v5914, %v5967
    %v6011 = vadd.f32 %v5915, %v5969
    %v6012 = vadd.f32 %v5916, %v5971
    %v6013 = vadd.f32 %v5917, %v5973
    %v6014 = vadd.f32 %v5918, %v5975
    %v6015 = vadd.f32 %v5919, %v5977
    %v6016 = vadd.f32 %v5920, %v5979
    %v6017 = vadd.f32 %v5921, %v5981
    %v6018 = vadd.f32 %v5922, %v5983
    %v6019 = vadd.f32 %v5923, %v5985
    %v6020 = vadd.f32 %v5924, %v5987
    %v6021 = vadd.f32 %v5925, %v5989
    %v6022 = vmul.f32 %v596, %v1054
    %v6023 = vmul.f32 %v596, %v1058
    %v6024 = vmul.f32 %v597, %v1054
    %v6025 = vmul.f32 %v597, %v1058
    %v6026 = vmul.f32 %v598, %v1054
    %v6027 = vmul.f32 %v598, %v1058
    %v6028 = vmul.f32 %v599, %v1054
    %v6029 = vmul.f32 %v599, %v1058
    %v6030 = vmul.f32 %v600, %v1054
    %v6031 = vmul.f32 %v600, %v1058
    %v6032 = vmul.f32 %v601, %v1054
    %v6033 = vmul.f32 %v601, %v1058
    %v6034 = vmul.f32 %v602, %v1054
    %v6035 = vmul.f32 %v602, %v1058
    %v6036 = vmul.f32 %v603, %v1054
    %v6037 = vmul.f32 %v603, %v1058
    %6054 = vrot.lane.b32.xlu0 %v6022, 127
    %v6055 = vpop.permute.xlu0 %6054
    %6056 = vrot.lane.b32.xlu0 %v6023, 127
    %v6057 = vpop.permute.xlu0 %6056
    %6058 = vrot.lane.b32.xlu0 %v6024, 127
    %v6059 = vpop.permute.xlu0 %6058
    %6060 = vrot.lane.b32.xlu0 %v6025, 127
    %v6061 = vpop.permute.xlu0 %6060
    %6062 = vrot.lane.b32.xlu0 %v6026, 127
    %v6063 = vpop.permute.xlu0 %6062
    %6064 = vrot.lane.b32.xlu0 %v6027, 127
    %v6065 = vpop.permute.xlu0 %6064
    %6066 = vrot.lane.b32.xlu0 %v6028, 127
    %v6067 = vpop.permute.xlu0 %6066
    %6068 = vrot.lane.b32.xlu0 %v6029, 127
    %v6069 = vpop.permute.xlu0 %6068
    %6070 = vrot.lane.b32.xlu0 %v6030, 127
    %v6071 = vpop.permute.xlu0 %6070
    %6072 = vrot.lane.b32.xlu0 %v6031, 127
    %v6073 = vpop.permute.xlu0 %6072
    %6074 = vrot.lane.b32.xlu0 %v6032, 127
    %v6075 = vpop.permute.xlu0 %6074
    %6076 = vrot.lane.b32.xlu0 %v6033, 127
    %v6077 = vpop.permute.xlu0 %6076
    %6078 = vrot.lane.b32.xlu0 %v6034, 127
    %v6079 = vpop.permute.xlu0 %6078
    %6080 = vrot.lane.b32.xlu0 %v6035, 127
    %v6081 = vpop.permute.xlu0 %6080
    %6082 = vrot.lane.b32.xlu0 %v6036, 127
    %v6083 = vpop.permute.xlu0 %6082
    %6084 = vrot.lane.b32.xlu0 %v6037, 127
    %v6085 = vpop.permute.xlu0 %6084
    %v6102 = vadd.f32 %v6006, %v6055
    %v6103 = vadd.f32 %v6007, %v6057
    %v6104 = vadd.f32 %v6008, %v6059
    %v6105 = vadd.f32 %v6009, %v6061
    %v6106 = vadd.f32 %v6010, %v6063
    %v6107 = vadd.f32 %v6011, %v6065
    %v6108 = vadd.f32 %v6012, %v6067
    %v6109 = vadd.f32 %v6013, %v6069
    %v6110 = vadd.f32 %v6014, %v6071
    %v6111 = vadd.f32 %v6015, %v6073
    %v6112 = vadd.f32 %v6016, %v6075
    %v6113 = vadd.f32 %v6017, %v6077
    %v6114 = vadd.f32 %v6018, %v6079
    %v6115 = vadd.f32 %v6019, %v6081
    %v6116 = vadd.f32 %v6020, %v6083
    %v6117 = vadd.f32 %v6021, %v6085
    %v6118 = vmul.f32 %v660, %v1158
    %v6119 = vmul.f32 %v660, %v1162
    %v6120 = vmul.f32 %v661, %v1158
    %v6121 = vmul.f32 %v661, %v1162
    %v6122 = vmul.f32 %v662, %v1158
    %v6123 = vmul.f32 %v662, %v1162
    %v6124 = vmul.f32 %v663, %v1158
    %v6125 = vmul.f32 %v663, %v1162
    %v6126 = vmul.f32 %v664, %v1158
    %v6127 = vmul.f32 %v664, %v1162
    %v6128 = vmul.f32 %v665, %v1158
    %v6129 = vmul.f32 %v665, %v1162
    %v6130 = vmul.f32 %v666, %v1158
    %v6131 = vmul.f32 %v666, %v1162
    %v6132 = vmul.f32 %v667, %v1158
    %v6133 = vmul.f32 %v667, %v1162
    %6150 = vrot.lane.b32.xlu0 %v6118, 127
    %v6151 = vpop.permute.xlu0 %6150
    %6152 = vrot.lane.b32.xlu0 %v6119, 127
    %v6153 = vpop.permute.xlu0 %6152
    %6154 = vrot.lane.b32.xlu0 %v6120, 127
    %v6155 = vpop.permute.xlu0 %6154
    %6156 = vrot.lane.b32.xlu0 %v6121, 127
    %v6157 = vpop.permute.xlu0 %6156
    %6158 = vrot.lane.b32.xlu0 %v6122, 127
    %v6159 = vpop.permute.xlu0 %6158
    %6160 = vrot.lane.b32.xlu0 %v6123, 127
    %v6161 = vpop.permute.xlu0 %6160
    %6162 = vrot.lane.b32.xlu0 %v6124, 127
    %v6163 = vpop.permute.xlu0 %6162
    %6164 = vrot.lane.b32.xlu0 %v6125, 127
    %v6165 = vpop.permute.xlu0 %6164
    %6166 = vrot.lane.b32.xlu0 %v6126, 127
    %v6167 = vpop.permute.xlu0 %6166
    %6168 = vrot.lane.b32.xlu0 %v6127, 127
    %v6169 = vpop.permute.xlu0 %6168
    %6170 = vrot.lane.b32.xlu0 %v6128, 127
    %v6171 = vpop.permute.xlu0 %6170
    %6172 = vrot.lane.b32.xlu0 %v6129, 127
    %v6173 = vpop.permute.xlu0 %6172
    %6174 = vrot.lane.b32.xlu0 %v6130, 127
    %v6175 = vpop.permute.xlu0 %6174
    %6176 = vrot.lane.b32.xlu0 %v6131, 127
    %v6177 = vpop.permute.xlu0 %6176
    %6178 = vrot.lane.b32.xlu0 %v6132, 127
    %v6179 = vpop.permute.xlu0 %6178
    %6180 = vrot.lane.b32.xlu0 %v6133, 127
    %v6181 = vpop.permute.xlu0 %6180
    %v6198 = vadd.f32 %v6102, %v6151
    %v6199 = vadd.f32 %v6103, %v6153
    %v6200 = vadd.f32 %v6104, %v6155
    %v6201 = vadd.f32 %v6105, %v6157
    %v6202 = vadd.f32 %v6106, %v6159
    %v6203 = vadd.f32 %v6107, %v6161
    %v6204 = vadd.f32 %v6108, %v6163
    %v6205 = vadd.f32 %v6109, %v6165
    %v6206 = vadd.f32 %v6110, %v6167
    %v6207 = vadd.f32 %v6111, %v6169
    %v6208 = vadd.f32 %v6112, %v6171
    %v6209 = vadd.f32 %v6113, %v6173
    %v6210 = vadd.f32 %v6114, %v6175
    %v6211 = vadd.f32 %v6115, %v6177
    %v6212 = vadd.f32 %v6116, %v6179
    %v6213 = vadd.f32 %v6117, %v6181
    %v6214 = vmul.f32 %v724, %v1262
    %v6215 = vmul.f32 %v724, %v1266
    %v6216 = vmul.f32 %v725, %v1262
    %v6217 = vmul.f32 %v725, %v1266
    %v6218 = vmul.f32 %v726, %v1262
    %v6219 = vmul.f32 %v726, %v1266
    %v6220 = vmul.f32 %v727, %v1262
    %v6221 = vmul.f32 %v727, %v1266
    %v6222 = vmul.f32 %v728, %v1262
    %v6223 = vmul.f32 %v728, %v1266
    %v6224 = vmul.f32 %v729, %v1262
    %v6225 = vmul.f32 %v729, %v1266
    %v6226 = vmul.f32 %v730, %v1262
    %v6227 = vmul.f32 %v730, %v1266
    %v6228 = vmul.f32 %v731, %v1262
    %v6229 = vmul.f32 %v731, %v1266
    %6246 = vrot.lane.b32.xlu0 %v6214, 127
    %v6247 = vpop.permute.xlu0 %6246
    %6248 = vrot.lane.b32.xlu0 %v6215, 127
    %v6249 = vpop.permute.xlu0 %6248
    %6250 = vrot.lane.b32.xlu0 %v6216, 127
    %v6251 = vpop.permute.xlu0 %6250
    %6252 = vrot.lane.b32.xlu0 %v6217, 127
    %v6253 = vpop.permute.xlu0 %6252
    %6254 = vrot.lane.b32.xlu0 %v6218, 127
    %v6255 = vpop.permute.xlu0 %6254
    %6256 = vrot.lane.b32.xlu0 %v6219, 127
    %v6257 = vpop.permute.xlu0 %6256
    %6258 = vrot.lane.b32.xlu0 %v6220, 127
    %v6259 = vpop.permute.xlu0 %6258
    %6260 = vrot.lane.b32.xlu0 %v6221, 127
    %v6261 = vpop.permute.xlu0 %6260
    %6262 = vrot.lane.b32.xlu0 %v6222, 127
    %v6263 = vpop.permute.xlu0 %6262
    %6264 = vrot.lane.b32.xlu0 %v6223, 127
    %v6265 = vpop.permute.xlu0 %6264
    %6266 = vrot.lane.b32.xlu0 %v6224, 127
    %v6267 = vpop.permute.xlu0 %6266
    %6268 = vrot.lane.b32.xlu0 %v6225, 127
    %v6269 = vpop.permute.xlu0 %6268
    %6270 = vrot.lane.b32.xlu0 %v6226, 127
    %v6271 = vpop.permute.xlu0 %6270
    %6272 = vrot.lane.b32.xlu0 %v6227, 127
    %v6273 = vpop.permute.xlu0 %6272
    %6274 = vrot.lane.b32.xlu0 %v6228, 127
    %v6275 = vpop.permute.xlu0 %6274
    %6276 = vrot.lane.b32.xlu0 %v6229, 127
    %v6277 = vpop.permute.xlu0 %6276
    %v6294 = vadd.f32 %v6198, %v6247
    %v6295 = vadd.f32 %v6199, %v6249
    %v6296 = vadd.f32 %v6200, %v6251
    %v6297 = vadd.f32 %v6201, %v6253
    %v6298 = vadd.f32 %v6202, %v6255
    %v6299 = vadd.f32 %v6203, %v6257
    %v6300 = vadd.f32 %v6204, %v6259
    %v6301 = vadd.f32 %v6205, %v6261
    %v6302 = vadd.f32 %v6206, %v6263
    %v6303 = vadd.f32 %v6207, %v6265
    %v6304 = vadd.f32 %v6208, %v6267
    %v6305 = vadd.f32 %v6209, %v6269
    %v6306 = vadd.f32 %v6210, %v6271
    %v6307 = vadd.f32 %v6211, %v6273
    %v6308 = vadd.f32 %v6212, %v6275
    %v6309 = vadd.f32 %v6213, %v6277
    %v6310 = vmul.f32 %v788, %v1366
    %v6311 = vmul.f32 %v788, %v1370
    %v6312 = vmul.f32 %v789, %v1366
    %v6313 = vmul.f32 %v789, %v1370
    %v6314 = vmul.f32 %v790, %v1366
    %v6315 = vmul.f32 %v790, %v1370
    %v6316 = vmul.f32 %v791, %v1366
    %v6317 = vmul.f32 %v791, %v1370
    %v6318 = vmul.f32 %v792, %v1366
    %v6319 = vmul.f32 %v792, %v1370
    %v6320 = vmul.f32 %v793, %v1366
    %v6321 = vmul.f32 %v793, %v1370
    %v6322 = vmul.f32 %v794, %v1366
    %v6323 = vmul.f32 %v794, %v1370
    %v6324 = vmul.f32 %v795, %v1366
    %v6325 = vmul.f32 %v795, %v1370
    %6342 = vrot.lane.b32.xlu0 %v6310, 127
    %v6343 = vpop.permute.xlu0 %6342
    %6344 = vrot.lane.b32.xlu0 %v6311, 127
    %v6345 = vpop.permute.xlu0 %6344
    %6346 = vrot.lane.b32.xlu0 %v6312, 127
    %v6347 = vpop.permute.xlu0 %6346
    %6348 = vrot.lane.b32.xlu0 %v6313, 127
    %v6349 = vpop.permute.xlu0 %6348
    %6350 = vrot.lane.b32.xlu0 %v6314, 127
    %v6351 = vpop.permute.xlu0 %6350
    %6352 = vrot.lane.b32.xlu0 %v6315, 127
    %v6353 = vpop.permute.xlu0 %6352
    %6354 = vrot.lane.b32.xlu0 %v6316, 127
    %v6355 = vpop.permute.xlu0 %6354
    %6356 = vrot.lane.b32.xlu0 %v6317, 127
    %v6357 = vpop.permute.xlu0 %6356
    %6358 = vrot.lane.b32.xlu0 %v6318, 127
    %v6359 = vpop.permute.xlu0 %6358
    %6360 = vrot.lane.b32.xlu0 %v6319, 127
    %v6361 = vpop.permute.xlu0 %6360
    %6362 = vrot.lane.b32.xlu0 %v6320, 127
    %v6363 = vpop.permute.xlu0 %6362
    %6364 = vrot.lane.b32.xlu0 %v6321, 127
    %v6365 = vpop.permute.xlu0 %6364
    %6366 = vrot.lane.b32.xlu0 %v6322, 127
    %v6367 = vpop.permute.xlu0 %6366
    %6368 = vrot.lane.b32.xlu0 %v6323, 127
    %v6369 = vpop.permute.xlu0 %6368
    %6370 = vrot.lane.b32.xlu0 %v6324, 127
    %v6371 = vpop.permute.xlu0 %6370
    %6372 = vrot.lane.b32.xlu0 %v6325, 127
    %v6373 = vpop.permute.xlu0 %6372
    %v6390 = vadd.f32 %v6294, %v6343
    %v6391 = vadd.f32 %v6295, %v6345
    %v6392 = vadd.f32 %v6296, %v6347
    %v6393 = vadd.f32 %v6297, %v6349
    %v6394 = vadd.f32 %v6298, %v6351
    %v6395 = vadd.f32 %v6299, %v6353
    %v6396 = vadd.f32 %v6300, %v6355
    %v6397 = vadd.f32 %v6301, %v6357
    %v6398 = vadd.f32 %v6302, %v6359
    %v6399 = vadd.f32 %v6303, %v6361
    %v6400 = vadd.f32 %v6304, %v6363
    %v6401 = vadd.f32 %v6305, %v6365
    %v6402 = vadd.f32 %v6306, %v6367
    %v6403 = vadd.f32 %v6307, %v6369
    %v6404 = vadd.f32 %v6308, %v6371
    %v6405 = vadd.f32 %v6309, %v6373
    %v6406 = vmul.f32 %v82, %v1470
    %v6407 = vmul.f32 %v82, %v1474
    %v6408 = vmul.f32 %v83, %v1470
    %v6409 = vmul.f32 %v83, %v1474
    %v6410 = vmul.f32 %v84, %v1470
    %v6411 = vmul.f32 %v84, %v1474
    %v6412 = vmul.f32 %v85, %v1470
    %v6413 = vmul.f32 %v85, %v1474
    %v6414 = vmul.f32 %v86, %v1470
    %v6415 = vmul.f32 %v86, %v1474
    %v6416 = vmul.f32 %v87, %v1470
    %v6417 = vmul.f32 %v87, %v1474
    %v6418 = vmul.f32 %v88, %v1470
    %v6419 = vmul.f32 %v88, %v1474
    %v6420 = vmul.f32 %v89, %v1470
    %v6421 = vmul.f32 %v89, %v1474
    %6438 = vrot.lane.b32.xlu0 %v6406, 126
    %v6439 = vpop.permute.xlu0 %6438
    %6440 = vrot.lane.b32.xlu0 %v6407, 126
    %v6441 = vpop.permute.xlu0 %6440
    %6442 = vrot.lane.b32.xlu0 %v6408, 126
    %v6443 = vpop.permute.xlu0 %6442
    %6444 = vrot.lane.b32.xlu0 %v6409, 126
    %v6445 = vpop.permute.xlu0 %6444
    %6446 = vrot.lane.b32.xlu0 %v6410, 126
    %v6447 = vpop.permute.xlu0 %6446
    %6448 = vrot.lane.b32.xlu0 %v6411, 126
    %v6449 = vpop.permute.xlu0 %6448
    %6450 = vrot.lane.b32.xlu0 %v6412, 126
    %v6451 = vpop.permute.xlu0 %6450
    %6452 = vrot.lane.b32.xlu0 %v6413, 126
    %v6453 = vpop.permute.xlu0 %6452
    %6454 = vrot.lane.b32.xlu0 %v6414, 126
    %v6455 = vpop.permute.xlu0 %6454
    %6456 = vrot.lane.b32.xlu0 %v6415, 126
    %v6457 = vpop.permute.xlu0 %6456
    %6458 = vrot.lane.b32.xlu0 %v6416, 126
    %v6459 = vpop.permute.xlu0 %6458
    %6460 = vrot.lane.b32.xlu0 %v6417, 126
    %v6461 = vpop.permute.xlu0 %6460
    %6462 = vrot.lane.b32.xlu0 %v6418, 126
    %v6463 = vpop.permute.xlu0 %6462
    %6464 = vrot.lane.b32.xlu0 %v6419, 126
    %v6465 = vpop.permute.xlu0 %6464
    %6466 = vrot.lane.b32.xlu0 %v6420, 126
    %v6467 = vpop.permute.xlu0 %6466
    %6468 = vrot.lane.b32.xlu0 %v6421, 126
    %v6469 = vpop.permute.xlu0 %6468
    %v6486 = vadd.f32 %v6390, %v6439
    %v6487 = vadd.f32 %v6391, %v6441
    %v6488 = vadd.f32 %v6392, %v6443
    %v6489 = vadd.f32 %v6393, %v6445
    %v6490 = vadd.f32 %v6394, %v6447
    %v6491 = vadd.f32 %v6395, %v6449
    %v6492 = vadd.f32 %v6396, %v6451
    %v6493 = vadd.f32 %v6397, %v6453
    %v6494 = vadd.f32 %v6398, %v6455
    %v6495 = vadd.f32 %v6399, %v6457
    %v6496 = vadd.f32 %v6400, %v6459
    %v6497 = vadd.f32 %v6401, %v6461
    %v6498 = vadd.f32 %v6402, %v6463
    %v6499 = vadd.f32 %v6403, %v6465
    %v6500 = vadd.f32 %v6404, %v6467
    %v6501 = vadd.f32 %v6405, %v6469
    %v6502 = vmul.f32 %v148, %v1574
    %v6503 = vmul.f32 %v148, %v1578
    %v6504 = vmul.f32 %v149, %v1574
    %v6505 = vmul.f32 %v149, %v1578
    %v6506 = vmul.f32 %v150, %v1574
    %v6507 = vmul.f32 %v150, %v1578
    %v6508 = vmul.f32 %v151, %v1574
    %v6509 = vmul.f32 %v151, %v1578
    %v6510 = vmul.f32 %v152, %v1574
    %v6511 = vmul.f32 %v152, %v1578
    %v6512 = vmul.f32 %v153, %v1574
    %v6513 = vmul.f32 %v153, %v1578
    %v6514 = vmul.f32 %v154, %v1574
    %v6515 = vmul.f32 %v154, %v1578
    %v6516 = vmul.f32 %v155, %v1574
    %v6517 = vmul.f32 %v155, %v1578
    %6534 = vrot.lane.b32.xlu0 %v6502, 126
    %v6535 = vpop.permute.xlu0 %6534
    %6536 = vrot.lane.b32.xlu0 %v6503, 126
    %v6537 = vpop.permute.xlu0 %6536
    %6538 = vrot.lane.b32.xlu0 %v6504, 126
    %v6539 = vpop.permute.xlu0 %6538
    %6540 = vrot.lane.b32.xlu0 %v6505, 126
    %v6541 = vpop.permute.xlu0 %6540
    %6542 = vrot.lane.b32.xlu0 %v6506, 126
    %v6543 = vpop.permute.xlu0 %6542
    %6544 = vrot.lane.b32.xlu0 %v6507, 126
    %v6545 = vpop.permute.xlu0 %6544
    %6546 = vrot.lane.b32.xlu0 %v6508, 126
    %v6547 = vpop.permute.xlu0 %6546
    %6548 = vrot.lane.b32.xlu0 %v6509, 126
    %v6549 = vpop.permute.xlu0 %6548
    %6550 = vrot.lane.b32.xlu0 %v6510, 126
    %v6551 = vpop.permute.xlu0 %6550
    %6552 = vrot.lane.b32.xlu0 %v6511, 126
    %v6553 = vpop.permute.xlu0 %6552
    %6554 = vrot.lane.b32.xlu0 %v6512, 126
    %v6555 = vpop.permute.xlu0 %6554
    %6556 = vrot.lane.b32.xlu0 %v6513, 126
    %v6557 = vpop.permute.xlu0 %6556
    %6558 = vrot.lane.b32.xlu0 %v6514, 126
    %v6559 = vpop.permute.xlu0 %6558
    %6560 = vrot.lane.b32.xlu0 %v6515, 126
    %v6561 = vpop.permute.xlu0 %6560
    %6562 = vrot.lane.b32.xlu0 %v6516, 126
    %v6563 = vpop.permute.xlu0 %6562
    %6564 = vrot.lane.b32.xlu0 %v6517, 126
    %v6565 = vpop.permute.xlu0 %6564
    %v6582 = vadd.f32 %v6486, %v6535
    %v6583 = vadd.f32 %v6487, %v6537
    %v6584 = vadd.f32 %v6488, %v6539
    %v6585 = vadd.f32 %v6489, %v6541
    %v6586 = vadd.f32 %v6490, %v6543
    %v6587 = vadd.f32 %v6491, %v6545
    %v6588 = vadd.f32 %v6492, %v6547
    %v6589 = vadd.f32 %v6493, %v6549
    %v6590 = vadd.f32 %v6494, %v6551
    %v6591 = vadd.f32 %v6495, %v6553
    %v6592 = vadd.f32 %v6496, %v6555
    %v6593 = vadd.f32 %v6497, %v6557
    %v6594 = vadd.f32 %v6498, %v6559
    %v6595 = vadd.f32 %v6499, %v6561
    %v6596 = vadd.f32 %v6500, %v6563
    %v6597 = vadd.f32 %v6501, %v6565
    %v6598 = vmul.f32 %v212, %v1678
    %v6599 = vmul.f32 %v212, %v1682
    %v6600 = vmul.f32 %v213, %v1678
    %v6601 = vmul.f32 %v213, %v1682
    %v6602 = vmul.f32 %v214, %v1678
    %v6603 = vmul.f32 %v214, %v1682
    %v6604 = vmul.f32 %v215, %v1678
    %v6605 = vmul.f32 %v215, %v1682
    %v6606 = vmul.f32 %v216, %v1678
    %v6607 = vmul.f32 %v216, %v1682
    %v6608 = vmul.f32 %v217, %v1678
    %v6609 = vmul.f32 %v217, %v1682
    %v6610 = vmul.f32 %v218, %v1678
    %v6611 = vmul.f32 %v218, %v1682
    %v6612 = vmul.f32 %v219, %v1678
    %v6613 = vmul.f32 %v219, %v1682
    %6630 = vrot.lane.b32.xlu0 %v6598, 126
    %v6631 = vpop.permute.xlu0 %6630
    %6632 = vrot.lane.b32.xlu0 %v6599, 126
    %v6633 = vpop.permute.xlu0 %6632
    %6634 = vrot.lane.b32.xlu0 %v6600, 126
    %v6635 = vpop.permute.xlu0 %6634
    %6636 = vrot.lane.b32.xlu0 %v6601, 126
    %v6637 = vpop.permute.xlu0 %6636
    %6638 = vrot.lane.b32.xlu0 %v6602, 126
    %v6639 = vpop.permute.xlu0 %6638
    %6640 = vrot.lane.b32.xlu0 %v6603, 126
    %v6641 = vpop.permute.xlu0 %6640
    %6642 = vrot.lane.b32.xlu0 %v6604, 126
    %v6643 = vpop.permute.xlu0 %6642
    %6644 = vrot.lane.b32.xlu0 %v6605, 126
    %v6645 = vpop.permute.xlu0 %6644
    %6646 = vrot.lane.b32.xlu0 %v6606, 126
    %v6647 = vpop.permute.xlu0 %6646
    %6648 = vrot.lane.b32.xlu0 %v6607, 126
    %v6649 = vpop.permute.xlu0 %6648
    %6650 = vrot.lane.b32.xlu0 %v6608, 126
    %v6651 = vpop.permute.xlu0 %6650
    %6652 = vrot.lane.b32.xlu0 %v6609, 126
    %v6653 = vpop.permute.xlu0 %6652
    %6654 = vrot.lane.b32.xlu0 %v6610, 126
    %v6655 = vpop.permute.xlu0 %6654
    %6656 = vrot.lane.b32.xlu0 %v6611, 126
    %v6657 = vpop.permute.xlu0 %6656
    %6658 = vrot.lane.b32.xlu0 %v6612, 126
    %v6659 = vpop.permute.xlu0 %6658
    %6660 = vrot.lane.b32.xlu0 %v6613, 126
    %v6661 = vpop.permute.xlu0 %6660
    %v6678 = vadd.f32 %v6582, %v6631
    %v6679 = vadd.f32 %v6583, %v6633
    %v6680 = vadd.f32 %v6584, %v6635
    %v6681 = vadd.f32 %v6585, %v6637
    %v6682 = vadd.f32 %v6586, %v6639
    %v6683 = vadd.f32 %v6587, %v6641
    %v6684 = vadd.f32 %v6588, %v6643
    %v6685 = vadd.f32 %v6589, %v6645
    %v6686 = vadd.f32 %v6590, %v6647
    %v6687 = vadd.f32 %v6591, %v6649
    %v6688 = vadd.f32 %v6592, %v6651
    %v6689 = vadd.f32 %v6593, %v6653
    %v6690 = vadd.f32 %v6594, %v6655
    %v6691 = vadd.f32 %v6595, %v6657
    %v6692 = vadd.f32 %v6596, %v6659
    %v6693 = vadd.f32 %v6597, %v6661
    %v6694 = vmul.f32 %v276, %v1782
    %v6695 = vmul.f32 %v276, %v1786
    %v6696 = vmul.f32 %v277, %v1782
    %v6697 = vmul.f32 %v277, %v1786
    %v6698 = vmul.f32 %v278, %v1782
    %v6699 = vmul.f32 %v278, %v1786
    %v6700 = vmul.f32 %v279, %v1782
    %v6701 = vmul.f32 %v279, %v1786
    %v6702 = vmul.f32 %v280, %v1782
    %v6703 = vmul.f32 %v280, %v1786
    %v6704 = vmul.f32 %v281, %v1782
    %v6705 = vmul.f32 %v281, %v1786
    %v6706 = vmul.f32 %v282, %v1782
    %v6707 = vmul.f32 %v282, %v1786
    %v6708 = vmul.f32 %v283, %v1782
    %v6709 = vmul.f32 %v283, %v1786
    %6726 = vrot.lane.b32.xlu0 %v6694, 126
    %v6727 = vpop.permute.xlu0 %6726
    %6728 = vrot.lane.b32.xlu0 %v6695, 126
    %v6729 = vpop.permute.xlu0 %6728
    %6730 = vrot.lane.b32.xlu0 %v6696, 126
    %v6731 = vpop.permute.xlu0 %6730
    %6732 = vrot.lane.b32.xlu0 %v6697, 126
    %v6733 = vpop.permute.xlu0 %6732
    %6734 = vrot.lane.b32.xlu0 %v6698, 126
    %v6735 = vpop.permute.xlu0 %6734
    %6736 = vrot.lane.b32.xlu0 %v6699, 126
    %v6737 = vpop.permute.xlu0 %6736
    %6738 = vrot.lane.b32.xlu0 %v6700, 126
    %v6739 = vpop.permute.xlu0 %6738
    %6740 = vrot.lane.b32.xlu0 %v6701, 126
    %v6741 = vpop.permute.xlu0 %6740
    %6742 = vrot.lane.b32.xlu0 %v6702, 126
    %v6743 = vpop.permute.xlu0 %6742
    %6744 = vrot.lane.b32.xlu0 %v6703, 126
    %v6745 = vpop.permute.xlu0 %6744
    %6746 = vrot.lane.b32.xlu0 %v6704, 126
    %v6747 = vpop.permute.xlu0 %6746
    %6748 = vrot.lane.b32.xlu0 %v6705, 126
    %v6749 = vpop.permute.xlu0 %6748
    %6750 = vrot.lane.b32.xlu0 %v6706, 126
    %v6751 = vpop.permute.xlu0 %6750
    %6752 = vrot.lane.b32.xlu0 %v6707, 126
    %v6753 = vpop.permute.xlu0 %6752
    %6754 = vrot.lane.b32.xlu0 %v6708, 126
    %v6755 = vpop.permute.xlu0 %6754
    %6756 = vrot.lane.b32.xlu0 %v6709, 126
    %v6757 = vpop.permute.xlu0 %6756
    %v6774 = vadd.f32 %v6678, %v6727
    %v6775 = vadd.f32 %v6679, %v6729
    %v6776 = vadd.f32 %v6680, %v6731
    %v6777 = vadd.f32 %v6681, %v6733
    %v6778 = vadd.f32 %v6682, %v6735
    %v6779 = vadd.f32 %v6683, %v6737
    %v6780 = vadd.f32 %v6684, %v6739
    %v6781 = vadd.f32 %v6685, %v6741
    %v6782 = vadd.f32 %v6686, %v6743
    %v6783 = vadd.f32 %v6687, %v6745
    %v6784 = vadd.f32 %v6688, %v6747
    %v6785 = vadd.f32 %v6689, %v6749
    %v6786 = vadd.f32 %v6690, %v6751
    %v6787 = vadd.f32 %v6691, %v6753
    %v6788 = vadd.f32 %v6692, %v6755
    %v6789 = vadd.f32 %v6693, %v6757
    %v6790 = vmul.f32 %v340, %v1886
    %v6791 = vmul.f32 %v340, %v1890
    %v6792 = vmul.f32 %v341, %v1886
    %v6793 = vmul.f32 %v341, %v1890
    %v6794 = vmul.f32 %v342, %v1886
    %v6795 = vmul.f32 %v342, %v1890
    %v6796 = vmul.f32 %v343, %v1886
    %v6797 = vmul.f32 %v343, %v1890
    %v6798 = vmul.f32 %v344, %v1886
    %v6799 = vmul.f32 %v344, %v1890
    %v6800 = vmul.f32 %v345, %v1886
    %v6801 = vmul.f32 %v345, %v1890
    %v6802 = vmul.f32 %v346, %v1886
    %v6803 = vmul.f32 %v346, %v1890
    %v6804 = vmul.f32 %v347, %v1886
    %v6805 = vmul.f32 %v347, %v1890
    %6822 = vrot.lane.b32.xlu0 %v6790, 126
    %v6823 = vpop.permute.xlu0 %6822
    %6824 = vrot.lane.b32.xlu0 %v6791, 126
    %v6825 = vpop.permute.xlu0 %6824
    %6826 = vrot.lane.b32.xlu0 %v6792, 126
    %v6827 = vpop.permute.xlu0 %6826
    %6828 = vrot.lane.b32.xlu0 %v6793, 126
    %v6829 = vpop.permute.xlu0 %6828
    %6830 = vrot.lane.b32.xlu0 %v6794, 126
    %v6831 = vpop.permute.xlu0 %6830
    %6832 = vrot.lane.b32.xlu0 %v6795, 126
    %v6833 = vpop.permute.xlu0 %6832
    %6834 = vrot.lane.b32.xlu0 %v6796, 126
    %v6835 = vpop.permute.xlu0 %6834
    %6836 = vrot.lane.b32.xlu0 %v6797, 126
    %v6837 = vpop.permute.xlu0 %6836
    %6838 = vrot.lane.b32.xlu0 %v6798, 126
    %v6839 = vpop.permute.xlu0 %6838
    %6840 = vrot.lane.b32.xlu0 %v6799, 126
    %v6841 = vpop.permute.xlu0 %6840
    %6842 = vrot.lane.b32.xlu0 %v6800, 126
    %v6843 = vpop.permute.xlu0 %6842
    %6844 = vrot.lane.b32.xlu0 %v6801, 126
    %v6845 = vpop.permute.xlu0 %6844
    %6846 = vrot.lane.b32.xlu0 %v6802, 126
    %v6847 = vpop.permute.xlu0 %6846
    %6848 = vrot.lane.b32.xlu0 %v6803, 126
    %v6849 = vpop.permute.xlu0 %6848
    %6850 = vrot.lane.b32.xlu0 %v6804, 126
    %v6851 = vpop.permute.xlu0 %6850
    %6852 = vrot.lane.b32.xlu0 %v6805, 126
    %v6853 = vpop.permute.xlu0 %6852
    %v6870 = vadd.f32 %v6774, %v6823
    %v6871 = vadd.f32 %v6775, %v6825
    %v6872 = vadd.f32 %v6776, %v6827
    %v6873 = vadd.f32 %v6777, %v6829
    %v6874 = vadd.f32 %v6778, %v6831
    %v6875 = vadd.f32 %v6779, %v6833
    %v6876 = vadd.f32 %v6780, %v6835
    %v6877 = vadd.f32 %v6781, %v6837
    %v6878 = vadd.f32 %v6782, %v6839
    %v6879 = vadd.f32 %v6783, %v6841
    %v6880 = vadd.f32 %v6784, %v6843
    %v6881 = vadd.f32 %v6785, %v6845
    %v6882 = vadd.f32 %v6786, %v6847
    %v6883 = vadd.f32 %v6787, %v6849
    %v6884 = vadd.f32 %v6788, %v6851
    %v6885 = vadd.f32 %v6789, %v6853
    %v6886 = vmul.f32 %v404, %v1990
    %v6887 = vmul.f32 %v404, %v1994
    %v6888 = vmul.f32 %v405, %v1990
    %v6889 = vmul.f32 %v405, %v1994
    %v6890 = vmul.f32 %v406, %v1990
    %v6891 = vmul.f32 %v406, %v1994
    %v6892 = vmul.f32 %v407, %v1990
    %v6893 = vmul.f32 %v407, %v1994
    %v6894 = vmul.f32 %v408, %v1990
    %v6895 = vmul.f32 %v408, %v1994
    %v6896 = vmul.f32 %v409, %v1990
    %v6897 = vmul.f32 %v409, %v1994
    %v6898 = vmul.f32 %v410, %v1990
    %v6899 = vmul.f32 %v410, %v1994
    %v6900 = vmul.f32 %v411, %v1990
    %v6901 = vmul.f32 %v411, %v1994
    %6918 = vrot.lane.b32.xlu0 %v6886, 126
    %v6919 = vpop.permute.xlu0 %6918
    %6920 = vrot.lane.b32.xlu0 %v6887, 126
    %v6921 = vpop.permute.xlu0 %6920
    %6922 = vrot.lane.b32.xlu0 %v6888, 126
    %v6923 = vpop.permute.xlu0 %6922
    %6924 = vrot.lane.b32.xlu0 %v6889, 126
    %v6925 = vpop.permute.xlu0 %6924
    %6926 = vrot.lane.b32.xlu0 %v6890, 126
    %v6927 = vpop.permute.xlu0 %6926
    %6928 = vrot.lane.b32.xlu0 %v6891, 126
    %v6929 = vpop.permute.xlu0 %6928
    %6930 = vrot.lane.b32.xlu0 %v6892, 126
    %v6931 = vpop.permute.xlu0 %6930
    %6932 = vrot.lane.b32.xlu0 %v6893, 126
    %v6933 = vpop.permute.xlu0 %6932
    %6934 = vrot.lane.b32.xlu0 %v6894, 126
    %v6935 = vpop.permute.xlu0 %6934
    %6936 = vrot.lane.b32.xlu0 %v6895, 126
    %v6937 = vpop.permute.xlu0 %6936
    %6938 = vrot.lane.b32.xlu0 %v6896, 126
    %v6939 = vpop.permute.xlu0 %6938
    %6940 = vrot.lane.b32.xlu0 %v6897, 126
    %v6941 = vpop.permute.xlu0 %6940
    %6942 = vrot.lane.b32.xlu0 %v6898, 126
    %v6943 = vpop.permute.xlu0 %6942
    %6944 = vrot.lane.b32.xlu0 %v6899, 126
    %v6945 = vpop.permute.xlu0 %6944
    %6946 = vrot.lane.b32.xlu0 %v6900, 126
    %v6947 = vpop.permute.xlu0 %6946
    %6948 = vrot.lane.b32.xlu0 %v6901, 126
    %v6949 = vpop.permute.xlu0 %6948
    %v6966 = vadd.f32 %v6870, %v6919
    %v6967 = vadd.f32 %v6871, %v6921
    %v6968 = vadd.f32 %v6872, %v6923
    %v6969 = vadd.f32 %v6873, %v6925
    %v6970 = vadd.f32 %v6874, %v6927
    %v6971 = vadd.f32 %v6875, %v6929
    %v6972 = vadd.f32 %v6876, %v6931
    %v6973 = vadd.f32 %v6877, %v6933
    %v6974 = vadd.f32 %v6878, %v6935
    %v6975 = vadd.f32 %v6879, %v6937
    %v6976 = vadd.f32 %v6880, %v6939
    %v6977 = vadd.f32 %v6881, %v6941
    %v6978 = vadd.f32 %v6882, %v6943
    %v6979 = vadd.f32 %v6883, %v6945
    %v6980 = vadd.f32 %v6884, %v6947
    %v6981 = vadd.f32 %v6885, %v6949
    %v6982 = vmul.f32 %v468, %v2094
    %v6983 = vmul.f32 %v468, %v2098
    %v6984 = vmul.f32 %v469, %v2094
    %v6985 = vmul.f32 %v469, %v2098
    %v6986 = vmul.f32 %v470, %v2094
    %v6987 = vmul.f32 %v470, %v2098
    %v6988 = vmul.f32 %v471, %v2094
    %v6989 = vmul.f32 %v471, %v2098
    %v6990 = vmul.f32 %v472, %v2094
    %v6991 = vmul.f32 %v472, %v2098
    %v6992 = vmul.f32 %v473, %v2094
    %v6993 = vmul.f32 %v473, %v2098
    %v6994 = vmul.f32 %v474, %v2094
    %v6995 = vmul.f32 %v474, %v2098
    %v6996 = vmul.f32 %v475, %v2094
    %v6997 = vmul.f32 %v475, %v2098
    %7014 = vrot.lane.b32.xlu0 %v6982, 126
    %v7015 = vpop.permute.xlu0 %7014
    %7016 = vrot.lane.b32.xlu0 %v6983, 126
    %v7017 = vpop.permute.xlu0 %7016
    %7018 = vrot.lane.b32.xlu0 %v6984, 126
    %v7019 = vpop.permute.xlu0 %7018
    %7020 = vrot.lane.b32.xlu0 %v6985, 126
    %v7021 = vpop.permute.xlu0 %7020
    %7022 = vrot.lane.b32.xlu0 %v6986, 126
    %v7023 = vpop.permute.xlu0 %7022
    %7024 = vrot.lane.b32.xlu0 %v6987, 126
    %v7025 = vpop.permute.xlu0 %7024
    %7026 = vrot.lane.b32.xlu0 %v6988, 126
    %v7027 = vpop.permute.xlu0 %7026
    %7028 = vrot.lane.b32.xlu0 %v6989, 126
    %v7029 = vpop.permute.xlu0 %7028
    %7030 = vrot.lane.b32.xlu0 %v6990, 126
    %v7031 = vpop.permute.xlu0 %7030
    %7032 = vrot.lane.b32.xlu0 %v6991, 126
    %v7033 = vpop.permute.xlu0 %7032
    %7034 = vrot.lane.b32.xlu0 %v6992, 126
    %v7035 = vpop.permute.xlu0 %7034
    %7036 = vrot.lane.b32.xlu0 %v6993, 126
    %v7037 = vpop.permute.xlu0 %7036
    %7038 = vrot.lane.b32.xlu0 %v6994, 126
    %v7039 = vpop.permute.xlu0 %7038
    %7040 = vrot.lane.b32.xlu0 %v6995, 126
    %v7041 = vpop.permute.xlu0 %7040
    %7042 = vrot.lane.b32.xlu0 %v6996, 126
    %v7043 = vpop.permute.xlu0 %7042
    %7044 = vrot.lane.b32.xlu0 %v6997, 126
    %v7045 = vpop.permute.xlu0 %7044
    %v7062 = vadd.f32 %v6966, %v7015
    %v7063 = vadd.f32 %v6967, %v7017
    %v7064 = vadd.f32 %v6968, %v7019
    %v7065 = vadd.f32 %v6969, %v7021
    %v7066 = vadd.f32 %v6970, %v7023
    %v7067 = vadd.f32 %v6971, %v7025
    %v7068 = vadd.f32 %v6972, %v7027
    %v7069 = vadd.f32 %v6973, %v7029
    %v7070 = vadd.f32 %v6974, %v7031
    %v7071 = vadd.f32 %v6975, %v7033
    %v7072 = vadd.f32 %v6976, %v7035
    %v7073 = vadd.f32 %v6977, %v7037
    %v7074 = vadd.f32 %v6978, %v7039
    %v7075 = vadd.f32 %v6979, %v7041
    %v7076 = vadd.f32 %v6980, %v7043
    %v7077 = vadd.f32 %v6981, %v7045
    %v7078 = vmul.f32 %v532, %v2198
    %v7079 = vmul.f32 %v532, %v2202
    %v7080 = vmul.f32 %v533, %v2198
    %v7081 = vmul.f32 %v533, %v2202
    %v7082 = vmul.f32 %v534, %v2198
    %v7083 = vmul.f32 %v534, %v2202
    %v7084 = vmul.f32 %v535, %v2198
    %v7085 = vmul.f32 %v535, %v2202
    %v7086 = vmul.f32 %v536, %v2198
    %v7087 = vmul.f32 %v536, %v2202
    %v7088 = vmul.f32 %v537, %v2198
    %v7089 = vmul.f32 %v537, %v2202
    %v7090 = vmul.f32 %v538, %v2198
    %v7091 = vmul.f32 %v538, %v2202
    %v7092 = vmul.f32 %v539, %v2198
    %v7093 = vmul.f32 %v539, %v2202
    %7110 = vrot.lane.b32.xlu0 %v7078, 126
    %v7111 = vpop.permute.xlu0 %7110
    %7112 = vrot.lane.b32.xlu0 %v7079, 126
    %v7113 = vpop.permute.xlu0 %7112
    %7114 = vrot.lane.b32.xlu0 %v7080, 126
    %v7115 = vpop.permute.xlu0 %7114
    %7116 = vrot.lane.b32.xlu0 %v7081, 126
    %v7117 = vpop.permute.xlu0 %7116
    %7118 = vrot.lane.b32.xlu0 %v7082, 126
    %v7119 = vpop.permute.xlu0 %7118
    %7120 = vrot.lane.b32.xlu0 %v7083, 126
    %v7121 = vpop.permute.xlu0 %7120
    %7122 = vrot.lane.b32.xlu0 %v7084, 126
    %v7123 = vpop.permute.xlu0 %7122
    %7124 = vrot.lane.b32.xlu0 %v7085, 126
    %v7125 = vpop.permute.xlu0 %7124
    %7126 = vrot.lane.b32.xlu0 %v7086, 126
    %v7127 = vpop.permute.xlu0 %7126
    %7128 = vrot.lane.b32.xlu0 %v7087, 126
    %v7129 = vpop.permute.xlu0 %7128
    %7130 = vrot.lane.b32.xlu0 %v7088, 126
    %v7131 = vpop.permute.xlu0 %7130
    %7132 = vrot.lane.b32.xlu0 %v7089, 126
    %v7133 = vpop.permute.xlu0 %7132
    %7134 = vrot.lane.b32.xlu0 %v7090, 126
    %v7135 = vpop.permute.xlu0 %7134
    %7136 = vrot.lane.b32.xlu0 %v7091, 126
    %v7137 = vpop.permute.xlu0 %7136
    %7138 = vrot.lane.b32.xlu0 %v7092, 126
    %v7139 = vpop.permute.xlu0 %7138
    %7140 = vrot.lane.b32.xlu0 %v7093, 126
    %v7141 = vpop.permute.xlu0 %7140
    %v7158 = vadd.f32 %v7062, %v7111
    %v7159 = vadd.f32 %v7063, %v7113
    %v7160 = vadd.f32 %v7064, %v7115
    %v7161 = vadd.f32 %v7065, %v7117
    %v7162 = vadd.f32 %v7066, %v7119
    %v7163 = vadd.f32 %v7067, %v7121
    %v7164 = vadd.f32 %v7068, %v7123
    %v7165 = vadd.f32 %v7069, %v7125
    %v7166 = vadd.f32 %v7070, %v7127
    %v7167 = vadd.f32 %v7071, %v7129
    %v7168 = vadd.f32 %v7072, %v7131
    %v7169 = vadd.f32 %v7073, %v7133
    %v7170 = vadd.f32 %v7074, %v7135
    %v7171 = vadd.f32 %v7075, %v7137
    %v7172 = vadd.f32 %v7076, %v7139
    %v7173 = vadd.f32 %v7077, %v7141
    %v7174 = vmul.f32 %v596, %v2302
    %v7175 = vmul.f32 %v596, %v2306
    %v7176 = vmul.f32 %v597, %v2302
    %v7177 = vmul.f32 %v597, %v2306
    %v7178 = vmul.f32 %v598, %v2302
    %v7179 = vmul.f32 %v598, %v2306
    %v7180 = vmul.f32 %v599, %v2302
    %v7181 = vmul.f32 %v599, %v2306
    %v7182 = vmul.f32 %v600, %v2302
    %v7183 = vmul.f32 %v600, %v2306
    %v7184 = vmul.f32 %v601, %v2302
    %v7185 = vmul.f32 %v601, %v2306
    %v7186 = vmul.f32 %v602, %v2302
    %v7187 = vmul.f32 %v602, %v2306
    %v7188 = vmul.f32 %v603, %v2302
    %v7189 = vmul.f32 %v603, %v2306
    %7206 = vrot.lane.b32.xlu0 %v7174, 126
    %v7207 = vpop.permute.xlu0 %7206
    %7208 = vrot.lane.b32.xlu0 %v7175, 126
    %v7209 = vpop.permute.xlu0 %7208
    %7210 = vrot.lane.b32.xlu0 %v7176, 126
    %v7211 = vpop.permute.xlu0 %7210
    %7212 = vrot.lane.b32.xlu0 %v7177, 126
    %v7213 = vpop.permute.xlu0 %7212
    %7214 = vrot.lane.b32.xlu0 %v7178, 126
    %v7215 = vpop.permute.xlu0 %7214
    %7216 = vrot.lane.b32.xlu0 %v7179, 126
    %v7217 = vpop.permute.xlu0 %7216
    %7218 = vrot.lane.b32.xlu0 %v7180, 126
    %v7219 = vpop.permute.xlu0 %7218
    %7220 = vrot.lane.b32.xlu0 %v7181, 126
    %v7221 = vpop.permute.xlu0 %7220
    %7222 = vrot.lane.b32.xlu0 %v7182, 126
    %v7223 = vpop.permute.xlu0 %7222
    %7224 = vrot.lane.b32.xlu0 %v7183, 126
    %v7225 = vpop.permute.xlu0 %7224
    %7226 = vrot.lane.b32.xlu0 %v7184, 126
    %v7227 = vpop.permute.xlu0 %7226
    %7228 = vrot.lane.b32.xlu0 %v7185, 126
    %v7229 = vpop.permute.xlu0 %7228
    %7230 = vrot.lane.b32.xlu0 %v7186, 126
    %v7231 = vpop.permute.xlu0 %7230
    %7232 = vrot.lane.b32.xlu0 %v7187, 126
    %v7233 = vpop.permute.xlu0 %7232
    %7234 = vrot.lane.b32.xlu0 %v7188, 126
    %v7235 = vpop.permute.xlu0 %7234
    %7236 = vrot.lane.b32.xlu0 %v7189, 126
    %v7237 = vpop.permute.xlu0 %7236
    %v7254 = vadd.f32 %v7158, %v7207
    %v7255 = vadd.f32 %v7159, %v7209
    %v7256 = vadd.f32 %v7160, %v7211
    %v7257 = vadd.f32 %v7161, %v7213
    %v7258 = vadd.f32 %v7162, %v7215
    %v7259 = vadd.f32 %v7163, %v7217
    %v7260 = vadd.f32 %v7164, %v7219
    %v7261 = vadd.f32 %v7165, %v7221
    %v7262 = vadd.f32 %v7166, %v7223
    %v7263 = vadd.f32 %v7167, %v7225
    %v7264 = vadd.f32 %v7168, %v7227
    %v7265 = vadd.f32 %v7169, %v7229
    %v7266 = vadd.f32 %v7170, %v7231
    %v7267 = vadd.f32 %v7171, %v7233
    %v7268 = vadd.f32 %v7172, %v7235
    %v7269 = vadd.f32 %v7173, %v7237
    %v7270 = vmul.f32 %v660, %v2406
    %v7271 = vmul.f32 %v660, %v2410
    %v7272 = vmul.f32 %v661, %v2406
    %v7273 = vmul.f32 %v661, %v2410
    %v7274 = vmul.f32 %v662, %v2406
    %v7275 = vmul.f32 %v662, %v2410
    %v7276 = vmul.f32 %v663, %v2406
    %v7277 = vmul.f32 %v663, %v2410
    %v7278 = vmul.f32 %v664, %v2406
    %v7279 = vmul.f32 %v664, %v2410
    %v7280 = vmul.f32 %v665, %v2406
    %v7281 = vmul.f32 %v665, %v2410
    %v7282 = vmul.f32 %v666, %v2406
    %v7283 = vmul.f32 %v666, %v2410
    %v7284 = vmul.f32 %v667, %v2406
    %v7285 = vmul.f32 %v667, %v2410
    %7302 = vrot.lane.b32.xlu0 %v7270, 126
    %v7303 = vpop.permute.xlu0 %7302
    %7304 = vrot.lane.b32.xlu0 %v7271, 126
    %v7305 = vpop.permute.xlu0 %7304
    %7306 = vrot.lane.b32.xlu0 %v7272, 126
    %v7307 = vpop.permute.xlu0 %7306
    %7308 = vrot.lane.b32.xlu0 %v7273, 126
    %v7309 = vpop.permute.xlu0 %7308
    %7310 = vrot.lane.b32.xlu0 %v7274, 126
    %v7311 = vpop.permute.xlu0 %7310
    %7312 = vrot.lane.b32.xlu0 %v7275, 126
    %v7313 = vpop.permute.xlu0 %7312
    %7314 = vrot.lane.b32.xlu0 %v7276, 126
    %v7315 = vpop.permute.xlu0 %7314
    %7316 = vrot.lane.b32.xlu0 %v7277, 126
    %v7317 = vpop.permute.xlu0 %7316
    %7318 = vrot.lane.b32.xlu0 %v7278, 126
    %v7319 = vpop.permute.xlu0 %7318
    %7320 = vrot.lane.b32.xlu0 %v7279, 126
    %v7321 = vpop.permute.xlu0 %7320
    %7322 = vrot.lane.b32.xlu0 %v7280, 126
    %v7323 = vpop.permute.xlu0 %7322
    %7324 = vrot.lane.b32.xlu0 %v7281, 126
    %v7325 = vpop.permute.xlu0 %7324
    %7326 = vrot.lane.b32.xlu0 %v7282, 126
    %v7327 = vpop.permute.xlu0 %7326
    %7328 = vrot.lane.b32.xlu0 %v7283, 126
    %v7329 = vpop.permute.xlu0 %7328
    %7330 = vrot.lane.b32.xlu0 %v7284, 126
    %v7331 = vpop.permute.xlu0 %7330
    %7332 = vrot.lane.b32.xlu0 %v7285, 126
    %v7333 = vpop.permute.xlu0 %7332
    %v7350 = vadd.f32 %v7254, %v7303
    %v7351 = vadd.f32 %v7255, %v7305
    %v7352 = vadd.f32 %v7256, %v7307
    %v7353 = vadd.f32 %v7257, %v7309
    %v7354 = vadd.f32 %v7258, %v7311
    %v7355 = vadd.f32 %v7259, %v7313
    %v7356 = vadd.f32 %v7260, %v7315
    %v7357 = vadd.f32 %v7261, %v7317
    %v7358 = vadd.f32 %v7262, %v7319
    %v7359 = vadd.f32 %v7263, %v7321
    %v7360 = vadd.f32 %v7264, %v7323
    %v7361 = vadd.f32 %v7265, %v7325
    %v7362 = vadd.f32 %v7266, %v7327
    %v7363 = vadd.f32 %v7267, %v7329
    %v7364 = vadd.f32 %v7268, %v7331
    %v7365 = vadd.f32 %v7269, %v7333
    %v7366 = vmul.f32 %v724, %v2510
    %v7367 = vmul.f32 %v724, %v2514
    %v7368 = vmul.f32 %v725, %v2510
    %v7369 = vmul.f32 %v725, %v2514
    %v7370 = vmul.f32 %v726, %v2510
    %v7371 = vmul.f32 %v726, %v2514
    %v7372 = vmul.f32 %v727, %v2510
    %v7373 = vmul.f32 %v727, %v2514
    %v7374 = vmul.f32 %v728, %v2510
    %v7375 = vmul.f32 %v728, %v2514
    %v7376 = vmul.f32 %v729, %v2510
    %v7377 = vmul.f32 %v729, %v2514
    %v7378 = vmul.f32 %v730, %v2510
    %v7379 = vmul.f32 %v730, %v2514
    %v7380 = vmul.f32 %v731, %v2510
    %v7381 = vmul.f32 %v731, %v2514
    %7398 = vrot.lane.b32.xlu0 %v7366, 126
    %v7399 = vpop.permute.xlu0 %7398
    %7400 = vrot.lane.b32.xlu0 %v7367, 126
    %v7401 = vpop.permute.xlu0 %7400
    %7402 = vrot.lane.b32.xlu0 %v7368, 126
    %v7403 = vpop.permute.xlu0 %7402
    %7404 = vrot.lane.b32.xlu0 %v7369, 126
    %v7405 = vpop.permute.xlu0 %7404
    %7406 = vrot.lane.b32.xlu0 %v7370, 126
    %v7407 = vpop.permute.xlu0 %7406
    %7408 = vrot.lane.b32.xlu0 %v7371, 126
    %v7409 = vpop.permute.xlu0 %7408
    %7410 = vrot.lane.b32.xlu0 %v7372, 126
    %v7411 = vpop.permute.xlu0 %7410
    %7412 = vrot.lane.b32.xlu0 %v7373, 126
    %v7413 = vpop.permute.xlu0 %7412
    %7414 = vrot.lane.b32.xlu0 %v7374, 126
    %v7415 = vpop.permute.xlu0 %7414
    %7416 = vrot.lane.b32.xlu0 %v7375, 126
    %v7417 = vpop.permute.xlu0 %7416
    %7418 = vrot.lane.b32.xlu0 %v7376, 126
    %v7419 = vpop.permute.xlu0 %7418
    %7420 = vrot.lane.b32.xlu0 %v7377, 126
    %v7421 = vpop.permute.xlu0 %7420
    %7422 = vrot.lane.b32.xlu0 %v7378, 126
    %v7423 = vpop.permute.xlu0 %7422
    %7424 = vrot.lane.b32.xlu0 %v7379, 126
    %v7425 = vpop.permute.xlu0 %7424
    %7426 = vrot.lane.b32.xlu0 %v7380, 126
    %v7427 = vpop.permute.xlu0 %7426
    %7428 = vrot.lane.b32.xlu0 %v7381, 126
    %v7429 = vpop.permute.xlu0 %7428
    %v7446 = vadd.f32 %v7350, %v7399
    %v7447 = vadd.f32 %v7351, %v7401
    %v7448 = vadd.f32 %v7352, %v7403
    %v7449 = vadd.f32 %v7353, %v7405
    %v7450 = vadd.f32 %v7354, %v7407
    %v7451 = vadd.f32 %v7355, %v7409
    %v7452 = vadd.f32 %v7356, %v7411
    %v7453 = vadd.f32 %v7357, %v7413
    %v7454 = vadd.f32 %v7358, %v7415
    %v7455 = vadd.f32 %v7359, %v7417
    %v7456 = vadd.f32 %v7360, %v7419
    %v7457 = vadd.f32 %v7361, %v7421
    %v7458 = vadd.f32 %v7362, %v7423
    %v7459 = vadd.f32 %v7363, %v7425
    %v7460 = vadd.f32 %v7364, %v7427
    %v7461 = vadd.f32 %v7365, %v7429
    %v7462 = vmul.f32 %v788, %v2614
    %v7463 = vmul.f32 %v788, %v2618
    %v7464 = vmul.f32 %v789, %v2614
    %v7465 = vmul.f32 %v789, %v2618
    %v7466 = vmul.f32 %v790, %v2614
    %v7467 = vmul.f32 %v790, %v2618
    %v7468 = vmul.f32 %v791, %v2614
    %v7469 = vmul.f32 %v791, %v2618
    %v7470 = vmul.f32 %v792, %v2614
    %v7471 = vmul.f32 %v792, %v2618
    %v7472 = vmul.f32 %v793, %v2614
    %v7473 = vmul.f32 %v793, %v2618
    %v7474 = vmul.f32 %v794, %v2614
    %v7475 = vmul.f32 %v794, %v2618
    %v7476 = vmul.f32 %v795, %v2614
    %v7477 = vmul.f32 %v795, %v2618
    %7494 = vrot.lane.b32.xlu0 %v7462, 126
    %v7495 = vpop.permute.xlu0 %7494
    %7496 = vrot.lane.b32.xlu0 %v7463, 126
    %v7497 = vpop.permute.xlu0 %7496
    %7498 = vrot.lane.b32.xlu0 %v7464, 126
    %v7499 = vpop.permute.xlu0 %7498
    %7500 = vrot.lane.b32.xlu0 %v7465, 126
    %v7501 = vpop.permute.xlu0 %7500
    %7502 = vrot.lane.b32.xlu0 %v7466, 126
    %v7503 = vpop.permute.xlu0 %7502
    %7504 = vrot.lane.b32.xlu0 %v7467, 126
    %v7505 = vpop.permute.xlu0 %7504
    %7506 = vrot.lane.b32.xlu0 %v7468, 126
    %v7507 = vpop.permute.xlu0 %7506
    %7508 = vrot.lane.b32.xlu0 %v7469, 126
    %v7509 = vpop.permute.xlu0 %7508
    %7510 = vrot.lane.b32.xlu0 %v7470, 126
    %v7511 = vpop.permute.xlu0 %7510
    %7512 = vrot.lane.b32.xlu0 %v7471, 126
    %v7513 = vpop.permute.xlu0 %7512
    %7514 = vrot.lane.b32.xlu0 %v7472, 126
    %v7515 = vpop.permute.xlu0 %7514
    %7516 = vrot.lane.b32.xlu0 %v7473, 126
    %v7517 = vpop.permute.xlu0 %7516
    %7518 = vrot.lane.b32.xlu0 %v7474, 126
    %v7519 = vpop.permute.xlu0 %7518
    %7520 = vrot.lane.b32.xlu0 %v7475, 126
    %v7521 = vpop.permute.xlu0 %7520
    %7522 = vrot.lane.b32.xlu0 %v7476, 126
    %v7523 = vpop.permute.xlu0 %7522
    %7524 = vrot.lane.b32.xlu0 %v7477, 126
    %v7525 = vpop.permute.xlu0 %7524
    %v7542 = vadd.f32 %v7446, %v7495
    %v7543 = vadd.f32 %v7447, %v7497
    %v7544 = vadd.f32 %v7448, %v7499
    %v7545 = vadd.f32 %v7449, %v7501
    %v7546 = vadd.f32 %v7450, %v7503
    %v7547 = vadd.f32 %v7451, %v7505
    %v7548 = vadd.f32 %v7452, %v7507
    %v7549 = vadd.f32 %v7453, %v7509
    %v7550 = vadd.f32 %v7454, %v7511
    %v7551 = vadd.f32 %v7455, %v7513
    %v7552 = vadd.f32 %v7456, %v7515
    %v7553 = vadd.f32 %v7457, %v7517
    %v7554 = vadd.f32 %v7458, %v7519
    %v7555 = vadd.f32 %v7459, %v7521
    %v7556 = vadd.f32 %v7460, %v7523
    %v7557 = vadd.f32 %v7461, %v7525
    %v7558 = vadd.f32 %v7542, %v2719
    %v7559 = vadd.f32 %v7543, %v2724
    %v7560 = vadd.f32 %v7544, %v2719
    %v7561 = vadd.f32 %v7545, %v2724
    %v7562 = vadd.f32 %v7546, %v2719
    %v7563 = vadd.f32 %v7547, %v2724
    %v7564 = vadd.f32 %v7548, %v2719
    %v7565 = vadd.f32 %v7549, %v2724
    %v7566 = vadd.f32 %v7550, %v2719
    %v7567 = vadd.f32 %v7551, %v2724
    %v7568 = vadd.f32 %v7552, %v2719
    %v7569 = vadd.f32 %v7553, %v2724
    %v7570 = vadd.f32 %v7554, %v2719
    %v7571 = vadd.f32 %v7555, %v2724
    %v7572 = vadd.f32 %v7556, %v2719
    %v7573 = vadd.f32 %v7557, %v2724
    %v7574 = vmul.f32 %v660, %v101
    %v7575 = vmul.f32 %v660, %v106
    %v7576 = vmul.f32 %v661, %v101
    %v7577 = vmul.f32 %v661, %v106
    %v7578 = vmul.f32 %v662, %v101
    %v7579 = vmul.f32 %v662, %v106
    %v7580 = vmul.f32 %v663, %v101
    %v7581 = vmul.f32 %v663, %v106
    %v7582 = vmul.f32 %v664, %v101
    %v7583 = vmul.f32 %v664, %v106
    %v7584 = vmul.f32 %v665, %v101
    %v7585 = vmul.f32 %v665, %v106
    %v7586 = vmul.f32 %v666, %v101
    %v7587 = vmul.f32 %v666, %v106
    %v7588 = vmul.f32 %v667, %v101
    %v7589 = vmul.f32 %v667, %v106
    %v7590 = vadd.f32 %v7574, 0.0
    %v7591 = vadd.f32 %v7575, 0.0
    %v7592 = vadd.f32 %v7576, 0.0
    %v7593 = vadd.f32 %v7577, 0.0
    %v7594 = vadd.f32 %v7578, 0.0
    %v7595 = vadd.f32 %v7579, 0.0
    %v7596 = vadd.f32 %v7580, 0.0
    %v7597 = vadd.f32 %v7581, 0.0
    %v7598 = vadd.f32 %v7582, 0.0
    %v7599 = vadd.f32 %v7583, 0.0
    %v7600 = vadd.f32 %v7584, 0.0
    %v7601 = vadd.f32 %v7585, 0.0
    %v7602 = vadd.f32 %v7586, 0.0
    %v7603 = vadd.f32 %v7587, 0.0
    %v7604 = vadd.f32 %v7588, 0.0
    %v7605 = vadd.f32 %v7589, 0.0
    %v7606 = vmul.f32 %v724, %v166
    %v7607 = vmul.f32 %v724, %v170
    %v7608 = vmul.f32 %v725, %v166
    %v7609 = vmul.f32 %v725, %v170
    %v7610 = vmul.f32 %v726, %v166
    %v7611 = vmul.f32 %v726, %v170
    %v7612 = vmul.f32 %v727, %v166
    %v7613 = vmul.f32 %v727, %v170
    %v7614 = vmul.f32 %v728, %v166
    %v7615 = vmul.f32 %v728, %v170
    %v7616 = vmul.f32 %v729, %v166
    %v7617 = vmul.f32 %v729, %v170
    %v7618 = vmul.f32 %v730, %v166
    %v7619 = vmul.f32 %v730, %v170
    %v7620 = vmul.f32 %v731, %v166
    %v7621 = vmul.f32 %v731, %v170
    %v7622 = vadd.f32 %v7590, %v7606
    %v7623 = vadd.f32 %v7591, %v7607
    %v7624 = vadd.f32 %v7592, %v7608
    %v7625 = vadd.f32 %v7593, %v7609
    %v7626 = vadd.f32 %v7594, %v7610
    %v7627 = vadd.f32 %v7595, %v7611
    %v7628 = vadd.f32 %v7596, %v7612
    %v7629 = vadd.f32 %v7597, %v7613
    %v7630 = vadd.f32 %v7598, %v7614
    %v7631 = vadd.f32 %v7599, %v7615
    %v7632 = vadd.f32 %v7600, %v7616
    %v7633 = vadd.f32 %v7601, %v7617
    %v7634 = vadd.f32 %v7602, %v7618
    %v7635 = vadd.f32 %v7603, %v7619
    %v7636 = vadd.f32 %v7604, %v7620
    %v7637 = vadd.f32 %v7605, %v7621
    %v7638 = vmul.f32 %v788, %v230
    %v7639 = vmul.f32 %v788, %v234
    %v7640 = vmul.f32 %v789, %v230
    %v7641 = vmul.f32 %v789, %v234
    %v7642 = vmul.f32 %v790, %v230
    %v7643 = vmul.f32 %v790, %v234
    %v7644 = vmul.f32 %v791, %v230
    %v7645 = vmul.f32 %v791, %v234
    %v7646 = vmul.f32 %v792, %v230
    %v7647 = vmul.f32 %v792, %v234
    %v7648 = vmul.f32 %v793, %v230
    %v7649 = vmul.f32 %v793, %v234
    %v7650 = vmul.f32 %v794, %v230
    %v7651 = vmul.f32 %v794, %v234
    %v7652 = vmul.f32 %v795, %v230
    %v7653 = vmul.f32 %v795, %v234
    %v7654 = vadd.f32 %v7622, %v7638
    %v7655 = vadd.f32 %v7623, %v7639
    %v7656 = vadd.f32 %v7624, %v7640
    %v7657 = vadd.f32 %v7625, %v7641
    %v7658 = vadd.f32 %v7626, %v7642
    %v7659 = vadd.f32 %v7627, %v7643
    %v7660 = vadd.f32 %v7628, %v7644
    %v7661 = vadd.f32 %v7629, %v7645
    %v7662 = vadd.f32 %v7630, %v7646
    %v7663 = vadd.f32 %v7631, %v7647
    %v7664 = vadd.f32 %v7632, %v7648
    %v7665 = vadd.f32 %v7633, %v7649
    %v7666 = vadd.f32 %v7634, %v7650
    %v7667 = vadd.f32 %v7635, %v7651
    %v7668 = vadd.f32 %v7636, %v7652
    %v7669 = vadd.f32 %v7637, %v7653
    %v7670 = vmul.f32 %v82, %v294
    %v7671 = vmul.f32 %v82, %v298
    %v7672 = vmul.f32 %v83, %v294
    %v7673 = vmul.f32 %v83, %v298
    %v7674 = vmul.f32 %v84, %v294
    %v7675 = vmul.f32 %v84, %v298
    %v7676 = vmul.f32 %v85, %v294
    %v7677 = vmul.f32 %v85, %v298
    %v7678 = vmul.f32 %v86, %v294
    %v7679 = vmul.f32 %v86, %v298
    %v7680 = vmul.f32 %v87, %v294
    %v7681 = vmul.f32 %v87, %v298
    %v7682 = vmul.f32 %v88, %v294
    %v7683 = vmul.f32 %v88, %v298
    %v7684 = vmul.f32 %v89, %v294
    %v7685 = vmul.f32 %v89, %v298
    %7702 = vrot.lane.b32.xlu0 %v7670, 127
    %v7703 = vpop.permute.xlu0 %7702
    %7704 = vrot.lane.b32.xlu0 %v7671, 127
    %v7705 = vpop.permute.xlu0 %7704
    %7706 = vrot.lane.b32.xlu0 %v7672, 127
    %v7707 = vpop.permute.xlu0 %7706
    %7708 = vrot.lane.b32.xlu0 %v7673, 127
    %v7709 = vpop.permute.xlu0 %7708
    %7710 = vrot.lane.b32.xlu0 %v7674, 127
    %v7711 = vpop.permute.xlu0 %7710
    %7712 = vrot.lane.b32.xlu0 %v7675, 127
    %v7713 = vpop.permute.xlu0 %7712
    %7714 = vrot.lane.b32.xlu0 %v7676, 127
    %v7715 = vpop.permute.xlu0 %7714
    %7716 = vrot.lane.b32.xlu0 %v7677, 127
    %v7717 = vpop.permute.xlu0 %7716
    %7718 = vrot.lane.b32.xlu0 %v7678, 127
    %v7719 = vpop.permute.xlu0 %7718
    %7720 = vrot.lane.b32.xlu0 %v7679, 127
    %v7721 = vpop.permute.xlu0 %7720
    %7722 = vrot.lane.b32.xlu0 %v7680, 127
    %v7723 = vpop.permute.xlu0 %7722
    %7724 = vrot.lane.b32.xlu0 %v7681, 127
    %v7725 = vpop.permute.xlu0 %7724
    %7726 = vrot.lane.b32.xlu0 %v7682, 127
    %v7727 = vpop.permute.xlu0 %7726
    %7728 = vrot.lane.b32.xlu0 %v7683, 127
    %v7729 = vpop.permute.xlu0 %7728
    %7730 = vrot.lane.b32.xlu0 %v7684, 127
    %v7731 = vpop.permute.xlu0 %7730
    %7732 = vrot.lane.b32.xlu0 %v7685, 127
    %v7733 = vpop.permute.xlu0 %7732
    %v7750 = vadd.f32 %v7654, %v7703
    %v7751 = vadd.f32 %v7655, %v7705
    %v7752 = vadd.f32 %v7656, %v7707
    %v7753 = vadd.f32 %v7657, %v7709
    %v7754 = vadd.f32 %v7658, %v7711
    %v7755 = vadd.f32 %v7659, %v7713
    %v7756 = vadd.f32 %v7660, %v7715
    %v7757 = vadd.f32 %v7661, %v7717
    %v7758 = vadd.f32 %v7662, %v7719
    %v7759 = vadd.f32 %v7663, %v7721
    %v7760 = vadd.f32 %v7664, %v7723
    %v7761 = vadd.f32 %v7665, %v7725
    %v7762 = vadd.f32 %v7666, %v7727
    %v7763 = vadd.f32 %v7667, %v7729
    %v7764 = vadd.f32 %v7668, %v7731
    %v7765 = vadd.f32 %v7669, %v7733
    %v7766 = vmul.f32 %v148, %v358
    %v7767 = vmul.f32 %v148, %v362
    %v7768 = vmul.f32 %v149, %v358
    %v7769 = vmul.f32 %v149, %v362
    %v7770 = vmul.f32 %v150, %v358
    %v7771 = vmul.f32 %v150, %v362
    %v7772 = vmul.f32 %v151, %v358
    %v7773 = vmul.f32 %v151, %v362
    %v7774 = vmul.f32 %v152, %v358
    %v7775 = vmul.f32 %v152, %v362
    %v7776 = vmul.f32 %v153, %v358
    %v7777 = vmul.f32 %v153, %v362
    %v7778 = vmul.f32 %v154, %v358
    %v7779 = vmul.f32 %v154, %v362
    %v7780 = vmul.f32 %v155, %v358
    %v7781 = vmul.f32 %v155, %v362
    %7798 = vrot.lane.b32.xlu0 %v7766, 127
    %v7799 = vpop.permute.xlu0 %7798
    %7800 = vrot.lane.b32.xlu0 %v7767, 127
    %v7801 = vpop.permute.xlu0 %7800
    %7802 = vrot.lane.b32.xlu0 %v7768, 127
    %v7803 = vpop.permute.xlu0 %7802
    %7804 = vrot.lane.b32.xlu0 %v7769, 127
    %v7805 = vpop.permute.xlu0 %7804
    %7806 = vrot.lane.b32.xlu0 %v7770, 127
    %v7807 = vpop.permute.xlu0 %7806
    %7808 = vrot.lane.b32.xlu0 %v7771, 127
    %v7809 = vpop.permute.xlu0 %7808
    %7810 = vrot.lane.b32.xlu0 %v7772, 127
    %v7811 = vpop.permute.xlu0 %7810
    %7812 = vrot.lane.b32.xlu0 %v7773, 127
    %v7813 = vpop.permute.xlu0 %7812
    %7814 = vrot.lane.b32.xlu0 %v7774, 127
    %v7815 = vpop.permute.xlu0 %7814
    %7816 = vrot.lane.b32.xlu0 %v7775, 127
    %v7817 = vpop.permute.xlu0 %7816
    %7818 = vrot.lane.b32.xlu0 %v7776, 127
    %v7819 = vpop.permute.xlu0 %7818
    %7820 = vrot.lane.b32.xlu0 %v7777, 127
    %v7821 = vpop.permute.xlu0 %7820
    %7822 = vrot.lane.b32.xlu0 %v7778, 127
    %v7823 = vpop.permute.xlu0 %7822
    %7824 = vrot.lane.b32.xlu0 %v7779, 127
    %v7825 = vpop.permute.xlu0 %7824
    %7826 = vrot.lane.b32.xlu0 %v7780, 127
    %v7827 = vpop.permute.xlu0 %7826
    %7828 = vrot.lane.b32.xlu0 %v7781, 127
    %v7829 = vpop.permute.xlu0 %7828
    %v7846 = vadd.f32 %v7750, %v7799
    %v7847 = vadd.f32 %v7751, %v7801
    %v7848 = vadd.f32 %v7752, %v7803
    %v7849 = vadd.f32 %v7753, %v7805
    %v7850 = vadd.f32 %v7754, %v7807
    %v7851 = vadd.f32 %v7755, %v7809
    %v7852 = vadd.f32 %v7756, %v7811
    %v7853 = vadd.f32 %v7757, %v7813
    %v7854 = vadd.f32 %v7758, %v7815
    %v7855 = vadd.f32 %v7759, %v7817
    %v7856 = vadd.f32 %v7760, %v7819
    %v7857 = vadd.f32 %v7761, %v7821
    %v7858 = vadd.f32 %v7762, %v7823
    %v7859 = vadd.f32 %v7763, %v7825
    %v7860 = vadd.f32 %v7764, %v7827
    %v7861 = vadd.f32 %v7765, %v7829
    %v7862 = vmul.f32 %v212, %v422
    %v7863 = vmul.f32 %v212, %v426
    %v7864 = vmul.f32 %v213, %v422
    %v7865 = vmul.f32 %v213, %v426
    %v7866 = vmul.f32 %v214, %v422
    %v7867 = vmul.f32 %v214, %v426
    %v7868 = vmul.f32 %v215, %v422
    %v7869 = vmul.f32 %v215, %v426
    %v7870 = vmul.f32 %v216, %v422
    %v7871 = vmul.f32 %v216, %v426
    %v7872 = vmul.f32 %v217, %v422
    %v7873 = vmul.f32 %v217, %v426
    %v7874 = vmul.f32 %v218, %v422
    %v7875 = vmul.f32 %v218, %v426
    %v7876 = vmul.f32 %v219, %v422
    %v7877 = vmul.f32 %v219, %v426
    %7894 = vrot.lane.b32.xlu0 %v7862, 127
    %v7895 = vpop.permute.xlu0 %7894
    %7896 = vrot.lane.b32.xlu0 %v7863, 127
    %v7897 = vpop.permute.xlu0 %7896
    %7898 = vrot.lane.b32.xlu0 %v7864, 127
    %v7899 = vpop.permute.xlu0 %7898
    %7900 = vrot.lane.b32.xlu0 %v7865, 127
    %v7901 = vpop.permute.xlu0 %7900
    %7902 = vrot.lane.b32.xlu0 %v7866, 127
    %v7903 = vpop.permute.xlu0 %7902
    %7904 = vrot.lane.b32.xlu0 %v7867, 127
    %v7905 = vpop.permute.xlu0 %7904
    %7906 = vrot.lane.b32.xlu0 %v7868, 127
    %v7907 = vpop.permute.xlu0 %7906
    %7908 = vrot.lane.b32.xlu0 %v7869, 127
    %v7909 = vpop.permute.xlu0 %7908
    %7910 = vrot.lane.b32.xlu0 %v7870, 127
    %v7911 = vpop.permute.xlu0 %7910
    %7912 = vrot.lane.b32.xlu0 %v7871, 127
    %v7913 = vpop.permute.xlu0 %7912
    %7914 = vrot.lane.b32.xlu0 %v7872, 127
    %v7915 = vpop.permute.xlu0 %7914
    %7916 = vrot.lane.b32.xlu0 %v7873, 127
    %v7917 = vpop.permute.xlu0 %7916
    %7918 = vrot.lane.b32.xlu0 %v7874, 127
    %v7919 = vpop.permute.xlu0 %7918
    %7920 = vrot.lane.b32.xlu0 %v7875, 127
    %v7921 = vpop.permute.xlu0 %7920
    %7922 = vrot.lane.b32.xlu0 %v7876, 127
    %v7923 = vpop.permute.xlu0 %7922
    %7924 = vrot.lane.b32.xlu0 %v7877, 127
    %v7925 = vpop.permute.xlu0 %7924
    %v7942 = vadd.f32 %v7846, %v7895
    %v7943 = vadd.f32 %v7847, %v7897
    %v7944 = vadd.f32 %v7848, %v7899
    %v7945 = vadd.f32 %v7849, %v7901
    %v7946 = vadd.f32 %v7850, %v7903
    %v7947 = vadd.f32 %v7851, %v7905
    %v7948 = vadd.f32 %v7852, %v7907
    %v7949 = vadd.f32 %v7853, %v7909
    %v7950 = vadd.f32 %v7854, %v7911
    %v7951 = vadd.f32 %v7855, %v7913
    %v7952 = vadd.f32 %v7856, %v7915
    %v7953 = vadd.f32 %v7857, %v7917
    %v7954 = vadd.f32 %v7858, %v7919
    %v7955 = vadd.f32 %v7859, %v7921
    %v7956 = vadd.f32 %v7860, %v7923
    %v7957 = vadd.f32 %v7861, %v7925
    %v7958 = vmul.f32 %v276, %v486
    %v7959 = vmul.f32 %v276, %v490
    %v7960 = vmul.f32 %v277, %v486
    %v7961 = vmul.f32 %v277, %v490
    %v7962 = vmul.f32 %v278, %v486
    %v7963 = vmul.f32 %v278, %v490
    %v7964 = vmul.f32 %v279, %v486
    %v7965 = vmul.f32 %v279, %v490
    %v7966 = vmul.f32 %v280, %v486
    %v7967 = vmul.f32 %v280, %v490
    %v7968 = vmul.f32 %v281, %v486
    %v7969 = vmul.f32 %v281, %v490
    %v7970 = vmul.f32 %v282, %v486
    %v7971 = vmul.f32 %v282, %v490
    %v7972 = vmul.f32 %v283, %v486
    %v7973 = vmul.f32 %v283, %v490
    %7990 = vrot.lane.b32.xlu0 %v7958, 127
    %v7991 = vpop.permute.xlu0 %7990
    %7992 = vrot.lane.b32.xlu0 %v7959, 127
    %v7993 = vpop.permute.xlu0 %7992
    %7994 = vrot.lane.b32.xlu0 %v7960, 127
    %v7995 = vpop.permute.xlu0 %7994
    %7996 = vrot.lane.b32.xlu0 %v7961, 127
    %v7997 = vpop.permute.xlu0 %7996
    %7998 = vrot.lane.b32.xlu0 %v7962, 127
    %v7999 = vpop.permute.xlu0 %7998
    %8000 = vrot.lane.b32.xlu0 %v7963, 127
    %v8001 = vpop.permute.xlu0 %8000
    %8002 = vrot.lane.b32.xlu0 %v7964, 127
    %v8003 = vpop.permute.xlu0 %8002
    %8004 = vrot.lane.b32.xlu0 %v7965, 127
    %v8005 = vpop.permute.xlu0 %8004
    %8006 = vrot.lane.b32.xlu0 %v7966, 127
    %v8007 = vpop.permute.xlu0 %8006
    %8008 = vrot.lane.b32.xlu0 %v7967, 127
    %v8009 = vpop.permute.xlu0 %8008
    %8010 = vrot.lane.b32.xlu0 %v7968, 127
    %v8011 = vpop.permute.xlu0 %8010
    %8012 = vrot.lane.b32.xlu0 %v7969, 127
    %v8013 = vpop.permute.xlu0 %8012
    %8014 = vrot.lane.b32.xlu0 %v7970, 127
    %v8015 = vpop.permute.xlu0 %8014
    %8016 = vrot.lane.b32.xlu0 %v7971, 127
    %v8017 = vpop.permute.xlu0 %8016
    %8018 = vrot.lane.b32.xlu0 %v7972, 127
    %v8019 = vpop.permute.xlu0 %8018
    %8020 = vrot.lane.b32.xlu0 %v7973, 127
    %v8021 = vpop.permute.xlu0 %8020
    %v8038 = vadd.f32 %v7942, %v7991
    %v8039 = vadd.f32 %v7943, %v7993
    %v8040 = vadd.f32 %v7944, %v7995
    %v8041 = vadd.f32 %v7945, %v7997
    %v8042 = vadd.f32 %v7946, %v7999
    %v8043 = vadd.f32 %v7947, %v8001
    %v8044 = vadd.f32 %v7948, %v8003
    %v8045 = vadd.f32 %v7949, %v8005
    %v8046 = vadd.f32 %v7950, %v8007
    %v8047 = vadd.f32 %v7951, %v8009
    %v8048 = vadd.f32 %v7952, %v8011
    %v8049 = vadd.f32 %v7953, %v8013
    %v8050 = vadd.f32 %v7954, %v8015
    %v8051 = vadd.f32 %v7955, %v8017
    %v8052 = vadd.f32 %v7956, %v8019
    %v8053 = vadd.f32 %v7957, %v8021
    %v8054 = vmul.f32 %v340, %v550
    %v8055 = vmul.f32 %v340, %v554
    %v8056 = vmul.f32 %v341, %v550
    %v8057 = vmul.f32 %v341, %v554
    %v8058 = vmul.f32 %v342, %v550
    %v8059 = vmul.f32 %v342, %v554
    %v8060 = vmul.f32 %v343, %v550
    %v8061 = vmul.f32 %v343, %v554
    %v8062 = vmul.f32 %v344, %v550
    %v8063 = vmul.f32 %v344, %v554
    %v8064 = vmul.f32 %v345, %v550
    %v8065 = vmul.f32 %v345, %v554
    %v8066 = vmul.f32 %v346, %v550
    %v8067 = vmul.f32 %v346, %v554
    %v8068 = vmul.f32 %v347, %v550
    %v8069 = vmul.f32 %v347, %v554
    %8086 = vrot.lane.b32.xlu0 %v8054, 127
    %v8087 = vpop.permute.xlu0 %8086
    %8088 = vrot.lane.b32.xlu0 %v8055, 127
    %v8089 = vpop.permute.xlu0 %8088
    %8090 = vrot.lane.b32.xlu0 %v8056, 127
    %v8091 = vpop.permute.xlu0 %8090
    %8092 = vrot.lane.b32.xlu0 %v8057, 127
    %v8093 = vpop.permute.xlu0 %8092
    %8094 = vrot.lane.b32.xlu0 %v8058, 127
    %v8095 = vpop.permute.xlu0 %8094
    %8096 = vrot.lane.b32.xlu0 %v8059, 127
    %v8097 = vpop.permute.xlu0 %8096
    %8098 = vrot.lane.b32.xlu0 %v8060, 127
    %v8099 = vpop.permute.xlu0 %8098
    %8100 = vrot.lane.b32.xlu0 %v8061, 127
    %v8101 = vpop.permute.xlu0 %8100
    %8102 = vrot.lane.b32.xlu0 %v8062, 127
    %v8103 = vpop.permute.xlu0 %8102
    %8104 = vrot.lane.b32.xlu0 %v8063, 127
    %v8105 = vpop.permute.xlu0 %8104
    %8106 = vrot.lane.b32.xlu0 %v8064, 127
    %v8107 = vpop.permute.xlu0 %8106
    %8108 = vrot.lane.b32.xlu0 %v8065, 127
    %v8109 = vpop.permute.xlu0 %8108
    %8110 = vrot.lane.b32.xlu0 %v8066, 127
    %v8111 = vpop.permute.xlu0 %8110
    %8112 = vrot.lane.b32.xlu0 %v8067, 127
    %v8113 = vpop.permute.xlu0 %8112
    %8114 = vrot.lane.b32.xlu0 %v8068, 127
    %v8115 = vpop.permute.xlu0 %8114
    %8116 = vrot.lane.b32.xlu0 %v8069, 127
    %v8117 = vpop.permute.xlu0 %8116
    %v8134 = vadd.f32 %v8038, %v8087
    %v8135 = vadd.f32 %v8039, %v8089
    %v8136 = vadd.f32 %v8040, %v8091
    %v8137 = vadd.f32 %v8041, %v8093
    %v8138 = vadd.f32 %v8042, %v8095
    %v8139 = vadd.f32 %v8043, %v8097
    %v8140 = vadd.f32 %v8044, %v8099
    %v8141 = vadd.f32 %v8045, %v8101
    %v8142 = vadd.f32 %v8046, %v8103
    %v8143 = vadd.f32 %v8047, %v8105
    %v8144 = vadd.f32 %v8048, %v8107
    %v8145 = vadd.f32 %v8049, %v8109
    %v8146 = vadd.f32 %v8050, %v8111
    %v8147 = vadd.f32 %v8051, %v8113
    %v8148 = vadd.f32 %v8052, %v8115
    %v8149 = vadd.f32 %v8053, %v8117
    %v8150 = vmul.f32 %v404, %v614
    %v8151 = vmul.f32 %v404, %v618
    %v8152 = vmul.f32 %v405, %v614
    %v8153 = vmul.f32 %v405, %v618
    %v8154 = vmul.f32 %v406, %v614
    %v8155 = vmul.f32 %v406, %v618
    %v8156 = vmul.f32 %v407, %v614
    %v8157 = vmul.f32 %v407, %v618
    %v8158 = vmul.f32 %v408, %v614
    %v8159 = vmul.f32 %v408, %v618
    %v8160 = vmul.f32 %v409, %v614
    %v8161 = vmul.f32 %v409, %v618
    %v8162 = vmul.f32 %v410, %v614
    %v8163 = vmul.f32 %v410, %v618
    %v8164 = vmul.f32 %v411, %v614
    %v8165 = vmul.f32 %v411, %v618
    %8182 = vrot.lane.b32.xlu0 %v8150, 127
    %v8183 = vpop.permute.xlu0 %8182
    %8184 = vrot.lane.b32.xlu0 %v8151, 127
    %v8185 = vpop.permute.xlu0 %8184
    %8186 = vrot.lane.b32.xlu0 %v8152, 127
    %v8187 = vpop.permute.xlu0 %8186
    %8188 = vrot.lane.b32.xlu0 %v8153, 127
    %v8189 = vpop.permute.xlu0 %8188
    %8190 = vrot.lane.b32.xlu0 %v8154, 127
    %v8191 = vpop.permute.xlu0 %8190
    %8192 = vrot.lane.b32.xlu0 %v8155, 127
    %v8193 = vpop.permute.xlu0 %8192
    %8194 = vrot.lane.b32.xlu0 %v8156, 127
    %v8195 = vpop.permute.xlu0 %8194
    %8196 = vrot.lane.b32.xlu0 %v8157, 127
    %v8197 = vpop.permute.xlu0 %8196
    %8198 = vrot.lane.b32.xlu0 %v8158, 127
    %v8199 = vpop.permute.xlu0 %8198
    %8200 = vrot.lane.b32.xlu0 %v8159, 127
    %v8201 = vpop.permute.xlu0 %8200
    %8202 = vrot.lane.b32.xlu0 %v8160, 127
    %v8203 = vpop.permute.xlu0 %8202
    %8204 = vrot.lane.b32.xlu0 %v8161, 127
    %v8205 = vpop.permute.xlu0 %8204
    %8206 = vrot.lane.b32.xlu0 %v8162, 127
    %v8207 = vpop.permute.xlu0 %8206
    %8208 = vrot.lane.b32.xlu0 %v8163, 127
    %v8209 = vpop.permute.xlu0 %8208
    %8210 = vrot.lane.b32.xlu0 %v8164, 127
    %v8211 = vpop.permute.xlu0 %8210
    %8212 = vrot.lane.b32.xlu0 %v8165, 127
    %v8213 = vpop.permute.xlu0 %8212
    %v8230 = vadd.f32 %v8134, %v8183
    %v8231 = vadd.f32 %v8135, %v8185
    %v8232 = vadd.f32 %v8136, %v8187
    %v8233 = vadd.f32 %v8137, %v8189
    %v8234 = vadd.f32 %v8138, %v8191
    %v8235 = vadd.f32 %v8139, %v8193
    %v8236 = vadd.f32 %v8140, %v8195
    %v8237 = vadd.f32 %v8141, %v8197
    %v8238 = vadd.f32 %v8142, %v8199
    %v8239 = vadd.f32 %v8143, %v8201
    %v8240 = vadd.f32 %v8144, %v8203
    %v8241 = vadd.f32 %v8145, %v8205
    %v8242 = vadd.f32 %v8146, %v8207
    %v8243 = vadd.f32 %v8147, %v8209
    %v8244 = vadd.f32 %v8148, %v8211
    %v8245 = vadd.f32 %v8149, %v8213
    %v8246 = vmul.f32 %v468, %v678
    %v8247 = vmul.f32 %v468, %v682
    %v8248 = vmul.f32 %v469, %v678
    %v8249 = vmul.f32 %v469, %v682
    %v8250 = vmul.f32 %v470, %v678
    %v8251 = vmul.f32 %v470, %v682
    %v8252 = vmul.f32 %v471, %v678
    %v8253 = vmul.f32 %v471, %v682
    %v8254 = vmul.f32 %v472, %v678
    %v8255 = vmul.f32 %v472, %v682
    %v8256 = vmul.f32 %v473, %v678
    %v8257 = vmul.f32 %v473, %v682
    %v8258 = vmul.f32 %v474, %v678
    %v8259 = vmul.f32 %v474, %v682
    %v8260 = vmul.f32 %v475, %v678
    %v8261 = vmul.f32 %v475, %v682
    %8278 = vrot.lane.b32.xlu0 %v8246, 127
    %v8279 = vpop.permute.xlu0 %8278
    %8280 = vrot.lane.b32.xlu0 %v8247, 127
    %v8281 = vpop.permute.xlu0 %8280
    %8282 = vrot.lane.b32.xlu0 %v8248, 127
    %v8283 = vpop.permute.xlu0 %8282
    %8284 = vrot.lane.b32.xlu0 %v8249, 127
    %v8285 = vpop.permute.xlu0 %8284
    %8286 = vrot.lane.b32.xlu0 %v8250, 127
    %v8287 = vpop.permute.xlu0 %8286
    %8288 = vrot.lane.b32.xlu0 %v8251, 127
    %v8289 = vpop.permute.xlu0 %8288
    %8290 = vrot.lane.b32.xlu0 %v8252, 127
    %v8291 = vpop.permute.xlu0 %8290
    %8292 = vrot.lane.b32.xlu0 %v8253, 127
    %v8293 = vpop.permute.xlu0 %8292
    %8294 = vrot.lane.b32.xlu0 %v8254, 127
    %v8295 = vpop.permute.xlu0 %8294
    %8296 = vrot.lane.b32.xlu0 %v8255, 127
    %v8297 = vpop.permute.xlu0 %8296
    %8298 = vrot.lane.b32.xlu0 %v8256, 127
    %v8299 = vpop.permute.xlu0 %8298
    %8300 = vrot.lane.b32.xlu0 %v8257, 127
    %v8301 = vpop.permute.xlu0 %8300
    %8302 = vrot.lane.b32.xlu0 %v8258, 127
    %v8303 = vpop.permute.xlu0 %8302
    %8304 = vrot.lane.b32.xlu0 %v8259, 127
    %v8305 = vpop.permute.xlu0 %8304
    %8306 = vrot.lane.b32.xlu0 %v8260, 127
    %v8307 = vpop.permute.xlu0 %8306
    %8308 = vrot.lane.b32.xlu0 %v8261, 127
    %v8309 = vpop.permute.xlu0 %8308
    %v8326 = vadd.f32 %v8230, %v8279
    %v8327 = vadd.f32 %v8231, %v8281
    %v8328 = vadd.f32 %v8232, %v8283
    %v8329 = vadd.f32 %v8233, %v8285
    %v8330 = vadd.f32 %v8234, %v8287
    %v8331 = vadd.f32 %v8235, %v8289
    %v8332 = vadd.f32 %v8236, %v8291
    %v8333 = vadd.f32 %v8237, %v8293
    %v8334 = vadd.f32 %v8238, %v8295
    %v8335 = vadd.f32 %v8239, %v8297
    %v8336 = vadd.f32 %v8240, %v8299
    %v8337 = vadd.f32 %v8241, %v8301
    %v8338 = vadd.f32 %v8242, %v8303
    %v8339 = vadd.f32 %v8243, %v8305
    %v8340 = vadd.f32 %v8244, %v8307
    %v8341 = vadd.f32 %v8245, %v8309
    %v8342 = vmul.f32 %v532, %v742
    %v8343 = vmul.f32 %v532, %v746
    %v8344 = vmul.f32 %v533, %v742
    %v8345 = vmul.f32 %v533, %v746
    %v8346 = vmul.f32 %v534, %v742
    %v8347 = vmul.f32 %v534, %v746
    %v8348 = vmul.f32 %v535, %v742
    %v8349 = vmul.f32 %v535, %v746
    %v8350 = vmul.f32 %v536, %v742
    %v8351 = vmul.f32 %v536, %v746
    %v8352 = vmul.f32 %v537, %v742
    %v8353 = vmul.f32 %v537, %v746
    %v8354 = vmul.f32 %v538, %v742
    %v8355 = vmul.f32 %v538, %v746
    %v8356 = vmul.f32 %v539, %v742
    %v8357 = vmul.f32 %v539, %v746
    %8374 = vrot.lane.b32.xlu0 %v8342, 127
    %v8375 = vpop.permute.xlu0 %8374
    %8376 = vrot.lane.b32.xlu0 %v8343, 127
    %v8377 = vpop.permute.xlu0 %8376
    %8378 = vrot.lane.b32.xlu0 %v8344, 127
    %v8379 = vpop.permute.xlu0 %8378
    %8380 = vrot.lane.b32.xlu0 %v8345, 127
    %v8381 = vpop.permute.xlu0 %8380
    %8382 = vrot.lane.b32.xlu0 %v8346, 127
    %v8383 = vpop.permute.xlu0 %8382
    %8384 = vrot.lane.b32.xlu0 %v8347, 127
    %v8385 = vpop.permute.xlu0 %8384
    %8386 = vrot.lane.b32.xlu0 %v8348, 127
    %v8387 = vpop.permute.xlu0 %8386
    %8388 = vrot.lane.b32.xlu0 %v8349, 127
    %v8389 = vpop.permute.xlu0 %8388
    %8390 = vrot.lane.b32.xlu0 %v8350, 127
    %v8391 = vpop.permute.xlu0 %8390
    %8392 = vrot.lane.b32.xlu0 %v8351, 127
    %v8393 = vpop.permute.xlu0 %8392
    %8394 = vrot.lane.b32.xlu0 %v8352, 127
    %v8395 = vpop.permute.xlu0 %8394
    %8396 = vrot.lane.b32.xlu0 %v8353, 127
    %v8397 = vpop.permute.xlu0 %8396
    %8398 = vrot.lane.b32.xlu0 %v8354, 127
    %v8399 = vpop.permute.xlu0 %8398
    %8400 = vrot.lane.b32.xlu0 %v8355, 127
    %v8401 = vpop.permute.xlu0 %8400
    %8402 = vrot.lane.b32.xlu0 %v8356, 127
    %v8403 = vpop.permute.xlu0 %8402
    %8404 = vrot.lane.b32.xlu0 %v8357, 127
    %v8405 = vpop.permute.xlu0 %8404
    %v8422 = vadd.f32 %v8326, %v8375
    %v8423 = vadd.f32 %v8327, %v8377
    %v8424 = vadd.f32 %v8328, %v8379
    %v8425 = vadd.f32 %v8329, %v8381
    %v8426 = vadd.f32 %v8330, %v8383
    %v8427 = vadd.f32 %v8331, %v8385
    %v8428 = vadd.f32 %v8332, %v8387
    %v8429 = vadd.f32 %v8333, %v8389
    %v8430 = vadd.f32 %v8334, %v8391
    %v8431 = vadd.f32 %v8335, %v8393
    %v8432 = vadd.f32 %v8336, %v8395
    %v8433 = vadd.f32 %v8337, %v8397
    %v8434 = vadd.f32 %v8338, %v8399
    %v8435 = vadd.f32 %v8339, %v8401
    %v8436 = vadd.f32 %v8340, %v8403
    %v8437 = vadd.f32 %v8341, %v8405
    %v8438 = vmul.f32 %v596, %v806
    %v8439 = vmul.f32 %v596, %v810
    %v8440 = vmul.f32 %v597, %v806
    %v8441 = vmul.f32 %v597, %v810
    %v8442 = vmul.f32 %v598, %v806
    %v8443 = vmul.f32 %v598, %v810
    %v8444 = vmul.f32 %v599, %v806
    %v8445 = vmul.f32 %v599, %v810
    %v8446 = vmul.f32 %v600, %v806
    %v8447 = vmul.f32 %v600, %v810
    %v8448 = vmul.f32 %v601, %v806
    %v8449 = vmul.f32 %v601, %v810
    %v8450 = vmul.f32 %v602, %v806
    %v8451 = vmul.f32 %v602, %v810
    %v8452 = vmul.f32 %v603, %v806
    %v8453 = vmul.f32 %v603, %v810
    %8470 = vrot.lane.b32.xlu0 %v8438, 127
    %v8471 = vpop.permute.xlu0 %8470
    %8472 = vrot.lane.b32.xlu0 %v8439, 127
    %v8473 = vpop.permute.xlu0 %8472
    %8474 = vrot.lane.b32.xlu0 %v8440, 127
    %v8475 = vpop.permute.xlu0 %8474
    %8476 = vrot.lane.b32.xlu0 %v8441, 127
    %v8477 = vpop.permute.xlu0 %8476
    %8478 = vrot.lane.b32.xlu0 %v8442, 127
    %v8479 = vpop.permute.xlu0 %8478
    %8480 = vrot.lane.b32.xlu0 %v8443, 127
    %v8481 = vpop.permute.xlu0 %8480
    %8482 = vrot.lane.b32.xlu0 %v8444, 127
    %v8483 = vpop.permute.xlu0 %8482
    %8484 = vrot.lane.b32.xlu0 %v8445, 127
    %v8485 = vpop.permute.xlu0 %8484
    %8486 = vrot.lane.b32.xlu0 %v8446, 127
    %v8487 = vpop.permute.xlu0 %8486
    %8488 = vrot.lane.b32.xlu0 %v8447, 127
    %v8489 = vpop.permute.xlu0 %8488
    %8490 = vrot.lane.b32.xlu0 %v8448, 127
    %v8491 = vpop.permute.xlu0 %8490
    %8492 = vrot.lane.b32.xlu0 %v8449, 127
    %v8493 = vpop.permute.xlu0 %8492
    %8494 = vrot.lane.b32.xlu0 %v8450, 127
    %v8495 = vpop.permute.xlu0 %8494
    %8496 = vrot.lane.b32.xlu0 %v8451, 127
    %v8497 = vpop.permute.xlu0 %8496
    %8498 = vrot.lane.b32.xlu0 %v8452, 127
    %v8499 = vpop.permute.xlu0 %8498
    %8500 = vrot.lane.b32.xlu0 %v8453, 127
    %v8501 = vpop.permute.xlu0 %8500
    %v8518 = vadd.f32 %v8422, %v8471
    %v8519 = vadd.f32 %v8423, %v8473
    %v8520 = vadd.f32 %v8424, %v8475
    %v8521 = vadd.f32 %v8425, %v8477
    %v8522 = vadd.f32 %v8426, %v8479
    %v8523 = vadd.f32 %v8427, %v8481
    %v8524 = vadd.f32 %v8428, %v8483
    %v8525 = vadd.f32 %v8429, %v8485
    %v8526 = vadd.f32 %v8430, %v8487
    %v8527 = vadd.f32 %v8431, %v8489
    %v8528 = vadd.f32 %v8432, %v8491
    %v8529 = vadd.f32 %v8433, %v8493
    %v8530 = vadd.f32 %v8434, %v8495
    %v8531 = vadd.f32 %v8435, %v8497
    %v8532 = vadd.f32 %v8436, %v8499
    %v8533 = vadd.f32 %v8437, %v8501
    %v8534 = vmul.f32 %v660, %v846
    %v8535 = vmul.f32 %v660, %v850
    %v8536 = vmul.f32 %v661, %v846
    %v8537 = vmul.f32 %v661, %v850
    %v8538 = vmul.f32 %v662, %v846
    %v8539 = vmul.f32 %v662, %v850
    %v8540 = vmul.f32 %v663, %v846
    %v8541 = vmul.f32 %v663, %v850
    %v8542 = vmul.f32 %v664, %v846
    %v8543 = vmul.f32 %v664, %v850
    %v8544 = vmul.f32 %v665, %v846
    %v8545 = vmul.f32 %v665, %v850
    %v8546 = vmul.f32 %v666, %v846
    %v8547 = vmul.f32 %v666, %v850
    %v8548 = vmul.f32 %v667, %v846
    %v8549 = vmul.f32 %v667, %v850
    %8566 = vrot.lane.b32.xlu0 %v8534, 127
    %v8567 = vpop.permute.xlu0 %8566
    %8568 = vrot.lane.b32.xlu0 %v8535, 127
    %v8569 = vpop.permute.xlu0 %8568
    %8570 = vrot.lane.b32.xlu0 %v8536, 127
    %v8571 = vpop.permute.xlu0 %8570
    %8572 = vrot.lane.b32.xlu0 %v8537, 127
    %v8573 = vpop.permute.xlu0 %8572
    %8574 = vrot.lane.b32.xlu0 %v8538, 127
    %v8575 = vpop.permute.xlu0 %8574
    %8576 = vrot.lane.b32.xlu0 %v8539, 127
    %v8577 = vpop.permute.xlu0 %8576
    %8578 = vrot.lane.b32.xlu0 %v8540, 127
    %v8579 = vpop.permute.xlu0 %8578
    %8580 = vrot.lane.b32.xlu0 %v8541, 127
    %v8581 = vpop.permute.xlu0 %8580
    %8582 = vrot.lane.b32.xlu0 %v8542, 127
    %v8583 = vpop.permute.xlu0 %8582
    %8584 = vrot.lane.b32.xlu0 %v8543, 127
    %v8585 = vpop.permute.xlu0 %8584
    %8586 = vrot.lane.b32.xlu0 %v8544, 127
    %v8587 = vpop.permute.xlu0 %8586
    %8588 = vrot.lane.b32.xlu0 %v8545, 127
    %v8589 = vpop.permute.xlu0 %8588
    %8590 = vrot.lane.b32.xlu0 %v8546, 127
    %v8591 = vpop.permute.xlu0 %8590
    %8592 = vrot.lane.b32.xlu0 %v8547, 127
    %v8593 = vpop.permute.xlu0 %8592
    %8594 = vrot.lane.b32.xlu0 %v8548, 127
    %v8595 = vpop.permute.xlu0 %8594
    %8596 = vrot.lane.b32.xlu0 %v8549, 127
    %v8597 = vpop.permute.xlu0 %8596
    %v8614 = vadd.f32 %v8518, %v8567
    %v8615 = vadd.f32 %v8519, %v8569
    %v8616 = vadd.f32 %v8520, %v8571
    %v8617 = vadd.f32 %v8521, %v8573
    %v8618 = vadd.f32 %v8522, %v8575
    %v8619 = vadd.f32 %v8523, %v8577
    %v8620 = vadd.f32 %v8524, %v8579
    %v8621 = vadd.f32 %v8525, %v8581
    %v8622 = vadd.f32 %v8526, %v8583
    %v8623 = vadd.f32 %v8527, %v8585
    %v8624 = vadd.f32 %v8528, %v8587
    %v8625 = vadd.f32 %v8529, %v8589
    %v8626 = vadd.f32 %v8530, %v8591
    %v8627 = vadd.f32 %v8531, %v8593
    %v8628 = vadd.f32 %v8532, %v8595
    %v8629 = vadd.f32 %v8533, %v8597
    %v8630 = vmul.f32 %v724, %v950
    %v8631 = vmul.f32 %v724, %v954
    %v8632 = vmul.f32 %v725, %v950
    %v8633 = vmul.f32 %v725, %v954
    %v8634 = vmul.f32 %v726, %v950
    %v8635 = vmul.f32 %v726, %v954
    %v8636 = vmul.f32 %v727, %v950
    %v8637 = vmul.f32 %v727, %v954
    %v8638 = vmul.f32 %v728, %v950
    %v8639 = vmul.f32 %v728, %v954
    %v8640 = vmul.f32 %v729, %v950
    %v8641 = vmul.f32 %v729, %v954
    %v8642 = vmul.f32 %v730, %v950
    %v8643 = vmul.f32 %v730, %v954
    %v8644 = vmul.f32 %v731, %v950
    %v8645 = vmul.f32 %v731, %v954
    %8662 = vrot.lane.b32.xlu0 %v8630, 127
    %v8663 = vpop.permute.xlu0 %8662
    %8664 = vrot.lane.b32.xlu0 %v8631, 127
    %v8665 = vpop.permute.xlu0 %8664
    %8666 = vrot.lane.b32.xlu0 %v8632, 127
    %v8667 = vpop.permute.xlu0 %8666
    %8668 = vrot.lane.b32.xlu0 %v8633, 127
    %v8669 = vpop.permute.xlu0 %8668
    %8670 = vrot.lane.b32.xlu0 %v8634, 127
    %v8671 = vpop.permute.xlu0 %8670
    %8672 = vrot.lane.b32.xlu0 %v8635, 127
    %v8673 = vpop.permute.xlu0 %8672
    %8674 = vrot.lane.b32.xlu0 %v8636, 127
    %v8675 = vpop.permute.xlu0 %8674
    %8676 = vrot.lane.b32.xlu0 %v8637, 127
    %v8677 = vpop.permute.xlu0 %8676
    %8678 = vrot.lane.b32.xlu0 %v8638, 127
    %v8679 = vpop.permute.xlu0 %8678
    %8680 = vrot.lane.b32.xlu0 %v8639, 127
    %v8681 = vpop.permute.xlu0 %8680
    %8682 = vrot.lane.b32.xlu0 %v8640, 127
    %v8683 = vpop.permute.xlu0 %8682
    %8684 = vrot.lane.b32.xlu0 %v8641, 127
    %v8685 = vpop.permute.xlu0 %8684
    %8686 = vrot.lane.b32.xlu0 %v8642, 127
    %v8687 = vpop.permute.xlu0 %8686
    %8688 = vrot.lane.b32.xlu0 %v8643, 127
    %v8689 = vpop.permute.xlu0 %8688
    %8690 = vrot.lane.b32.xlu0 %v8644, 127
    %v8691 = vpop.permute.xlu0 %8690
    %8692 = vrot.lane.b32.xlu0 %v8645, 127
    %v8693 = vpop.permute.xlu0 %8692
    %v8710 = vadd.f32 %v8614, %v8663
    %v8711 = vadd.f32 %v8615, %v8665
    %v8712 = vadd.f32 %v8616, %v8667
    %v8713 = vadd.f32 %v8617, %v8669
    %v8714 = vadd.f32 %v8618, %v8671
    %v8715 = vadd.f32 %v8619, %v8673
    %v8716 = vadd.f32 %v8620, %v8675
    %v8717 = vadd.f32 %v8621, %v8677
    %v8718 = vadd.f32 %v8622, %v8679
    %v8719 = vadd.f32 %v8623, %v8681
    %v8720 = vadd.f32 %v8624, %v8683
    %v8721 = vadd.f32 %v8625, %v8685
    %v8722 = vadd.f32 %v8626, %v8687
    %v8723 = vadd.f32 %v8627, %v8689
    %v8724 = vadd.f32 %v8628, %v8691
    %v8725 = vadd.f32 %v8629, %v8693
    %v8726 = vmul.f32 %v788, %v1054
    %v8727 = vmul.f32 %v788, %v1058
    %v8728 = vmul.f32 %v789, %v1054
    %v8729 = vmul.f32 %v789, %v1058
    %v8730 = vmul.f32 %v790, %v1054
    %v8731 = vmul.f32 %v790, %v1058
    %v8732 = vmul.f32 %v791, %v1054
    %v8733 = vmul.f32 %v791, %v1058
    %v8734 = vmul.f32 %v792, %v1054
    %v8735 = vmul.f32 %v792, %v1058
    %v8736 = vmul.f32 %v793, %v1054
    %v8737 = vmul.f32 %v793, %v1058
    %v8738 = vmul.f32 %v794, %v1054
    %v8739 = vmul.f32 %v794, %v1058
    %v8740 = vmul.f32 %v795, %v1054
    %v8741 = vmul.f32 %v795, %v1058
    %8758 = vrot.lane.b32.xlu0 %v8726, 127
    %v8759 = vpop.permute.xlu0 %8758
    %8760 = vrot.lane.b32.xlu0 %v8727, 127
    %v8761 = vpop.permute.xlu0 %8760
    %8762 = vrot.lane.b32.xlu0 %v8728, 127
    %v8763 = vpop.permute.xlu0 %8762
    %8764 = vrot.lane.b32.xlu0 %v8729, 127
    %v8765 = vpop.permute.xlu0 %8764
    %8766 = vrot.lane.b32.xlu0 %v8730, 127
    %v8767 = vpop.permute.xlu0 %8766
    %8768 = vrot.lane.b32.xlu0 %v8731, 127
    %v8769 = vpop.permute.xlu0 %8768
    %8770 = vrot.lane.b32.xlu0 %v8732, 127
    %v8771 = vpop.permute.xlu0 %8770
    %8772 = vrot.lane.b32.xlu0 %v8733, 127
    %v8773 = vpop.permute.xlu0 %8772
    %8774 = vrot.lane.b32.xlu0 %v8734, 127
    %v8775 = vpop.permute.xlu0 %8774
    %8776 = vrot.lane.b32.xlu0 %v8735, 127
    %v8777 = vpop.permute.xlu0 %8776
    %8778 = vrot.lane.b32.xlu0 %v8736, 127
    %v8779 = vpop.permute.xlu0 %8778
    %8780 = vrot.lane.b32.xlu0 %v8737, 127
    %v8781 = vpop.permute.xlu0 %8780
    %8782 = vrot.lane.b32.xlu0 %v8738, 127
    %v8783 = vpop.permute.xlu0 %8782
    %8784 = vrot.lane.b32.xlu0 %v8739, 127
    %v8785 = vpop.permute.xlu0 %8784
    %8786 = vrot.lane.b32.xlu0 %v8740, 127
    %v8787 = vpop.permute.xlu0 %8786
    %8788 = vrot.lane.b32.xlu0 %v8741, 127
    %v8789 = vpop.permute.xlu0 %8788
    %v8806 = vadd.f32 %v8710, %v8759
    %v8807 = vadd.f32 %v8711, %v8761
    %v8808 = vadd.f32 %v8712, %v8763
    %v8809 = vadd.f32 %v8713, %v8765
    %v8810 = vadd.f32 %v8714, %v8767
    %v8811 = vadd.f32 %v8715, %v8769
    %v8812 = vadd.f32 %v8716, %v8771
    %v8813 = vadd.f32 %v8717, %v8773
    %v8814 = vadd.f32 %v8718, %v8775
    %v8815 = vadd.f32 %v8719, %v8777
    %v8816 = vadd.f32 %v8720, %v8779
    %v8817 = vadd.f32 %v8721, %v8781
    %v8818 = vadd.f32 %v8722, %v8783
    %v8819 = vadd.f32 %v8723, %v8785
    %v8820 = vadd.f32 %v8724, %v8787
    %v8821 = vadd.f32 %v8725, %v8789
    %v8822 = vmul.f32 %v82, %v1158
    %v8823 = vmul.f32 %v82, %v1162
    %v8824 = vmul.f32 %v83, %v1158
    %v8825 = vmul.f32 %v83, %v1162
    %v8826 = vmul.f32 %v84, %v1158
    %v8827 = vmul.f32 %v84, %v1162
    %v8828 = vmul.f32 %v85, %v1158
    %v8829 = vmul.f32 %v85, %v1162
    %v8830 = vmul.f32 %v86, %v1158
    %v8831 = vmul.f32 %v86, %v1162
    %v8832 = vmul.f32 %v87, %v1158
    %v8833 = vmul.f32 %v87, %v1162
    %v8834 = vmul.f32 %v88, %v1158
    %v8835 = vmul.f32 %v88, %v1162
    %v8836 = vmul.f32 %v89, %v1158
    %v8837 = vmul.f32 %v89, %v1162
    %8854 = vrot.lane.b32.xlu0 %v8822, 126
    %v8855 = vpop.permute.xlu0 %8854
    %8856 = vrot.lane.b32.xlu0 %v8823, 126
    %v8857 = vpop.permute.xlu0 %8856
    %8858 = vrot.lane.b32.xlu0 %v8824, 126
    %v8859 = vpop.permute.xlu0 %8858
    %8860 = vrot.lane.b32.xlu0 %v8825, 126
    %v8861 = vpop.permute.xlu0 %8860
    %8862 = vrot.lane.b32.xlu0 %v8826, 126
    %v8863 = vpop.permute.xlu0 %8862
    %8864 = vrot.lane.b32.xlu0 %v8827, 126
    %v8865 = vpop.permute.xlu0 %8864
    %8866 = vrot.lane.b32.xlu0 %v8828, 126
    %v8867 = vpop.permute.xlu0 %8866
    %8868 = vrot.lane.b32.xlu0 %v8829, 126
    %v8869 = vpop.permute.xlu0 %8868
    %8870 = vrot.lane.b32.xlu0 %v8830, 126
    %v8871 = vpop.permute.xlu0 %8870
    %8872 = vrot.lane.b32.xlu0 %v8831, 126
    %v8873 = vpop.permute.xlu0 %8872
    %8874 = vrot.lane.b32.xlu0 %v8832, 126
    %v8875 = vpop.permute.xlu0 %8874
    %8876 = vrot.lane.b32.xlu0 %v8833, 126
    %v8877 = vpop.permute.xlu0 %8876
    %8878 = vrot.lane.b32.xlu0 %v8834, 126
    %v8879 = vpop.permute.xlu0 %8878
    %8880 = vrot.lane.b32.xlu0 %v8835, 126
    %v8881 = vpop.permute.xlu0 %8880
    %8882 = vrot.lane.b32.xlu0 %v8836, 126
    %v8883 = vpop.permute.xlu0 %8882
    %8884 = vrot.lane.b32.xlu0 %v8837, 126
    %v8885 = vpop.permute.xlu0 %8884
    %v8902 = vadd.f32 %v8806, %v8855
    %v8903 = vadd.f32 %v8807, %v8857
    %v8904 = vadd.f32 %v8808, %v8859
    %v8905 = vadd.f32 %v8809, %v8861
    %v8906 = vadd.f32 %v8810, %v8863
    %v8907 = vadd.f32 %v8811, %v8865
    %v8908 = vadd.f32 %v8812, %v8867
    %v8909 = vadd.f32 %v8813, %v8869
    %v8910 = vadd.f32 %v8814, %v8871
    %v8911 = vadd.f32 %v8815, %v8873
    %v8912 = vadd.f32 %v8816, %v8875
    %v8913 = vadd.f32 %v8817, %v8877
    %v8914 = vadd.f32 %v8818, %v8879
    %v8915 = vadd.f32 %v8819, %v8881
    %v8916 = vadd.f32 %v8820, %v8883
    %v8917 = vadd.f32 %v8821, %v8885
    %v8918 = vmul.f32 %v148, %v1262
    %v8919 = vmul.f32 %v148, %v1266
    %v8920 = vmul.f32 %v149, %v1262
    %v8921 = vmul.f32 %v149, %v1266
    %v8922 = vmul.f32 %v150, %v1262
    %v8923 = vmul.f32 %v150, %v1266
    %v8924 = vmul.f32 %v151, %v1262
    %v8925 = vmul.f32 %v151, %v1266
    %v8926 = vmul.f32 %v152, %v1262
    %v8927 = vmul.f32 %v152, %v1266
    %v8928 = vmul.f32 %v153, %v1262
    %v8929 = vmul.f32 %v153, %v1266
    %v8930 = vmul.f32 %v154, %v1262
    %v8931 = vmul.f32 %v154, %v1266
    %v8932 = vmul.f32 %v155, %v1262
    %v8933 = vmul.f32 %v155, %v1266
    %8950 = vrot.lane.b32.xlu0 %v8918, 126
    %v8951 = vpop.permute.xlu0 %8950
    %8952 = vrot.lane.b32.xlu0 %v8919, 126
    %v8953 = vpop.permute.xlu0 %8952
    %8954 = vrot.lane.b32.xlu0 %v8920, 126
    %v8955 = vpop.permute.xlu0 %8954
    %8956 = vrot.lane.b32.xlu0 %v8921, 126
    %v8957 = vpop.permute.xlu0 %8956
    %8958 = vrot.lane.b32.xlu0 %v8922, 126
    %v8959 = vpop.permute.xlu0 %8958
    %8960 = vrot.lane.b32.xlu0 %v8923, 126
    %v8961 = vpop.permute.xlu0 %8960
    %8962 = vrot.lane.b32.xlu0 %v8924, 126
    %v8963 = vpop.permute.xlu0 %8962
    %8964 = vrot.lane.b32.xlu0 %v8925, 126
    %v8965 = vpop.permute.xlu0 %8964
    %8966 = vrot.lane.b32.xlu0 %v8926, 126
    %v8967 = vpop.permute.xlu0 %8966
    %8968 = vrot.lane.b32.xlu0 %v8927, 126
    %v8969 = vpop.permute.xlu0 %8968
    %8970 = vrot.lane.b32.xlu0 %v8928, 126
    %v8971 = vpop.permute.xlu0 %8970
    %8972 = vrot.lane.b32.xlu0 %v8929, 126
    %v8973 = vpop.permute.xlu0 %8972
    %8974 = vrot.lane.b32.xlu0 %v8930, 126
    %v8975 = vpop.permute.xlu0 %8974
    %8976 = vrot.lane.b32.xlu0 %v8931, 126
    %v8977 = vpop.permute.xlu0 %8976
    %8978 = vrot.lane.b32.xlu0 %v8932, 126
    %v8979 = vpop.permute.xlu0 %8978
    %8980 = vrot.lane.b32.xlu0 %v8933, 126
    %v8981 = vpop.permute.xlu0 %8980
    %v8998 = vadd.f32 %v8902, %v8951
    %v8999 = vadd.f32 %v8903, %v8953
    %v9000 = vadd.f32 %v8904, %v8955
    %v9001 = vadd.f32 %v8905, %v8957
    %v9002 = vadd.f32 %v8906, %v8959
    %v9003 = vadd.f32 %v8907, %v8961
    %v9004 = vadd.f32 %v8908, %v8963
    %v9005 = vadd.f32 %v8909, %v8965
    %v9006 = vadd.f32 %v8910, %v8967
    %v9007 = vadd.f32 %v8911, %v8969
    %v9008 = vadd.f32 %v8912, %v8971
    %v9009 = vadd.f32 %v8913, %v8973
    %v9010 = vadd.f32 %v8914, %v8975
    %v9011 = vadd.f32 %v8915, %v8977
    %v9012 = vadd.f32 %v8916, %v8979
    %v9013 = vadd.f32 %v8917, %v8981
    %v9014 = vmul.f32 %v212, %v1366
    %v9015 = vmul.f32 %v212, %v1370
    %v9016 = vmul.f32 %v213, %v1366
    %v9017 = vmul.f32 %v213, %v1370
    %v9018 = vmul.f32 %v214, %v1366
    %v9019 = vmul.f32 %v214, %v1370
    %v9020 = vmul.f32 %v215, %v1366
    %v9021 = vmul.f32 %v215, %v1370
    %v9022 = vmul.f32 %v216, %v1366
    %v9023 = vmul.f32 %v216, %v1370
    %v9024 = vmul.f32 %v217, %v1366
    %v9025 = vmul.f32 %v217, %v1370
    %v9026 = vmul.f32 %v218, %v1366
    %v9027 = vmul.f32 %v218, %v1370
    %v9028 = vmul.f32 %v219, %v1366
    %v9029 = vmul.f32 %v219, %v1370
    %9046 = vrot.lane.b32.xlu0 %v9014, 126
    %v9047 = vpop.permute.xlu0 %9046
    %9048 = vrot.lane.b32.xlu0 %v9015, 126
    %v9049 = vpop.permute.xlu0 %9048
    %9050 = vrot.lane.b32.xlu0 %v9016, 126
    %v9051 = vpop.permute.xlu0 %9050
    %9052 = vrot.lane.b32.xlu0 %v9017, 126
    %v9053 = vpop.permute.xlu0 %9052
    %9054 = vrot.lane.b32.xlu0 %v9018, 126
    %v9055 = vpop.permute.xlu0 %9054
    %9056 = vrot.lane.b32.xlu0 %v9019, 126
    %v9057 = vpop.permute.xlu0 %9056
    %9058 = vrot.lane.b32.xlu0 %v9020, 126
    %v9059 = vpop.permute.xlu0 %9058
    %9060 = vrot.lane.b32.xlu0 %v9021, 126
    %v9061 = vpop.permute.xlu0 %9060
    %9062 = vrot.lane.b32.xlu0 %v9022, 126
    %v9063 = vpop.permute.xlu0 %9062
    %9064 = vrot.lane.b32.xlu0 %v9023, 126
    %v9065 = vpop.permute.xlu0 %9064
    %9066 = vrot.lane.b32.xlu0 %v9024, 126
    %v9067 = vpop.permute.xlu0 %9066
    %9068 = vrot.lane.b32.xlu0 %v9025, 126
    %v9069 = vpop.permute.xlu0 %9068
    %9070 = vrot.lane.b32.xlu0 %v9026, 126
    %v9071 = vpop.permute.xlu0 %9070
    %9072 = vrot.lane.b32.xlu0 %v9027, 126
    %v9073 = vpop.permute.xlu0 %9072
    %9074 = vrot.lane.b32.xlu0 %v9028, 126
    %v9075 = vpop.permute.xlu0 %9074
    %9076 = vrot.lane.b32.xlu0 %v9029, 126
    %v9077 = vpop.permute.xlu0 %9076
    %v9094 = vadd.f32 %v8998, %v9047
    %v9095 = vadd.f32 %v8999, %v9049
    %v9096 = vadd.f32 %v9000, %v9051
    %v9097 = vadd.f32 %v9001, %v9053
    %v9098 = vadd.f32 %v9002, %v9055
    %v9099 = vadd.f32 %v9003, %v9057
    %v9100 = vadd.f32 %v9004, %v9059
    %v9101 = vadd.f32 %v9005, %v9061
    %v9102 = vadd.f32 %v9006, %v9063
    %v9103 = vadd.f32 %v9007, %v9065
    %v9104 = vadd.f32 %v9008, %v9067
    %v9105 = vadd.f32 %v9009, %v9069
    %v9106 = vadd.f32 %v9010, %v9071
    %v9107 = vadd.f32 %v9011, %v9073
    %v9108 = vadd.f32 %v9012, %v9075
    %v9109 = vadd.f32 %v9013, %v9077
    %v9110 = vmul.f32 %v276, %v1470
    %v9111 = vmul.f32 %v276, %v1474
    %v9112 = vmul.f32 %v277, %v1470
    %v9113 = vmul.f32 %v277, %v1474
    %v9114 = vmul.f32 %v278, %v1470
    %v9115 = vmul.f32 %v278, %v1474
    %v9116 = vmul.f32 %v279, %v1470
    %v9117 = vmul.f32 %v279, %v1474
    %v9118 = vmul.f32 %v280, %v1470
    %v9119 = vmul.f32 %v280, %v1474
    %v9120 = vmul.f32 %v281, %v1470
    %v9121 = vmul.f32 %v281, %v1474
    %v9122 = vmul.f32 %v282, %v1470
    %v9123 = vmul.f32 %v282, %v1474
    %v9124 = vmul.f32 %v283, %v1470
    %v9125 = vmul.f32 %v283, %v1474
    %9142 = vrot.lane.b32.xlu0 %v9110, 126
    %v9143 = vpop.permute.xlu0 %9142
    %9144 = vrot.lane.b32.xlu0 %v9111, 126
    %v9145 = vpop.permute.xlu0 %9144
    %9146 = vrot.lane.b32.xlu0 %v9112, 126
    %v9147 = vpop.permute.xlu0 %9146
    %9148 = vrot.lane.b32.xlu0 %v9113, 126
    %v9149 = vpop.permute.xlu0 %9148
    %9150 = vrot.lane.b32.xlu0 %v9114, 126
    %v9151 = vpop.permute.xlu0 %9150
    %9152 = vrot.lane.b32.xlu0 %v9115, 126
    %v9153 = vpop.permute.xlu0 %9152
    %9154 = vrot.lane.b32.xlu0 %v9116, 126
    %v9155 = vpop.permute.xlu0 %9154
    %9156 = vrot.lane.b32.xlu0 %v9117, 126
    %v9157 = vpop.permute.xlu0 %9156
    %9158 = vrot.lane.b32.xlu0 %v9118, 126
    %v9159 = vpop.permute.xlu0 %9158
    %9160 = vrot.lane.b32.xlu0 %v9119, 126
    %v9161 = vpop.permute.xlu0 %9160
    %9162 = vrot.lane.b32.xlu0 %v9120, 126
    %v9163 = vpop.permute.xlu0 %9162
    %9164 = vrot.lane.b32.xlu0 %v9121, 126
    %v9165 = vpop.permute.xlu0 %9164
    %9166 = vrot.lane.b32.xlu0 %v9122, 126
    %v9167 = vpop.permute.xlu0 %9166
    %9168 = vrot.lane.b32.xlu0 %v9123, 126
    %v9169 = vpop.permute.xlu0 %9168
    %9170 = vrot.lane.b32.xlu0 %v9124, 126
    %v9171 = vpop.permute.xlu0 %9170
    %9172 = vrot.lane.b32.xlu0 %v9125, 126
    %v9173 = vpop.permute.xlu0 %9172
    %v9190 = vadd.f32 %v9094, %v9143
    %v9191 = vadd.f32 %v9095, %v9145
    %v9192 = vadd.f32 %v9096, %v9147
    %v9193 = vadd.f32 %v9097, %v9149
    %v9194 = vadd.f32 %v9098, %v9151
    %v9195 = vadd.f32 %v9099, %v9153
    %v9196 = vadd.f32 %v9100, %v9155
    %v9197 = vadd.f32 %v9101, %v9157
    %v9198 = vadd.f32 %v9102, %v9159
    %v9199 = vadd.f32 %v9103, %v9161
    %v9200 = vadd.f32 %v9104, %v9163
    %v9201 = vadd.f32 %v9105, %v9165
    %v9202 = vadd.f32 %v9106, %v9167
    %v9203 = vadd.f32 %v9107, %v9169
    %v9204 = vadd.f32 %v9108, %v9171
    %v9205 = vadd.f32 %v9109, %v9173
    %v9206 = vmul.f32 %v340, %v1574
    %v9207 = vmul.f32 %v340, %v1578
    %v9208 = vmul.f32 %v341, %v1574
    %v9209 = vmul.f32 %v341, %v1578
    %v9210 = vmul.f32 %v342, %v1574
    %v9211 = vmul.f32 %v342, %v1578
    %v9212 = vmul.f32 %v343, %v1574
    %v9213 = vmul.f32 %v343, %v1578
    %v9214 = vmul.f32 %v344, %v1574
    %v9215 = vmul.f32 %v344, %v1578
    %v9216 = vmul.f32 %v345, %v1574
    %v9217 = vmul.f32 %v345, %v1578
    %v9218 = vmul.f32 %v346, %v1574
    %v9219 = vmul.f32 %v346, %v1578
    %v9220 = vmul.f32 %v347, %v1574
    %v9221 = vmul.f32 %v347, %v1578
    %9238 = vrot.lane.b32.xlu0 %v9206, 126
    %v9239 = vpop.permute.xlu0 %9238
    %9240 = vrot.lane.b32.xlu0 %v9207, 126
    %v9241 = vpop.permute.xlu0 %9240
    %9242 = vrot.lane.b32.xlu0 %v9208, 126
    %v9243 = vpop.permute.xlu0 %9242
    %9244 = vrot.lane.b32.xlu0 %v9209, 126
    %v9245 = vpop.permute.xlu0 %9244
    %9246 = vrot.lane.b32.xlu0 %v9210, 126
    %v9247 = vpop.permute.xlu0 %9246
    %9248 = vrot.lane.b32.xlu0 %v9211, 126
    %v9249 = vpop.permute.xlu0 %9248
    %9250 = vrot.lane.b32.xlu0 %v9212, 126
    %v9251 = vpop.permute.xlu0 %9250
    %9252 = vrot.lane.b32.xlu0 %v9213, 126
    %v9253 = vpop.permute.xlu0 %9252
    %9254 = vrot.lane.b32.xlu0 %v9214, 126
    %v9255 = vpop.permute.xlu0 %9254
    %9256 = vrot.lane.b32.xlu0 %v9215, 126
    %v9257 = vpop.permute.xlu0 %9256
    %9258 = vrot.lane.b32.xlu0 %v9216, 126
    %v9259 = vpop.permute.xlu0 %9258
    %9260 = vrot.lane.b32.xlu0 %v9217, 126
    %v9261 = vpop.permute.xlu0 %9260
    %9262 = vrot.lane.b32.xlu0 %v9218, 126
    %v9263 = vpop.permute.xlu0 %9262
    %9264 = vrot.lane.b32.xlu0 %v9219, 126
    %v9265 = vpop.permute.xlu0 %9264
    %9266 = vrot.lane.b32.xlu0 %v9220, 126
    %v9267 = vpop.permute.xlu0 %9266
    %9268 = vrot.lane.b32.xlu0 %v9221, 126
    %v9269 = vpop.permute.xlu0 %9268
    %v9286 = vadd.f32 %v9190, %v9239
    %v9287 = vadd.f32 %v9191, %v9241
    %v9288 = vadd.f32 %v9192, %v9243
    %v9289 = vadd.f32 %v9193, %v9245
    %v9290 = vadd.f32 %v9194, %v9247
    %v9291 = vadd.f32 %v9195, %v9249
    %v9292 = vadd.f32 %v9196, %v9251
    %v9293 = vadd.f32 %v9197, %v9253
    %v9294 = vadd.f32 %v9198, %v9255
    %v9295 = vadd.f32 %v9199, %v9257
    %v9296 = vadd.f32 %v9200, %v9259
    %v9297 = vadd.f32 %v9201, %v9261
    %v9298 = vadd.f32 %v9202, %v9263
    %v9299 = vadd.f32 %v9203, %v9265
    %v9300 = vadd.f32 %v9204, %v9267
    %v9301 = vadd.f32 %v9205, %v9269
    %v9302 = vmul.f32 %v404, %v1678
    %v9303 = vmul.f32 %v404, %v1682
    %v9304 = vmul.f32 %v405, %v1678
    %v9305 = vmul.f32 %v405, %v1682
    %v9306 = vmul.f32 %v406, %v1678
    %v9307 = vmul.f32 %v406, %v1682
    %v9308 = vmul.f32 %v407, %v1678
    %v9309 = vmul.f32 %v407, %v1682
    %v9310 = vmul.f32 %v408, %v1678
    %v9311 = vmul.f32 %v408, %v1682
    %v9312 = vmul.f32 %v409, %v1678
    %v9313 = vmul.f32 %v409, %v1682
    %v9314 = vmul.f32 %v410, %v1678
    %v9315 = vmul.f32 %v410, %v1682
    %v9316 = vmul.f32 %v411, %v1678
    %v9317 = vmul.f32 %v411, %v1682
    %9334 = vrot.lane.b32.xlu0 %v9302, 126
    %v9335 = vpop.permute.xlu0 %9334
    %9336 = vrot.lane.b32.xlu0 %v9303, 126
    %v9337 = vpop.permute.xlu0 %9336
    %9338 = vrot.lane.b32.xlu0 %v9304, 126
    %v9339 = vpop.permute.xlu0 %9338
    %9340 = vrot.lane.b32.xlu0 %v9305, 126
    %v9341 = vpop.permute.xlu0 %9340
    %9342 = vrot.lane.b32.xlu0 %v9306, 126
    %v9343 = vpop.permute.xlu0 %9342
    %9344 = vrot.lane.b32.xlu0 %v9307, 126
    %v9345 = vpop.permute.xlu0 %9344
    %9346 = vrot.lane.b32.xlu0 %v9308, 126
    %v9347 = vpop.permute.xlu0 %9346
    %9348 = vrot.lane.b32.xlu0 %v9309, 126
    %v9349 = vpop.permute.xlu0 %9348
    %9350 = vrot.lane.b32.xlu0 %v9310, 126
    %v9351 = vpop.permute.xlu0 %9350
    %9352 = vrot.lane.b32.xlu0 %v9311, 126
    %v9353 = vpop.permute.xlu0 %9352
    %9354 = vrot.lane.b32.xlu0 %v9312, 126
    %v9355 = vpop.permute.xlu0 %9354
    %9356 = vrot.lane.b32.xlu0 %v9313, 126
    %v9357 = vpop.permute.xlu0 %9356
    %9358 = vrot.lane.b32.xlu0 %v9314, 126
    %v9359 = vpop.permute.xlu0 %9358
    %9360 = vrot.lane.b32.xlu0 %v9315, 126
    %v9361 = vpop.permute.xlu0 %9360
    %9362 = vrot.lane.b32.xlu0 %v9316, 126
    %v9363 = vpop.permute.xlu0 %9362
    %9364 = vrot.lane.b32.xlu0 %v9317, 126
    %v9365 = vpop.permute.xlu0 %9364
    %v9382 = vadd.f32 %v9286, %v9335
    %v9383 = vadd.f32 %v9287, %v9337
    %v9384 = vadd.f32 %v9288, %v9339
    %v9385 = vadd.f32 %v9289, %v9341
    %v9386 = vadd.f32 %v9290, %v9343
    %v9387 = vadd.f32 %v9291, %v9345
    %v9388 = vadd.f32 %v9292, %v9347
    %v9389 = vadd.f32 %v9293, %v9349
    %v9390 = vadd.f32 %v9294, %v9351
    %v9391 = vadd.f32 %v9295, %v9353
    %v9392 = vadd.f32 %v9296, %v9355
    %v9393 = vadd.f32 %v9297, %v9357
    %v9394 = vadd.f32 %v9298, %v9359
    %v9395 = vadd.f32 %v9299, %v9361
    %v9396 = vadd.f32 %v9300, %v9363
    %v9397 = vadd.f32 %v9301, %v9365
    %v9398 = vmul.f32 %v468, %v1782
    %v9399 = vmul.f32 %v468, %v1786
    %v9400 = vmul.f32 %v469, %v1782
    %v9401 = vmul.f32 %v469, %v1786
    %v9402 = vmul.f32 %v470, %v1782
    %v9403 = vmul.f32 %v470, %v1786
    %v9404 = vmul.f32 %v471, %v1782
    %v9405 = vmul.f32 %v471, %v1786
    %v9406 = vmul.f32 %v472, %v1782
    %v9407 = vmul.f32 %v472, %v1786
    %v9408 = vmul.f32 %v473, %v1782
    %v9409 = vmul.f32 %v473, %v1786
    %v9410 = vmul.f32 %v474, %v1782
    %v9411 = vmul.f32 %v474, %v1786
    %v9412 = vmul.f32 %v475, %v1782
    %v9413 = vmul.f32 %v475, %v1786
    %9430 = vrot.lane.b32.xlu0 %v9398, 126
    %v9431 = vpop.permute.xlu0 %9430
    %9432 = vrot.lane.b32.xlu0 %v9399, 126
    %v9433 = vpop.permute.xlu0 %9432
    %9434 = vrot.lane.b32.xlu0 %v9400, 126
    %v9435 = vpop.permute.xlu0 %9434
    %9436 = vrot.lane.b32.xlu0 %v9401, 126
    %v9437 = vpop.permute.xlu0 %9436
    %9438 = vrot.lane.b32.xlu0 %v9402, 126
    %v9439 = vpop.permute.xlu0 %9438
    %9440 = vrot.lane.b32.xlu0 %v9403, 126
    %v9441 = vpop.permute.xlu0 %9440
    %9442 = vrot.lane.b32.xlu0 %v9404, 126
    %v9443 = vpop.permute.xlu0 %9442
    %9444 = vrot.lane.b32.xlu0 %v9405, 126
    %v9445 = vpop.permute.xlu0 %9444
    %9446 = vrot.lane.b32.xlu0 %v9406, 126
    %v9447 = vpop.permute.xlu0 %9446
    %9448 = vrot.lane.b32.xlu0 %v9407, 126
    %v9449 = vpop.permute.xlu0 %9448
    %9450 = vrot.lane.b32.xlu0 %v9408, 126
    %v9451 = vpop.permute.xlu0 %9450
    %9452 = vrot.lane.b32.xlu0 %v9409, 126
    %v9453 = vpop.permute.xlu0 %9452
    %9454 = vrot.lane.b32.xlu0 %v9410, 126
    %v9455 = vpop.permute.xlu0 %9454
    %9456 = vrot.lane.b32.xlu0 %v9411, 126
    %v9457 = vpop.permute.xlu0 %9456
    %9458 = vrot.lane.b32.xlu0 %v9412, 126
    %v9459 = vpop.permute.xlu0 %9458
    %9460 = vrot.lane.b32.xlu0 %v9413, 126
    %v9461 = vpop.permute.xlu0 %9460
    %v9478 = vadd.f32 %v9382, %v9431
    %v9479 = vadd.f32 %v9383, %v9433
    %v9480 = vadd.f32 %v9384, %v9435
    %v9481 = vadd.f32 %v9385, %v9437
    %v9482 = vadd.f32 %v9386, %v9439
    %v9483 = vadd.f32 %v9387, %v9441
    %v9484 = vadd.f32 %v9388, %v9443
    %v9485 = vadd.f32 %v9389, %v9445
    %v9486 = vadd.f32 %v9390, %v9447
    %v9487 = vadd.f32 %v9391, %v9449
    %v9488 = vadd.f32 %v9392, %v9451
    %v9489 = vadd.f32 %v9393, %v9453
    %v9490 = vadd.f32 %v9394, %v9455
    %v9491 = vadd.f32 %v9395, %v9457
    %v9492 = vadd.f32 %v9396, %v9459
    %v9493 = vadd.f32 %v9397, %v9461
    %v9494 = vmul.f32 %v532, %v1886
    %v9495 = vmul.f32 %v532, %v1890
    %v9496 = vmul.f32 %v533, %v1886
    %v9497 = vmul.f32 %v533, %v1890
    %v9498 = vmul.f32 %v534, %v1886
    %v9499 = vmul.f32 %v534, %v1890
    %v9500 = vmul.f32 %v535, %v1886
    %v9501 = vmul.f32 %v535, %v1890
    %v9502 = vmul.f32 %v536, %v1886
    %v9503 = vmul.f32 %v536, %v1890
    %v9504 = vmul.f32 %v537, %v1886
    %v9505 = vmul.f32 %v537, %v1890
    %v9506 = vmul.f32 %v538, %v1886
    %v9507 = vmul.f32 %v538, %v1890
    %v9508 = vmul.f32 %v539, %v1886
    %v9509 = vmul.f32 %v539, %v1890
    %9526 = vrot.lane.b32.xlu0 %v9494, 126
    %v9527 = vpop.permute.xlu0 %9526
    %9528 = vrot.lane.b32.xlu0 %v9495, 126
    %v9529 = vpop.permute.xlu0 %9528
    %9530 = vrot.lane.b32.xlu0 %v9496, 126
    %v9531 = vpop.permute.xlu0 %9530
    %9532 = vrot.lane.b32.xlu0 %v9497, 126
    %v9533 = vpop.permute.xlu0 %9532
    %9534 = vrot.lane.b32.xlu0 %v9498, 126
    %v9535 = vpop.permute.xlu0 %9534
    %9536 = vrot.lane.b32.xlu0 %v9499, 126
    %v9537 = vpop.permute.xlu0 %9536
    %9538 = vrot.lane.b32.xlu0 %v9500, 126
    %v9539 = vpop.permute.xlu0 %9538
    %9540 = vrot.lane.b32.xlu0 %v9501, 126
    %v9541 = vpop.permute.xlu0 %9540
    %9542 = vrot.lane.b32.xlu0 %v9502, 126
    %v9543 = vpop.permute.xlu0 %9542
    %9544 = vrot.lane.b32.xlu0 %v9503, 126
    %v9545 = vpop.permute.xlu0 %9544
    %9546 = vrot.lane.b32.xlu0 %v9504, 126
    %v9547 = vpop.permute.xlu0 %9546
    %9548 = vrot.lane.b32.xlu0 %v9505, 126
    %v9549 = vpop.permute.xlu0 %9548
    %9550 = vrot.lane.b32.xlu0 %v9506, 126
    %v9551 = vpop.permute.xlu0 %9550
    %9552 = vrot.lane.b32.xlu0 %v9507, 126
    %v9553 = vpop.permute.xlu0 %9552
    %9554 = vrot.lane.b32.xlu0 %v9508, 126
    %v9555 = vpop.permute.xlu0 %9554
    %9556 = vrot.lane.b32.xlu0 %v9509, 126
    %v9557 = vpop.permute.xlu0 %9556
    %v9574 = vadd.f32 %v9478, %v9527
    %v9575 = vadd.f32 %v9479, %v9529
    %v9576 = vadd.f32 %v9480, %v9531
    %v9577 = vadd.f32 %v9481, %v9533
    %v9578 = vadd.f32 %v9482, %v9535
    %v9579 = vadd.f32 %v9483, %v9537
    %v9580 = vadd.f32 %v9484, %v9539
    %v9581 = vadd.f32 %v9485, %v9541
    %v9582 = vadd.f32 %v9486, %v9543
    %v9583 = vadd.f32 %v9487, %v9545
    %v9584 = vadd.f32 %v9488, %v9547
    %v9585 = vadd.f32 %v9489, %v9549
    %v9586 = vadd.f32 %v9490, %v9551
    %v9587 = vadd.f32 %v9491, %v9553
    %v9588 = vadd.f32 %v9492, %v9555
    %v9589 = vadd.f32 %v9493, %v9557
    %v9590 = vmul.f32 %v596, %v1990
    %v9591 = vmul.f32 %v596, %v1994
    %v9592 = vmul.f32 %v597, %v1990
    %v9593 = vmul.f32 %v597, %v1994
    %v9594 = vmul.f32 %v598, %v1990
    %v9595 = vmul.f32 %v598, %v1994
    %v9596 = vmul.f32 %v599, %v1990
    %v9597 = vmul.f32 %v599, %v1994
    %v9598 = vmul.f32 %v600, %v1990
    %v9599 = vmul.f32 %v600, %v1994
    %v9600 = vmul.f32 %v601, %v1990
    %v9601 = vmul.f32 %v601, %v1994
    %v9602 = vmul.f32 %v602, %v1990
    %v9603 = vmul.f32 %v602, %v1994
    %v9604 = vmul.f32 %v603, %v1990
    %v9605 = vmul.f32 %v603, %v1994
    %9622 = vrot.lane.b32.xlu0 %v9590, 126
    %v9623 = vpop.permute.xlu0 %9622
    %9624 = vrot.lane.b32.xlu0 %v9591, 126
    %v9625 = vpop.permute.xlu0 %9624
    %9626 = vrot.lane.b32.xlu0 %v9592, 126
    %v9627 = vpop.permute.xlu0 %9626
    %9628 = vrot.lane.b32.xlu0 %v9593, 126
    %v9629 = vpop.permute.xlu0 %9628
    %9630 = vrot.lane.b32.xlu0 %v9594, 126
    %v9631 = vpop.permute.xlu0 %9630
    %9632 = vrot.lane.b32.xlu0 %v9595, 126
    %v9633 = vpop.permute.xlu0 %9632
    %9634 = vrot.lane.b32.xlu0 %v9596, 126
    %v9635 = vpop.permute.xlu0 %9634
    %9636 = vrot.lane.b32.xlu0 %v9597, 126
    %v9637 = vpop.permute.xlu0 %9636
    %9638 = vrot.lane.b32.xlu0 %v9598, 126
    %v9639 = vpop.permute.xlu0 %9638
    %9640 = vrot.lane.b32.xlu0 %v9599, 126
    %v9641 = vpop.permute.xlu0 %9640
    %9642 = vrot.lane.b32.xlu0 %v9600, 126
    %v9643 = vpop.permute.xlu0 %9642
    %9644 = vrot.lane.b32.xlu0 %v9601, 126
    %v9645 = vpop.permute.xlu0 %9644
    %9646 = vrot.lane.b32.xlu0 %v9602, 126
    %v9647 = vpop.permute.xlu0 %9646
    %9648 = vrot.lane.b32.xlu0 %v9603, 126
    %v9649 = vpop.permute.xlu0 %9648
    %9650 = vrot.lane.b32.xlu0 %v9604, 126
    %v9651 = vpop.permute.xlu0 %9650
    %9652 = vrot.lane.b32.xlu0 %v9605, 126
    %v9653 = vpop.permute.xlu0 %9652
    %v9670 = vadd.f32 %v9574, %v9623
    %v9671 = vadd.f32 %v9575, %v9625
    %v9672 = vadd.f32 %v9576, %v9627
    %v9673 = vadd.f32 %v9577, %v9629
    %v9674 = vadd.f32 %v9578, %v9631
    %v9675 = vadd.f32 %v9579, %v9633
    %v9676 = vadd.f32 %v9580, %v9635
    %v9677 = vadd.f32 %v9581, %v9637
    %v9678 = vadd.f32 %v9582, %v9639
    %v9679 = vadd.f32 %v9583, %v9641
    %v9680 = vadd.f32 %v9584, %v9643
    %v9681 = vadd.f32 %v9585, %v9645
    %v9682 = vadd.f32 %v9586, %v9647
    %v9683 = vadd.f32 %v9587, %v9649
    %v9684 = vadd.f32 %v9588, %v9651
    %v9685 = vadd.f32 %v9589, %v9653
    %v9686 = vmul.f32 %v660, %v2094
    %v9687 = vmul.f32 %v660, %v2098
    %v9688 = vmul.f32 %v661, %v2094
    %v9689 = vmul.f32 %v661, %v2098
    %v9690 = vmul.f32 %v662, %v2094
    %v9691 = vmul.f32 %v662, %v2098
    %v9692 = vmul.f32 %v663, %v2094
    %v9693 = vmul.f32 %v663, %v2098
    %v9694 = vmul.f32 %v664, %v2094
    %v9695 = vmul.f32 %v664, %v2098
    %v9696 = vmul.f32 %v665, %v2094
    %v9697 = vmul.f32 %v665, %v2098
    %v9698 = vmul.f32 %v666, %v2094
    %v9699 = vmul.f32 %v666, %v2098
    %v9700 = vmul.f32 %v667, %v2094
    %v9701 = vmul.f32 %v667, %v2098
    %9718 = vrot.lane.b32.xlu0 %v9686, 126
    %v9719 = vpop.permute.xlu0 %9718
    %9720 = vrot.lane.b32.xlu0 %v9687, 126
    %v9721 = vpop.permute.xlu0 %9720
    %9722 = vrot.lane.b32.xlu0 %v9688, 126
    %v9723 = vpop.permute.xlu0 %9722
    %9724 = vrot.lane.b32.xlu0 %v9689, 126
    %v9725 = vpop.permute.xlu0 %9724
    %9726 = vrot.lane.b32.xlu0 %v9690, 126
    %v9727 = vpop.permute.xlu0 %9726
    %9728 = vrot.lane.b32.xlu0 %v9691, 126
    %v9729 = vpop.permute.xlu0 %9728
    %9730 = vrot.lane.b32.xlu0 %v9692, 126
    %v9731 = vpop.permute.xlu0 %9730
    %9732 = vrot.lane.b32.xlu0 %v9693, 126
    %v9733 = vpop.permute.xlu0 %9732
    %9734 = vrot.lane.b32.xlu0 %v9694, 126
    %v9735 = vpop.permute.xlu0 %9734
    %9736 = vrot.lane.b32.xlu0 %v9695, 126
    %v9737 = vpop.permute.xlu0 %9736
    %9738 = vrot.lane.b32.xlu0 %v9696, 126
    %v9739 = vpop.permute.xlu0 %9738
    %9740 = vrot.lane.b32.xlu0 %v9697, 126
    %v9741 = vpop.permute.xlu0 %9740
    %9742 = vrot.lane.b32.xlu0 %v9698, 126
    %v9743 = vpop.permute.xlu0 %9742
    %9744 = vrot.lane.b32.xlu0 %v9699, 126
    %v9745 = vpop.permute.xlu0 %9744
    %9746 = vrot.lane.b32.xlu0 %v9700, 126
    %v9747 = vpop.permute.xlu0 %9746
    %9748 = vrot.lane.b32.xlu0 %v9701, 126
    %v9749 = vpop.permute.xlu0 %9748
    %v9766 = vadd.f32 %v9670, %v9719
    %v9767 = vadd.f32 %v9671, %v9721
    %v9768 = vadd.f32 %v9672, %v9723
    %v9769 = vadd.f32 %v9673, %v9725
    %v9770 = vadd.f32 %v9674, %v9727
    %v9771 = vadd.f32 %v9675, %v9729
    %v9772 = vadd.f32 %v9676, %v9731
    %v9773 = vadd.f32 %v9677, %v9733
    %v9774 = vadd.f32 %v9678, %v9735
    %v9775 = vadd.f32 %v9679, %v9737
    %v9776 = vadd.f32 %v9680, %v9739
    %v9777 = vadd.f32 %v9681, %v9741
    %v9778 = vadd.f32 %v9682, %v9743
    %v9779 = vadd.f32 %v9683, %v9745
    %v9780 = vadd.f32 %v9684, %v9747
    %v9781 = vadd.f32 %v9685, %v9749
    %v9782 = vmul.f32 %v724, %v2198
    %v9783 = vmul.f32 %v724, %v2202
    %v9784 = vmul.f32 %v725, %v2198
    %v9785 = vmul.f32 %v725, %v2202
    %v9786 = vmul.f32 %v726, %v2198
    %v9787 = vmul.f32 %v726, %v2202
    %v9788 = vmul.f32 %v727, %v2198
    %v9789 = vmul.f32 %v727, %v2202
    %v9790 = vmul.f32 %v728, %v2198
    %v9791 = vmul.f32 %v728, %v2202
    %v9792 = vmul.f32 %v729, %v2198
    %v9793 = vmul.f32 %v729, %v2202
    %v9794 = vmul.f32 %v730, %v2198
    %v9795 = vmul.f32 %v730, %v2202
    %v9796 = vmul.f32 %v731, %v2198
    %v9797 = vmul.f32 %v731, %v2202
    %9814 = vrot.lane.b32.xlu0 %v9782, 126
    %v9815 = vpop.permute.xlu0 %9814
    %9816 = vrot.lane.b32.xlu0 %v9783, 126
    %v9817 = vpop.permute.xlu0 %9816
    %9818 = vrot.lane.b32.xlu0 %v9784, 126
    %v9819 = vpop.permute.xlu0 %9818
    %9820 = vrot.lane.b32.xlu0 %v9785, 126
    %v9821 = vpop.permute.xlu0 %9820
    %9822 = vrot.lane.b32.xlu0 %v9786, 126
    %v9823 = vpop.permute.xlu0 %9822
    %9824 = vrot.lane.b32.xlu0 %v9787, 126
    %v9825 = vpop.permute.xlu0 %9824
    %9826 = vrot.lane.b32.xlu0 %v9788, 126
    %v9827 = vpop.permute.xlu0 %9826
    %9828 = vrot.lane.b32.xlu0 %v9789, 126
    %v9829 = vpop.permute.xlu0 %9828
    %9830 = vrot.lane.b32.xlu0 %v9790, 126
    %v9831 = vpop.permute.xlu0 %9830
    %9832 = vrot.lane.b32.xlu0 %v9791, 126
    %v9833 = vpop.permute.xlu0 %9832
    %9834 = vrot.lane.b32.xlu0 %v9792, 126
    %v9835 = vpop.permute.xlu0 %9834
    %9836 = vrot.lane.b32.xlu0 %v9793, 126
    %v9837 = vpop.permute.xlu0 %9836
    %9838 = vrot.lane.b32.xlu0 %v9794, 126
    %v9839 = vpop.permute.xlu0 %9838
    %9840 = vrot.lane.b32.xlu0 %v9795, 126
    %v9841 = vpop.permute.xlu0 %9840
    %9842 = vrot.lane.b32.xlu0 %v9796, 126
    %v9843 = vpop.permute.xlu0 %9842
    %9844 = vrot.lane.b32.xlu0 %v9797, 126
    %v9845 = vpop.permute.xlu0 %9844
    %v9862 = vadd.f32 %v9766, %v9815
    %v9863 = vadd.f32 %v9767, %v9817
    %v9864 = vadd.f32 %v9768, %v9819
    %v9865 = vadd.f32 %v9769, %v9821
    %v9866 = vadd.f32 %v9770, %v9823
    %v9867 = vadd.f32 %v9771, %v9825
    %v9868 = vadd.f32 %v9772, %v9827
    %v9869 = vadd.f32 %v9773, %v9829
    %v9870 = vadd.f32 %v9774, %v9831
    %v9871 = vadd.f32 %v9775, %v9833
    %v9872 = vadd.f32 %v9776, %v9835
    %v9873 = vadd.f32 %v9777, %v9837
    %v9874 = vadd.f32 %v9778, %v9839
    %v9875 = vadd.f32 %v9779, %v9841
    %v9876 = vadd.f32 %v9780, %v9843
    %v9877 = vadd.f32 %v9781, %v9845
    %v9878 = vmul.f32 %v788, %v2302
    %v9879 = vmul.f32 %v788, %v2306
    %v9880 = vmul.f32 %v789, %v2302
    %v9881 = vmul.f32 %v789, %v2306
    %v9882 = vmul.f32 %v790, %v2302
    %v9883 = vmul.f32 %v790, %v2306
    %v9884 = vmul.f32 %v791, %v2302
    %v9885 = vmul.f32 %v791, %v2306
    %v9886 = vmul.f32 %v792, %v2302
    %v9887 = vmul.f32 %v792, %v2306
    %v9888 = vmul.f32 %v793, %v2302
    %v9889 = vmul.f32 %v793, %v2306
    %v9890 = vmul.f32 %v794, %v2302
    %v9891 = vmul.f32 %v794, %v2306
    %v9892 = vmul.f32 %v795, %v2302
    %v9893 = vmul.f32 %v795, %v2306
    %9910 = vrot.lane.b32.xlu0 %v9878, 126
    %v9911 = vpop.permute.xlu0 %9910
    %9912 = vrot.lane.b32.xlu0 %v9879, 126
    %v9913 = vpop.permute.xlu0 %9912
    %9914 = vrot.lane.b32.xlu0 %v9880, 126
    %v9915 = vpop.permute.xlu0 %9914
    %9916 = vrot.lane.b32.xlu0 %v9881, 126
    %v9917 = vpop.permute.xlu0 %9916
    %9918 = vrot.lane.b32.xlu0 %v9882, 126
    %v9919 = vpop.permute.xlu0 %9918
    %9920 = vrot.lane.b32.xlu0 %v9883, 126
    %v9921 = vpop.permute.xlu0 %9920
    %9922 = vrot.lane.b32.xlu0 %v9884, 126
    %v9923 = vpop.permute.xlu0 %9922
    %9924 = vrot.lane.b32.xlu0 %v9885, 126
    %v9925 = vpop.permute.xlu0 %9924
    %9926 = vrot.lane.b32.xlu0 %v9886, 126
    %v9927 = vpop.permute.xlu0 %9926
    %9928 = vrot.lane.b32.xlu0 %v9887, 126
    %v9929 = vpop.permute.xlu0 %9928
    %9930 = vrot.lane.b32.xlu0 %v9888, 126
    %v9931 = vpop.permute.xlu0 %9930
    %9932 = vrot.lane.b32.xlu0 %v9889, 126
    %v9933 = vpop.permute.xlu0 %9932
    %9934 = vrot.lane.b32.xlu0 %v9890, 126
    %v9935 = vpop.permute.xlu0 %9934
    %9936 = vrot.lane.b32.xlu0 %v9891, 126
    %v9937 = vpop.permute.xlu0 %9936
    %9938 = vrot.lane.b32.xlu0 %v9892, 126
    %v9939 = vpop.permute.xlu0 %9938
    %9940 = vrot.lane.b32.xlu0 %v9893, 126
    %v9941 = vpop.permute.xlu0 %9940
    %v9958 = vadd.f32 %v9862, %v9911
    %v9959 = vadd.f32 %v9863, %v9913
    %v9960 = vadd.f32 %v9864, %v9915
    %v9961 = vadd.f32 %v9865, %v9917
    %v9962 = vadd.f32 %v9866, %v9919
    %v9963 = vadd.f32 %v9867, %v9921
    %v9964 = vadd.f32 %v9868, %v9923
    %v9965 = vadd.f32 %v9869, %v9925
    %v9966 = vadd.f32 %v9870, %v9927
    %v9967 = vadd.f32 %v9871, %v9929
    %v9968 = vadd.f32 %v9872, %v9931
    %v9969 = vadd.f32 %v9873, %v9933
    %v9970 = vadd.f32 %v9874, %v9935
    %v9971 = vadd.f32 %v9875, %v9937
    %v9972 = vadd.f32 %v9876, %v9939
    %v9973 = vadd.f32 %v9877, %v9941
    %v9974 = vmul.f32 %v82, %v2406
    %v9975 = vmul.f32 %v82, %v2410
    %v9976 = vmul.f32 %v83, %v2406
    %v9977 = vmul.f32 %v83, %v2410
    %v9978 = vmul.f32 %v84, %v2406
    %v9979 = vmul.f32 %v84, %v2410
    %v9980 = vmul.f32 %v85, %v2406
    %v9981 = vmul.f32 %v85, %v2410
    %v9982 = vmul.f32 %v86, %v2406
    %v9983 = vmul.f32 %v86, %v2410
    %v9984 = vmul.f32 %v87, %v2406
    %v9985 = vmul.f32 %v87, %v2410
    %v9986 = vmul.f32 %v88, %v2406
    %v9987 = vmul.f32 %v88, %v2410
    %v9988 = vmul.f32 %v89, %v2406
    %v9989 = vmul.f32 %v89, %v2410
    %10006 = vrot.lane.b32.xlu0 %v9974, 125
    %v10007 = vpop.permute.xlu0 %10006
    %10008 = vrot.lane.b32.xlu0 %v9975, 125
    %v10009 = vpop.permute.xlu0 %10008
    %10010 = vrot.lane.b32.xlu0 %v9976, 125
    %v10011 = vpop.permute.xlu0 %10010
    %10012 = vrot.lane.b32.xlu0 %v9977, 125
    %v10013 = vpop.permute.xlu0 %10012
    %10014 = vrot.lane.b32.xlu0 %v9978, 125
    %v10015 = vpop.permute.xlu0 %10014
    %10016 = vrot.lane.b32.xlu0 %v9979, 125
    %v10017 = vpop.permute.xlu0 %10016
    %10018 = vrot.lane.b32.xlu0 %v9980, 125
    %v10019 = vpop.permute.xlu0 %10018
    %10020 = vrot.lane.b32.xlu0 %v9981, 125
    %v10021 = vpop.permute.xlu0 %10020
    %10022 = vrot.lane.b32.xlu0 %v9982, 125
    %v10023 = vpop.permute.xlu0 %10022
    %10024 = vrot.lane.b32.xlu0 %v9983, 125
    %v10025 = vpop.permute.xlu0 %10024
    %10026 = vrot.lane.b32.xlu0 %v9984, 125
    %v10027 = vpop.permute.xlu0 %10026
    %10028 = vrot.lane.b32.xlu0 %v9985, 125
    %v10029 = vpop.permute.xlu0 %10028
    %10030 = vrot.lane.b32.xlu0 %v9986, 125
    %v10031 = vpop.permute.xlu0 %10030
    %10032 = vrot.lane.b32.xlu0 %v9987, 125
    %v10033 = vpop.permute.xlu0 %10032
    %10034 = vrot.lane.b32.xlu0 %v9988, 125
    %v10035 = vpop.permute.xlu0 %10034
    %10036 = vrot.lane.b32.xlu0 %v9989, 125
    %v10037 = vpop.permute.xlu0 %10036
    %v10054 = vadd.f32 %v9958, %v10007
    %v10055 = vadd.f32 %v9959, %v10009
    %v10056 = vadd.f32 %v9960, %v10011
    %v10057 = vadd.f32 %v9961, %v10013
    %v10058 = vadd.f32 %v9962, %v10015
    %v10059 = vadd.f32 %v9963, %v10017
    %v10060 = vadd.f32 %v9964, %v10019
    %v10061 = vadd.f32 %v9965, %v10021
    %v10062 = vadd.f32 %v9966, %v10023
    %v10063 = vadd.f32 %v9967, %v10025
    %v10064 = vadd.f32 %v9968, %v10027
    %v10065 = vadd.f32 %v9969, %v10029
    %v10066 = vadd.f32 %v9970, %v10031
    %v10067 = vadd.f32 %v9971, %v10033
    %v10068 = vadd.f32 %v9972, %v10035
    %v10069 = vadd.f32 %v9973, %v10037
    %v10070 = vmul.f32 %v148, %v2510
    %v10071 = vmul.f32 %v148, %v2514
    %v10072 = vmul.f32 %v149, %v2510
    %v10073 = vmul.f32 %v149, %v2514
    %v10074 = vmul.f32 %v150, %v2510
    %v10075 = vmul.f32 %v150, %v2514
    %v10076 = vmul.f32 %v151, %v2510
    %v10077 = vmul.f32 %v151, %v2514
    %v10078 = vmul.f32 %v152, %v2510
    %v10079 = vmul.f32 %v152, %v2514
    %v10080 = vmul.f32 %v153, %v2510
    %v10081 = vmul.f32 %v153, %v2514
    %v10082 = vmul.f32 %v154, %v2510
    %v10083 = vmul.f32 %v154, %v2514
    %v10084 = vmul.f32 %v155, %v2510
    %v10085 = vmul.f32 %v155, %v2514
    %10102 = vrot.lane.b32.xlu0 %v10070, 125
    %v10103 = vpop.permute.xlu0 %10102
    %10104 = vrot.lane.b32.xlu0 %v10071, 125
    %v10105 = vpop.permute.xlu0 %10104
    %10106 = vrot.lane.b32.xlu0 %v10072, 125
    %v10107 = vpop.permute.xlu0 %10106
    %10108 = vrot.lane.b32.xlu0 %v10073, 125
    %v10109 = vpop.permute.xlu0 %10108
    %10110 = vrot.lane.b32.xlu0 %v10074, 125
    %v10111 = vpop.permute.xlu0 %10110
    %10112 = vrot.lane.b32.xlu0 %v10075, 125
    %v10113 = vpop.permute.xlu0 %10112
    %10114 = vrot.lane.b32.xlu0 %v10076, 125
    %v10115 = vpop.permute.xlu0 %10114
    %10116 = vrot.lane.b32.xlu0 %v10077, 125
    %v10117 = vpop.permute.xlu0 %10116
    %10118 = vrot.lane.b32.xlu0 %v10078, 125
    %v10119 = vpop.permute.xlu0 %10118
    %10120 = vrot.lane.b32.xlu0 %v10079, 125
    %v10121 = vpop.permute.xlu0 %10120
    %10122 = vrot.lane.b32.xlu0 %v10080, 125
    %v10123 = vpop.permute.xlu0 %10122
    %10124 = vrot.lane.b32.xlu0 %v10081, 125
    %v10125 = vpop.permute.xlu0 %10124
    %10126 = vrot.lane.b32.xlu0 %v10082, 125
    %v10127 = vpop.permute.xlu0 %10126
    %10128 = vrot.lane.b32.xlu0 %v10083, 125
    %v10129 = vpop.permute.xlu0 %10128
    %10130 = vrot.lane.b32.xlu0 %v10084, 125
    %v10131 = vpop.permute.xlu0 %10130
    %10132 = vrot.lane.b32.xlu0 %v10085, 125
    %v10133 = vpop.permute.xlu0 %10132
    %v10150 = vadd.f32 %v10054, %v10103
    %v10151 = vadd.f32 %v10055, %v10105
    %v10152 = vadd.f32 %v10056, %v10107
    %v10153 = vadd.f32 %v10057, %v10109
    %v10154 = vadd.f32 %v10058, %v10111
    %v10155 = vadd.f32 %v10059, %v10113
    %v10156 = vadd.f32 %v10060, %v10115
    %v10157 = vadd.f32 %v10061, %v10117
    %v10158 = vadd.f32 %v10062, %v10119
    %v10159 = vadd.f32 %v10063, %v10121
    %v10160 = vadd.f32 %v10064, %v10123
    %v10161 = vadd.f32 %v10065, %v10125
    %v10162 = vadd.f32 %v10066, %v10127
    %v10163 = vadd.f32 %v10067, %v10129
    %v10164 = vadd.f32 %v10068, %v10131
    %v10165 = vadd.f32 %v10069, %v10133
    %v10166 = vmul.f32 %v212, %v2614
    %v10167 = vmul.f32 %v212, %v2618
    %v10168 = vmul.f32 %v213, %v2614
    %v10169 = vmul.f32 %v213, %v2618
    %v10170 = vmul.f32 %v214, %v2614
    %v10171 = vmul.f32 %v214, %v2618
    %v10172 = vmul.f32 %v215, %v2614
    %v10173 = vmul.f32 %v215, %v2618
    %v10174 = vmul.f32 %v216, %v2614
    %v10175 = vmul.f32 %v216, %v2618
    %v10176 = vmul.f32 %v217, %v2614
    %v10177 = vmul.f32 %v217, %v2618
    %v10178 = vmul.f32 %v218, %v2614
    %v10179 = vmul.f32 %v218, %v2618
    %v10180 = vmul.f32 %v219, %v2614
    %v10181 = vmul.f32 %v219, %v2618
    %10198 = vrot.lane.b32.xlu0 %v10166, 125
    %v10199 = vpop.permute.xlu0 %10198
    %10200 = vrot.lane.b32.xlu0 %v10167, 125
    %v10201 = vpop.permute.xlu0 %10200
    %10202 = vrot.lane.b32.xlu0 %v10168, 125
    %v10203 = vpop.permute.xlu0 %10202
    %10204 = vrot.lane.b32.xlu0 %v10169, 125
    %v10205 = vpop.permute.xlu0 %10204
    %10206 = vrot.lane.b32.xlu0 %v10170, 125
    %v10207 = vpop.permute.xlu0 %10206
    %10208 = vrot.lane.b32.xlu0 %v10171, 125
    %v10209 = vpop.permute.xlu0 %10208
    %10210 = vrot.lane.b32.xlu0 %v10172, 125
    %v10211 = vpop.permute.xlu0 %10210
    %10212 = vrot.lane.b32.xlu0 %v10173, 125
    %v10213 = vpop.permute.xlu0 %10212
    %10214 = vrot.lane.b32.xlu0 %v10174, 125
    %v10215 = vpop.permute.xlu0 %10214
    %10216 = vrot.lane.b32.xlu0 %v10175, 125
    %v10217 = vpop.permute.xlu0 %10216
    %10218 = vrot.lane.b32.xlu0 %v10176, 125
    %v10219 = vpop.permute.xlu0 %10218
    %10220 = vrot.lane.b32.xlu0 %v10177, 125
    %v10221 = vpop.permute.xlu0 %10220
    %10222 = vrot.lane.b32.xlu0 %v10178, 125
    %v10223 = vpop.permute.xlu0 %10222
    %10224 = vrot.lane.b32.xlu0 %v10179, 125
    %v10225 = vpop.permute.xlu0 %10224
    %10226 = vrot.lane.b32.xlu0 %v10180, 125
    %v10227 = vpop.permute.xlu0 %10226
    %10228 = vrot.lane.b32.xlu0 %v10181, 125
    %v10229 = vpop.permute.xlu0 %10228
    %v10246 = vadd.f32 %v10150, %v10199
    %v10247 = vadd.f32 %v10151, %v10201
    %v10248 = vadd.f32 %v10152, %v10203
    %v10249 = vadd.f32 %v10153, %v10205
    %v10250 = vadd.f32 %v10154, %v10207
    %v10251 = vadd.f32 %v10155, %v10209
    %v10252 = vadd.f32 %v10156, %v10211
    %v10253 = vadd.f32 %v10157, %v10213
    %v10254 = vadd.f32 %v10158, %v10215
    %v10255 = vadd.f32 %v10159, %v10217
    %v10256 = vadd.f32 %v10160, %v10219
    %v10257 = vadd.f32 %v10161, %v10221
    %v10258 = vadd.f32 %v10162, %v10223
    %v10259 = vadd.f32 %v10163, %v10225
    %v10260 = vadd.f32 %v10164, %v10227
    %v10261 = vadd.f32 %v10165, %v10229
    %v10262 = vadd.f32 %v10246, %v2719
    %v10263 = vadd.f32 %v10247, %v2724
    %v10264 = vadd.f32 %v10248, %v2719
    %v10265 = vadd.f32 %v10249, %v2724
    %v10266 = vadd.f32 %v10250, %v2719
    %v10267 = vadd.f32 %v10251, %v2724
    %v10268 = vadd.f32 %v10252, %v2719
    %v10269 = vadd.f32 %v10253, %v2724
    %v10270 = vadd.f32 %v10254, %v2719
    %v10271 = vadd.f32 %v10255, %v2724
    %v10272 = vadd.f32 %v10256, %v2719
    %v10273 = vadd.f32 %v10257, %v2724
    %v10274 = vadd.f32 %v10258, %v2719
    %v10275 = vadd.f32 %v10259, %v2724
    %v10276 = vadd.f32 %v10260, %v2719
    %v10277 = vadd.f32 %v10261, %v2724
    %10286 = vrot.lane.b32.xlu0 %v10262, 2
    %v10287 = vpop.permute.xlu0 %10286
    %10288 = vrot.lane.b32.xlu0 %v10263, 2
    %v10289 = vpop.permute.xlu0 %10288
    %10290 = vrot.lane.b32.xlu0 %v10264, 2
    %v10291 = vpop.permute.xlu0 %10290
    %10292 = vrot.lane.b32.xlu0 %v10265, 2
    %v10293 = vpop.permute.xlu0 %10292
    %10294 = vrot.lane.b32.xlu0 %v10266, 2
    %v10295 = vpop.permute.xlu0 %10294
    %10296 = vrot.lane.b32.xlu0 %v10267, 2
    %v10297 = vpop.permute.xlu0 %10296
    %10298 = vrot.lane.b32.xlu0 %v10268, 2
    %v10299 = vpop.permute.xlu0 %10298
    %10300 = vrot.lane.b32.xlu0 %v10269, 2
    %v10301 = vpop.permute.xlu0 %10300
    %vm10310 = vcmask 15360
    %v10311 = vsel %vm10310, 0.0, %v10287
    %v10312 = vsel %vm10310, 0.0, %v10289
    %v10313 = vsel %vm10310, 0.0, %v10291
    %v10314 = vsel %vm10310, 0.0, %v10293
    %v10315 = vsel %vm10310, 0.0, %v10295
    %v10316 = vsel %vm10310, 0.0, %v10297
    %v10317 = vsel %vm10310, 0.0, %v10299
    %v10318 = vsel %vm10310, 0.0, %v10301
    %vm10319 = vcmask 179200
    %v10320 = vsel %vm10319, %v10311, 0.0
    %v10321 = vsel %vm10319, %v10312, 0.0
    %v10322 = vsel %vm10319, %v10313, 0.0
    %v10323 = vsel %vm10319, %v10314, 0.0
    %v10324 = vsel %vm10319, %v10315, 0.0
    %v10325 = vsel %vm10319, %v10316, 0.0
    %v10326 = vsel %vm10319, %v10317, 0.0
    %v10327 = vsel %vm10319, %v10318, 0.0
    %10336 = vrot.lane.b32.xlu0 %v2726, 1
    %v10337 = vpop.permute.xlu0 %10336
    %10338 = vrot.lane.b32.xlu0 %v2727, 1
    %v10339 = vpop.permute.xlu0 %10338
    %10340 = vrot.lane.b32.xlu0 %v2728, 1
    %v10341 = vpop.permute.xlu0 %10340
    %10342 = vrot.lane.b32.xlu0 %v2729, 1
    %v10343 = vpop.permute.xlu0 %10342
    %10344 = vrot.lane.b32.xlu0 %v2730, 1
    %v10345 = vpop.permute.xlu0 %10344
    %10346 = vrot.lane.b32.xlu0 %v2731, 1
    %v10347 = vpop.permute.xlu0 %10346
    %10348 = vrot.lane.b32.xlu0 %v2732, 1
    %v10349 = vpop.permute.xlu0 %10348
    %10350 = vrot.lane.b32.xlu0 %v2733, 1
    %v10351 = vpop.permute.xlu0 %10350
    %vm10360 = vcmask 7168
    %v10361 = vsel %vm10360, 0.0, %v10337
    %v10362 = vsel %vm10360, 0.0, %v10339
    %v10363 = vsel %vm10360, 0.0, %v10341
    %v10364 = vsel %vm10360, 0.0, %v10343
    %v10365 = vsel %vm10360, 0.0, %v10345
    %v10366 = vsel %vm10360, 0.0, %v10347
    %v10367 = vsel %vm10360, 0.0, %v10349
    %v10368 = vsel %vm10360, 0.0, %v10351
    %v10369 = vsel %vm10319, %v10361, 0.0
    %v10370 = vsel %vm10319, %v10362, 0.0
    %v10371 = vsel %vm10319, %v10363, 0.0
    %v10372 = vsel %vm10319, %v10364, 0.0
    %v10373 = vsel %vm10319, %v10365, 0.0
    %v10374 = vsel %vm10319, %v10366, 0.0
    %v10375 = vsel %vm10319, %v10367, 0.0
    %v10376 = vsel %vm10319, %v10368, 0.0
    %10385 = vrot.lane.b32.xlu0 %v5046, 1
    %v10386 = vpop.permute.xlu0 %10385
    %10387 = vrot.lane.b32.xlu0 %v5047, 1
    %v10388 = vpop.permute.xlu0 %10387
    %10389 = vrot.lane.b32.xlu0 %v5048, 1
    %v10390 = vpop.permute.xlu0 %10389
    %10391 = vrot.lane.b32.xlu0 %v5049, 1
    %v10392 = vpop.permute.xlu0 %10391
    %10393 = vrot.lane.b32.xlu0 %v5050, 1
    %v10394 = vpop.permute.xlu0 %10393
    %10395 = vrot.lane.b32.xlu0 %v5051, 1
    %v10396 = vpop.permute.xlu0 %10395
    %10397 = vrot.lane.b32.xlu0 %v5052, 1
    %v10398 = vpop.permute.xlu0 %10397
    %10399 = vrot.lane.b32.xlu0 %v5053, 1
    %v10400 = vpop.permute.xlu0 %10399
    %v10409 = vsel %vm10360, 0.0, %v10386
    %v10410 = vsel %vm10360, 0.0, %v10388
    %v10411 = vsel %vm10360, 0.0, %v10390
    %v10412 = vsel %vm10360, 0.0, %v10392
    %v10413 = vsel %vm10360, 0.0, %v10394
    %v10414 = vsel %vm10360, 0.0, %v10396
    %v10415 = vsel %vm10360, 0.0, %v10398
    %v10416 = vsel %vm10360, 0.0, %v10400
    %vm10417 = vcmask 171008
    %v10418 = vsel %vm10417, %v10409, 0.0
    %v10419 = vsel %vm10417, %v10410, 0.0
    %v10420 = vsel %vm10417, %v10411, 0.0
    %v10421 = vsel %vm10417, %v10412, 0.0
    %v10422 = vsel %vm10417, %v10413, 0.0
    %v10423 = vsel %vm10417, %v10414, 0.0
    %v10424 = vsel %vm10417, %v10415, 0.0
    %v10425 = vsel %vm10417, %v10416, 0.0
    %10434 = vrot.lane.b32.xlu0 %v7558, 1
    %v10435 = vpop.permute.xlu0 %10434
    %10436 = vrot.lane.b32.xlu0 %v7559, 1
    %v10437 = vpop.permute.xlu0 %10436
    %10438 = vrot.lane.b32.xlu0 %v7560, 1
    %v10439 = vpop.permute.xlu0 %10438
    %10440 = vrot.lane.b32.xlu0 %v7561, 1
    %v10441 = vpop.permute.xlu0 %10440
    %10442 = vrot.lane.b32.xlu0 %v7562, 1
    %v10443 = vpop.permute.xlu0 %10442
    %10444 = vrot.lane.b32.xlu0 %v7563, 1
    %v10445 = vpop.permute.xlu0 %10444
    %10446 = vrot.lane.b32.xlu0 %v7564, 1
    %v10447 = vpop.permute.xlu0 %10446
    %10448 = vrot.lane.b32.xlu0 %v7565, 1
    %v10449 = vpop.permute.xlu0 %10448
    %v10458 = vsel %vm10360, 0.0, %v10435
    %v10459 = vsel %vm10360, 0.0, %v10437
    %v10460 = vsel %vm10360, 0.0, %v10439
    %v10461 = vsel %vm10360, 0.0, %v10441
    %v10462 = vsel %vm10360, 0.0, %v10443
    %v10463 = vsel %vm10360, 0.0, %v10445
    %v10464 = vsel %vm10360, 0.0, %v10447
    %v10465 = vsel %vm10360, 0.0, %v10449
    %v10466 = vsel %vm10417, %v10458, 0.0
    %v10467 = vsel %vm10417, %v10459, 0.0
    %v10468 = vsel %vm10417, %v10460, 0.0
    %v10469 = vsel %vm10417, %v10461, 0.0
    %v10470 = vsel %vm10417, %v10462, 0.0
    %v10471 = vsel %vm10417, %v10463, 0.0
    %v10472 = vsel %vm10417, %v10464, 0.0
    %v10473 = vsel %vm10417, %v10465, 0.0
    %10482 = vrot.lane.b32.xlu0 %v10270, 2
    %v10483 = vpop.permute.xlu0 %10482
    %10484 = vrot.lane.b32.xlu0 %v10271, 2
    %v10485 = vpop.permute.xlu0 %10484
    %10486 = vrot.lane.b32.xlu0 %v10272, 2
    %v10487 = vpop.permute.xlu0 %10486
    %10488 = vrot.lane.b32.xlu0 %v10273, 2
    %v10489 = vpop.permute.xlu0 %10488
    %10490 = vrot.lane.b32.xlu0 %v10274, 2
    %v10491 = vpop.permute.xlu0 %10490
    %10492 = vrot.lane.b32.xlu0 %v10275, 2
    %v10493 = vpop.permute.xlu0 %10492
    %10494 = vrot.lane.b32.xlu0 %v10276, 2
    %v10495 = vpop.permute.xlu0 %10494
    %10496 = vrot.lane.b32.xlu0 %v10277, 2
    %v10497 = vpop.permute.xlu0 %10496
    %v10506 = vsel %vm10310, 0.0, %v10483
    %v10507 = vsel %vm10310, 0.0, %v10485
    %v10508 = vsel %vm10310, 0.0, %v10487
    %v10509 = vsel %vm10310, 0.0, %v10489
    %v10510 = vsel %vm10310, 0.0, %v10491
    %v10511 = vsel %vm10310, 0.0, %v10493
    %v10512 = vsel %vm10310, 0.0, %v10495
    %v10513 = vsel %vm10310, 0.0, %v10497
    %v10514 = vsel %vm10319, %v10506, 0.0
    %v10515 = vsel %vm10319, %v10507, 0.0
    %v10516 = vsel %vm10319, %v10508, 0.0
    %v10517 = vsel %vm10319, %v10509, 0.0
    %v10518 = vsel %vm10319, %v10510, 0.0
    %v10519 = vsel %vm10319, %v10511, 0.0
    %v10520 = vsel %vm10319, %v10512, 0.0
    %v10521 = vsel %vm10319, %v10513, 0.0
    %10530 = vrot.lane.b32.xlu0 %v2734, 1
    %v10531 = vpop.permute.xlu0 %10530
    %10532 = vrot.lane.b32.xlu0 %v2735, 1
    %v10533 = vpop.permute.xlu0 %10532
    %10534 = vrot.lane.b32.xlu0 %v2736, 1
    %v10535 = vpop.permute.xlu0 %10534
    %10536 = vrot.lane.b32.xlu0 %v2737, 1
    %v10537 = vpop.permute.xlu0 %10536
    %10538 = vrot.lane.b32.xlu0 %v2738, 1
    %v10539 = vpop.permute.xlu0 %10538
    %10540 = vrot.lane.b32.xlu0 %v2739, 1
    %v10541 = vpop.permute.xlu0 %10540
    %10542 = vrot.lane.b32.xlu0 %v2740, 1
    %v10543 = vpop.permute.xlu0 %10542
    %10544 = vrot.lane.b32.xlu0 %v2741, 1
    %v10545 = vpop.permute.xlu0 %10544
    %v10554 = vsel %vm10360, 0.0, %v10531
    %v10555 = vsel %vm10360, 0.0, %v10533
    %v10556 = vsel %vm10360, 0.0, %v10535
    %v10557 = vsel %vm10360, 0.0, %v10537
    %v10558 = vsel %vm10360, 0.0, %v10539
    %v10559 = vsel %vm10360, 0.0, %v10541
    %v10560 = vsel %vm10360, 0.0, %v10543
    %v10561 = vsel %vm10360, 0.0, %v10545
    %v10562 = vsel %vm10319, %v10554, 0.0
    %v10563 = vsel %vm10319, %v10555, 0.0
    %v10564 = vsel %vm10319, %v10556, 0.0
    %v10565 = vsel %vm10319, %v10557, 0.0
    %v10566 = vsel %vm10319, %v10558, 0.0
    %v10567 = vsel %vm10319, %v10559, 0.0
    %v10568 = vsel %vm10319, %v10560, 0.0
    %v10569 = vsel %vm10319, %v10561, 0.0
    %10578 = vrot.lane.b32.xlu0 %v5054, 1
    %v10579 = vpop.permute.xlu0 %10578
    %10580 = vrot.lane.b32.xlu0 %v5055, 1
    %v10581 = vpop.permute.xlu0 %10580
    %10582 = vrot.lane.b32.xlu0 %v5056, 1
    %v10583 = vpop.permute.xlu0 %10582
    %10584 = vrot.lane.b32.xlu0 %v5057, 1
    %v10585 = vpop.permute.xlu0 %10584
    %10586 = vrot.lane.b32.xlu0 %v5058, 1
    %v10587 = vpop.permute.xlu0 %10586
    %10588 = vrot.lane.b32.xlu0 %v5059, 1
    %v10589 = vpop.permute.xlu0 %10588
    %10590 = vrot.lane.b32.xlu0 %v5060, 1
    %v10591 = vpop.permute.xlu0 %10590
    %10592 = vrot.lane.b32.xlu0 %v5061, 1
    %v10593 = vpop.permute.xlu0 %10592
    %v10602 = vsel %vm10360, 0.0, %v10579
    %v10603 = vsel %vm10360, 0.0, %v10581
    %v10604 = vsel %vm10360, 0.0, %v10583
    %v10605 = vsel %vm10360, 0.0, %v10585
    %v10606 = vsel %vm10360, 0.0, %v10587
    %v10607 = vsel %vm10360, 0.0, %v10589
    %v10608 = vsel %vm10360, 0.0, %v10591
    %v10609 = vsel %vm10360, 0.0, %v10593
    %v10610 = vsel %vm10417, %v10602, 0.0
    %v10611 = vsel %vm10417, %v10603, 0.0
    %v10612 = vsel %vm10417, %v10604, 0.0
    %v10613 = vsel %vm10417, %v10605, 0.0
    %v10614 = vsel %vm10417, %v10606, 0.0
    %v10615 = vsel %vm10417, %v10607, 0.0
    %v10616 = vsel %vm10417, %v10608, 0.0
    %v10617 = vsel %vm10417, %v10609, 0.0
    %10626 = vrot.lane.b32.xlu0 %v7566, 1
    %v10627 = vpop.permute.xlu0 %10626
    %10628 = vrot.lane.b32.xlu0 %v7567, 1
    %v10629 = vpop.permute.xlu0 %10628
    %10630 = vrot.lane.b32.xlu0 %v7568, 1
    %v10631 = vpop.permute.xlu0 %10630
    %10632 = vrot.lane.b32.xlu0 %v7569, 1
    %v10633 = vpop.permute.xlu0 %10632
    %10634 = vrot.lane.b32.xlu0 %v7570, 1
    %v10635 = vpop.permute.xlu0 %10634
    %10636 = vrot.lane.b32.xlu0 %v7571, 1
    %v10637 = vpop.permute.xlu0 %10636
    %10638 = vrot.lane.b32.xlu0 %v7572, 1
    %v10639 = vpop.permute.xlu0 %10638
    %10640 = vrot.lane.b32.xlu0 %v7573, 1
    %v10641 = vpop.permute.xlu0 %10640
    %v10650 = vsel %vm10360, 0.0, %v10627
    %v10651 = vsel %vm10360, 0.0, %v10629
    %v10652 = vsel %vm10360, 0.0, %v10631
    %v10653 = vsel %vm10360, 0.0, %v10633
    %v10654 = vsel %vm10360, 0.0, %v10635
    %v10655 = vsel %vm10360, 0.0, %v10637
    %v10656 = vsel %vm10360, 0.0, %v10639
    %v10657 = vsel %vm10360, 0.0, %v10641
    %v10658 = vsel %vm10417, %v10650, 0.0
    %v10659 = vsel %vm10417, %v10651, 0.0
    %v10660 = vsel %vm10417, %v10652, 0.0
    %v10661 = vsel %vm10417, %v10653, 0.0
    %v10662 = vsel %vm10417, %v10654, 0.0
    %v10663 = vsel %vm10417, %v10655, 0.0
    %v10664 = vsel %vm10417, %v10656, 0.0
    %v10665 = vsel %vm10417, %v10657, 0.0
    %10674 = vrot.lane.b32.xlu0 %v10369, 23
    %v10675 = vpop.permute.xlu0 %10674
    %10676 = vrot.lane.b32.xlu0 %v10370, 23
    %v10677 = vpop.permute.xlu0 %10676
    %10678 = vrot.lane.b32.xlu0 %v10371, 23
    %v10679 = vpop.permute.xlu0 %10678
    %10680 = vrot.lane.b32.xlu0 %v10372, 23
    %v10681 = vpop.permute.xlu0 %10680
    %10682 = vrot.lane.b32.xlu0 %v10373, 23
    %v10683 = vpop.permute.xlu0 %10682
    %10684 = vrot.lane.b32.xlu0 %v10374, 23
    %v10685 = vpop.permute.xlu0 %10684
    %10686 = vrot.lane.b32.xlu0 %v10375, 23
    %v10687 = vpop.permute.xlu0 %10686
    %10688 = vrot.lane.b32.xlu0 %v10376, 23
    %v10689 = vpop.permute.xlu0 %10688
    %10706 = vrot.lane.b32.xlu0 %v10418, 46
    %v10707 = vpop.permute.xlu0 %10706
    %10708 = vrot.lane.b32.xlu0 %v10419, 46
    %v10709 = vpop.permute.xlu0 %10708
    %10710 = vrot.lane.b32.xlu0 %v10420, 46
    %v10711 = vpop.permute.xlu0 %10710
    %10712 = vrot.lane.b32.xlu0 %v10421, 46
    %v10713 = vpop.permute.xlu0 %10712
    %10714 = vrot.lane.b32.xlu0 %v10422, 46
    %v10715 = vpop.permute.xlu0 %10714
    %10716 = vrot.lane.b32.xlu0 %v10423, 46
    %v10717 = vpop.permute.xlu0 %10716
    %10718 = vrot.lane.b32.xlu0 %v10424, 46
    %v10719 = vpop.permute.xlu0 %10718
    %10720 = vrot.lane.b32.xlu0 %v10425, 46
    %v10721 = vpop.permute.xlu0 %10720
    %10738 = vrot.lane.b32.xlu0 %v10466, 69
    %v10739 = vpop.permute.xlu0 %10738
    %10740 = vrot.lane.b32.xlu0 %v10467, 69
    %v10741 = vpop.permute.xlu0 %10740
    %10742 = vrot.lane.b32.xlu0 %v10468, 69
    %v10743 = vpop.permute.xlu0 %10742
    %10744 = vrot.lane.b32.xlu0 %v10469, 69
    %v10745 = vpop.permute.xlu0 %10744
    %10746 = vrot.lane.b32.xlu0 %v10470, 69
    %v10747 = vpop.permute.xlu0 %10746
    %10748 = vrot.lane.b32.xlu0 %v10471, 69
    %v10749 = vpop.permute.xlu0 %10748
    %10750 = vrot.lane.b32.xlu0 %v10472, 69
    %v10751 = vpop.permute.xlu0 %10750
    %10752 = vrot.lane.b32.xlu0 %v10473, 69
    %v10753 = vpop.permute.xlu0 %10752
    %10770 = vrot.lane.b32.xlu0 %v10514, 91
    %v10771 = vpop.permute.xlu0 %10770
    %10772 = vrot.lane.b32.xlu0 %v10515, 91
    %v10773 = vpop.permute.xlu0 %10772
    %10774 = vrot.lane.b32.xlu0 %v10516, 91
    %v10775 = vpop.permute.xlu0 %10774
    %10776 = vrot.lane.b32.xlu0 %v10517, 91
    %v10777 = vpop.permute.xlu0 %10776
    %10778 = vrot.lane.b32.xlu0 %v10518, 91
    %v10779 = vpop.permute.xlu0 %10778
    %10780 = vrot.lane.b32.xlu0 %v10519, 91
    %v10781 = vpop.permute.xlu0 %10780
    %10782 = vrot.lane.b32.xlu0 %v10520, 91
    %v10783 = vpop.permute.xlu0 %10782
    %10784 = vrot.lane.b32.xlu0 %v10521, 91
    %v10785 = vpop.permute.xlu0 %10784
    %10802 = vrot.lane.b32.xlu0 %v10562, 114
    %v10803 = vpop.permute.xlu0 %10802
    %10804 = vrot.lane.b32.xlu0 %v10563, 114
    %v10805 = vpop.permute.xlu0 %10804
    %10806 = vrot.lane.b32.xlu0 %v10564, 114
    %v10807 = vpop.permute.xlu0 %10806
    %10808 = vrot.lane.b32.xlu0 %v10565, 114
    %v10809 = vpop.permute.xlu0 %10808
    %10810 = vrot.lane.b32.xlu0 %v10566, 114
    %v10811 = vpop.permute.xlu0 %10810
    %10812 = vrot.lane.b32.xlu0 %v10567, 114
    %v10813 = vpop.permute.xlu0 %10812
    %10814 = vrot.lane.b32.xlu0 %v10568, 114
    %v10815 = vpop.permute.xlu0 %10814
    %10816 = vrot.lane.b32.xlu0 %v10569, 114
    %v10817 = vpop.permute.xlu0 %10816
    %10834 = vrot.lane.b32.xlu0 %v10610, 9
    %v10835 = vpop.permute.xlu0 %10834
    %10836 = vrot.lane.b32.xlu0 %v10611, 9
    %v10837 = vpop.permute.xlu0 %10836
    %10838 = vrot.lane.b32.xlu0 %v10612, 9
    %v10839 = vpop.permute.xlu0 %10838
    %10840 = vrot.lane.b32.xlu0 %v10613, 9
    %v10841 = vpop.permute.xlu0 %10840
    %10842 = vrot.lane.b32.xlu0 %v10614, 9
    %v10843 = vpop.permute.xlu0 %10842
    %10844 = vrot.lane.b32.xlu0 %v10615, 9
    %v10845 = vpop.permute.xlu0 %10844
    %10846 = vrot.lane.b32.xlu0 %v10616, 9
    %v10847 = vpop.permute.xlu0 %10846
    %10848 = vrot.lane.b32.xlu0 %v10617, 9
    %v10849 = vpop.permute.xlu0 %10848
    %10866 = vrot.lane.b32.xlu0 %v10658, 32
    %v10867 = vpop.permute.xlu0 %10866
    %10868 = vrot.lane.b32.xlu0 %v10659, 32
    %v10869 = vpop.permute.xlu0 %10868
    %10870 = vrot.lane.b32.xlu0 %v10660, 32
    %v10871 = vpop.permute.xlu0 %10870
    %10872 = vrot.lane.b32.xlu0 %v10661, 32
    %v10873 = vpop.permute.xlu0 %10872
    %10874 = vrot.lane.b32.xlu0 %v10662, 32
    %v10875 = vpop.permute.xlu0 %10874
    %10876 = vrot.lane.b32.xlu0 %v10663, 32
    %v10877 = vpop.permute.xlu0 %10876
    %10878 = vrot.lane.b32.xlu0 %v10664, 32
    %v10879 = vpop.permute.xlu0 %10878
    %10880 = vrot.lane.b32.xlu0 %v10665, 32
    %v10881 = vpop.permute.xlu0 %10880
    %vm10890 = vcmask 187392
    %v10891 = vsel %vm10890, %v10320, %v10675
    %v10892 = vsel %vm10890, %v10321, %v10677
    %v10893 = vsel %vm10890, %v10322, %v10679
    %v10894 = vsel %vm10890, %v10323, %v10681
    %v10895 = vsel %vm10890, %v10324, %v10683
    %v10896 = vsel %vm10890, %v10325, %v10685
    %v10897 = vsel %vm10890, %v10326, %v10687
    %v10898 = vsel %vm10890, %v10327, %v10689
    %vm10899 = vcmask 375808
    %v10900 = vsel %vm10899, %v10891, %v10707
    %v10901 = vsel %vm10899, %v10892, %v10709
    %v10902 = vsel %vm10899, %v10893, %v10711
    %v10903 = vsel %vm10899, %v10894, %v10713
    %v10904 = vsel %vm10899, %v10895, %v10715
    %v10905 = vsel %vm10899, %v10896, %v10717
    %v10906 = vsel %vm10899, %v10897, %v10719
    %v10907 = vsel %vm10899, %v10898, %v10721
    %vm10908 = vcmask 564224
    %v10909 = vsel %vm10908, %v10900, %v10739
    %v10910 = vsel %vm10908, %v10901, %v10741
    %v10911 = vsel %vm10908, %v10902, %v10743
    %v10912 = vsel %vm10908, %v10903, %v10745
    %v10913 = vsel %vm10908, %v10904, %v10747
    %v10914 = vsel %vm10908, %v10905, %v10749
    %v10915 = vsel %vm10908, %v10906, %v10751
    %v10916 = vsel %vm10908, %v10907, %v10753
    %vm10917 = vcmask 744448
    %v10918 = vsel %vm10917, %v10909, %v10771
    %v10919 = vsel %vm10917, %v10910, %v10773
    %v10920 = vsel %vm10917, %v10911, %v10775
    %v10921 = vsel %vm10917, %v10912, %v10777
    %v10922 = vsel %vm10917, %v10913, %v10779
    %v10923 = vsel %vm10917, %v10914, %v10781
    %v10924 = vsel %vm10917, %v10915, %v10783
    %v10925 = vsel %vm10917, %v10916, %v10785
    %vm10926 = vcmask 932864
    %v10927 = vsel %vm10926, %v10918, %v10803
    %v10928 = vsel %vm10926, %v10919, %v10805
    %v10929 = vsel %vm10926, %v10920, %v10807
    %v10930 = vsel %vm10926, %v10921, %v10809
    %v10931 = vsel %vm10926, %v10922, %v10811
    %v10932 = vsel %vm10926, %v10923, %v10813
    %v10933 = vsel %vm10926, %v10924, %v10815
    %v10934 = vsel %vm10926, %v10925, %v10817
    %vm10935 = vcmask 72704
    %v10936 = vsel %vm10935, %v10803, %v10835
    %v10937 = vsel %vm10935, %v10805, %v10837
    %v10938 = vsel %vm10935, %v10807, %v10839
    %v10939 = vsel %vm10935, %v10809, %v10841
    %v10940 = vsel %vm10935, %v10811, %v10843
    %v10941 = vsel %vm10935, %v10813, %v10845
    %v10942 = vsel %vm10935, %v10815, %v10847
    %v10943 = vsel %vm10935, %v10817, %v10849
    %vm10944 = vcmask 261120
    %v10945 = vsel %vm10944, %v10936, %v10867
    %v10946 = vsel %vm10944, %v10937, %v10869
    %v10947 = vsel %vm10944, %v10938, %v10871
    %v10948 = vsel %vm10944, %v10939, %v10873
    %v10949 = vsel %vm10944, %v10940, %v10875
    %v10950 = vsel %vm10944, %v10941, %v10877
    %v10951 = vsel %vm10944, %v10942, %v10879
    %v10952 = vsel %vm10944, %v10943, %v10881
    %vm10953 = vcmask 523264
    %v10955 = vsel %vm10953, %v62, 0
    %v10958 = vsel %vm10953, %v63, 0
    %10960 = vmatpush.msra.mxu0 0.0
    %10961 = vmatpush.msra.mxu0 0.0
    %10962 = vmatpush.msra.mxu0 0.0
    %10963 = vmatpush.msra.mxu0 0.0
    %10964 = vmatpush.msra.mxu0 0.0
    %10965 = vmatpush.msra.mxu0 0.0
    %10966 = vmatpush.msra.mxu0 0.0
    %10967 = vmatpush.msra.mxu0 0.0
    %10968 = vmatpush.msra.mxu0 %v10934
    %10969 = vmatpush.msra.mxu0 %v10933
    %10970 = vmatpush.msra.mxu0 %v10932
    %10971 = vmatpush.msra.mxu0 %v10931
    %10972 = vmatpush.msra.mxu0 %v10930
    %10973 = vmatpush.msra.mxu0 %v10929
    %10974 = vmatpush.msra.mxu0 %v10928
    %10975 = vmatpush.msra.mxu0 %v10927
    %10976 = vmatmul.f32.gmra.mxu0 %v10955
    %v10977 = vpop.f32.mrf.mxu0
    %v10978 = vadd.f32 0.0, %v10977
    %10979 = vmatmul.f32.gmra.mxu0 %v10958
    %v10980 = vpop.f32.mrf.mxu0
    %v10981 = vadd.f32 0.0, %v10980
    %10982 = vdwg.mxu0
    %10983 = vmatpush.msra.mxu0 0.0
    %10984 = vmatpush.msra.mxu0 0.0
    %10985 = vmatpush.msra.mxu0 0.0
    %10986 = vmatpush.msra.mxu0 0.0
    %10987 = vmatpush.msra.mxu0 0.0
    %10988 = vmatpush.msra.mxu0 0.0
    %10989 = vmatpush.msra.mxu0 0.0
    %10990 = vmatpush.msra.mxu0 0.0
    %10991 = vmatpush.msra.mxu0 %v10952
    %10992 = vmatpush.msra.mxu0 %v10951
    %10993 = vmatpush.msra.mxu0 %v10950
    %10994 = vmatpush.msra.mxu0 %v10949
    %10995 = vmatpush.msra.mxu0 %v10948
    %10996 = vmatpush.msra.mxu0 %v10947
    %10997 = vmatpush.msra.mxu0 %v10946
    %10998 = vmatpush.msra.mxu0 %v10945
    %10999 = vmatmul.f32.gmra.mxu0 %v10955
    %v11000 = vpop.f32.mrf.mxu0
    %v11001 = vadd.f32 0.0, %v11000
    %11002 = vmatmul.f32.gmra.mxu0 %v10958
    %v11003 = vpop.f32.mrf.mxu0
    %v11004 = vadd.f32 0.0, %v11003
    %11005 = vdwg.mxu0
    %vm11006 = vcmask 441344
    %v11007 = vsel %vm11006, %v11001, 0.0
    %v11008 = vadd.f32 %v10978, %v11007
    %11009 = vadd.xlane.f32.xlu0 %v11008
    %v11010 = vpop.xlane.xlu0 %11009
    %v11011 = vsel %vm11006, %v11004, 0.0
    %v11012 = vadd.f32 %v10981, %v11011
    %11013 = vadd.xlane.f32.xlu0 %v11012
    %v11014 = vpop.xlane.xlu0 %11013
    %v11015 = vrcp.pop 182.0
    %v11016 = vmul.f32 182.0, %v11015
    %v11017 = vsub.f32 1.0, %v11016
    %v11018 = vmul.f32 %v11015, %v11017
    %v11019 = vadd.f32 %v11015, %v11018
    %vm11020 = vweird.f32 %v11015
    %v11021 = vsel %vm11020, %v11015, %v11019
    %v11022 = vmul.f32 %v11010, %v11021
    %v11023 = vmul.f32 %v11014, %v11021
    %v11024 = vsub.f32 %v10978, %v11022
    %v11025 = vsub.f32 %v11001, %v11022
    %v11026 = vsub.f32 %v10981, %v11023
    %v11027 = vsub.f32 %v11004, %v11023
    %v11028 = vmul.f32 %v11024, %v11024
    %v11029 = vmul.f32 %v11025, %v11025
    %v11030 = vmul.f32 %v11026, %v11026
    %v11031 = vmul.f32 %v11027, %v11027
    %v11032 = vsel %vm11006, %v11029, 0.0
    %v11033 = vadd.f32 %v11028, %v11032
    %11034 = vadd.xlane.f32.xlu0 %v11033
    %v11035 = vpop.xlane.xlu0 %11034
    %v11036 = vsel %vm11006, %v11031, 0.0
    %v11037 = vadd.f32 %v11030, %v11036
    %11038 = vadd.xlane.f32.xlu0 %v11037
    %v11039 = vpop.xlane.xlu0 %11038
    %v11040 = vmul.f32 %v11035, %v11021
    %v11041 = vmul.f32 %v11039, %v11021
    %v11042 = vadd.f32 %v11040, 1e-05
    %v11043 = vadd.f32 %v11041, 1e-05
    %v11044 = vrsqrt.pop %v11042
    %v11045 = vmul.f32 %v11044, %v11042
    %v11046 = vmul.f32 %v11045, %v11044
    %v11047 = vmul.f32 0.5, %v11046
    %v11048 = vsub.f32 1.5, %v11047
    %v11049 = vmul.f32 %v11044, %v11048
    %vm11050 = vweird.f32 %v11042
    %vm11051 = vweird.f32 %v11044
    %vm11052 = vmor %vm11050, %vm11051
    %v11053 = vsel %vm11052, %v11044, %v11049
    %v11054 = vrsqrt.pop %v11043
    %v11055 = vmul.f32 %v11054, %v11043
    %v11056 = vmul.f32 %v11055, %v11054
    %v11057 = vmul.f32 0.5, %v11056
    %v11058 = vsub.f32 1.5, %v11057
    %v11059 = vmul.f32 %v11054, %v11058
    %vm11060 = vweird.f32 %v11043
    %vm11061 = vweird.f32 %v11054
    %vm11062 = vmor %vm11060, %vm11061
    %v11063 = vsel %vm11062, %v11054, %v11059
    %v11064 = vmul.f32 %v64, %v11053
    %v11065 = vmul.f32 %v65, %v11063
    %v11066 = vmul.f32 %v11022, %v11064
    %v11067 = vmul.f32 %v11023, %v11065
    %v11068 = vsub.f32 %v66, %v11066
    %v11069 = vsub.f32 %v67, %v11067
    %11071 = vset.pattern.permute.xlu0 0
    %11072 = vperm.xlu0 %11071, %v11064
    %v11073 = vpop.permute.xlu0 %11072
    %11076 = vset.pattern.permute.xlu0 0
    %11077 = vperm.xlu0 %11076, %v11065
    %v11078 = vpop.permute.xlu0 %11077
    %v11080 = vmul.f32 %v10978, %v11073
    %v11081 = vmul.f32 %v11001, %v11073
    %v11082 = vmul.f32 %v10981, %v11078
    %v11083 = vmul.f32 %v11004, %v11078
    %11085 = vset.pattern.permute.xlu0 0
    %11086 = vperm.xlu0 %11085, %v11068
    %v11087 = vpop.permute.xlu0 %11086
    %11090 = vset.pattern.permute.xlu0 0
    %11091 = vperm.xlu0 %11090, %v11069
    %v11092 = vpop.permute.xlu0 %11091
    %v11094 = vadd.f32 %v11080, %v11087
    %v11095 = vadd.f32 %v11081, %v11087
    %v11096 = vadd.f32 %v11082, %v11092
    %v11097 = vadd.f32 %v11083, %v11092
    %v11098 = vmax.f32 %v11094, 0.0
    %v11099 = vmax.f32 %v11095, 0.0
    %v11100 = vmax.f32 %v11096, 0.0
    %v11101 = vmax.f32 %v11097, 0.0
    %v11102 = vadd.f32 %v11098, 0.0
    %v11103 = vadd.f32 %v11100, 0.0
    %11106 = vrot.lane.b32.xlu0 %v11098, 105
    %v11107 = vpop.permute.xlu0 %11106
    %11108 = vrot.lane.b32.xlu0 %v11100, 105
    %v11109 = vpop.permute.xlu0 %11108
    %v11112 = vadd.f32 %v11102, %v11107
    %v11113 = vadd.f32 %v11103, %v11109
    %11114 = vrot.lane.b32.xlu0 %v11098, 82
    %v11115 = vpop.permute.xlu0 %11114
    %11116 = vrot.lane.b32.xlu0 %v11100, 82
    %v11117 = vpop.permute.xlu0 %11116
    %v11120 = vadd.f32 %v11112, %v11115
    %v11121 = vadd.f32 %v11113, %v11117
    %11122 = vrot.lane.b32.xlu0 %v11098, 59
    %v11123 = vpop.permute.xlu0 %11122
    %11124 = vrot.lane.b32.xlu0 %v11100, 59
    %v11125 = vpop.permute.xlu0 %11124
    %v11128 = vadd.f32 %v11120, %v11123
    %v11129 = vadd.f32 %v11121, %v11125
    %11130 = vrot.lane.b32.xlu0 %v11098, 127
    %v11131 = vpop.permute.xlu0 %11130
    %11132 = vrot.lane.b32.xlu0 %v11100, 127
    %v11133 = vpop.permute.xlu0 %11132
    %v11136 = vadd.f32 %v11128, %v11131
    %v11137 = vadd.f32 %v11129, %v11133
    %11138 = vrot.lane.b32.xlu0 %v11098, 104
    %v11139 = vpop.permute.xlu0 %11138
    %11140 = vrot.lane.b32.xlu0 %v11100, 104
    %v11141 = vpop.permute.xlu0 %11140
    %v11144 = vadd.f32 %v11136, %v11139
    %v11145 = vadd.f32 %v11137, %v11141
    %11146 = vrot.lane.b32.xlu0 %v11098, 81
    %v11147 = vpop.permute.xlu0 %11146
    %11148 = vrot.lane.b32.xlu0 %v11100, 81
    %v11149 = vpop.permute.xlu0 %11148
    %v11152 = vadd.f32 %v11144, %v11147
    %v11153 = vadd.f32 %v11145, %v11149
    %11154 = vrot.lane.b32.xlu0 %v11098, 58
    %v11155 = vpop.permute.xlu0 %11154
    %11156 = vrot.lane.b32.xlu0 %v11100, 58
    %v11157 = vpop.permute.xlu0 %11156
    %v11160 = vadd.f32 %v11152, %v11155
    %v11161 = vadd.f32 %v11153, %v11157
    %11162 = vrot.lane.b32.xlu0 %v11098, 126
    %v11163 = vpop.permute.xlu0 %11162
    %11164 = vrot.lane.b32.xlu0 %v11100, 126
    %v11165 = vpop.permute.xlu0 %11164
    %v11168 = vadd.f32 %v11160, %v11163
    %v11169 = vadd.f32 %v11161, %v11165
    %11170 = vrot.lane.b32.xlu0 %v11098, 103
    %v11171 = vpop.permute.xlu0 %11170
    %11172 = vrot.lane.b32.xlu0 %v11100, 103
    %v11173 = vpop.permute.xlu0 %11172
    %v11176 = vadd.f32 %v11168, %v11171
    %v11177 = vadd.f32 %v11169, %v11173
    %11178 = vrot.lane.b32.xlu0 %v11098, 80
    %v11179 = vpop.permute.xlu0 %11178
    %11180 = vrot.lane.b32.xlu0 %v11100, 80
    %v11181 = vpop.permute.xlu0 %11180
    %v11184 = vadd.f32 %v11176, %v11179
    %v11185 = vadd.f32 %v11177, %v11181
    %11186 = vrot.lane.b32.xlu0 %v11098, 57
    %v11187 = vpop.permute.xlu0 %11186
    %11188 = vrot.lane.b32.xlu0 %v11100, 57
    %v11189 = vpop.permute.xlu0 %11188
    %v11192 = vadd.f32 %v11184, %v11187
    %v11193 = vadd.f32 %v11185, %v11189
    %11194 = vrot.lane.b32.xlu0 %v11098, 125
    %v11195 = vpop.permute.xlu0 %11194
    %11196 = vrot.lane.b32.xlu0 %v11100, 125
    %v11197 = vpop.permute.xlu0 %11196
    %v11200 = vadd.f32 %v11192, %v11195
    %v11201 = vadd.f32 %v11193, %v11197
    %11202 = vrot.lane.b32.xlu0 %v11098, 102
    %v11203 = vpop.permute.xlu0 %11202
    %11204 = vrot.lane.b32.xlu0 %v11100, 102
    %v11205 = vpop.permute.xlu0 %11204
    %v11208 = vadd.f32 %v11200, %v11203
    %v11209 = vadd.f32 %v11201, %v11205
    %11210 = vrot.lane.b32.xlu0 %v11098, 79
    %v11211 = vpop.permute.xlu0 %11210
    %11212 = vrot.lane.b32.xlu0 %v11100, 79
    %v11213 = vpop.permute.xlu0 %11212
    %v11216 = vadd.f32 %v11208, %v11211
    %v11217 = vadd.f32 %v11209, %v11213
    %11218 = vrot.lane.b32.xlu0 %v11098, 56
    %v11219 = vpop.permute.xlu0 %11218
    %11220 = vrot.lane.b32.xlu0 %v11100, 56
    %v11221 = vpop.permute.xlu0 %11220
    %v11224 = vadd.f32 %v11216, %v11219
    %v11225 = vadd.f32 %v11217, %v11221
    %11226 = vrot.lane.b32.xlu0 %v11098, 124
    %v11227 = vpop.permute.xlu0 %11226
    %11228 = vrot.lane.b32.xlu0 %v11100, 124
    %v11229 = vpop.permute.xlu0 %11228
    %v11232 = vadd.f32 %v11224, %v11227
    %v11233 = vadd.f32 %v11225, %v11229
    %11234 = vrot.lane.b32.xlu0 %v11098, 101
    %v11235 = vpop.permute.xlu0 %11234
    %11236 = vrot.lane.b32.xlu0 %v11100, 101
    %v11237 = vpop.permute.xlu0 %11236
    %v11240 = vadd.f32 %v11232, %v11235
    %v11241 = vadd.f32 %v11233, %v11237
    %11242 = vrot.lane.b32.xlu0 %v11098, 78
    %v11243 = vpop.permute.xlu0 %11242
    %11244 = vrot.lane.b32.xlu0 %v11100, 78
    %v11245 = vpop.permute.xlu0 %11244
    %v11248 = vadd.f32 %v11240, %v11243
    %v11249 = vadd.f32 %v11241, %v11245
    %11250 = vrot.lane.b32.xlu0 %v11098, 55
    %v11251 = vpop.permute.xlu0 %11250
    %11252 = vrot.lane.b32.xlu0 %v11100, 55
    %v11253 = vpop.permute.xlu0 %11252
    %v11256 = vadd.f32 %v11248, %v11251
    %v11257 = vadd.f32 %v11249, %v11253
    %11258 = vrot.lane.b32.xlu0 %v11098, 45
    %v11259 = vpop.permute.xlu0 %11258
    %11260 = vrot.lane.b32.xlu0 %v11100, 45
    %v11261 = vpop.permute.xlu0 %11260
    %v11264 = vadd.f32 %v11112, %v11259
    %v11265 = vadd.f32 %v11113, %v11261
    %11266 = vrot.lane.b32.xlu0 %v11098, 22
    %v11267 = vpop.permute.xlu0 %11266
    %11268 = vrot.lane.b32.xlu0 %v11100, 22
    %v11269 = vpop.permute.xlu0 %11268
    %v11272 = vadd.f32 %v11264, %v11267
    %v11273 = vadd.f32 %v11265, %v11269
    %v11274 = vadd.f32 %v11272, %v11131
    %v11275 = vadd.f32 %v11273, %v11133
    %v11276 = vadd.f32 %v11274, %v11139
    %v11277 = vadd.f32 %v11275, %v11141
    %11278 = vrot.lane.b32.xlu0 %v11098, 44
    %v11279 = vpop.permute.xlu0 %11278
    %11280 = vrot.lane.b32.xlu0 %v11100, 44
    %v11281 = vpop.permute.xlu0 %11280
    %v11284 = vadd.f32 %v11276, %v11279
    %v11285 = vadd.f32 %v11277, %v11281
    %11286 = vrot.lane.b32.xlu0 %v11098, 21
    %v11287 = vpop.permute.xlu0 %11286
    %11288 = vrot.lane.b32.xlu0 %v11100, 21
    %v11289 = vpop.permute.xlu0 %11288
    %v11292 = vadd.f32 %v11284, %v11287
    %v11293 = vadd.f32 %v11285, %v11289
    %v11294 = vadd.f32 %v11292, %v11163
    %v11295 = vadd.f32 %v11293, %v11165
    %v11296 = vadd.f32 %v11294, %v11171
    %v11297 = vadd.f32 %v11295, %v11173
    %11298 = vrot.lane.b32.xlu0 %v11098, 43
    %v11299 = vpop.permute.xlu0 %11298
    %11300 = vrot.lane.b32.xlu0 %v11100, 43
    %v11301 = vpop.permute.xlu0 %11300
    %v11304 = vadd.f32 %v11296, %v11299
    %v11305 = vadd.f32 %v11297, %v11301
    %11306 = vrot.lane.b32.xlu0 %v11098, 20
    %v11307 = vpop.permute.xlu0 %11306
    %11308 = vrot.lane.b32.xlu0 %v11100, 20
    %v11309 = vpop.permute.xlu0 %11308
    %v11312 = vadd.f32 %v11304, %v11307
    %v11313 = vadd.f32 %v11305, %v11309
    %v11314 = vadd.f32 %v11312, %v11195
    %v11315 = vadd.f32 %v11313, %v11197
    %v11316 = vadd.f32 %v11314, %v11203
    %v11317 = vadd.f32 %v11315, %v11205
    %11318 = vrot.lane.b32.xlu0 %v11098, 42
    %v11319 = vpop.permute.xlu0 %11318
    %11320 = vrot.lane.b32.xlu0 %v11100, 42
    %v11321 = vpop.permute.xlu0 %11320
    %v11324 = vadd.f32 %v11316, %v11319
    %v11325 = vadd.f32 %v11317, %v11321
    %11326 = vrot.lane.b32.xlu0 %v11098, 19
    %v11327 = vpop.permute.xlu0 %11326
    %11328 = vrot.lane.b32.xlu0 %v11100, 19
    %v11329 = vpop.permute.xlu0 %11328
    %v11332 = vadd.f32 %v11324, %v11327
    %v11333 = vadd.f32 %v11325, %v11329
    %v11334 = vadd.f32 %v11332, %v11227
    %v11335 = vadd.f32 %v11333, %v11229
    %v11336 = vadd.f32 %v11334, %v11235
    %v11337 = vadd.f32 %v11335, %v11237
    %11338 = vrot.lane.b32.xlu0 %v11098, 41
    %v11339 = vpop.permute.xlu0 %11338
    %11340 = vrot.lane.b32.xlu0 %v11100, 41
    %v11341 = vpop.permute.xlu0 %11340
    %v11344 = vadd.f32 %v11336, %v11339
    %v11345 = vadd.f32 %v11337, %v11341
    %11346 = vrot.lane.b32.xlu0 %v11098, 18
    %v11347 = vpop.permute.xlu0 %11346
    %11348 = vrot.lane.b32.xlu0 %v11100, 18
    %v11349 = vpop.permute.xlu0 %11348
    %v11352 = vadd.f32 %v11344, %v11347
    %v11353 = vadd.f32 %v11345, %v11349
    %11356 = vrot.lane.b32.xlu0 %v11256, 2
    %v11357 = vpop.permute.xlu0 %11356
    %11358 = vrot.lane.b32.xlu0 %v11257, 2
    %v11359 = vpop.permute.xlu0 %11358
    %v11362 = vsel %vm10310, 0.0, %v11357
    %v11363 = vsel %vm10310, 0.0, %v11359
    %11366 = vrot.lane.b32.xlu0 %v11352, 84
    %v11367 = vpop.permute.xlu0 %11366
    %11368 = vrot.lane.b32.xlu0 %v11353, 84
    %v11369 = vpop.permute.xlu0 %11368
    %v11372 = vsel %vm10310, 0.0, %v11367
    %v11373 = vsel %vm10310, 0.0, %v11369
    %11374 = vrot.lane.b32.xlu0 %v11256, 1
    %v11375 = vpop.permute.xlu0 %11374
    %11376 = vrot.lane.b32.xlu0 %v11257, 1
    %v11377 = vpop.permute.xlu0 %11376
    %v11380 = vsel %vm10360, 0.0, %v11375
    %v11381 = vsel %vm10360, 0.0, %v11377
    %11382 = vrot.lane.b32.xlu0 %v11352, 83
    %v11383 = vpop.permute.xlu0 %11382
    %11384 = vrot.lane.b32.xlu0 %v11353, 83
    %v11385 = vpop.permute.xlu0 %11384
    %v11388 = vsel %vm10360, 0.0, %v11383
    %v11389 = vsel %vm10360, 0.0, %v11385
    %11390 = vrot.lane.b32.xlu0 %v11256, 127
    %v11391 = vpop.permute.xlu0 %11390
    %11392 = vrot.lane.b32.xlu0 %v11257, 127
    %v11393 = vpop.permute.xlu0 %11392
    %vm11396 = vcmask 138240
    %v11397 = vsel %vm11396, %v11391, 0.0
    %v11398 = vsel %vm11396, %v11393, 0.0
    %11399 = vrot.lane.b32.xlu0 %v11352, 81
    %v11400 = vpop.permute.xlu0 %11399
    %11401 = vrot.lane.b32.xlu0 %v11353, 81
    %v11402 = vpop.permute.xlu0 %11401
    %v11405 = vsel %vm11396, %v11400, 0.0
    %v11406 = vsel %vm11396, %v11402, 0.0
    %11407 = vrot.lane.b32.xlu0 %v11256, 126
    %v11408 = vpop.permute.xlu0 %11407
    %11409 = vrot.lane.b32.xlu0 %v11257, 126
    %v11410 = vpop.permute.xlu0 %11409
    %vm11413 = vcmask 130048
    %v11414 = vsel %vm11413, %v11408, 0.0
    %v11415 = vsel %vm11413, %v11410, 0.0
    %11416 = vrot.lane.b32.xlu0 %v11352, 80
    %v11417 = vpop.permute.xlu0 %11416
    %11418 = vrot.lane.b32.xlu0 %v11353, 80
    %v11419 = vpop.permute.xlu0 %11418
    %v11422 = vsel %vm11413, %v11417, 0.0
    %v11423 = vsel %vm11413, %v11419, 0.0
    %11424 = vrot.lane.b32.xlu0 %v11352, 82
    %v11425 = vpop.permute.xlu0 %11424
    %11426 = vrot.lane.b32.xlu0 %v11353, 82
    %v11427 = vpop.permute.xlu0 %11426
    %11432 = vrot.lane.b32.xlu0 %v11099, 105
    %v11433 = vpop.permute.xlu0 %11432
    %11434 = vrot.lane.b32.xlu0 %v11101, 105
    %v11435 = vpop.permute.xlu0 %11434
    %vm11436 = vcmask 859136
    %v11437 = vsel %vm11436, %v11107, %v11433
    %v11438 = vsel %vm11436, %v11109, %v11435
    %v11441 = vadd.f32 %v11102, %v11437
    %v11442 = vadd.f32 %v11103, %v11438
    %11443 = vrot.lane.b32.xlu0 %v11099, 82
    %v11444 = vpop.permute.xlu0 %11443
    %11445 = vrot.lane.b32.xlu0 %v11101, 82
    %v11446 = vpop.permute.xlu0 %11445
    %v11449 = vadd.f32 %v11441, %v11444
    %v11450 = vadd.f32 %v11442, %v11446
    %11451 = vrot.lane.b32.xlu0 %v11099, 59
    %v11452 = vpop.permute.xlu0 %11451
    %11453 = vrot.lane.b32.xlu0 %v11101, 59
    %v11454 = vpop.permute.xlu0 %11453
    %v11457 = vadd.f32 %v11449, %v11452
    %v11458 = vadd.f32 %v11450, %v11454
    %v11459 = vadd.f32 %v11457, %v11131
    %v11460 = vadd.f32 %v11458, %v11133
    %11461 = vrot.lane.b32.xlu0 %v11099, 104
    %v11462 = vpop.permute.xlu0 %11461
    %11463 = vrot.lane.b32.xlu0 %v11101, 104
    %v11464 = vpop.permute.xlu0 %11463
    %vm11465 = vcmask 850944
    %v11466 = vsel %vm11465, %v11139, %v11462
    %v11467 = vsel %vm11465, %v11141, %v11464
    %v11470 = vadd.f32 %v11459, %v11466
    %v11471 = vadd.f32 %v11460, %v11467
    %11472 = vrot.lane.b32.xlu0 %v11099, 81
    %v11473 = vpop.permute.xlu0 %11472
    %11474 = vrot.lane.b32.xlu0 %v11101, 81
    %v11475 = vpop.permute.xlu0 %11474
    %v11478 = vadd.f32 %v11470, %v11473
    %v11479 = vadd.f32 %v11471, %v11475
    %11480 = vrot.lane.b32.xlu0 %v11099, 58
    %v11481 = vpop.permute.xlu0 %11480
    %11482 = vrot.lane.b32.xlu0 %v11101, 58
    %v11483 = vpop.permute.xlu0 %11482
    %v11486 = vadd.f32 %v11478, %v11481
    %v11487 = vadd.f32 %v11479, %v11483
    %v11488 = vadd.f32 %v11486, %v11163
    %v11489 = vadd.f32 %v11487, %v11165
    %11490 = vrot.lane.b32.xlu0 %v11099, 103
    %v11491 = vpop.permute.xlu0 %11490
    %11492 = vrot.lane.b32.xlu0 %v11101, 103
    %v11493 = vpop.permute.xlu0 %11492
    %vm11494 = vcmask 842752
    %v11495 = vsel %vm11494, %v11171, %v11491
    %v11496 = vsel %vm11494, %v11173, %v11493
    %v11499 = vadd.f32 %v11488, %v11495
    %v11500 = vadd.f32 %v11489, %v11496
    %11501 = vrot.lane.b32.xlu0 %v11099, 80
    %v11502 = vpop.permute.xlu0 %11501
    %11503 = vrot.lane.b32.xlu0 %v11101, 80
    %v11504 = vpop.permute.xlu0 %11503
    %v11507 = vadd.f32 %v11499, %v11502
    %v11508 = vadd.f32 %v11500, %v11504
    %11509 = vrot.lane.b32.xlu0 %v11099, 57
    %v11510 = vpop.permute.xlu0 %11509
    %11511 = vrot.lane.b32.xlu0 %v11101, 57
    %v11512 = vpop.permute.xlu0 %11511
    %v11515 = vadd.f32 %v11507, %v11510
    %v11516 = vadd.f32 %v11508, %v11512
    %v11517 = vadd.f32 %v11515, %v11195
    %v11518 = vadd.f32 %v11516, %v11197
    %11519 = vrot.lane.b32.xlu0 %v11099, 102
    %v11520 = vpop.permute.xlu0 %11519
    %11521 = vrot.lane.b32.xlu0 %v11101, 102
    %v11522 = vpop.permute.xlu0 %11521
    %vm11523 = vcmask 834560
    %v11524 = vsel %vm11523, %v11203, %v11520
    %v11525 = vsel %vm11523, %v11205, %v11522
    %v11528 = vadd.f32 %v11517, %v11524
    %v11529 = vadd.f32 %v11518, %v11525
    %11530 = vrot.lane.b32.xlu0 %v11099, 79
    %v11531 = vpop.permute.xlu0 %11530
    %11532 = vrot.lane.b32.xlu0 %v11101, 79
    %v11533 = vpop.permute.xlu0 %11532
    %v11536 = vadd.f32 %v11528, %v11531
    %v11537 = vadd.f32 %v11529, %v11533
    %11538 = vrot.lane.b32.xlu0 %v11099, 56
    %v11539 = vpop.permute.xlu0 %11538
    %11540 = vrot.lane.b32.xlu0 %v11101, 56
    %v11541 = vpop.permute.xlu0 %11540
    %v11544 = vadd.f32 %v11536, %v11539
    %v11545 = vadd.f32 %v11537, %v11541
    %v11546 = vadd.f32 %v11544, %v11227
    %v11547 = vadd.f32 %v11545, %v11229
    %11548 = vrot.lane.b32.xlu0 %v11099, 101
    %v11549 = vpop.permute.xlu0 %11548
    %11550 = vrot.lane.b32.xlu0 %v11101, 101
    %v11551 = vpop.permute.xlu0 %11550
    %vm11552 = vcmask 826368
    %v11553 = vsel %vm11552, %v11235, %v11549
    %v11554 = vsel %vm11552, %v11237, %v11551
    %v11557 = vadd.f32 %v11546, %v11553
    %v11558 = vadd.f32 %v11547, %v11554
    %11559 = vrot.lane.b32.xlu0 %v11099, 78
    %v11560 = vpop.permute.xlu0 %11559
    %11561 = vrot.lane.b32.xlu0 %v11101, 78
    %v11562 = vpop.permute.xlu0 %11561
    %v11565 = vadd.f32 %v11557, %v11560
    %v11566 = vadd.f32 %v11558, %v11562
    %11567 = vrot.lane.b32.xlu0 %v11099, 55
    %v11568 = vpop.permute.xlu0 %11567
    %11569 = vrot.lane.b32.xlu0 %v11101, 55
    %v11570 = vpop.permute.xlu0 %11569
    %v11573 = vadd.f32 %v11565, %v11568
    %v11574 = vadd.f32 %v11566, %v11570
    %v11575 = vadd.f32 %v11099, 0.0
    %v11576 = vadd.f32 %v11101, 0.0
    %v11579 = vadd.f32 %v11575, %v11433
    %v11580 = vadd.f32 %v11576, %v11435
    %v11581 = vadd.f32 %v11579, %v11259
    %v11582 = vadd.f32 %v11580, %v11261
    %11583 = vrot.lane.b32.xlu0 %v11099, 22
    %v11584 = vpop.permute.xlu0 %11583
    %11585 = vrot.lane.b32.xlu0 %v11101, 22
    %v11586 = vpop.permute.xlu0 %11585
    %v11587 = vsel %vm10319, %v11267, %v11584
    %v11588 = vsel %vm10319, %v11269, %v11586
    %v11591 = vadd.f32 %v11581, %v11587
    %v11592 = vadd.f32 %v11582, %v11588
    %11593 = vrot.lane.b32.xlu0 %v11099, 127
    %v11594 = vpop.permute.xlu0 %11593
    %11595 = vrot.lane.b32.xlu0 %v11101, 127
    %v11596 = vpop.permute.xlu0 %11595
    %v11599 = vadd.f32 %v11591, %v11594
    %v11600 = vadd.f32 %v11592, %v11596
    %v11603 = vadd.f32 %v11599, %v11462
    %v11604 = vadd.f32 %v11600, %v11464
    %v11605 = vadd.f32 %v11603, %v11279
    %v11606 = vadd.f32 %v11604, %v11281
    %11607 = vrot.lane.b32.xlu0 %v11099, 21
    %v11608 = vpop.permute.xlu0 %11607
    %11609 = vrot.lane.b32.xlu0 %v11101, 21
    %v11610 = vpop.permute.xlu0 %11609
    %v11611 = vsel %vm10417, %v11287, %v11608
    %v11612 = vsel %vm10417, %v11289, %v11610
    %v11615 = vadd.f32 %v11605, %v11611
    %v11616 = vadd.f32 %v11606, %v11612
    %11617 = vrot.lane.b32.xlu0 %v11099, 126
    %v11618 = vpop.permute.xlu0 %11617
    %11619 = vrot.lane.b32.xlu0 %v11101, 126
    %v11620 = vpop.permute.xlu0 %11619
    %v11623 = vadd.f32 %v11615, %v11618
    %v11624 = vadd.f32 %v11616, %v11620
    %v11627 = vadd.f32 %v11623, %v11491
    %v11628 = vadd.f32 %v11624, %v11493
    %v11629 = vadd.f32 %v11627, %v11299
    %v11630 = vadd.f32 %v11628, %v11301
    %11631 = vrot.lane.b32.xlu0 %v11099, 20
    %v11632 = vpop.permute.xlu0 %11631
    %11633 = vrot.lane.b32.xlu0 %v11101, 20
    %v11634 = vpop.permute.xlu0 %11633
    %vm11635 = vcmask 162816
    %v11636 = vsel %vm11635, %v11307, %v11632
    %v11637 = vsel %vm11635, %v11309, %v11634
    %v11640 = vadd.f32 %v11629, %v11636
    %v11641 = vadd.f32 %v11630, %v11637
    %11642 = vrot.lane.b32.xlu0 %v11099, 125
    %v11643 = vpop.permute.xlu0 %11642
    %11644 = vrot.lane.b32.xlu0 %v11101, 125
    %v11645 = vpop.permute.xlu0 %11644
    %v11648 = vadd.f32 %v11640, %v11643
    %v11649 = vadd.f32 %v11641, %v11645
    %v11652 = vadd.f32 %v11648, %v11520
    %v11653 = vadd.f32 %v11649, %v11522
    %v11654 = vadd.f32 %v11652, %v11319
    %v11655 = vadd.f32 %v11653, %v11321
    %11656 = vrot.lane.b32.xlu0 %v11099, 19
    %v11657 = vpop.permute.xlu0 %11656
    %11658 = vrot.lane.b32.xlu0 %v11101, 19
    %v11659 = vpop.permute.xlu0 %11658
    %vm11660 = vcmask 154624
    %v11661 = vsel %vm11660, %v11327, %v11657
    %v11662 = vsel %vm11660, %v11329, %v11659
    %v11665 = vadd.f32 %v11654, %v11661
    %v11666 = vadd.f32 %v11655, %v11662
    %11667 = vrot.lane.b32.xlu0 %v11099, 124
    %v11668 = vpop.permute.xlu0 %11667
    %11669 = vrot.lane.b32.xlu0 %v11101, 124
    %v11670 = vpop.permute.xlu0 %11669
    %v11673 = vadd.f32 %v11665, %v11668
    %v11674 = vadd.f32 %v11666, %v11670
    %v11677 = vadd.f32 %v11673, %v11549
    %v11678 = vadd.f32 %v11674, %v11551
    %v11679 = vadd.f32 %v11677, %v11339
    %v11680 = vadd.f32 %v11678, %v11341
    %11681 = vrot.lane.b32.xlu0 %v11099, 18
    %v11682 = vpop.permute.xlu0 %11681
    %11683 = vrot.lane.b32.xlu0 %v11101, 18
    %v11684 = vpop.permute.xlu0 %11683
    %vm11685 = vcmask 146432
    %v11686 = vsel %vm11685, %v11347, %v11682
    %v11687 = vsel %vm11685, %v11349, %v11684
    %v11690 = vadd.f32 %v11679, %v11686
    %v11691 = vadd.f32 %v11680, %v11687
    %11694 = vrot.lane.b32.xlu0 %v11573, 39
    %v11695 = vpop.permute.xlu0 %11694
    %11696 = vrot.lane.b32.xlu0 %v11574, 39
    %v11697 = vpop.permute.xlu0 %11696
    %v11700 = vsel %vm10310, 0.0, %v11695
    %v11701 = vsel %vm10310, 0.0, %v11697
    %11704 = vrot.lane.b32.xlu0 %v11690, 121
    %v11705 = vpop.permute.xlu0 %11704
    %11706 = vrot.lane.b32.xlu0 %v11691, 121
    %v11707 = vpop.permute.xlu0 %11706
    %v11710 = vsel %vm10310, 0.0, %v11705
    %v11711 = vsel %vm10310, 0.0, %v11707
    %11712 = vrot.lane.b32.xlu0 %v11573, 38
    %v11713 = vpop.permute.xlu0 %11712
    %11714 = vrot.lane.b32.xlu0 %v11574, 38
    %v11715 = vpop.permute.xlu0 %11714
    %v11718 = vsel %vm10360, 0.0, %v11713
    %v11719 = vsel %vm10360, 0.0, %v11715
    %11720 = vrot.lane.b32.xlu0 %v11690, 120
    %v11721 = vpop.permute.xlu0 %11720
    %11722 = vrot.lane.b32.xlu0 %v11691, 120
    %v11723 = vpop.permute.xlu0 %11722
    %v11726 = vsel %vm10360, 0.0, %v11721
    %v11727 = vsel %vm10360, 0.0, %v11723
    %11728 = vrot.lane.b32.xlu0 %v11573, 36
    %v11729 = vpop.permute.xlu0 %11728
    %11730 = vrot.lane.b32.xlu0 %v11574, 36
    %v11731 = vpop.permute.xlu0 %11730
    %v11734 = vsel %vm11396, %v11729, 0.0
    %v11735 = vsel %vm11396, %v11731, 0.0
    %11736 = vrot.lane.b32.xlu0 %v11690, 118
    %v11737 = vpop.permute.xlu0 %11736
    %11738 = vrot.lane.b32.xlu0 %v11691, 118
    %v11739 = vpop.permute.xlu0 %11738
    %v11742 = vsel %vm11396, %v11737, 0.0
    %v11743 = vsel %vm11396, %v11739, 0.0
    %11744 = vrot.lane.b32.xlu0 %v11573, 35
    %v11745 = vpop.permute.xlu0 %11744
    %11746 = vrot.lane.b32.xlu0 %v11574, 35
    %v11747 = vpop.permute.xlu0 %11746
    %v11750 = vsel %vm11413, %v11745, 0.0
    %v11751 = vsel %vm11413, %v11747, 0.0
    %11752 = vrot.lane.b32.xlu0 %v11690, 117
    %v11753 = vpop.permute.xlu0 %11752
    %11754 = vrot.lane.b32.xlu0 %v11691, 117
    %v11755 = vpop.permute.xlu0 %11754
    %v11758 = vsel %vm11413, %v11753, 0.0
    %v11759 = vsel %vm11413, %v11755, 0.0
    %11760 = vrot.lane.b32.xlu0 %v11573, 37
    %v11761 = vpop.permute.xlu0 %11760
    %11762 = vrot.lane.b32.xlu0 %v11574, 37
    %v11763 = vpop.permute.xlu0 %11762
    %11764 = vrot.lane.b32.xlu0 %v11690, 119
    %v11765 = vpop.permute.xlu0 %11764
    %11766 = vrot.lane.b32.xlu0 %v11691, 119
    %v11767 = vpop.permute.xlu0 %11766
    %11784 = vrot.lane.b32.xlu0 %v11700, 18
    %v11785 = vpop.permute.xlu0 %11784
    %11786 = vrot.lane.b32.xlu0 %v11701, 18
    %v11787 = vpop.permute.xlu0 %11786
    %11788 = vrot.lane.b32.xlu0 %v11710, 18
    %v11789 = vpop.permute.xlu0 %11788
    %11790 = vrot.lane.b32.xlu0 %v11711, 18
    %v11791 = vpop.permute.xlu0 %11790
    %11792 = vrot.lane.b32.xlu0 %v11718, 18
    %v11793 = vpop.permute.xlu0 %11792
    %11794 = vrot.lane.b32.xlu0 %v11719, 18
    %v11795 = vpop.permute.xlu0 %11794
    %11796 = vrot.lane.b32.xlu0 %v11726, 18
    %v11797 = vpop.permute.xlu0 %11796
    %11798 = vrot.lane.b32.xlu0 %v11727, 18
    %v11799 = vpop.permute.xlu0 %11798
    %11800 = vrot.lane.b32.xlu0 %v11761, 18
    %v11801 = vpop.permute.xlu0 %11800
    %11802 = vrot.lane.b32.xlu0 %v11763, 18
    %v11803 = vpop.permute.xlu0 %11802
    %11804 = vrot.lane.b32.xlu0 %v11765, 18
    %v11805 = vpop.permute.xlu0 %11804
    %11806 = vrot.lane.b32.xlu0 %v11767, 18
    %v11807 = vpop.permute.xlu0 %11806
    %11808 = vrot.lane.b32.xlu0 %v11734, 18
    %v11809 = vpop.permute.xlu0 %11808
    %11810 = vrot.lane.b32.xlu0 %v11735, 18
    %v11811 = vpop.permute.xlu0 %11810
    %11812 = vrot.lane.b32.xlu0 %v11742, 18
    %v11813 = vpop.permute.xlu0 %11812
    %11814 = vrot.lane.b32.xlu0 %v11743, 18
    %v11815 = vpop.permute.xlu0 %11814
    %11816 = vrot.lane.b32.xlu0 %v11750, 18
    %v11817 = vpop.permute.xlu0 %11816
    %11818 = vrot.lane.b32.xlu0 %v11751, 18
    %v11819 = vpop.permute.xlu0 %11818
    %11820 = vrot.lane.b32.xlu0 %v11758, 18
    %v11821 = vpop.permute.xlu0 %11820
    %11822 = vrot.lane.b32.xlu0 %v11759, 18
    %v11823 = vpop.permute.xlu0 %11822
    %v11844 = vsel %vm11685, %v11362, %v11785
    %v11845 = vsel %vm11685, %v11363, %v11787
    %v11846 = vsel %vm11685, %v11372, %v11789
    %v11847 = vsel %vm11685, %v11373, %v11791
    %v11848 = vsel %vm11685, %v11380, %v11793
    %v11849 = vsel %vm11685, %v11381, %v11795
    %v11850 = vsel %vm11685, %v11388, %v11797
    %v11851 = vsel %vm11685, %v11389, %v11799
    %v11852 = vsel %vm11685, %v11256, %v11801
    %v11853 = vsel %vm11685, %v11257, %v11803
    %v11854 = vsel %vm11685, %v11425, %v11805
    %v11855 = vsel %vm11685, %v11427, %v11807
    %v11856 = vsel %vm11685, %v11397, %v11809
    %v11857 = vsel %vm11685, %v11398, %v11811
    %v11858 = vsel %vm11685, %v11405, %v11813
    %v11859 = vsel %vm11685, %v11406, %v11815
    %v11860 = vsel %vm11685, %v11414, %v11817
    %v11861 = vsel %vm11685, %v11415, %v11819
    %v11862 = vsel %vm11685, %v11422, %v11821
    %v11863 = vsel %vm11685, %v11423, %v11823
    %11865 = vset.pattern.permute.xlu0 0
    %11866 = vperm.xlu0 %11865, %v72
    %v11867 = vpop.permute.xlu0 %11866
    %11870 = vset.pattern.permute.xlu0 0
    %11871 = vperm.xlu0 %11870, %v73
    %v11872 = vpop.permute.xlu0 %11871
    %v11875 = vsel %vm10944, %v69, 0
    %v11878 = vsel %vm10944, %v71, 0
    %11880 = vmatpush.msra.mxu0 %v11859
    %11881 = vmatpush.msra.mxu0 %v11858
    %11882 = vmatpush.msra.mxu0 %v11857
    %11883 = vmatpush.msra.mxu0 %v11856
    %11884 = vmatpush.msra.mxu0 %v11855
    %11885 = vmatpush.msra.mxu0 %v11854
    %11886 = vmatpush.msra.mxu0 %v11853
    %11887 = vmatpush.msra.mxu0 %v11852
    %11888 = vmatpush.msra.mxu0 %v11851
    %11889 = vmatpush.msra.mxu0 %v11850
    %11890 = vmatpush.msra.mxu0 %v11849
    %11891 = vmatpush.msra.mxu0 %v11848
    %11892 = vmatpush.msra.mxu0 %v11847
    %11893 = vmatpush.msra.mxu0 %v11846
    %11894 = vmatpush.msra.mxu0 %v11845
    %11895 = vmatpush.msra.mxu0 %v11844
    %11896 = vmatmul.f32.gmra.mxu0 %v68
    %v11897 = vpop.f32.mrf.mxu0
    %v11898 = vadd.f32 %v11867, %v11897
    %11899 = vmatmul.f32.gmra.mxu0 %v70
    %v11900 = vpop.f32.mrf.mxu0
    %v11901 = vadd.f32 %v11872, %v11900
    %11902 = vdwg.mxu0
    %11903 = vmatpush.msra.mxu0 0.0
    %11904 = vmatpush.msra.mxu0 0.0
    %11905 = vmatpush.msra.mxu0 0.0
    %11906 = vmatpush.msra.mxu0 0.0
    %11907 = vmatpush.msra.mxu0 0.0
    %11908 = vmatpush.msra.mxu0 0.0
    %11909 = vmatpush.msra.mxu0 0.0
    %11910 = vmatpush.msra.mxu0 0.0
    %11911 = vmatpush.msra.mxu0 0.0
    %11912 = vmatpush.msra.mxu0 0.0
    %11913 = vmatpush.msra.mxu0 0.0
    %11914 = vmatpush.msra.mxu0 0.0
    %11915 = vmatpush.msra.mxu0 %v11863
    %11916 = vmatpush.msra.mxu0 %v11862
    %11917 = vmatpush.msra.mxu0 %v11861
    %11918 = vmatpush.msra.mxu0 %v11860
    %11919 = vmatmul.f32.gmra.mxu0 %v11875
    %v11920 = vpop.f32.mrf.mxu0
    %v11921 = vadd.f32 %v11898, %v11920
    %11922 = vmatmul.f32.gmra.mxu0 %v11878
    %v11923 = vpop.f32.mrf.mxu0
    %v11924 = vadd.f32 %v11901, %v11923
    %11925 = vdwg.mxu0
    %11926 = vst.msk [vmem:[#allocation5] sm:$0xff] %vm11685, %v11921
    %11927 = vst.msk [vmem:[#allocation5 + $0x8] sm:$0xff] %vm11685, %v11924
    %11930 = vrot.lane.b32.xlu0 %v11921, 110
    %v11931 = vpop.permute.xlu0 %11930
    %11932 = vrot.lane.b32.xlu0 %v11924, 110
    %v11933 = vpop.permute.xlu0 %11932
    %s11936 = scalar_lea.vmem [#allocation5], 16
    %11937 = vst.msk [vmem:[%s11936] sm:$0xff] %vm11685, %v11931
    %11938 = vst.msk [vmem:[%s11936 + $0x8] sm:$0xff] %vm11685, %v11933
    // Predicated region
    $region38: #{tpu_custom_call.1} parent=1 // pred_check
      _
    $region39: #{tpu_custom_call.1} parent=1 // pred_check_branch
      %11940 = sbr.rel (0) target = $region41
    $region40: #{tpu_custom_call.1} parent=1 // pred_region
      %11942 = vsyncadd [#allocation4], 0
      %s11943 = sshll.u32 [#allocation5], 4
      %s11944 = int_to_ptr.vmem [resolvable:$true] %s11943
      %s11945 = sshll.u32 %s8, 4
      %s11946 = int_to_ptr.hbm [resolvable:$true] %s11945
      %11951 = dma.vmem_to_hbm [thread:$0]  %s11944, 512, %s11946, [#allocation4], 128, 128, 8
    $region41: #{tpu_custom_call.1} parent=1 // pred_fallthru
      _
    // Predicated region
    $region42: #{tpu_custom_call.1} parent=1 // pred_check
      _
    $region43: #{tpu_custom_call.1} parent=1 // pred_check_branch
      %11953 = sbr.rel (0) target = $region45
    $region44: #{tpu_custom_call.1} parent=1 // pred_region
      %11955 = dma.done [#allocation4], 512
    $region45: #{tpu_custom_call.1} parent=1 // pred_fallthru
      _
    %11956 = vsyncpa [#allocation3], 1
    %11957 = vsyncpa [#allocation4], 1

</llo_original>
